<compile_context>
chip_gen: v5e
topology: v5e:2x2
jax: 0.10.0
libtpu: 0.0.40
codegen_flags: <defaults>
</compile_context>

<pallas_src>
import functools

import jax
import jax.numpy as jnp
from jax import lax
from jax.experimental import pallas as pl
from jax.experimental.pallas import tpu as pltpu

# ----------------------------- model config (small) -----------------------------
VOCAB = 64
MAX_POS = 16
TYPE_VOCAB = 2
HIDDEN = 128
NUM_LAYERS = 2
NUM_HEADS = 4
HEAD_DIM = HIDDEN // NUM_HEADS
INTERMEDIATE = 256
LN_EPS = 1e-12
MASK_NEG = -1e9


# ----------------------------- in-kernel helpers ---------------------------------
def _ln(x, g, b):
    """Row-wise LayerNorm over the last axis (f32 statistics)."""
    mu = jnp.mean(x, axis=-1, keepdims=True)
    c = x - mu
    var = jnp.mean(c * c, axis=-1, keepdims=True)
    return c * lax.rsqrt(var + LN_EPS) * g + b


def _gelu(x):
    # tanh-approximate GELU.
    # TODO(synk): HuggingFace BERT/BGE uses the exact erf GELU; diff is ~1e-3 level.
    return 0.5 * x * (1.0 + jnp.tanh(0.7978845608028654 * (x + 0.044715 * x * x * x)))


# ----------------------------- fused encoder kernel ------------------------------
def _encoder_kernel(x_ref, bias_ref, embg_ref, embb_ref,
                    wqkv_ref, bqkv_ref, wo_ref, bo_ref, ln1g_ref, ln1b_ref,
                    wi_ref, bi_ref, wf_ref, bf_ref, ln2g_ref, ln2b_ref,
                    poolw_ref, poolb_ref,
                    pooled_ref, x_sc,
                    *, bt, seq, num_heads, head_dim):
    """Grid (b_block, layer): Bt sequences, one encoder layer per step.

    x_ref     : (Bt, S, H)  bf16  raw embeddings (word+pos+type) for this batch block
    bias_ref  : (Bt, 1, S)  f32   additive attention-mask bias
    weights   : per-layer stacks sliced to one layer (leading dim squeezed); matmuls bf16
    pooled_ref: (Bt, H)     f32   output, written only at the last layer
    x_sc      : (Bt*S, H)   f32   VMEM scratch carrying activations across layers

    NOTE: the layer axis MUST remain the innermost grid axis and "arbitrary" --
    x_sc is a sequential carry over layers for the current batch block.
    """
    l = pl.program_id(1)
    num_l = pl.num_programs(1)
    H = num_heads * head_dim
    M = bt * seq
    bf16 = jnp.bfloat16

    # Layer 0: embedding LayerNorm; park activations in VMEM for all layers.
    @pl.when(l == 0)
    def _():
        x0 = x_ref[...].reshape(M, H).astype(jnp.float32)
        x_sc[...] = _ln(x0, embg_ref[...], embb_ref[...])

    x = x_sc[...]                                   # (M, H) f32, VMEM-resident
    xb = x.astype(bf16)

    # Fused QKV projection with M = Bt*S rows (1/sqrt(hd) pre-folded into Q columns).
    qkv = jnp.dot(xb, wqkv_ref[...], preferred_element_type=jnp.float32) + bqkv_ref[...]

    def split_heads(base):
        # (M, H-slice) -> (num_heads*Bt, S, head_dim), head-major on the batch axis.
        parts = [qkv[:, base + h * head_dim: base + (h + 1) * head_dim]
                 .reshape(bt, seq, head_dim) for h in range(num_heads)]
        return (jnp.stack(parts, axis=0)
                .reshape(num_heads * bt, seq, head_dim).astype(bf16))

    qh = split_heads(0)
    kh = split_heads(H)
    vh = split_heads(2 * H)

    # Single batched dot_general over (head, batch) for scores and for P @ V.
    s = lax.dot_general(qh, kh, (((2,), (2,)), ((0,), (0,))),
                        preferred_element_type=jnp.float32)        # (nH*Bt, S, S)
    bias = jnp.broadcast_to(bias_ref[...][None], (num_heads, bt, 1, seq))
    s = s + bias.reshape(num_heads * bt, 1, seq)
    m = jnp.max(s, axis=-1, keepdims=True)
    p = jnp.exp(s - m)
    p = p * pl.reciprocal(jnp.sum(p, axis=-1, keepdims=True), approx=True)

    ctx = lax.dot_general(p.astype(bf16), vh, (((2,), (1,)), ((0,), (0,))),
                          preferred_element_type=jnp.float32)      # (nH*Bt, S, hd)

    # Output projection fused per head (wo pre-split as (nH, hd, H) at init):
    # attn = sum_h ctx_h @ wo_h  -- no lane-dim concat of head outputs.
    ctx = ctx.reshape(num_heads, M, head_dim).astype(bf16)         # (nH, M, hd)
    attn = lax.dot_general(ctx, wo_ref[...], (((2,), (1,)), ((0,), (0,))),
                           preferred_element_type=jnp.float32)     # (nH, M, H)
    attn = jnp.sum(attn, axis=0) + bo_ref[...]

    # Residual + LN1 (fused epilogue).
    x1 = _ln(x + attn, ln1g_ref[...], ln1b_ref[...])

    # FFN (GELU in f32) + residual + LN2 (fused epilogue).
    ff = jnp.dot(x1.astype(bf16), wi_ref[...],
                 preferred_element_type=jnp.float32) + bi_ref[...]
    ff = _gelu(ff)
    ff = jnp.dot(ff.astype(bf16), wf_ref[...],
                 preferred_element_type=jnp.float32) + bf_ref[...]
    x2 = _ln(x1 + ff, ln2g_ref[...], ln2b_ref[...])

    x_sc[...] = x2                                  # carry to the next layer

    # Last layer: fold the BERT pooler (tanh(W @ CLS + b)) into the epilogue.
    @pl.when(l == num_l - 1)
    def _():
        cls = x2.reshape(bt, seq, H)[:, 0:1, :].reshape(bt, H)     # CLS rows
        pooled = jnp.tanh(
            jnp.dot(cls.astype(bf16), poolw_ref[...],
                    preferred_element_type=jnp.float32) + poolb_ref[...])
        pooled_ref[...] = pooled


# ----------------------------- parameter init ------------------------------------
def init_params(key):
    cnt = [0]

    def nrm(shape, scale=0.02):
        cnt[0] += 1
        return scale * jax.random.normal(jax.random.fold_in(key, cnt[0]), shape,
                                         dtype=jnp.float32)

    att_scale = 1.0 / float(HEAD_DIM) ** 0.5
    layers = []
    for _ in range(NUM_LAYERS):
        layers.append({
            "wq": nrm((HIDDEN, HIDDEN)), "bq": jnp.zeros((HIDDEN,), jnp.float32),
            "wk": nrm((HIDDEN, HIDDEN)), "bk": jnp.zeros((HIDDEN,), jnp.float32),
            "wv": nrm((HIDDEN, HIDDEN)), "bv": jnp.zeros((HIDDEN,), jnp.float32),
            "wo": nrm((HIDDEN, HIDDEN)), "bo": jnp.zeros((HIDDEN,), jnp.float32),
            "ln1_g": jnp.ones((HIDDEN,), jnp.float32),
            "ln1_b": jnp.zeros((HIDDEN,), jnp.float32),
            "wi": nrm((HIDDEN, INTERMEDIATE)),
            "bi": jnp.zeros((INTERMEDIATE,), jnp.float32),
            "wf": nrm((INTERMEDIATE, HIDDEN)),
            "bf": jnp.zeros((HIDDEN,), jnp.float32),
            "ln2_g": jnp.ones((HIDDEN,), jnp.float32),
            "ln2_b": jnp.zeros((HIDDEN,), jnp.float32),
        })

    def stack(f, dtype=jnp.float32):
        return jnp.stack([f(lyr) for lyr in layers]).astype(dtype)

    params = {
        "word_emb": nrm((VOCAB, HIDDEN)),
        "pos_emb": nrm((MAX_POS, HIDDEN)),
        "type_emb": nrm((TYPE_VOCAB, HIDDEN)),
        "emb_ln_g": jnp.ones((1, HIDDEN), jnp.float32),
        "emb_ln_b": jnp.zeros((1, HIDDEN), jnp.float32),
        # Matmul weights stored in bf16 (MXU-native, half the HBM traffic);
        # biases / LayerNorm params stay f32.
        "pool_w": nrm((HIDDEN, HIDDEN)).astype(jnp.bfloat16),
        "pool_b": jnp.zeros((1, HIDDEN), jnp.float32),
        # 1/sqrt(head_dim) folded into the Q columns (weight AND bias).
        "wqkv": stack(lambda l: jnp.concatenate(
            [l["wq"] * att_scale, l["wk"], l["wv"]], axis=1), jnp.bfloat16),  # (L,H,3H)
        "bqkv": stack(lambda l: jnp.concatenate(
            [l["bq"] * att_scale, l["bk"], l["bv"]])[None, :]),               # (L,1,3H)
        # Attention output projection pre-split per head: (L, nH, hd, H).
        "wo": stack(lambda l: l["wo"].reshape(NUM_HEADS, HEAD_DIM, HIDDEN),
                    jnp.bfloat16),
        "bo": stack(lambda l: l["bo"][None, :]),
        "ln1_g": stack(lambda l: l["ln1_g"][None, :]),
        "ln1_b": stack(lambda l: l["ln1_b"][None, :]),
        "wi": stack(lambda l: l["wi"], jnp.bfloat16),                  # (L, H, I)
        "bi": stack(lambda l: l["bi"][None, :]),
        "wf": stack(lambda l: l["wf"], jnp.bfloat16),                  # (L, I, H)
        "bf": stack(lambda l: l["bf"][None, :]),
        "ln2_g": stack(lambda l: l["ln2_g"][None, :]),
        "ln2_b": stack(lambda l: l["ln2_b"][None, :]),
    }
    return params


# ----------------------------- forward --------------------------------------------
def bge_forward(params, input_ids, attention_mask, *, batch_tile):
    B, S = input_ids.shape
    H, I = HIDDEN, INTERMEDIATE
    assert B % batch_tile == 0, "batch must divide evenly into batch blocks"
    assert batch_tile == B or batch_tile % 8 == 0, "batch tile must respect (8,128) tiling"
    assert S % 8 == 0 and S <= MAX_POS
    n_bblocks = B // batch_tile

    # Embedding gather (glue; token_type hard-wired to 0 as in single-segment BGE).
    # Fed to the kernel in bf16 to halve the input DMA; LN stats are f32 in-kernel.
    positions = jnp.arange(S, dtype=jnp.int32)
    x = (params["word_emb"][input_ids]
         + params["pos_emb"][positions][None, :, :]
         + params["type_emb"][0][None, None, :]).astype(jnp.bfloat16)   # (B, S, H)

    # Additive attention-mask bias, ONE copy per sequence (no per-head replication).
    mask_bias = ((1.0 - attention_mask.astype(jnp.float32)) * MASK_NEG).reshape(B, 1, S)

    kernel = functools.partial(_encoder_kernel, bt=batch_tile, seq=S,
                               num_heads=NUM_HEADS, head_dim=HEAD_DIM)

    def lspec(shape):      # per-layer stacked weight: leading layer dim squeezed away
        z = (0,) * len(shape)
        return pl.BlockSpec((None,) + tuple(shape), lambda b, l, _z=z: (l,) + _z)

    def cspec(shape):      # layer-independent constant: full-array block
        z = (0,) * len(shape)
        return pl.BlockSpec(tuple(shape), lambda b, l, _z=z: _z)

    kern_inputs = (x, mask_bias,
                   params["emb_ln_g"], params["emb_ln_b"],
                   params["wqkv"], params["bqkv"], params["wo"], params["bo"],
                   params["ln1_g"], params["ln1_b"], params["wi"], params["bi"],
                   params["wf"], params["bf"], params["ln2_g"], params["ln2_b"],
                   params["pool_w"], params["pool_b"])

    # Advisory cost estimate so XLA schedules the surrounding gather/reshape sensibly.
    flops = (2 * B * NUM_LAYERS * S * (3 * H * H + 2 * NUM_HEADS * S * HEAD_DIM
                                       + H * H + 2 * H * I)
             + 2 * B * H * H)
    transcendentals = B * NUM_LAYERS * (NUM_HEADS * S * S + S * I + 2 * S) + B * H
    bytes_accessed = (sum(int(a.size) * a.dtype.itemsize for a in kern_inputs)
                      + B * H * 4)

    pooled = pl.pallas_call(
        kernel,
        out_shape=jax.ShapeDtypeStruct((B, H), jnp.float32),
        grid=(n_bblocks, NUM_LAYERS),
        in_specs=[
            pl.BlockSpec((batch_tile, S, H), lambda b, l: (b, 0, 0)),   # embeddings
            pl.BlockSpec((batch_tile, 1, S), lambda b, l: (b, 0, 0)),   # mask bias
            cspec((1, H)), cspec((1, H)),                      # embedding LN gamma/beta
            lspec((H, 3 * H)), lspec((1, 3 * H)),              # fused QKV weight / bias
            lspec((NUM_HEADS, HEAD_DIM, H)), lspec((1, H)),    # attn out proj (per-head)
            lspec((1, H)), lspec((1, H)),                      # LN1 gamma/beta
            lspec((H, I)), lspec((1, I)),                      # FFN up
            lspec((I, H)), lspec((1, H)),                      # FFN down
            lspec((1, H)), lspec((1, H)),                      # LN2 gamma/beta
            cspec((H, H)), cspec((1, H)),                      # pooler weight / bias
        ],
        out_specs=pl.BlockSpec((batch_tile, H), lambda b, l: (b, 0)),
        scratch_shapes=[pltpu.VMEM((batch_tile * S, H), jnp.float32)],  # carried acts
        compiler_params=pltpu.CompilerParams(
            dimension_semantics=("parallel", "arbitrary"),
            vmem_limit_bytes=48 * 1024 * 1024),
        cost_estimate=pl.CostEstimate(flops=int(flops),
                                      transcendentals=int(transcendentals),
                                      bytes_accessed=int(bytes_accessed)),
    )(*kern_inputs)

    return pooled                                              # (B, H) pooler_output


# ----------------------------- main -----------------------------------------------
if __name__ == "__main__":
    B, S = 32, 8
    # Bt*S = 128 rows per MXU op; B/Bt = 2 batch blocks keeps both v7x TensorCores busy.
    BT = 16

    key = jax.random.PRNGKey(0)
    params = init_params(jax.random.fold_in(key, 1))

    input_ids = jax.random.randint(jax.random.fold_in(key, 2), (B, S), 0, VOCAB,
                                   dtype=jnp.int32)
    # Every other sequence has 2 padding positions at the end.
    attention_mask = jnp.ones((B, S), jnp.int32).at[1::2, S - 2:].set(0)

    fwd = jax.jit(functools.partial(bge_forward, batch_tile=BT))
    pooled = jax.block_until_ready(fwd(params, input_ids, attention_mask))

    assert pooled.shape == (B, HIDDEN) and pooled.dtype == jnp.float32
    assert bool(jnp.all(jnp.isfinite(pooled)))
    print("KERNEL_OK")
</pallas_src>

<mosaic_0001>
module attributes {stable_mosaic.version = 11 : i64} {
  func.func @_encoder_kernel(%arg0: i32, %arg1: i32, %arg2: memref<16x8x128xbf16, #tpu.memory_space<vmem>>, %arg3: memref<16x1x8xf32, #tpu.memory_space<vmem>>, %arg4: memref<1x128xf32, #tpu.memory_space<vmem>>, %arg5: memref<1x128xf32, #tpu.memory_space<vmem>>, %arg6: memref<1x128x384xbf16, #tpu.memory_space<vmem>>, %arg7: memref<1x1x384xf32, #tpu.memory_space<vmem>>, %arg8: memref<1x4x32x128xbf16, #tpu.memory_space<vmem>>, %arg9: memref<1x1x128xf32, #tpu.memory_space<vmem>>, %arg10: memref<1x1x128xf32, #tpu.memory_space<vmem>>, %arg11: memref<1x1x128xf32, #tpu.memory_space<vmem>>, %arg12: memref<1x128x256xbf16, #tpu.memory_space<vmem>>, %arg13: memref<1x1x256xf32, #tpu.memory_space<vmem>>, %arg14: memref<1x256x128xbf16, #tpu.memory_space<vmem>>, %arg15: memref<1x1x128xf32, #tpu.memory_space<vmem>>, %arg16: memref<1x1x128xf32, #tpu.memory_space<vmem>>, %arg17: memref<1x1x128xf32, #tpu.memory_space<vmem>>, %arg18: memref<128x128xbf16, #tpu.memory_space<vmem>>, %arg19: memref<1x128xf32, #tpu.memory_space<vmem>>, %arg20: memref<16x128xf32, #tpu.memory_space<vmem>>, %arg21: memref<128x128xf32, #tpu.memory_space<vmem>>) attributes {dimension_semantics = [#tpu.dimension_semantics<parallel>, #tpu.dimension_semantics<arbitrary>], iteration_bounds = array<i64: 2, 2>, scalar_prefetch = 0 : i64, scratch_operands = 1 : i64, tpu.core_type = #tpu.core_type<tc>, window_params = [{transform_indices = @transform_0, window_bounds = array<i64: 16, 8, 128>}, {transform_indices = @transform_1, window_bounds = array<i64: 16, 1, 8>}, {pipeline_mode = #tpu.pipeline_mode<synchronous>, transform_indices = @transform_2, window_bounds = array<i64: 1, 128>}, {pipeline_mode = #tpu.pipeline_mode<synchronous>, transform_indices = @transform_3, window_bounds = array<i64: 1, 128>}, {transform_indices = @transform_4, window_bounds = array<i64: 1, 128, 384>}, {transform_indices = @transform_5, window_bounds = array<i64: 1, 1, 384>}, {transform_indices = @transform_6, window_bounds = array<i64: 1, 4, 32, 128>}, {transform_indices = @transform_7, window_bounds = array<i64: 1, 1, 128>}, {transform_indices = @transform_8, window_bounds = array<i64: 1, 1, 128>}, {transform_indices = @transform_9, window_bounds = array<i64: 1, 1, 128>}, {transform_indices = @transform_10, window_bounds = array<i64: 1, 128, 256>}, {transform_indices = @transform_11, window_bounds = array<i64: 1, 1, 256>}, {transform_indices = @transform_12, window_bounds = array<i64: 1, 256, 128>}, {transform_indices = @transform_13, window_bounds = array<i64: 1, 1, 128>}, {transform_indices = @transform_14, window_bounds = array<i64: 1, 1, 128>}, {transform_indices = @transform_15, window_bounds = array<i64: 1, 1, 128>}, {pipeline_mode = #tpu.pipeline_mode<synchronous>, transform_indices = @transform_16, window_bounds = array<i64: 128, 128>}, {pipeline_mode = #tpu.pipeline_mode<synchronous>, transform_indices = @transform_17, window_bounds = array<i64: 1, 128>}, {transform_indices = @transform_18, window_bounds = array<i64: 16, 128>}]} {
    %c0_i32 = arith.constant 0 : i32
    %0 = arith.cmpi eq, %arg1, %c0_i32 : i32
    %1 = arith.extui %0 : i1 to i32
    %c0_i32_0 = arith.constant 0 : i32
    %2 = arith.cmpi ne, %1, %c0_i32_0 : i32
    scf.if %2 {
      %c0_67 = arith.constant 0 : index
      %c0_68 = arith.constant 0 : index
      %c0_69 = arith.constant 0 : index
      %170 = vector.load %arg2[%c0_67, %c0_68, %c0_69] : memref<16x8x128xbf16, #tpu.memory_space<vmem>>, vector<16x8x128xbf16>
      %171 = vector.shape_cast %170 : vector<16x8x128xbf16> to vector<128x128xbf16>
      %172 = arith.extf %171 : vector<128x128xbf16> to vector<128x128xf32>
      %c0_70 = arith.constant 0 : index
      %c0_71 = arith.constant 0 : index
      %173 = vector.load %arg4[%c0_70, %c0_71] : memref<1x128xf32, #tpu.memory_space<vmem>>, vector<1x128xf32>
      %c0_72 = arith.constant 0 : index
      %c0_73 = arith.constant 0 : index
      %174 = vector.load %arg5[%c0_72, %c0_73] : memref<1x128xf32, #tpu.memory_space<vmem>>, vector<1x128xf32>
      %cst_74 = arith.constant dense<0.000000e+00> : vector<128xf32>
      %175 = vector.multi_reduction <add>, %172, %cst_74 [1] : vector<128x128xf32> to vector<128xf32>
      %176 = vector.shape_cast %175 : vector<128xf32> to vector<128x1xf32>
      %cst_75 = arith.constant 1.280000e+02 : f32
      %177 = vector.broadcast %cst_75 : f32 to vector<128x1xf32>
      %178 = arith.divf %176, %177 : vector<128x1xf32>
      %179 = vector.broadcast %178 : vector<128x1xf32> to vector<128x128xf32>
      %180 = arith.subf %172, %179 : vector<128x128xf32>
      %181 = arith.mulf %180, %180 : vector<128x128xf32>
      %cst_76 = arith.constant dense<0.000000e+00> : vector<128xf32>
      %182 = vector.multi_reduction <add>, %181, %cst_76 [1] : vector<128x128xf32> to vector<128xf32>
      %183 = vector.shape_cast %182 : vector<128xf32> to vector<128x1xf32>
      %cst_77 = arith.constant 1.280000e+02 : f32
      %184 = vector.broadcast %cst_77 : f32 to vector<128x1xf32>
      %185 = arith.divf %183, %184 : vector<128x1xf32>
      %cst_78 = arith.constant 9.99999996E-13 : f32
      %186 = vector.broadcast %cst_78 : f32 to vector<128x1xf32>
      %187 = arith.addf %185, %186 : vector<128x1xf32>
      %188 = math.rsqrt %187 : vector<128x1xf32>
      %189 = vector.broadcast %188 : vector<128x1xf32> to vector<128x128xf32>
      %190 = arith.mulf %180, %189 : vector<128x128xf32>
      %191 = vector.broadcast %173 : vector<1x128xf32> to vector<128x128xf32>
      %192 = arith.mulf %190, %191 : vector<128x128xf32>
      %193 = vector.broadcast %174 : vector<1x128xf32> to vector<128x128xf32>
      %194 = arith.addf %192, %193 : vector<128x128xf32>
      %c0_79 = arith.constant 0 : index
      %c0_80 = arith.constant 0 : index
      %195 = vector.load %arg21[%c0_79, %c0_80] : memref<128x128xf32, #tpu.memory_space<vmem>>, vector<128x128xf32>
      tpu.vector_store %arg21[%c0_79, %c0_80], %194 {strides = array<i32>} : memref<128x128xf32, #tpu.memory_space<vmem>>, vector<128x128xf32>,
    } else {
    }
    %c0 = arith.constant 0 : index
    %c0_1 = arith.constant 0 : index
    %3 = vector.load %arg21[%c0, %c0_1] : memref<128x128xf32, #tpu.memory_space<vmem>>, vector<128x128xf32>
    %4 = arith.truncf %3 : vector<128x128xf32> to vector<128x128xbf16>
    %c0_2 = arith.constant 0 : index
    %c0_3 = arith.constant 0 : index
    %c0_4 = arith.constant 0 : index
    %5 = vector.load %arg6[%c0_2, %c0_3, %c0_4] : memref<1x128x384xbf16, #tpu.memory_space<vmem>>, vector<1x128x384xbf16>
    %6 = vector.shape_cast %5 : vector<1x128x384xbf16> to vector<128x384xbf16>
    %cst = arith.constant dense<0.000000e+00> : vector<128x384xf32>
    %7 = tpu.matmul %4, %6, %cst {dimension_numbers = #tpu.dot_dimension_numbers<[1], [0], [0], [1], [0, 0, 1, 1], [], []>} : vector<128x128xbf16>, vector<128x384xbf16>, vector<128x384xf32> -> vector<128x384xf32>
    %c0_5 = arith.constant 0 : index
    %c0_6 = arith.constant 0 : index
    %c0_7 = arith.constant 0 : index
    %8 = vector.load %arg7[%c0_5, %c0_6, %c0_7] : memref<1x1x384xf32, #tpu.memory_space<vmem>>, vector<1x1x384xf32>
    %9 = vector.shape_cast %8 : vector<1x1x384xf32> to vector<1x384xf32>
    %10 = vector.broadcast %9 : vector<1x384xf32> to vector<128x384xf32>
    %11 = arith.addf %7, %10 : vector<128x384xf32>
    %12 = vector.extract_strided_slice %11 {offsets = [0, 0], sizes = [128, 32], strides = [1, 1]} : vector<128x384xf32> to vector<128x32xf32>
    %13 = vector.shape_cast %12 : vector<128x32xf32> to vector<16x8x32xf32>
    %14 = vector.extract_strided_slice %11 {offsets = [0, 32], sizes = [128, 32], strides = [1, 1]} : vector<128x384xf32> to vector<128x32xf32>
    %15 = vector.shape_cast %14 : vector<128x32xf32> to vector<16x8x32xf32>
    %16 = vector.extract_strided_slice %11 {offsets = [0, 64], sizes = [128, 32], strides = [1, 1]} : vector<128x384xf32> to vector<128x32xf32>
    %17 = vector.shape_cast %16 : vector<128x32xf32> to vector<16x8x32xf32>
    %18 = vector.extract_strided_slice %11 {offsets = [0, 96], sizes = [128, 32], strides = [1, 1]} : vector<128x384xf32> to vector<128x32xf32>
    %19 = vector.shape_cast %18 : vector<128x32xf32> to vector<16x8x32xf32>
    %20 = vector.shape_cast %13 : vector<16x8x32xf32> to vector<1x16x8x32xf32>
    %21 = vector.shape_cast %15 : vector<16x8x32xf32> to vector<1x16x8x32xf32>
    %22 = vector.shape_cast %17 : vector<16x8x32xf32> to vector<1x16x8x32xf32>
    %23 = vector.shape_cast %19 : vector<16x8x32xf32> to vector<1x16x8x32xf32>
    %24 = tpu.concatenate %20, %21, %22, %23 in 0 : vector<1x16x8x32xf32>, vector<1x16x8x32xf32>, vector<1x16x8x32xf32>, vector<1x16x8x32xf32> -> vector<4x16x8x32xf32>
    %25 = vector.shape_cast %24 : vector<4x16x8x32xf32> to vector<64x8x32xf32>
    %26 = arith.truncf %25 : vector<64x8x32xf32> to vector<64x8x32xbf16>
    %27 = vector.extract_strided_slice %11 {offsets = [0, 128], sizes = [128, 32], strides = [1, 1]} : vector<128x384xf32> to vector<128x32xf32>
    %28 = vector.shape_cast %27 : vector<128x32xf32> to vector<16x8x32xf32>
    %29 = vector.extract_strided_slice %11 {offsets = [0, 160], sizes = [128, 32], strides = [1, 1]} : vector<128x384xf32> to vector<128x32xf32>
    %30 = vector.shape_cast %29 : vector<128x32xf32> to vector<16x8x32xf32>
    %31 = vector.extract_strided_slice %11 {offsets = [0, 192], sizes = [128, 32], strides = [1, 1]} : vector<128x384xf32> to vector<128x32xf32>
    %32 = vector.shape_cast %31 : vector<128x32xf32> to vector<16x8x32xf32>
    %33 = vector.extract_strided_slice %11 {offsets = [0, 224], sizes = [128, 32], strides = [1, 1]} : vector<128x384xf32> to vector<128x32xf32>
    %34 = vector.shape_cast %33 : vector<128x32xf32> to vector<16x8x32xf32>
    %35 = vector.shape_cast %28 : vector<16x8x32xf32> to vector<1x16x8x32xf32>
    %36 = vector.shape_cast %30 : vector<16x8x32xf32> to vector<1x16x8x32xf32>
    %37 = vector.shape_cast %32 : vector<16x8x32xf32> to vector<1x16x8x32xf32>
    %38 = vector.shape_cast %34 : vector<16x8x32xf32> to vector<1x16x8x32xf32>
    %39 = tpu.concatenate %35, %36, %37, %38 in 0 : vector<1x16x8x32xf32>, vector<1x16x8x32xf32>, vector<1x16x8x32xf32>, vector<1x16x8x32xf32> -> vector<4x16x8x32xf32>
    %40 = vector.shape_cast %39 : vector<4x16x8x32xf32> to vector<64x8x32xf32>
    %41 = arith.truncf %40 : vector<64x8x32xf32> to vector<64x8x32xbf16>
    %42 = vector.extract_strided_slice %11 {offsets = [0, 256], sizes = [128, 32], strides = [1, 1]} : vector<128x384xf32> to vector<128x32xf32>
    %43 = vector.shape_cast %42 : vector<128x32xf32> to vector<16x8x32xf32>
    %44 = vector.extract_strided_slice %11 {offsets = [0, 288], sizes = [128, 32], strides = [1, 1]} : vector<128x384xf32> to vector<128x32xf32>
    %45 = vector.shape_cast %44 : vector<128x32xf32> to vector<16x8x32xf32>
    %46 = vector.extract_strided_slice %11 {offsets = [0, 320], sizes = [128, 32], strides = [1, 1]} : vector<128x384xf32> to vector<128x32xf32>
    %47 = vector.shape_cast %46 : vector<128x32xf32> to vector<16x8x32xf32>
    %48 = vector.extract_strided_slice %11 {offsets = [0, 352], sizes = [128, 32], strides = [1, 1]} : vector<128x384xf32> to vector<128x32xf32>
    %49 = vector.shape_cast %48 : vector<128x32xf32> to vector<16x8x32xf32>
    %50 = vector.shape_cast %43 : vector<16x8x32xf32> to vector<1x16x8x32xf32>
    %51 = vector.shape_cast %45 : vector<16x8x32xf32> to vector<1x16x8x32xf32>
    %52 = vector.shape_cast %47 : vector<16x8x32xf32> to vector<1x16x8x32xf32>
    %53 = vector.shape_cast %49 : vector<16x8x32xf32> to vector<1x16x8x32xf32>
    %54 = tpu.concatenate %50, %51, %52, %53 in 0 : vector<1x16x8x32xf32>, vector<1x16x8x32xf32>, vector<1x16x8x32xf32>, vector<1x16x8x32xf32> -> vector<4x16x8x32xf32>
    %55 = vector.shape_cast %54 : vector<4x16x8x32xf32> to vector<64x8x32xf32>
    %56 = arith.truncf %55 : vector<64x8x32xf32> to vector<64x8x32xbf16>
    %cst_8 = arith.constant dense<0.000000e+00> : vector<64x8x8xf32>
    %57 = tpu.matmul %26, %41, %cst_8 {dimension_numbers = #tpu.dot_dimension_numbers<[2], [2], [1], [1], [0, 0, 0, 1, 1, 1], [0], [0]>} : vector<64x8x32xbf16>, vector<64x8x32xbf16>, vector<64x8x8xf32> -> vector<64x8x8xf32>
    %c0_9 = arith.constant 0 : index
    %c0_10 = arith.constant 0 : index
    %c0_11 = arith.constant 0 : index
    %58 = vector.load %arg3[%c0_9, %c0_10, %c0_11] : memref<16x1x8xf32, #tpu.memory_space<vmem>>, vector<16x1x8xf32>
    %59 = vector.shape_cast %58 : vector<16x1x8xf32> to vector<1x16x1x8xf32>
    %60 = vector.shape_cast %59 : vector<1x16x1x8xf32> to vector<1x16x1x8xf32>
    %61 = vector.broadcast %60 : vector<1x16x1x8xf32> to vector<4x16x1x8xf32>
    %62 = vector.shape_cast %61 : vector<4x16x1x8xf32> to vector<64x1x8xf32>
    %63 = vector.broadcast %62 : vector<64x1x8xf32> to vector<64x8x8xf32>
    %64 = arith.addf %57, %63 : vector<64x8x8xf32>
    %cst_12 = arith.constant dense<0xFF800000> : vector<64x8xf32>
    %65 = vector.multi_reduction <maximumf>, %64, %cst_12 [2] : vector<64x8x8xf32> to vector<64x8xf32>
    %66 = vector.shape_cast %65 : vector<64x8xf32> to vector<64x8x1xf32>
    %67 = vector.broadcast %66 : vector<64x8x1xf32> to vector<64x8x8xf32>
    %68 = arith.subf %64, %67 : vector<64x8x8xf32>
    %69 = math.exp %68 : vector<64x8x8xf32>
    %cst_13 = arith.constant dense<0.000000e+00> : vector<64x8xf32>
    %70 = vector.multi_reduction <add>, %69, %cst_13 [2] : vector<64x8x8xf32> to vector<64x8xf32>
    %71 = vector.shape_cast %70 : vector<64x8xf32> to vector<64x8x1xf32>
    %72 = tpu.reciprocal %71 {approx = true} : vector<64x8x1xf32> -> vector<64x8x1xf32>
    %73 = vector.broadcast %72 : vector<64x8x1xf32> to vector<64x8x8xf32>
    %74 = arith.mulf %69, %73 : vector<64x8x8xf32>
    %75 = arith.truncf %74 : vector<64x8x8xf32> to vector<64x8x8xbf16>
    %cst_14 = arith.constant dense<0.000000e+00> : vector<64x8x32xf32>
    %76 = tpu.matmul %75, %56, %cst_14 {dimension_numbers = #tpu.dot_dimension_numbers<[2], [1], [1], [2], [0, 0, 0, 1, 1, 2], [0], [0]>} : vector<64x8x8xbf16>, vector<64x8x32xbf16>, vector<64x8x32xf32> -> vector<64x8x32xf32>
    %77 = vector.shape_cast %76 : vector<64x8x32xf32> to vector<4x128x32xf32>
    %78 = arith.truncf %77 : vector<4x128x32xf32> to vector<4x128x32xbf16>
    %c0_15 = arith.constant 0 : index
    %c0_16 = arith.constant 0 : index
    %c0_17 = arith.constant 0 : index
    %c0_18 = arith.constant 0 : index
    %79 = vector.load %arg8[%c0_15, %c0_16, %c0_17, %c0_18] : memref<1x4x32x128xbf16, #tpu.memory_space<vmem>>, vector<1x4x32x128xbf16>
    %80 = vector.shape_cast %79 : vector<1x4x32x128xbf16> to vector<4x32x128xbf16>
    %cst_19 = arith.constant dense<0.000000e+00> : vector<4x128x128xf32>
    %81 = tpu.matmul %78, %80, %cst_19 {dimension_numbers = #tpu.dot_dimension_numbers<[2], [1], [1], [2], [0, 0, 0, 1, 1, 2], [0], [0]>} : vector<4x128x32xbf16>, vector<4x32x128xbf16>, vector<4x128x128xf32> -> vector<4x128x128xf32>
    %cst_20 = arith.constant dense<0.000000e+00> : vector<128x128xf32>
    %82 = vector.multi_reduction <add>, %81, %cst_20 [0] : vector<4x128x128xf32> to vector<128x128xf32>
    %c0_21 = arith.constant 0 : index
    %c0_22 = arith.constant 0 : index
    %c0_23 = arith.constant 0 : index
    %83 = vector.load %arg9[%c0_21, %c0_22, %c0_23] : memref<1x1x128xf32, #tpu.memory_space<vmem>>, vector<1x1x128xf32>
    %84 = vector.shape_cast %83 : vector<1x1x128xf32> to vector<1x128xf32>
    %85 = vector.broadcast %84 : vector<1x128xf32> to vector<128x128xf32>
    %86 = arith.addf %82, %85 : vector<128x128xf32>
    %87 = arith.addf %3, %86 : vector<128x128xf32>
    %c0_24 = arith.constant 0 : index
    %c0_25 = arith.constant 0 : index
    %c0_26 = arith.constant 0 : index
    %88 = vector.load %arg10[%c0_24, %c0_25, %c0_26] : memref<1x1x128xf32, #tpu.memory_space<vmem>>, vector<1x1x128xf32>
    %89 = vector.shape_cast %88 : vector<1x1x128xf32> to vector<1x128xf32>
    %c0_27 = arith.constant 0 : index
    %c0_28 = arith.constant 0 : index
    %c0_29 = arith.constant 0 : index
    %90 = vector.load %arg11[%c0_27, %c0_28, %c0_29] : memref<1x1x128xf32, #tpu.memory_space<vmem>>, vector<1x1x128xf32>
    %91 = vector.shape_cast %90 : vector<1x1x128xf32> to vector<1x128xf32>
    %cst_30 = arith.constant dense<0.000000e+00> : vector<128xf32>
    %92 = vector.multi_reduction <add>, %87, %cst_30 [1] : vector<128x128xf32> to vector<128xf32>
    %93 = vector.shape_cast %92 : vector<128xf32> to vector<128x1xf32>
    %cst_31 = arith.constant 1.280000e+02 : f32
    %94 = vector.broadcast %cst_31 : f32 to vector<128x1xf32>
    %95 = arith.divf %93, %94 : vector<128x1xf32>
    %96 = vector.broadcast %95 : vector<128x1xf32> to vector<128x128xf32>
    %97 = arith.subf %87, %96 : vector<128x128xf32>
    %98 = arith.mulf %97, %97 : vector<128x128xf32>
    %cst_32 = arith.constant dense<0.000000e+00> : vector<128xf32>
    %99 = vector.multi_reduction <add>, %98, %cst_32 [1] : vector<128x128xf32> to vector<128xf32>
    %100 = vector.shape_cast %99 : vector<128xf32> to vector<128x1xf32>
    %cst_33 = arith.constant 1.280000e+02 : f32
    %101 = vector.broadcast %cst_33 : f32 to vector<128x1xf32>
    %102 = arith.divf %100, %101 : vector<128x1xf32>
    %cst_34 = arith.constant 9.99999996E-13 : f32
    %103 = vector.broadcast %cst_34 : f32 to vector<128x1xf32>
    %104 = arith.addf %102, %103 : vector<128x1xf32>
    %105 = math.rsqrt %104 : vector<128x1xf32>
    %106 = vector.broadcast %105 : vector<128x1xf32> to vector<128x128xf32>
    %107 = arith.mulf %97, %106 : vector<128x128xf32>
    %108 = vector.broadcast %89 : vector<1x128xf32> to vector<128x128xf32>
    %109 = arith.mulf %107, %108 : vector<128x128xf32>
    %110 = vector.broadcast %91 : vector<1x128xf32> to vector<128x128xf32>
    %111 = arith.addf %109, %110 : vector<128x128xf32>
    %112 = arith.truncf %111 : vector<128x128xf32> to vector<128x128xbf16>
    %c0_35 = arith.constant 0 : index
    %c0_36 = arith.constant 0 : index
    %c0_37 = arith.constant 0 : index
    %113 = vector.load %arg12[%c0_35, %c0_36, %c0_37] : memref<1x128x256xbf16, #tpu.memory_space<vmem>>, vector<1x128x256xbf16>
    %114 = vector.shape_cast %113 : vector<1x128x256xbf16> to vector<128x256xbf16>
    %cst_38 = arith.constant dense<0.000000e+00> : vector<128x256xf32>
    %115 = tpu.matmul %112, %114, %cst_38 {dimension_numbers = #tpu.dot_dimension_numbers<[1], [0], [0], [1], [0, 0, 1, 1], [], []>} : vector<128x128xbf16>, vector<128x256xbf16>, vector<128x256xf32> -> vector<128x256xf32>
    %c0_39 = arith.constant 0 : index
    %c0_40 = arith.constant 0 : index
    %c0_41 = arith.constant 0 : index
    %116 = vector.load %arg13[%c0_39, %c0_40, %c0_41] : memref<1x1x256xf32, #tpu.memory_space<vmem>>, vector<1x1x256xf32>
    %117 = vector.shape_cast %116 : vector<1x1x256xf32> to vector<1x256xf32>
    %118 = vector.broadcast %117 : vector<1x256xf32> to vector<128x256xf32>
    %119 = arith.addf %115, %118 : vector<128x256xf32>
    %cst_42 = arith.constant 5.000000e-01 : f32
    %120 = vector.broadcast %cst_42 : f32 to vector<128x256xf32>
    %121 = arith.mulf %120, %119 : vector<128x256xf32>
    %cst_43 = arith.constant 4.471500e-02 : f32
    %122 = vector.broadcast %cst_43 : f32 to vector<128x256xf32>
    %123 = arith.mulf %122, %119 : vector<128x256xf32>
    %124 = arith.mulf %123, %119 : vector<128x256xf32>
    %125 = arith.mulf %124, %119 : vector<128x256xf32>
    %126 = arith.addf %119, %125 : vector<128x256xf32>
    %cst_44 = arith.constant 0.797884583 : f32
    %127 = vector.broadcast %cst_44 : f32 to vector<128x256xf32>
    %128 = arith.mulf %127, %126 : vector<128x256xf32>
    %129 = math.tanh %128 : vector<128x256xf32>
    %cst_45 = arith.constant 1.000000e+00 : f32
    %130 = vector.broadcast %cst_45 : f32 to vector<128x256xf32>
    %131 = arith.addf %130, %129 : vector<128x256xf32>
    %132 = arith.mulf %121, %131 : vector<128x256xf32>
    %133 = arith.truncf %132 : vector<128x256xf32> to vector<128x256xbf16>
    %c0_46 = arith.constant 0 : index
    %c0_47 = arith.constant 0 : index
    %c0_48 = arith.constant 0 : index
    %134 = vector.load %arg14[%c0_46, %c0_47, %c0_48] : memref<1x256x128xbf16, #tpu.memory_space<vmem>>, vector<1x256x128xbf16>
    %135 = vector.shape_cast %134 : vector<1x256x128xbf16> to vector<256x128xbf16>
    %cst_49 = arith.constant dense<0.000000e+00> : vector<128x128xf32>
    %136 = tpu.matmul %133, %135, %cst_49 {dimension_numbers = #tpu.dot_dimension_numbers<[1], [0], [0], [1], [0, 0, 1, 1], [], []>} : vector<128x256xbf16>, vector<256x128xbf16>, vector<128x128xf32> -> vector<128x128xf32>
    %c0_50 = arith.constant 0 : index
    %c0_51 = arith.constant 0 : index
    %c0_52 = arith.constant 0 : index
    %137 = vector.load %arg15[%c0_50, %c0_51, %c0_52] : memref<1x1x128xf32, #tpu.memory_space<vmem>>, vector<1x1x128xf32>
    %138 = vector.shape_cast %137 : vector<1x1x128xf32> to vector<1x128xf32>
    %139 = vector.broadcast %138 : vector<1x128xf32> to vector<128x128xf32>
    %140 = arith.addf %136, %139 : vector<128x128xf32>
    %141 = arith.addf %111, %140 : vector<128x128xf32>
    %c0_53 = arith.constant 0 : index
    %c0_54 = arith.constant 0 : index
    %c0_55 = arith.constant 0 : index
    %142 = vector.load %arg16[%c0_53, %c0_54, %c0_55] : memref<1x1x128xf32, #tpu.memory_space<vmem>>, vector<1x1x128xf32>
    %143 = vector.shape_cast %142 : vector<1x1x128xf32> to vector<1x128xf32>
    %c0_56 = arith.constant 0 : index
    %c0_57 = arith.constant 0 : index
    %c0_58 = arith.constant 0 : index
    %144 = vector.load %arg17[%c0_56, %c0_57, %c0_58] : memref<1x1x128xf32, #tpu.memory_space<vmem>>, vector<1x1x128xf32>
    %145 = vector.shape_cast %144 : vector<1x1x128xf32> to vector<1x128xf32>
    %cst_59 = arith.constant dense<0.000000e+00> : vector<128xf32>
    %146 = vector.multi_reduction <add>, %141, %cst_59 [1] : vector<128x128xf32> to vector<128xf32>
    %147 = vector.shape_cast %146 : vector<128xf32> to vector<128x1xf32>
    %cst_60 = arith.constant 1.280000e+02 : f32
    %148 = vector.broadcast %cst_60 : f32 to vector<128x1xf32>
    %149 = arith.divf %147, %148 : vector<128x1xf32>
    %150 = vector.broadcast %149 : vector<128x1xf32> to vector<128x128xf32>
    %151 = arith.subf %141, %150 : vector<128x128xf32>
    %152 = arith.mulf %151, %151 : vector<128x128xf32>
    %cst_61 = arith.constant dense<0.000000e+00> : vector<128xf32>
    %153 = vector.multi_reduction <add>, %152, %cst_61 [1] : vector<128x128xf32> to vector<128xf32>
    %154 = vector.shape_cast %153 : vector<128xf32> to vector<128x1xf32>
    %cst_62 = arith.constant 1.280000e+02 : f32
    %155 = vector.broadcast %cst_62 : f32 to vector<128x1xf32>
    %156 = arith.divf %154, %155 : vector<128x1xf32>
    %cst_63 = arith.constant 9.99999996E-13 : f32
    %157 = vector.broadcast %cst_63 : f32 to vector<128x1xf32>
    %158 = arith.addf %156, %157 : vector<128x1xf32>
    %159 = math.rsqrt %158 : vector<128x1xf32>
    %160 = vector.broadcast %159 : vector<128x1xf32> to vector<128x128xf32>
    %161 = arith.mulf %151, %160 : vector<128x128xf32>
    %162 = vector.broadcast %143 : vector<1x128xf32> to vector<128x128xf32>
    %163 = arith.mulf %161, %162 : vector<128x128xf32>
    %164 = vector.broadcast %145 : vector<1x128xf32> to vector<128x128xf32>
    %165 = arith.addf %163, %164 : vector<128x128xf32>
    %c0_64 = arith.constant 0 : index
    %c0_65 = arith.constant 0 : index
    %166 = vector.load %arg21[%c0_64, %c0_65] : memref<128x128xf32, #tpu.memory_space<vmem>>, vector<128x128xf32>
    tpu.vector_store %arg21[%c0_64, %c0_65], %165 {strides = array<i32>} : memref<128x128xf32, #tpu.memory_space<vmem>>, vector<128x128xf32>,
    %c1_i32 = arith.constant 1 : i32
    %167 = arith.cmpi eq, %arg1, %c1_i32 : i32
    %168 = arith.extui %167 : i1 to i32
    %c0_i32_66 = arith.constant 0 : i32
    %169 = arith.cmpi ne, %168, %c0_i32_66 : i32
    scf.if %169 {
      %170 = vector.shape_cast %165 : vector<128x128xf32> to vector<16x8x128xf32>
      %171 = vector.extract_strided_slice %170 {offsets = [0, 0, 0], sizes = [16, 1, 128], strides = [1, 1, 1]} : vector<16x8x128xf32> to vector<16x1x128xf32>
      %172 = vector.shape_cast %171 : vector<16x1x128xf32> to vector<16x128xf32>
      %173 = arith.truncf %172 : vector<16x128xf32> to vector<16x128xbf16>
      %c0_67 = arith.constant 0 : index
      %c0_68 = arith.constant 0 : index
      %174 = vector.load %arg18[%c0_67, %c0_68] : memref<128x128xbf16, #tpu.memory_space<vmem>>, vector<128x128xbf16>
      %cst_69 = arith.constant dense<0.000000e+00> : vector<16x128xf32>
      %175 = tpu.matmul %173, %174, %cst_69 {dimension_numbers = #tpu.dot_dimension_numbers<[1], [0], [0], [1], [0, 0, 1, 1], [], []>} : vector<16x128xbf16>, vector<128x128xbf16>, vector<16x128xf32> -> vector<16x128xf32>
      %c0_70 = arith.constant 0 : index
      %c0_71 = arith.constant 0 : index
      %176 = vector.load %arg19[%c0_70, %c0_71] : memref<1x128xf32, #tpu.memory_space<vmem>>, vector<1x128xf32>
      %177 = vector.broadcast %176 : vector<1x128xf32> to vector<16x128xf32>
      %178 = arith.addf %175, %177 : vector<16x128xf32>
      %179 = math.tanh %178 : vector<16x128xf32>
      %c0_72 = arith.constant 0 : index
      %c0_73 = arith.constant 0 : index
      %180 = vector.load %arg20[%c0_72, %c0_73] : memref<16x128xf32, #tpu.memory_space<vmem>>, vector<16x128xf32>
      tpu.vector_store %arg20[%c0_72, %c0_73], %179 {strides = array<i32>} : memref<16x128xf32, #tpu.memory_space<vmem>>, vector<16x128xf32>,
    } else {
    }
    return
  }
  func.func @transform_0(%arg0: i32, %arg1: i32) -> (i32, i32, i32) {
    %c0_i32 = arith.constant 0 : i32
    %c0_i32_0 = arith.constant 0 : i32
    %c0_i32_1 = arith.constant 0 : i32
    return %arg0, %c0_i32, %c0_i32_0 : i32, i32, i32
  }
  func.func @transform_1(%arg0: i32, %arg1: i32) -> (i32, i32, i32) {
    %c0_i32 = arith.constant 0 : i32
    %c0_i32_0 = arith.constant 0 : i32
    %c0_i32_1 = arith.constant 0 : i32
    return %arg0, %c0_i32, %c0_i32_0 : i32, i32, i32
  }
  func.func @transform_2(%arg0: i32, %arg1: i32) -> (i32, i32) {
    %c0_i32 = arith.constant 0 : i32
    %c0_i32_0 = arith.constant 0 : i32
    %c0_i32_1 = arith.constant 0 : i32
    return %c0_i32, %c0_i32_0 : i32, i32
  }
  func.func @transform_3(%arg0: i32, %arg1: i32) -> (i32, i32) {
    %c0_i32 = arith.constant 0 : i32
    %c0_i32_0 = arith.constant 0 : i32
    %c0_i32_1 = arith.constant 0 : i32
    return %c0_i32, %c0_i32_0 : i32, i32
  }
  func.func @transform_4(%arg0: i32, %arg1: i32) -> (i32, i32, i32) {
    %c0_i32 = arith.constant 0 : i32
    %c0_i32_0 = arith.constant 0 : i32
    %c0_i32_1 = arith.constant 0 : i32
    return %arg1, %c0_i32, %c0_i32_0 : i32, i32, i32
  }
  func.func @transform_5(%arg0: i32, %arg1: i32) -> (i32, i32, i32) {
    %c0_i32 = arith.constant 0 : i32
    %c0_i32_0 = arith.constant 0 : i32
    %c0_i32_1 = arith.constant 0 : i32
    return %arg1, %c0_i32, %c0_i32_0 : i32, i32, i32
  }
  func.func @transform_6(%arg0: i32, %arg1: i32) -> (i32, i32, i32, i32) {
    %c0_i32 = arith.constant 0 : i32
    %c0_i32_0 = arith.constant 0 : i32
    %c0_i32_1 = arith.constant 0 : i32
    %c0_i32_2 = arith.constant 0 : i32
    return %arg1, %c0_i32, %c0_i32_0, %c0_i32_1 : i32, i32, i32, i32
  }
  func.func @transform_7(%arg0: i32, %arg1: i32) -> (i32, i32, i32) {
    %c0_i32 = arith.constant 0 : i32
    %c0_i32_0 = arith.constant 0 : i32
    %c0_i32_1 = arith.constant 0 : i32
    return %arg1, %c0_i32, %c0_i32_0 : i32, i32, i32
  }
  func.func @transform_8(%arg0: i32, %arg1: i32) -> (i32, i32, i32) {
    %c0_i32 = arith.constant 0 : i32
    %c0_i32_0 = arith.constant 0 : i32
    %c0_i32_1 = arith.constant 0 : i32
    return %arg1, %c0_i32, %c0_i32_0 : i32, i32, i32
  }
  func.func @transform_9(%arg0: i32, %arg1: i32) -> (i32, i32, i32) {
    %c0_i32 = arith.constant 0 : i32
    %c0_i32_0 = arith.constant 0 : i32
    %c0_i32_1 = arith.constant 0 : i32
    return %arg1, %c0_i32, %c0_i32_0 : i32, i32, i32
  }
  func.func @transform_10(%arg0: i32, %arg1: i32) -> (i32, i32, i32) {
    %c0_i32 = arith.constant 0 : i32
    %c0_i32_0 = arith.constant 0 : i32
    %c0_i32_1 = arith.constant 0 : i32
    return %arg1, %c0_i32, %c0_i32_0 : i32, i32, i32
  }
  func.func @transform_11(%arg0: i32, %arg1: i32) -> (i32, i32, i32) {
    %c0_i32 = arith.constant 0 : i32
    %c0_i32_0 = arith.constant 0 : i32
    %c0_i32_1 = arith.constant 0 : i32
    return %arg1, %c0_i32, %c0_i32_0 : i32, i32, i32
  }
  func.func @transform_12(%arg0: i32, %arg1: i32) -> (i32, i32, i32) {
    %c0_i32 = arith.constant 0 : i32
    %c0_i32_0 = arith.constant 0 : i32
    %c0_i32_1 = arith.constant 0 : i32
    return %arg1, %c0_i32, %c0_i32_0 : i32, i32, i32
  }
  func.func @transform_13(%arg0: i32, %arg1: i32) -> (i32, i32, i32) {
    %c0_i32 = arith.constant 0 : i32
    %c0_i32_0 = arith.constant 0 : i32
    %c0_i32_1 = arith.constant 0 : i32
    return %arg1, %c0_i32, %c0_i32_0 : i32, i32, i32
  }
  func.func @transform_14(%arg0: i32, %arg1: i32) -> (i32, i32, i32) {
    %c0_i32 = arith.constant 0 : i32
    %c0_i32_0 = arith.constant 0 : i32
    %c0_i32_1 = arith.constant 0 : i32
    return %arg1, %c0_i32, %c0_i32_0 : i32, i32, i32
  }
  func.func @transform_15(%arg0: i32, %arg1: i32) -> (i32, i32, i32) {
    %c0_i32 = arith.constant 0 : i32
    %c0_i32_0 = arith.constant 0 : i32
    %c0_i32_1 = arith.constant 0 : i32
    return %arg1, %c0_i32, %c0_i32_0 : i32, i32, i32
  }
  func.func @transform_16(%arg0: i32, %arg1: i32) -> (i32, i32) {
    %c0_i32 = arith.constant 0 : i32
    %c0_i32_0 = arith.constant 0 : i32
    %c0_i32_1 = arith.constant 0 : i32
    return %c0_i32, %c0_i32_0 : i32, i32
  }
  func.func @transform_17(%arg0: i32, %arg1: i32) -> (i32, i32) {
    %c0_i32 = arith.constant 0 : i32
    %c0_i32_0 = arith.constant 0 : i32
    %c0_i32_1 = arith.constant 0 : i32
    return %c0_i32, %c0_i32_0 : i32, i32
  }
  func.func @transform_18(%arg0: i32, %arg1: i32) -> (i32, i32) {
    %c0_i32 = arith.constant 0 : i32
    %c0_i32_0 = arith.constant 0 : i32
    return %arg0, %c0_i32 : i32, i32
  }
}

</mosaic_0001>

<llo_original>
// kernel: bge_forward.1
$region0: #{bge_forward.1}
  #allocation0 [shape = 'u32[]', space=smem, size = 0x4, offset = 0x4, fixed_abs, tag = 'smem constant byte address 0x4 - core index']
  #allocation1 [shape = 'u32[72,128]{1,0:T(1,128)}', space=vmem, size = 0x9000, scoped, tag = 'internal scratch']
  #allocation2 [shape = 'f32[128,128]{1,0:T(8,128)}', space=vmem, size = 0x10000, scoped, tag = 'scratch operand']
  %s0 = inlined_call_operand.vmem [shape: bf16[32,8,128], index: 0, kind: input, shape index: {}]
  %s1 = inlined_call_operand.vmem [shape: f32[32,1,8], index: 1, kind: input, shape index: {}]
  %s2 = inlined_call_operand.vmem [shape: f32[1,128], index: 2, kind: input, shape index: {}]
  %s3 = inlined_call_operand.vmem [shape: f32[1,128], index: 3, kind: input, shape index: {}]
  %s4 = inlined_call_operand.vmem [shape: bf16[2,128,384], index: 4, kind: input, shape index: {}]
  %s5 = inlined_call_operand.vmem [shape: f32[2,1,384], index: 5, kind: input, shape index: {}]
  %s6 = inlined_call_operand.vmem [shape: bf16[2,4,32,128], index: 6, kind: input, shape index: {}]
  %s7 = inlined_call_operand.vmem [shape: f32[2,1,128], index: 7, kind: input, shape index: {}]
  %s8 = inlined_call_operand.vmem [shape: f32[2,1,128], index: 8, kind: input, shape index: {}]
  %s9 = inlined_call_operand.vmem [shape: f32[2,1,128], index: 9, kind: input, shape index: {}]
  %s10 = inlined_call_operand.vmem [shape: bf16[2,128,256], index: 10, kind: input, shape index: {}]
  %s11 = inlined_call_operand.vmem [shape: f32[2,1,256], index: 11, kind: input, shape index: {}]
  %s12 = inlined_call_operand.vmem [shape: bf16[2,256,128], index: 12, kind: input, shape index: {}]
  %s13 = inlined_call_operand.vmem [shape: f32[2,1,128], index: 13, kind: input, shape index: {}]
  %s14 = inlined_call_operand.vmem [shape: f32[2,1,128], index: 14, kind: input, shape index: {}]
  %s15 = inlined_call_operand.vmem [shape: f32[2,1,128], index: 15, kind: input, shape index: {}]
  %s16 = inlined_call_operand.vmem [shape: bf16[128,128], index: 16, kind: input, shape index: {}]
  %s17 = inlined_call_operand.vmem [shape: f32[1,128], index: 17, kind: input, shape index: {}]
  %s18 = inlined_call_operand.hbm [shape: f32[32,128], index: 18, kind: output, shape index: {}]
  %s19 = sld [smem:[#allocation0]]
  $region113: #{bge_forward.1} parent=0
    _
  %s21 = ssub.s32 1, %s19
  %s22 = scalar_select 0, %s21, %s19
  $region1: #{bge_forward.1} parent=0
    #allocation3 [shape = 'u8[16384]{0}', space=vmem, size = 0x4000, scoped, tag = 'output window, operand 0']
    #allocation4 [shape = 's32[2]{0}', space=sflag, size = 0x8, scoped, tag = 'scoped memory for bge_forward.1']
    %23 = vsyncpa [#allocation4], 0
    %s24 = scalar_lea.sflag [#allocation4], 1
    %25 = vsyncpa %s24, 0
    loop: start=0, step=1, limit=6
    $region2: #{bge_forward.1} parent=1 // loop_pre_header
      _
    $region3: #{bge_forward.1} parent=1 // loop_header
      %s27 = sphi 0, %s31
      %p28 = scmp.ge.s32.totalorder %s27, 6
      %s34 = sphi 0, %s46
      %s35 = sphi 0, %s42
      %s36 = sphi 0, %s34
      %s37 = sphi 0, %s35
      %s38 = sphi 0, %s36
      %s39 = sphi 0, %s37
      %s49 = sphi 0, %s51
      %s52 = sphi 0, %s49
      %s53 = sphi 0, %s52
      %s69 = sphi 0, %s53
      %s75 = sphi 0, %s77
      %s78 = sphi 0, %s75
      %s79 = sphi 0, %s78
      %s95 = sphi 0, %s79
      %s99 = sphi 0, %s99
      %s101 = sphi 0, %s99
      %s102 = sphi 0, %s101
      %s116 = sphi 0, %s102
      %s120 = sphi 0, %s120
      %s122 = sphi 0, %s120
      %s123 = sphi 0, %s122
      %s137 = sphi 0, %s123
      %s143 = sphi 0, %s145
      %s146 = sphi 0, %s143
      %s147 = sphi 0, %s146
      %s163 = sphi 0, %s147
      %s169 = sphi 0, %s171
      %s172 = sphi 0, %s169
      %s173 = sphi 0, %s172
      %s189 = sphi 0, %s173
      %s195 = sphi 0, %s197
      %s198 = sphi 0, %s195
      %s199 = sphi 0, %s198
      %s215 = sphi 0, %s199
      %s221 = sphi 0, %s223
      %s224 = sphi 0, %s221
      %s225 = sphi 0, %s224
      %s241 = sphi 0, %s225
      %s247 = sphi 0, %s249
      %s250 = sphi 0, %s247
      %s251 = sphi 0, %s250
      %s267 = sphi 0, %s251
      %s273 = sphi 0, %s275
      %s276 = sphi 0, %s273
      %s277 = sphi 0, %s276
      %s293 = sphi 0, %s277
      %s299 = sphi 0, %s301
      %s302 = sphi 0, %s299
      %s303 = sphi 0, %s302
      %s319 = sphi 0, %s303
      %s325 = sphi 0, %s327
      %s328 = sphi 0, %s325
      %s329 = sphi 0, %s328
      %s345 = sphi 0, %s329
      %s351 = sphi 0, %s353
      %s354 = sphi 0, %s351
      %s355 = sphi 0, %s354
      %s371 = sphi 0, %s355
      %s377 = sphi 0, %s379
      %s380 = sphi 0, %s377
      %s381 = sphi 0, %s380
      %s397 = sphi 0, %s381
      %s403 = sphi 0, %s405
      %s406 = sphi 0, %s403
      %s407 = sphi 0, %s406
      %s423 = sphi 0, %s407
      %s429 = sphi 0, %s431
      %s432 = sphi 0, %s429
      %s433 = sphi 0, %s432
      %s449 = sphi 0, %s433
      %s453 = sphi 0, %s453
      %s455 = sphi 0, %s453
      %s456 = sphi 0, %s455
      %s470 = sphi 0, %s456
      %s474 = sphi 0, %s474
      %s476 = sphi 0, %s474
      %s477 = sphi 0, %s476
      %s491 = sphi 0, %s477
      %s497 = sphi 0, %s499
      %s500 = sphi 0, %s497
      %s501 = sphi 0, %s500
      %s517 = sphi 0, %s501
    $region4: #{bge_forward.1} parent=1 // loop_header_branch
      %30 = sbr.rel (%p28) target = $region8
    $region5: #{bge_forward.1} parent=1 // loop_body
      %s32 = ssub.s32 %s27, 1
      %s33 = ssub.s32 %s27, 2
      %s40 = sadd.s32 1, %s35
      %p41 = scmp.ge.s32.totalorder %s40, 2
      %s42 = scalar_select %p41, 0, %s40
      %s43 = sadd.s32 1, %s34
      %s44 = scalar_select %p41, %s43, %s34
      %p45 = scmp.ge.s32.totalorder %s44, 2
      %s46 = scalar_select %p45, 0, %s44
      %s47 = ssub.s32 %s34, %s46
      %p48 = scmp.eq.s32.totalorder %s47, 0
      %s50 = sadd.s32 %s49, 1
      %s51 = scalar_select %p48, %s49, %s50
      %p54 = pneg %p48
      %p55 = scmp.eq.s32.totalorder %s27, 3
      %p56 = por %p54, %p55
      %p57 = scmp.ne.s32.totalorder %s49, %s52
      %p58 = scmp.eq.s32.totalorder %s27, 0
      %p59 = por %p57, %p58
      %p60 = scmp.ne.s32.totalorder %s49, %s52
      %p61 = scmp.eq.s32.totalorder %s32, 3
      %p62 = por %p60, %p61
      %p63 = scmp.ne.s32.totalorder %s52, %s53
      %p64 = scmp.eq.s32.totalorder %s32, 0
      %p65 = por %p63, %p64
      %p66 = scmp.ne.s32.totalorder %s52, %s53
      %p67 = scmp.eq.s32.totalorder %s33, 3
      %p68 = por %p66, %p67
      %p70 = scmp.ne.s32.totalorder %s53, %s69
      %p71 = scmp.eq.s32.totalorder %s33, 0
      %p72 = por %p70, %p71
      %s73 = ssub.s32 %s34, %s46
      %p74 = scmp.eq.s32.totalorder %s73, 0
      %s76 = sadd.s32 %s75, 1
      %s77 = scalar_select %p74, %s75, %s76
      %p80 = pneg %p74
      %p81 = scmp.eq.s32.totalorder %s27, 3
      %p82 = por %p80, %p81
      %p83 = scmp.ne.s32.totalorder %s75, %s78
      %p84 = scmp.eq.s32.totalorder %s27, 0
      %p85 = por %p83, %p84
      %p86 = scmp.ne.s32.totalorder %s75, %s78
      %p87 = scmp.eq.s32.totalorder %s32, 3
      %p88 = por %p86, %p87
      %p89 = scmp.ne.s32.totalorder %s78, %s79
      %p90 = scmp.eq.s32.totalorder %s32, 0
      %p91 = por %p89, %p90
      %p92 = scmp.ne.s32.totalorder %s78, %s79
      %p93 = scmp.eq.s32.totalorder %s33, 3
      %p94 = por %p92, %p93
      %p96 = scmp.ne.s32.totalorder %s79, %s95
      %p97 = scmp.eq.s32.totalorder %s33, 0
      %p98 = por %p96, %p97
      %s100 = sadd.s32 %s99, 1
      %p103 = scmp.eq.s32.totalorder %s27, 3
      %p104 = scmp.ne.s32.totalorder %s99, %s101
      %p105 = scmp.eq.s32.totalorder %s27, 0
      %p106 = por %p104, %p105
      %p107 = scmp.ne.s32.totalorder %s99, %s101
      %p108 = scmp.eq.s32.totalorder %s32, 3
      %p109 = por %p107, %p108
      %p110 = scmp.ne.s32.totalorder %s101, %s102
      %p111 = scmp.eq.s32.totalorder %s32, 0
      %p112 = por %p110, %p111
      %p113 = scmp.ne.s32.totalorder %s101, %s102
      %p114 = scmp.eq.s32.totalorder %s33, 3
      %p115 = por %p113, %p114
      %p117 = scmp.ne.s32.totalorder %s102, %s116
      %p118 = scmp.eq.s32.totalorder %s33, 0
      %p119 = por %p117, %p118
      %s121 = sadd.s32 %s120, 1
      %p124 = scmp.eq.s32.totalorder %s27, 3
      %p125 = scmp.ne.s32.totalorder %s120, %s122
      %p126 = scmp.eq.s32.totalorder %s27, 0
      %p127 = por %p125, %p126
      %p128 = scmp.ne.s32.totalorder %s120, %s122
      %p129 = scmp.eq.s32.totalorder %s32, 3
      %p130 = por %p128, %p129
      %p131 = scmp.ne.s32.totalorder %s122, %s123
      %p132 = scmp.eq.s32.totalorder %s32, 0
      %p133 = por %p131, %p132
      %p134 = scmp.ne.s32.totalorder %s122, %s123
      %p135 = scmp.eq.s32.totalorder %s33, 3
      %p136 = por %p134, %p135
      %p138 = scmp.ne.s32.totalorder %s123, %s137
      %p139 = scmp.eq.s32.totalorder %s33, 0
      %p140 = por %p138, %p139
      %s141 = ssub.s32 %s35, %s42
      %p142 = scmp.eq.s32.totalorder %s141, 0
      %s144 = sadd.s32 %s143, 1
      %s145 = scalar_select %p142, %s143, %s144
      %p148 = pneg %p142
      %p149 = scmp.eq.s32.totalorder %s27, 3
      %p150 = por %p148, %p149
      %p151 = scmp.ne.s32.totalorder %s143, %s146
      %p152 = scmp.eq.s32.totalorder %s27, 0
      %p153 = por %p151, %p152
      %p154 = scmp.ne.s32.totalorder %s143, %s146
      %p155 = scmp.eq.s32.totalorder %s32, 3
      %p156 = por %p154, %p155
      %p157 = scmp.ne.s32.totalorder %s146, %s147
      %p158 = scmp.eq.s32.totalorder %s32, 0
      %p159 = por %p157, %p158
      %p160 = scmp.ne.s32.totalorder %s146, %s147
      %p161 = scmp.eq.s32.totalorder %s33, 3
      %p162 = por %p160, %p161
      %p164 = scmp.ne.s32.totalorder %s147, %s163
      %p165 = scmp.eq.s32.totalorder %s33, 0
      %p166 = por %p164, %p165
      %s167 = ssub.s32 %s35, %s42
      %p168 = scmp.eq.s32.totalorder %s167, 0
      %s170 = sadd.s32 %s169, 1
      %s171 = scalar_select %p168, %s169, %s170
      %p174 = pneg %p168
      %p175 = scmp.eq.s32.totalorder %s27, 3
      %p176 = por %p174, %p175
      %p177 = scmp.ne.s32.totalorder %s169, %s172
      %p178 = scmp.eq.s32.totalorder %s27, 0
      %p179 = por %p177, %p178
      %p180 = scmp.ne.s32.totalorder %s169, %s172
      %p181 = scmp.eq.s32.totalorder %s32, 3
      %p182 = por %p180, %p181
      %p183 = scmp.ne.s32.totalorder %s172, %s173
      %p184 = scmp.eq.s32.totalorder %s32, 0
      %p185 = por %p183, %p184
      %p186 = scmp.ne.s32.totalorder %s172, %s173
      %p187 = scmp.eq.s32.totalorder %s33, 3
      %p188 = por %p186, %p187
      %p190 = scmp.ne.s32.totalorder %s173, %s189
      %p191 = scmp.eq.s32.totalorder %s33, 0
      %p192 = por %p190, %p191
      %s193 = ssub.s32 %s35, %s42
      %p194 = scmp.eq.s32.totalorder %s193, 0
      %s196 = sadd.s32 %s195, 1
      %s197 = scalar_select %p194, %s195, %s196
      %p200 = pneg %p194
      %p201 = scmp.eq.s32.totalorder %s27, 3
      %p202 = por %p200, %p201
      %p203 = scmp.ne.s32.totalorder %s195, %s198
      %p204 = scmp.eq.s32.totalorder %s27, 0
      %p205 = por %p203, %p204
      %p206 = scmp.ne.s32.totalorder %s195, %s198
      %p207 = scmp.eq.s32.totalorder %s32, 3
      %p208 = por %p206, %p207
      %p209 = scmp.ne.s32.totalorder %s198, %s199
      %p210 = scmp.eq.s32.totalorder %s32, 0
      %p211 = por %p209, %p210
      %p212 = scmp.ne.s32.totalorder %s198, %s199
      %p213 = scmp.eq.s32.totalorder %s33, 3
      %p214 = por %p212, %p213
      %p216 = scmp.ne.s32.totalorder %s199, %s215
      %p217 = scmp.eq.s32.totalorder %s33, 0
      %p218 = por %p216, %p217
      %s219 = ssub.s32 %s35, %s42
      %p220 = scmp.eq.s32.totalorder %s219, 0
      %s222 = sadd.s32 %s221, 1
      %s223 = scalar_select %p220, %s221, %s222
      %p226 = pneg %p220
      %p227 = scmp.eq.s32.totalorder %s27, 3
      %p228 = por %p226, %p227
      %p229 = scmp.ne.s32.totalorder %s221, %s224
      %p230 = scmp.eq.s32.totalorder %s27, 0
      %p231 = por %p229, %p230
      %p232 = scmp.ne.s32.totalorder %s221, %s224
      %p233 = scmp.eq.s32.totalorder %s32, 3
      %p234 = por %p232, %p233
      %p235 = scmp.ne.s32.totalorder %s224, %s225
      %p236 = scmp.eq.s32.totalorder %s32, 0
      %p237 = por %p235, %p236
      %p238 = scmp.ne.s32.totalorder %s224, %s225
      %p239 = scmp.eq.s32.totalorder %s33, 3
      %p240 = por %p238, %p239
      %p242 = scmp.ne.s32.totalorder %s225, %s241
      %p243 = scmp.eq.s32.totalorder %s33, 0
      %p244 = por %p242, %p243
      %s245 = ssub.s32 %s35, %s42
      %p246 = scmp.eq.s32.totalorder %s245, 0
      %s248 = sadd.s32 %s247, 1
      %s249 = scalar_select %p246, %s247, %s248
      %p252 = pneg %p246
      %p253 = scmp.eq.s32.totalorder %s27, 3
      %p254 = por %p252, %p253
      %p255 = scmp.ne.s32.totalorder %s247, %s250
      %p256 = scmp.eq.s32.totalorder %s27, 0
      %p257 = por %p255, %p256
      %p258 = scmp.ne.s32.totalorder %s247, %s250
      %p259 = scmp.eq.s32.totalorder %s32, 3
      %p260 = por %p258, %p259
      %p261 = scmp.ne.s32.totalorder %s250, %s251
      %p262 = scmp.eq.s32.totalorder %s32, 0
      %p263 = por %p261, %p262
      %p264 = scmp.ne.s32.totalorder %s250, %s251
      %p265 = scmp.eq.s32.totalorder %s33, 3
      %p266 = por %p264, %p265
      %p268 = scmp.ne.s32.totalorder %s251, %s267
      %p269 = scmp.eq.s32.totalorder %s33, 0
      %p270 = por %p268, %p269
      %s271 = ssub.s32 %s35, %s42
      %p272 = scmp.eq.s32.totalorder %s271, 0
      %s274 = sadd.s32 %s273, 1
      %s275 = scalar_select %p272, %s273, %s274
      %p278 = pneg %p272
      %p279 = scmp.eq.s32.totalorder %s27, 3
      %p280 = por %p278, %p279
      %p281 = scmp.ne.s32.totalorder %s273, %s276
      %p282 = scmp.eq.s32.totalorder %s27, 0
      %p283 = por %p281, %p282
      %p284 = scmp.ne.s32.totalorder %s273, %s276
      %p285 = scmp.eq.s32.totalorder %s32, 3
      %p286 = por %p284, %p285
      %p287 = scmp.ne.s32.totalorder %s276, %s277
      %p288 = scmp.eq.s32.totalorder %s32, 0
      %p289 = por %p287, %p288
      %p290 = scmp.ne.s32.totalorder %s276, %s277
      %p291 = scmp.eq.s32.totalorder %s33, 3
      %p292 = por %p290, %p291
      %p294 = scmp.ne.s32.totalorder %s277, %s293
      %p295 = scmp.eq.s32.totalorder %s33, 0
      %p296 = por %p294, %p295
      %s297 = ssub.s32 %s35, %s42
      %p298 = scmp.eq.s32.totalorder %s297, 0
      %s300 = sadd.s32 %s299, 1
      %s301 = scalar_select %p298, %s299, %s300
      %p304 = pneg %p298
      %p305 = scmp.eq.s32.totalorder %s27, 3
      %p306 = por %p304, %p305
      %p307 = scmp.ne.s32.totalorder %s299, %s302
      %p308 = scmp.eq.s32.totalorder %s27, 0
      %p309 = por %p307, %p308
      %p310 = scmp.ne.s32.totalorder %s299, %s302
      %p311 = scmp.eq.s32.totalorder %s32, 3
      %p312 = por %p310, %p311
      %p313 = scmp.ne.s32.totalorder %s302, %s303
      %p314 = scmp.eq.s32.totalorder %s32, 0
      %p315 = por %p313, %p314
      %p316 = scmp.ne.s32.totalorder %s302, %s303
      %p317 = scmp.eq.s32.totalorder %s33, 3
      %p318 = por %p316, %p317
      %p320 = scmp.ne.s32.totalorder %s303, %s319
      %p321 = scmp.eq.s32.totalorder %s33, 0
      %p322 = por %p320, %p321
      %s323 = ssub.s32 %s35, %s42
      %p324 = scmp.eq.s32.totalorder %s323, 0
      %s326 = sadd.s32 %s325, 1
      %s327 = scalar_select %p324, %s325, %s326
      %p330 = pneg %p324
      %p331 = scmp.eq.s32.totalorder %s27, 3
      %p332 = por %p330, %p331
      %p333 = scmp.ne.s32.totalorder %s325, %s328
      %p334 = scmp.eq.s32.totalorder %s27, 0
      %p335 = por %p333, %p334
      %p336 = scmp.ne.s32.totalorder %s325, %s328
      %p337 = scmp.eq.s32.totalorder %s32, 3
      %p338 = por %p336, %p337
      %p339 = scmp.ne.s32.totalorder %s328, %s329
      %p340 = scmp.eq.s32.totalorder %s32, 0
      %p341 = por %p339, %p340
      %p342 = scmp.ne.s32.totalorder %s328, %s329
      %p343 = scmp.eq.s32.totalorder %s33, 3
      %p344 = por %p342, %p343
      %p346 = scmp.ne.s32.totalorder %s329, %s345
      %p347 = scmp.eq.s32.totalorder %s33, 0
      %p348 = por %p346, %p347
      %s349 = ssub.s32 %s35, %s42
      %p350 = scmp.eq.s32.totalorder %s349, 0
      %s352 = sadd.s32 %s351, 1
      %s353 = scalar_select %p350, %s351, %s352
      %p356 = pneg %p350
      %p357 = scmp.eq.s32.totalorder %s27, 3
      %p358 = por %p356, %p357
      %p359 = scmp.ne.s32.totalorder %s351, %s354
      %p360 = scmp.eq.s32.totalorder %s27, 0
      %p361 = por %p359, %p360
      %p362 = scmp.ne.s32.totalorder %s351, %s354
      %p363 = scmp.eq.s32.totalorder %s32, 3
      %p364 = por %p362, %p363
      %p365 = scmp.ne.s32.totalorder %s354, %s355
      %p366 = scmp.eq.s32.totalorder %s32, 0
      %p367 = por %p365, %p366
      %p368 = scmp.ne.s32.totalorder %s354, %s355
      %p369 = scmp.eq.s32.totalorder %s33, 3
      %p370 = por %p368, %p369
      %p372 = scmp.ne.s32.totalorder %s355, %s371
      %p373 = scmp.eq.s32.totalorder %s33, 0
      %p374 = por %p372, %p373
      %s375 = ssub.s32 %s35, %s42
      %p376 = scmp.eq.s32.totalorder %s375, 0
      %s378 = sadd.s32 %s377, 1
      %s379 = scalar_select %p376, %s377, %s378
      %p382 = pneg %p376
      %p383 = scmp.eq.s32.totalorder %s27, 3
      %p384 = por %p382, %p383
      %p385 = scmp.ne.s32.totalorder %s377, %s380
      %p386 = scmp.eq.s32.totalorder %s27, 0
      %p387 = por %p385, %p386
      %p388 = scmp.ne.s32.totalorder %s377, %s380
      %p389 = scmp.eq.s32.totalorder %s32, 3
      %p390 = por %p388, %p389
      %p391 = scmp.ne.s32.totalorder %s380, %s381
      %p392 = scmp.eq.s32.totalorder %s32, 0
      %p393 = por %p391, %p392
      %p394 = scmp.ne.s32.totalorder %s380, %s381
      %p395 = scmp.eq.s32.totalorder %s33, 3
      %p396 = por %p394, %p395
      %p398 = scmp.ne.s32.totalorder %s381, %s397
      %p399 = scmp.eq.s32.totalorder %s33, 0
      %p400 = por %p398, %p399
      %s401 = ssub.s32 %s35, %s42
      %p402 = scmp.eq.s32.totalorder %s401, 0
      %s404 = sadd.s32 %s403, 1
      %s405 = scalar_select %p402, %s403, %s404
      %p408 = pneg %p402
      %p409 = scmp.eq.s32.totalorder %s27, 3
      %p410 = por %p408, %p409
      %p411 = scmp.ne.s32.totalorder %s403, %s406
      %p412 = scmp.eq.s32.totalorder %s27, 0
      %p413 = por %p411, %p412
      %p414 = scmp.ne.s32.totalorder %s403, %s406
      %p415 = scmp.eq.s32.totalorder %s32, 3
      %p416 = por %p414, %p415
      %p417 = scmp.ne.s32.totalorder %s406, %s407
      %p418 = scmp.eq.s32.totalorder %s32, 0
      %p419 = por %p417, %p418
      %p420 = scmp.ne.s32.totalorder %s406, %s407
      %p421 = scmp.eq.s32.totalorder %s33, 3
      %p422 = por %p420, %p421
      %p424 = scmp.ne.s32.totalorder %s407, %s423
      %p425 = scmp.eq.s32.totalorder %s33, 0
      %p426 = por %p424, %p425
      %s427 = ssub.s32 %s35, %s42
      %p428 = scmp.eq.s32.totalorder %s427, 0
      %s430 = sadd.s32 %s429, 1
      %s431 = scalar_select %p428, %s429, %s430
      %p434 = pneg %p428
      %p435 = scmp.eq.s32.totalorder %s27, 3
      %p436 = por %p434, %p435
      %p437 = scmp.ne.s32.totalorder %s429, %s432
      %p438 = scmp.eq.s32.totalorder %s27, 0
      %p439 = por %p437, %p438
      %p440 = scmp.ne.s32.totalorder %s429, %s432
      %p441 = scmp.eq.s32.totalorder %s32, 3
      %p442 = por %p440, %p441
      %p443 = scmp.ne.s32.totalorder %s432, %s433
      %p444 = scmp.eq.s32.totalorder %s32, 0
      %p445 = por %p443, %p444
      %p446 = scmp.ne.s32.totalorder %s432, %s433
      %p447 = scmp.eq.s32.totalorder %s33, 3
      %p448 = por %p446, %p447
      %p450 = scmp.ne.s32.totalorder %s433, %s449
      %p451 = scmp.eq.s32.totalorder %s33, 0
      %p452 = por %p450, %p451
      %s454 = sadd.s32 %s453, 1
      %p457 = scmp.eq.s32.totalorder %s27, 3
      %p458 = scmp.ne.s32.totalorder %s453, %s455
      %p459 = scmp.eq.s32.totalorder %s27, 0
      %p460 = por %p458, %p459
      %p461 = scmp.ne.s32.totalorder %s453, %s455
      %p462 = scmp.eq.s32.totalorder %s32, 3
      %p463 = por %p461, %p462
      %p464 = scmp.ne.s32.totalorder %s455, %s456
      %p465 = scmp.eq.s32.totalorder %s32, 0
      %p466 = por %p464, %p465
      %p467 = scmp.ne.s32.totalorder %s455, %s456
      %p468 = scmp.eq.s32.totalorder %s33, 3
      %p469 = por %p467, %p468
      %p471 = scmp.ne.s32.totalorder %s456, %s470
      %p472 = scmp.eq.s32.totalorder %s33, 0
      %p473 = por %p471, %p472
      %s475 = sadd.s32 %s474, 1
      %p478 = scmp.eq.s32.totalorder %s27, 3
      %p479 = scmp.ne.s32.totalorder %s474, %s476
      %p480 = scmp.eq.s32.totalorder %s27, 0
      %p481 = por %p479, %p480
      %p482 = scmp.ne.s32.totalorder %s474, %s476
      %p483 = scmp.eq.s32.totalorder %s32, 3
      %p484 = por %p482, %p483
      %p485 = scmp.ne.s32.totalorder %s476, %s477
      %p486 = scmp.eq.s32.totalorder %s32, 0
      %p487 = por %p485, %p486
      %p488 = scmp.ne.s32.totalorder %s476, %s477
      %p489 = scmp.eq.s32.totalorder %s33, 3
      %p490 = por %p488, %p489
      %p492 = scmp.ne.s32.totalorder %s477, %s491
      %p493 = scmp.eq.s32.totalorder %s33, 0
      %p494 = por %p492, %p493
      %s495 = ssub.s32 %s34, %s46
      %p496 = scmp.eq.s32.totalorder %s495, 0
      %s498 = sadd.s32 %s497, 1
      %s499 = scalar_select %p496, %s497, %s498
      %p502 = pneg %p496
      %p503 = scmp.eq.s32.totalorder %s27, 3
      %p504 = por %p502, %p503
      %p505 = scmp.ne.s32.totalorder %s497, %s500
      %p506 = scmp.eq.s32.totalorder %s27, 0
      %p507 = por %p505, %p506
      %p508 = scmp.ne.s32.totalorder %s497, %s500
      %p509 = scmp.eq.s32.totalorder %s32, 3
      %p510 = por %p508, %p509
      %p511 = scmp.ne.s32.totalorder %s500, %s501
      %p512 = scmp.eq.s32.totalorder %s32, 0
      %p513 = por %p511, %p512
      %p514 = scmp.ne.s32.totalorder %s500, %s501
      %p515 = scmp.eq.s32.totalorder %s33, 3
      %p516 = por %p514, %p515
      %p518 = scmp.ne.s32.totalorder %s501, %s517
      %p519 = scmp.eq.s32.totalorder %s33, 0
      %p520 = por %p518, %p519
      %p521 = scmp.le.s32.totalorder 1, %s27
      %p522 = scmp.lt.s32.totalorder %s27, 5
      %p523 = pnand %p521, %p522
      %p524 = pneg %p523
      // Predicated region
      $region9: #{bge_forward.1} parent=5 // pred_check
        _
      $region10: #{bge_forward.1} parent=5 // pred_check_branch
        %526 = sbr.rel (%p523) target = $region12
      $region11: #{bge_forward.1} parent=5 // pred_region
        %s527 = ssub.s32 %s27, 1
        // Predicated region
        $region13: #{bge_forward.1} parent=11 // pred_check
          %p528 = pneg %p112
        $region14: #{bge_forward.1} parent=11 // pred_check_branch
          %530 = sbr.rel (%p528) target = $region16
        $region15: #{bge_forward.1} parent=11 // pred_region
          _
        $region16: #{bge_forward.1} parent=11 // pred_fallthru
          _
        // Predicated region
        $region17: #{bge_forward.1} parent=11 // pred_check
          %p531 = pneg %p133
        $region18: #{bge_forward.1} parent=11 // pred_check_branch
          %533 = sbr.rel (%p531) target = $region20
        $region19: #{bge_forward.1} parent=11 // pred_region
          _
        $region20: #{bge_forward.1} parent=11 // pred_fallthru
          _
        // Predicated region
        $region21: #{bge_forward.1} parent=11 // pred_check
          %p534 = pneg %p466
        $region22: #{bge_forward.1} parent=11 // pred_check_branch
          %536 = sbr.rel (%p534) target = $region24
        $region23: #{bge_forward.1} parent=11 // pred_region
          _
        $region24: #{bge_forward.1} parent=11 // pred_fallthru
          _
        // Predicated region
        $region25: #{bge_forward.1} parent=11 // pred_check
          %p537 = pneg %p487
        $region26: #{bge_forward.1} parent=11 // pred_check_branch
          %539 = sbr.rel (%p537) target = $region28
        $region27: #{bge_forward.1} parent=11 // pred_region
          _
        $region28: #{bge_forward.1} parent=11 // pred_fallthru
          _
      $region12: #{bge_forward.1} parent=5 // pred_fallthru
        _
      %p540 = scmp.lt.s32.totalorder %s27, 4
      // Predicated region
      $region29: #{bge_forward.1} parent=5 // pred_check
        %p541 = pneg %p540
      $region30: #{bge_forward.1} parent=5 // pred_check_branch
        %543 = sbr.rel (%p541) target = $region32
      $region31: #{bge_forward.1} parent=5 // pred_region
        // Predicated region
        $region33: #{bge_forward.1} parent=31 // pred_check
          %p544 = pneg %p59
        $region34: #{bge_forward.1} parent=31 // pred_check_branch
          %546 = sbr.rel (%p544) target = $region36
        $region35: #{bge_forward.1} parent=31 // pred_region
          %s547 = smul.u32 16, %s34
          %p548 = scmp.lt.s32.totalorder %s547, 31
          %s549 = scalar_select %p548, %s547, 31
          %s550 = smul.addr %s549, 4
          %s551 = scalar_lea.vmem %s0, %s550
          %s552 = smul.u32 16, %s34
        $region36: #{bge_forward.1} parent=31 // pred_fallthru
          _
        // Predicated region
        $region37: #{bge_forward.1} parent=31 // pred_check
          %p553 = pneg %p85
        $region38: #{bge_forward.1} parent=31 // pred_check_branch
          %555 = sbr.rel (%p553) target = $region40
        $region39: #{bge_forward.1} parent=31 // pred_region
          %s556 = smul.u32 16, %s34
          %p557 = scmp.lt.s32.totalorder %s556, 31
          %s558 = scalar_select %p557, %s556, 31
          %s559 = scalar_lea.vmem %s1, %s558
          %s560 = smul.u32 16, %s34
        $region40: #{bge_forward.1} parent=31 // pred_fallthru
          _
        // Predicated region
        $region41: #{bge_forward.1} parent=31 // pred_check
          %p561 = pneg %p153
        $region42: #{bge_forward.1} parent=31 // pred_check_branch
          %563 = sbr.rel (%p561) target = $region44
        $region43: #{bge_forward.1} parent=31 // pred_region
          %p564 = scmp.lt.s32.totalorder %s35, 1
          %s565 = scalar_select %p564, %s35, 1
          %s566 = smul.addr %s565, 48
          %s567 = smul.addr %s566, 4
          %s568 = scalar_lea.vmem %s4, %s567
        $region44: #{bge_forward.1} parent=31 // pred_fallthru
          _
        // Predicated region
        $region45: #{bge_forward.1} parent=31 // pred_check
          %p569 = pneg %p179
        $region46: #{bge_forward.1} parent=31 // pred_check_branch
          %571 = sbr.rel (%p569) target = $region48
        $region47: #{bge_forward.1} parent=31 // pred_region
          %p572 = scmp.lt.s32.totalorder %s35, 1
          %s573 = scalar_select %p572, %s35, 1
          %s574 = smul.addr %s573, 3
          %s575 = scalar_lea.vmem %s5, %s574
        $region48: #{bge_forward.1} parent=31 // pred_fallthru
          _
        // Predicated region
        $region49: #{bge_forward.1} parent=31 // pred_check
          %p576 = pneg %p205
        $region50: #{bge_forward.1} parent=31 // pred_check_branch
          %578 = sbr.rel (%p576) target = $region52
        $region51: #{bge_forward.1} parent=31 // pred_region
          %p579 = scmp.lt.s32.totalorder %s35, 1
          %s580 = scalar_select %p579, %s35, 1
          %s581 = smul.addr %s580, 16
          %s582 = smul.addr %s581, 4
          %s583 = scalar_lea.vmem %s6, %s582
        $region52: #{bge_forward.1} parent=31 // pred_fallthru
          _
        // Predicated region
        $region53: #{bge_forward.1} parent=31 // pred_check
          %p584 = pneg %p231
        $region54: #{bge_forward.1} parent=31 // pred_check_branch
          %586 = sbr.rel (%p584) target = $region56
        $region55: #{bge_forward.1} parent=31 // pred_region
          %p587 = scmp.lt.s32.totalorder %s35, 1
          %s588 = scalar_select %p587, %s35, 1
          %s589 = scalar_lea.vmem %s7, %s588
        $region56: #{bge_forward.1} parent=31 // pred_fallthru
          _
        // Predicated region
        $region57: #{bge_forward.1} parent=31 // pred_check
          %p590 = pneg %p257
        $region58: #{bge_forward.1} parent=31 // pred_check_branch
          %592 = sbr.rel (%p590) target = $region60
        $region59: #{bge_forward.1} parent=31 // pred_region
          %p593 = scmp.lt.s32.totalorder %s35, 1
          %s594 = scalar_select %p593, %s35, 1
          %s595 = scalar_lea.vmem %s8, %s594
        $region60: #{bge_forward.1} parent=31 // pred_fallthru
          _
        // Predicated region
        $region61: #{bge_forward.1} parent=31 // pred_check
          %p596 = pneg %p283
        $region62: #{bge_forward.1} parent=31 // pred_check_branch
          %598 = sbr.rel (%p596) target = $region64
        $region63: #{bge_forward.1} parent=31 // pred_region
          %p599 = scmp.lt.s32.totalorder %s35, 1
          %s600 = scalar_select %p599, %s35, 1
          %s601 = scalar_lea.vmem %s9, %s600
        $region64: #{bge_forward.1} parent=31 // pred_fallthru
          _
        // Predicated region
        $region65: #{bge_forward.1} parent=31 // pred_check
          %p602 = pneg %p309
        $region66: #{bge_forward.1} parent=31 // pred_check_branch
          %604 = sbr.rel (%p602) target = $region68
        $region67: #{bge_forward.1} parent=31 // pred_region
          %p605 = scmp.lt.s32.totalorder %s35, 1
          %s606 = scalar_select %p605, %s35, 1
          %s607 = smul.addr %s606, 32
          %s608 = smul.addr %s607, 4
          %s609 = scalar_lea.vmem %s10, %s608
        $region68: #{bge_forward.1} parent=31 // pred_fallthru
          _
        // Predicated region
        $region69: #{bge_forward.1} parent=31 // pred_check
          %p610 = pneg %p335
        $region70: #{bge_forward.1} parent=31 // pred_check_branch
          %612 = sbr.rel (%p610) target = $region72
        $region71: #{bge_forward.1} parent=31 // pred_region
          %p613 = scmp.lt.s32.totalorder %s35, 1
          %s614 = scalar_select %p613, %s35, 1
          %s615 = smul.addr %s614, 2
          %s616 = scalar_lea.vmem %s11, %s615
        $region72: #{bge_forward.1} parent=31 // pred_fallthru
          _
        // Predicated region
        $region73: #{bge_forward.1} parent=31 // pred_check
          %p617 = pneg %p361
        $region74: #{bge_forward.1} parent=31 // pred_check_branch
          %619 = sbr.rel (%p617) target = $region76
        $region75: #{bge_forward.1} parent=31 // pred_region
          %p620 = scmp.lt.s32.totalorder %s35, 1
          %s621 = scalar_select %p620, %s35, 1
          %s622 = smul.addr %s621, 32
          %s623 = smul.addr %s622, 4
          %s624 = scalar_lea.vmem %s12, %s623
        $region76: #{bge_forward.1} parent=31 // pred_fallthru
          _
        // Predicated region
        $region77: #{bge_forward.1} parent=31 // pred_check
          %p625 = pneg %p387
        $region78: #{bge_forward.1} parent=31 // pred_check_branch
          %627 = sbr.rel (%p625) target = $region80
        $region79: #{bge_forward.1} parent=31 // pred_region
          %p628 = scmp.lt.s32.totalorder %s35, 1
          %s629 = scalar_select %p628, %s35, 1
          %s630 = scalar_lea.vmem %s13, %s629
        $region80: #{bge_forward.1} parent=31 // pred_fallthru
          _
        // Predicated region
        $region81: #{bge_forward.1} parent=31 // pred_check
          %p631 = pneg %p413
        $region82: #{bge_forward.1} parent=31 // pred_check_branch
          %633 = sbr.rel (%p631) target = $region84
        $region83: #{bge_forward.1} parent=31 // pred_region
          %p634 = scmp.lt.s32.totalorder %s35, 1
          %s635 = scalar_select %p634, %s35, 1
          %s636 = scalar_lea.vmem %s14, %s635
        $region84: #{bge_forward.1} parent=31 // pred_fallthru
          _
        // Predicated region
        $region85: #{bge_forward.1} parent=31 // pred_check
          %p637 = pneg %p439
        $region86: #{bge_forward.1} parent=31 // pred_check_branch
          %639 = sbr.rel (%p637) target = $region88
        $region87: #{bge_forward.1} parent=31 // pred_region
          %p640 = scmp.lt.s32.totalorder %s35, 1
          %s641 = scalar_select %p640, %s35, 1
          %s642 = scalar_lea.vmem %s15, %s641
        $region88: #{bge_forward.1} parent=31 // pred_fallthru
          _
      $region32: #{bge_forward.1} parent=5 // pred_fallthru
        _
      %p643 = scmp.le.s32.totalorder 1, %s27
      %p644 = scmp.lt.s32.totalorder %s27, 5
      %p645 = pnand %p643, %p644
      %p646 = pneg %p645
      // Predicated region
      $region89: #{bge_forward.1} parent=5 // pred_check
        _
      $region90: #{bge_forward.1} parent=5 // pred_check_branch
        %648 = sbr.rel (%p645) target = $region92
      $region91: #{bge_forward.1} parent=5 // pred_region
        %s649 = ssub.s32 %s27, 1
        %s650 = smul.u32 16, %s36
        %p651 = scmp.lt.s32.totalorder %s650, 31
        %s652 = scalar_select %p651, %s650, 31
        %s653 = smul.addr %s652, 4
        %s654 = scalar_lea.vmem %s0, %s653
        %p655 = pneg %p65
        %p656 = pneg %p62
        %s657 = smul.u32 16, %s36
        %p658 = scmp.lt.s32.totalorder %s657, 31
        %s659 = scalar_select %p658, %s657, 31
        %s660 = scalar_lea.vmem %s1, %s659
        %p661 = pneg %p91
        %p662 = pneg %p88
        %p663 = pneg %p112
        %p664 = pneg %p109
        %p665 = pneg %p133
        %p666 = pneg %p130
        %p667 = scmp.lt.s32.totalorder %s37, 1
        %s668 = scalar_select %p667, %s37, 1
        %s669 = smul.addr %s668, 48
        %s670 = smul.addr %s669, 4
        %s671 = scalar_lea.vmem %s4, %s670
        %p672 = pneg %p159
        %p673 = pneg %p156
        %p674 = scmp.lt.s32.totalorder %s37, 1
        %s675 = scalar_select %p674, %s37, 1
        %s676 = smul.addr %s675, 3
        %s677 = scalar_lea.vmem %s5, %s676
        %p678 = pneg %p185
        %p679 = pneg %p182
        %p680 = scmp.lt.s32.totalorder %s37, 1
        %s681 = scalar_select %p680, %s37, 1
        %s682 = smul.addr %s681, 16
        %s683 = smul.addr %s682, 4
        %s684 = scalar_lea.vmem %s6, %s683
        %p685 = pneg %p211
        %p686 = pneg %p208
        %p687 = scmp.lt.s32.totalorder %s37, 1
        %s688 = scalar_select %p687, %s37, 1
        %s689 = scalar_lea.vmem %s7, %s688
        %p690 = pneg %p237
        %p691 = pneg %p234
        %p692 = scmp.lt.s32.totalorder %s37, 1
        %s693 = scalar_select %p692, %s37, 1
        %s694 = scalar_lea.vmem %s8, %s693
        %p695 = pneg %p263
        %p696 = pneg %p260
        %p697 = scmp.lt.s32.totalorder %s37, 1
        %s698 = scalar_select %p697, %s37, 1
        %s699 = scalar_lea.vmem %s9, %s698
        %p700 = pneg %p289
        %p701 = pneg %p286
        %p702 = scmp.lt.s32.totalorder %s37, 1
        %s703 = scalar_select %p702, %s37, 1
        %s704 = smul.addr %s703, 32
        %s705 = smul.addr %s704, 4
        %s706 = scalar_lea.vmem %s10, %s705
        %p707 = pneg %p315
        %p708 = pneg %p312
        %p709 = scmp.lt.s32.totalorder %s37, 1
        %s710 = scalar_select %p709, %s37, 1
        %s711 = smul.addr %s710, 2
        %s712 = scalar_lea.vmem %s11, %s711
        %p713 = pneg %p341
        %p714 = pneg %p338
        %p715 = scmp.lt.s32.totalorder %s37, 1
        %s716 = scalar_select %p715, %s37, 1
        %s717 = smul.addr %s716, 32
        %s718 = smul.addr %s717, 4
        %s719 = scalar_lea.vmem %s12, %s718
        %p720 = pneg %p367
        %p721 = pneg %p364
        %p722 = scmp.lt.s32.totalorder %s37, 1
        %s723 = scalar_select %p722, %s37, 1
        %s724 = scalar_lea.vmem %s13, %s723
        %p725 = pneg %p393
        %p726 = pneg %p390
        %p727 = scmp.lt.s32.totalorder %s37, 1
        %s728 = scalar_select %p727, %s37, 1
        %s729 = scalar_lea.vmem %s14, %s728
        %p730 = pneg %p419
        %p731 = pneg %p416
        %p732 = scmp.lt.s32.totalorder %s37, 1
        %s733 = scalar_select %p732, %s37, 1
        %s734 = scalar_lea.vmem %s15, %s733
        %p735 = pneg %p445
        %p736 = pneg %p442
        %p737 = pneg %p466
        %p738 = pneg %p463
        %p739 = pneg %p487
        %p740 = pneg %p484
        %p741 = pneg %p513
        %p742 = pneg %p510
        %s743 = sand.u32 %s500, 1
        %s744 = scalar_lea.sflag [#allocation4], %s743
        %s745 = sand.u32 %s500, 1
        %s746 = smul.addr %s745, 16
        %s747 = scalar_lea.vmem [#allocation3], %s746
        %s748 = smul.u32 16, %s36
        %p749 = scmp.lt.s32.totalorder %s748, 31
        %s750 = scalar_select %p749, %s748, 31
        %s751 = smul.addr %s750, 4
        %s752 = scalar_lea.vmem %s0, %s751
        %s753 = smul.u32 16, %s36
        %s754 = smul.u32 16, %s36
        %p755 = scmp.lt.s32.totalorder %s754, 31
        %s756 = scalar_select %p755, %s754, 31
        %s757 = scalar_lea.vmem %s1, %s756
        %s758 = smul.u32 16, %s36
        %p759 = scmp.lt.s32.totalorder %s37, 1
        %s760 = scalar_select %p759, %s37, 1
        %s761 = smul.addr %s760, 48
        %s762 = smul.addr %s761, 4
        %s763 = scalar_lea.vmem %s4, %s762
        %p764 = scmp.lt.s32.totalorder %s37, 1
        %s765 = scalar_select %p764, %s37, 1
        %s766 = smul.addr %s765, 3
        %s767 = scalar_lea.vmem %s5, %s766
        %p768 = scmp.lt.s32.totalorder %s37, 1
        %s769 = scalar_select %p768, %s37, 1
        %s770 = smul.addr %s769, 16
        %s771 = smul.addr %s770, 4
        %s772 = scalar_lea.vmem %s6, %s771
        %p773 = scmp.lt.s32.totalorder %s37, 1
        %s774 = scalar_select %p773, %s37, 1
        %s775 = scalar_lea.vmem %s7, %s774
        %p776 = scmp.lt.s32.totalorder %s37, 1
        %s777 = scalar_select %p776, %s37, 1
        %s778 = scalar_lea.vmem %s8, %s777
        %p779 = scmp.lt.s32.totalorder %s37, 1
        %s780 = scalar_select %p779, %s37, 1
        %s781 = scalar_lea.vmem %s9, %s780
        %p782 = scmp.lt.s32.totalorder %s37, 1
        %s783 = scalar_select %p782, %s37, 1
        %s784 = smul.addr %s783, 32
        %s785 = smul.addr %s784, 4
        %s786 = scalar_lea.vmem %s10, %s785
        %p787 = scmp.lt.s32.totalorder %s37, 1
        %s788 = scalar_select %p787, %s37, 1
        %s789 = smul.addr %s788, 2
        %s790 = scalar_lea.vmem %s11, %s789
        %p791 = scmp.lt.s32.totalorder %s37, 1
        %s792 = scalar_select %p791, %s37, 1
        %s793 = smul.addr %s792, 32
        %s794 = smul.addr %s793, 4
        %s795 = scalar_lea.vmem %s12, %s794
        %p796 = scmp.lt.s32.totalorder %s37, 1
        %s797 = scalar_select %p796, %s37, 1
        %s798 = scalar_lea.vmem %s13, %s797
        %p799 = scmp.lt.s32.totalorder %s37, 1
        %s800 = scalar_select %p799, %s37, 1
        %s801 = scalar_lea.vmem %s14, %s800
        %p802 = scmp.lt.s32.totalorder %s37, 1
        %s803 = scalar_select %p802, %s37, 1
        %s804 = scalar_lea.vmem %s15, %s803
        %s805 = smul.u32 2, %s36
        %p807 = scmp.eq.s32.totalorder %s37, 0
        // Predicated region
        $region93: #{bge_forward.1} parent=91 // pred_check
          %p808 = pneg %p807
        $region94: #{bge_forward.1} parent=91 // pred_check_branch
          %810 = sbr.rel (%p808) target = $region96
        $region95: #{bge_forward.1} parent=91 // pred_region
          %v811 = vld [vmem:[%s752] sm:$0xf]
          %v812 = vld [vmem:[%s752 + $0x4] sm:$0xf]
          %v813 = vld [vmem:[%s752 + $0x8] sm:$0xf]
          %v814 = vld [vmem:[%s752 + $0xc] sm:$0xf]
          %v815 = vld [vmem:[%s752 + $0x10] sm:$0xf]
          %v816 = vld [vmem:[%s752 + $0x14] sm:$0xf]
          %v817 = vld [vmem:[%s752 + $0x18] sm:$0xf]
          %v818 = vld [vmem:[%s752 + $0x1c] sm:$0xf]
          %v819 = vld [vmem:[%s752 + $0x20] sm:$0xf]
          %v820 = vld [vmem:[%s752 + $0x24] sm:$0xf]
          %v821 = vld [vmem:[%s752 + $0x28] sm:$0xf]
          %v822 = vld [vmem:[%s752 + $0x2c] sm:$0xf]
          %v823 = vld [vmem:[%s752 + $0x30] sm:$0xf]
          %v824 = vld [vmem:[%s752 + $0x34] sm:$0xf]
          %v825 = vld [vmem:[%s752 + $0x38] sm:$0xf]
          %v826 = vld [vmem:[%s752 + $0x3c] sm:$0xf]
          %v827 = vunpack.c.l.bf16 %v811
          %v828 = vunpack.c.l.bf16 %v812
          %v829 = vunpack.c.l.bf16 %v813
          %v830 = vunpack.c.l.bf16 %v814
          %v831 = vunpack.c.l.bf16 %v815
          %v832 = vunpack.c.l.bf16 %v816
          %v833 = vunpack.c.l.bf16 %v817
          %v834 = vunpack.c.l.bf16 %v818
          %v835 = vunpack.c.l.bf16 %v819
          %v836 = vunpack.c.l.bf16 %v820
          %v837 = vunpack.c.l.bf16 %v821
          %v838 = vunpack.c.l.bf16 %v822
          %v839 = vunpack.c.l.bf16 %v823
          %v840 = vunpack.c.l.bf16 %v824
          %v841 = vunpack.c.l.bf16 %v825
          %v842 = vunpack.c.l.bf16 %v826
          %v843 = vld [vmem:[%s2] sm:$0x1]
          %v844 = vld [vmem:[%s3] sm:$0x1]
          %845 = vadd.xlane.f32.xlu0 %v827
          %v846 = vpop.xlane.xlu0 %845
          %847 = vadd.xlane.f32.xlu0 %v828
          %v848 = vpop.xlane.xlu0 %847
          %849 = vadd.xlane.f32.xlu0 %v829
          %v850 = vpop.xlane.xlu0 %849
          %851 = vadd.xlane.f32.xlu0 %v830
          %v852 = vpop.xlane.xlu0 %851
          %853 = vadd.xlane.f32.xlu0 %v831
          %v854 = vpop.xlane.xlu0 %853
          %855 = vadd.xlane.f32.xlu0 %v832
          %v856 = vpop.xlane.xlu0 %855
          %857 = vadd.xlane.f32.xlu0 %v833
          %v858 = vpop.xlane.xlu0 %857
          %859 = vadd.xlane.f32.xlu0 %v834
          %v860 = vpop.xlane.xlu0 %859
          %861 = vadd.xlane.f32.xlu0 %v835
          %v862 = vpop.xlane.xlu0 %861
          %863 = vadd.xlane.f32.xlu0 %v836
          %v864 = vpop.xlane.xlu0 %863
          %865 = vadd.xlane.f32.xlu0 %v837
          %v866 = vpop.xlane.xlu0 %865
          %867 = vadd.xlane.f32.xlu0 %v838
          %v868 = vpop.xlane.xlu0 %867
          %869 = vadd.xlane.f32.xlu0 %v839
          %v870 = vpop.xlane.xlu0 %869
          %871 = vadd.xlane.f32.xlu0 %v840
          %v872 = vpop.xlane.xlu0 %871
          %873 = vadd.xlane.f32.xlu0 %v841
          %v874 = vpop.xlane.xlu0 %873
          %875 = vadd.xlane.f32.xlu0 %v842
          %v876 = vpop.xlane.xlu0 %875
          %v877 = vrcp.pop 128.0
          %v878 = vmul.f32 128.0, %v877
          %v879 = vsub.f32 1.0, %v878
          %v880 = vmul.f32 %v877, %v879
          %v881 = vadd.f32 %v877, %v880
          %vm882 = vweird.f32 %v877
          %v883 = vsel %vm882, %v877, %v881
          %v884 = vmul.f32 %v846, %v883
          %v885 = vmul.f32 %v848, %v883
          %v886 = vmul.f32 %v850, %v883
          %v887 = vmul.f32 %v852, %v883
          %v888 = vmul.f32 %v854, %v883
          %v889 = vmul.f32 %v856, %v883
          %v890 = vmul.f32 %v858, %v883
          %v891 = vmul.f32 %v860, %v883
          %v892 = vmul.f32 %v862, %v883
          %v893 = vmul.f32 %v864, %v883
          %v894 = vmul.f32 %v866, %v883
          %v895 = vmul.f32 %v868, %v883
          %v896 = vmul.f32 %v870, %v883
          %v897 = vmul.f32 %v872, %v883
          %v898 = vmul.f32 %v874, %v883
          %v899 = vmul.f32 %v876, %v883
          %v900 = vsub.f32 %v827, %v884
          %v901 = vsub.f32 %v828, %v885
          %v902 = vsub.f32 %v829, %v886
          %v903 = vsub.f32 %v830, %v887
          %v904 = vsub.f32 %v831, %v888
          %v905 = vsub.f32 %v832, %v889
          %v906 = vsub.f32 %v833, %v890
          %v907 = vsub.f32 %v834, %v891
          %v908 = vsub.f32 %v835, %v892
          %v909 = vsub.f32 %v836, %v893
          %v910 = vsub.f32 %v837, %v894
          %v911 = vsub.f32 %v838, %v895
          %v912 = vsub.f32 %v839, %v896
          %v913 = vsub.f32 %v840, %v897
          %v914 = vsub.f32 %v841, %v898
          %v915 = vsub.f32 %v842, %v899
          %v916 = vmul.f32 %v900, %v900
          %v917 = vmul.f32 %v901, %v901
          %v918 = vmul.f32 %v902, %v902
          %v919 = vmul.f32 %v903, %v903
          %v920 = vmul.f32 %v904, %v904
          %v921 = vmul.f32 %v905, %v905
          %v922 = vmul.f32 %v906, %v906
          %v923 = vmul.f32 %v907, %v907
          %v924 = vmul.f32 %v908, %v908
          %v925 = vmul.f32 %v909, %v909
          %v926 = vmul.f32 %v910, %v910
          %v927 = vmul.f32 %v911, %v911
          %v928 = vmul.f32 %v912, %v912
          %v929 = vmul.f32 %v913, %v913
          %v930 = vmul.f32 %v914, %v914
          %v931 = vmul.f32 %v915, %v915
          %932 = vadd.xlane.f32.xlu0 %v916
          %v933 = vpop.xlane.xlu0 %932
          %934 = vadd.xlane.f32.xlu0 %v917
          %v935 = vpop.xlane.xlu0 %934
          %936 = vadd.xlane.f32.xlu0 %v918
          %v937 = vpop.xlane.xlu0 %936
          %938 = vadd.xlane.f32.xlu0 %v919
          %v939 = vpop.xlane.xlu0 %938
          %940 = vadd.xlane.f32.xlu0 %v920
          %v941 = vpop.xlane.xlu0 %940
          %942 = vadd.xlane.f32.xlu0 %v921
          %v943 = vpop.xlane.xlu0 %942
          %944 = vadd.xlane.f32.xlu0 %v922
          %v945 = vpop.xlane.xlu0 %944
          %946 = vadd.xlane.f32.xlu0 %v923
          %v947 = vpop.xlane.xlu0 %946
          %948 = vadd.xlane.f32.xlu0 %v924
          %v949 = vpop.xlane.xlu0 %948
          %950 = vadd.xlane.f32.xlu0 %v925
          %v951 = vpop.xlane.xlu0 %950
          %952 = vadd.xlane.f32.xlu0 %v926
          %v953 = vpop.xlane.xlu0 %952
          %954 = vadd.xlane.f32.xlu0 %v927
          %v955 = vpop.xlane.xlu0 %954
          %956 = vadd.xlane.f32.xlu0 %v928
          %v957 = vpop.xlane.xlu0 %956
          %958 = vadd.xlane.f32.xlu0 %v929
          %v959 = vpop.xlane.xlu0 %958
          %960 = vadd.xlane.f32.xlu0 %v930
          %v961 = vpop.xlane.xlu0 %960
          %962 = vadd.xlane.f32.xlu0 %v931
          %v963 = vpop.xlane.xlu0 %962
          %v964 = vmul.f32 %v933, %v883
          %v965 = vmul.f32 %v935, %v883
          %v966 = vmul.f32 %v937, %v883
          %v967 = vmul.f32 %v939, %v883
          %v968 = vmul.f32 %v941, %v883
          %v969 = vmul.f32 %v943, %v883
          %v970 = vmul.f32 %v945, %v883
          %v971 = vmul.f32 %v947, %v883
          %v972 = vmul.f32 %v949, %v883
          %v973 = vmul.f32 %v951, %v883
          %v974 = vmul.f32 %v953, %v883
          %v975 = vmul.f32 %v955, %v883
          %v976 = vmul.f32 %v957, %v883
          %v977 = vmul.f32 %v959, %v883
          %v978 = vmul.f32 %v961, %v883
          %v979 = vmul.f32 %v963, %v883
          %v980 = vadd.f32 %v964, 1e-12
          %v981 = vadd.f32 %v965, 1e-12
          %v982 = vadd.f32 %v966, 1e-12
          %v983 = vadd.f32 %v967, 1e-12
          %v984 = vadd.f32 %v968, 1e-12
          %v985 = vadd.f32 %v969, 1e-12
          %v986 = vadd.f32 %v970, 1e-12
          %v987 = vadd.f32 %v971, 1e-12
          %v988 = vadd.f32 %v972, 1e-12
          %v989 = vadd.f32 %v973, 1e-12
          %v990 = vadd.f32 %v974, 1e-12
          %v991 = vadd.f32 %v975, 1e-12
          %v992 = vadd.f32 %v976, 1e-12
          %v993 = vadd.f32 %v977, 1e-12
          %v994 = vadd.f32 %v978, 1e-12
          %v995 = vadd.f32 %v979, 1e-12
          %v996 = vrsqrt.pop %v980
          %v997 = vmul.f32 %v996, %v980
          %v998 = vmul.f32 %v997, %v996
          %v999 = vmul.f32 0.5, %v998
          %v1000 = vsub.f32 1.5, %v999
          %v1001 = vmul.f32 %v996, %v1000
          %vm1002 = vweird.f32 %v980
          %vm1003 = vweird.f32 %v996
          %vm1004 = vmor %vm1002, %vm1003
          %v1005 = vsel %vm1004, %v996, %v1001
          %v1006 = vrsqrt.pop %v981
          %v1007 = vmul.f32 %v1006, %v981
          %v1008 = vmul.f32 %v1007, %v1006
          %v1009 = vmul.f32 0.5, %v1008
          %v1010 = vsub.f32 1.5, %v1009
          %v1011 = vmul.f32 %v1006, %v1010
          %vm1012 = vweird.f32 %v981
          %vm1013 = vweird.f32 %v1006
          %vm1014 = vmor %vm1012, %vm1013
          %v1015 = vsel %vm1014, %v1006, %v1011
          %v1016 = vrsqrt.pop %v982
          %v1017 = vmul.f32 %v1016, %v982
          %v1018 = vmul.f32 %v1017, %v1016
          %v1019 = vmul.f32 0.5, %v1018
          %v1020 = vsub.f32 1.5, %v1019
          %v1021 = vmul.f32 %v1016, %v1020
          %vm1022 = vweird.f32 %v982
          %vm1023 = vweird.f32 %v1016
          %vm1024 = vmor %vm1022, %vm1023
          %v1025 = vsel %vm1024, %v1016, %v1021
          %v1026 = vrsqrt.pop %v983
          %v1027 = vmul.f32 %v1026, %v983
          %v1028 = vmul.f32 %v1027, %v1026
          %v1029 = vmul.f32 0.5, %v1028
          %v1030 = vsub.f32 1.5, %v1029
          %v1031 = vmul.f32 %v1026, %v1030
          %vm1032 = vweird.f32 %v983
          %vm1033 = vweird.f32 %v1026
          %vm1034 = vmor %vm1032, %vm1033
          %v1035 = vsel %vm1034, %v1026, %v1031
          %v1036 = vrsqrt.pop %v984
          %v1037 = vmul.f32 %v1036, %v984
          %v1038 = vmul.f32 %v1037, %v1036
          %v1039 = vmul.f32 0.5, %v1038
          %v1040 = vsub.f32 1.5, %v1039
          %v1041 = vmul.f32 %v1036, %v1040
          %vm1042 = vweird.f32 %v984
          %vm1043 = vweird.f32 %v1036
          %vm1044 = vmor %vm1042, %vm1043
          %v1045 = vsel %vm1044, %v1036, %v1041
          %v1046 = vrsqrt.pop %v985
          %v1047 = vmul.f32 %v1046, %v985
          %v1048 = vmul.f32 %v1047, %v1046
          %v1049 = vmul.f32 0.5, %v1048
          %v1050 = vsub.f32 1.5, %v1049
          %v1051 = vmul.f32 %v1046, %v1050
          %vm1052 = vweird.f32 %v985
          %vm1053 = vweird.f32 %v1046
          %vm1054 = vmor %vm1052, %vm1053
          %v1055 = vsel %vm1054, %v1046, %v1051
          %v1056 = vrsqrt.pop %v986
          %v1057 = vmul.f32 %v1056, %v986
          %v1058 = vmul.f32 %v1057, %v1056
          %v1059 = vmul.f32 0.5, %v1058
          %v1060 = vsub.f32 1.5, %v1059
          %v1061 = vmul.f32 %v1056, %v1060
          %vm1062 = vweird.f32 %v986
          %vm1063 = vweird.f32 %v1056
          %vm1064 = vmor %vm1062, %vm1063
          %v1065 = vsel %vm1064, %v1056, %v1061
          %v1066 = vrsqrt.pop %v987
          %v1067 = vmul.f32 %v1066, %v987
          %v1068 = vmul.f32 %v1067, %v1066
          %v1069 = vmul.f32 0.5, %v1068
          %v1070 = vsub.f32 1.5, %v1069
          %v1071 = vmul.f32 %v1066, %v1070
          %vm1072 = vweird.f32 %v987
          %vm1073 = vweird.f32 %v1066
          %vm1074 = vmor %vm1072, %vm1073
          %v1075 = vsel %vm1074, %v1066, %v1071
          %v1076 = vrsqrt.pop %v988
          %v1077 = vmul.f32 %v1076, %v988
          %v1078 = vmul.f32 %v1077, %v1076
          %v1079 = vmul.f32 0.5, %v1078
          %v1080 = vsub.f32 1.5, %v1079
          %v1081 = vmul.f32 %v1076, %v1080
          %vm1082 = vweird.f32 %v988
          %vm1083 = vweird.f32 %v1076
          %vm1084 = vmor %vm1082, %vm1083
          %v1085 = vsel %vm1084, %v1076, %v1081
          %v1086 = vrsqrt.pop %v989
          %v1087 = vmul.f32 %v1086, %v989
          %v1088 = vmul.f32 %v1087, %v1086
          %v1089 = vmul.f32 0.5, %v1088
          %v1090 = vsub.f32 1.5, %v1089
          %v1091 = vmul.f32 %v1086, %v1090
          %vm1092 = vweird.f32 %v989
          %vm1093 = vweird.f32 %v1086
          %vm1094 = vmor %vm1092, %vm1093
          %v1095 = vsel %vm1094, %v1086, %v1091
          %v1096 = vrsqrt.pop %v990
          %v1097 = vmul.f32 %v1096, %v990
          %v1098 = vmul.f32 %v1097, %v1096
          %v1099 = vmul.f32 0.5, %v1098
          %v1100 = vsub.f32 1.5, %v1099
          %v1101 = vmul.f32 %v1096, %v1100
          %vm1102 = vweird.f32 %v990
          %vm1103 = vweird.f32 %v1096
          %vm1104 = vmor %vm1102, %vm1103
          %v1105 = vsel %vm1104, %v1096, %v1101
          %v1106 = vrsqrt.pop %v991
          %v1107 = vmul.f32 %v1106, %v991
          %v1108 = vmul.f32 %v1107, %v1106
          %v1109 = vmul.f32 0.5, %v1108
          %v1110 = vsub.f32 1.5, %v1109
          %v1111 = vmul.f32 %v1106, %v1110
          %vm1112 = vweird.f32 %v991
          %vm1113 = vweird.f32 %v1106
          %vm1114 = vmor %vm1112, %vm1113
          %v1115 = vsel %vm1114, %v1106, %v1111
          %v1116 = vrsqrt.pop %v992
          %v1117 = vmul.f32 %v1116, %v992
          %v1118 = vmul.f32 %v1117, %v1116
          %v1119 = vmul.f32 0.5, %v1118
          %v1120 = vsub.f32 1.5, %v1119
          %v1121 = vmul.f32 %v1116, %v1120
          %vm1122 = vweird.f32 %v992
          %vm1123 = vweird.f32 %v1116
          %vm1124 = vmor %vm1122, %vm1123
          %v1125 = vsel %vm1124, %v1116, %v1121
          %v1126 = vrsqrt.pop %v993
          %v1127 = vmul.f32 %v1126, %v993
          %v1128 = vmul.f32 %v1127, %v1126
          %v1129 = vmul.f32 0.5, %v1128
          %v1130 = vsub.f32 1.5, %v1129
          %v1131 = vmul.f32 %v1126, %v1130
          %vm1132 = vweird.f32 %v993
          %vm1133 = vweird.f32 %v1126
          %vm1134 = vmor %vm1132, %vm1133
          %v1135 = vsel %vm1134, %v1126, %v1131
          %v1136 = vrsqrt.pop %v994
          %v1137 = vmul.f32 %v1136, %v994
          %v1138 = vmul.f32 %v1137, %v1136
          %v1139 = vmul.f32 0.5, %v1138
          %v1140 = vsub.f32 1.5, %v1139
          %v1141 = vmul.f32 %v1136, %v1140
          %vm1142 = vweird.f32 %v994
          %vm1143 = vweird.f32 %v1136
          %vm1144 = vmor %vm1142, %vm1143
          %v1145 = vsel %vm1144, %v1136, %v1141
          %v1146 = vrsqrt.pop %v995
          %v1147 = vmul.f32 %v1146, %v995
          %v1148 = vmul.f32 %v1147, %v1146
          %v1149 = vmul.f32 0.5, %v1148
          %v1150 = vsub.f32 1.5, %v1149
          %v1151 = vmul.f32 %v1146, %v1150
          %vm1152 = vweird.f32 %v995
          %vm1153 = vweird.f32 %v1146
          %vm1154 = vmor %vm1152, %vm1153
          %v1155 = vsel %vm1154, %v1146, %v1151
          %v1156 = vmul.f32 %v900, %v1005
          %v1157 = vmul.f32 %v901, %v1015
          %v1158 = vmul.f32 %v902, %v1025
          %v1159 = vmul.f32 %v903, %v1035
          %v1160 = vmul.f32 %v904, %v1045
          %v1161 = vmul.f32 %v905, %v1055
          %v1162 = vmul.f32 %v906, %v1065
          %v1163 = vmul.f32 %v907, %v1075
          %v1164 = vmul.f32 %v908, %v1085
          %v1165 = vmul.f32 %v909, %v1095
          %v1166 = vmul.f32 %v910, %v1105
          %v1167 = vmul.f32 %v911, %v1115
          %v1168 = vmul.f32 %v912, %v1125
          %v1169 = vmul.f32 %v913, %v1135
          %v1170 = vmul.f32 %v914, %v1145
          %v1171 = vmul.f32 %v915, %v1155
          %v1173 = vperm.slane %v843, 0
          %v1175 = vmul.f32 %v1156, %v1173
          %v1176 = vmul.f32 %v1157, %v1173
          %v1177 = vmul.f32 %v1158, %v1173
          %v1178 = vmul.f32 %v1159, %v1173
          %v1179 = vmul.f32 %v1160, %v1173
          %v1180 = vmul.f32 %v1161, %v1173
          %v1181 = vmul.f32 %v1162, %v1173
          %v1182 = vmul.f32 %v1163, %v1173
          %v1183 = vmul.f32 %v1164, %v1173
          %v1184 = vmul.f32 %v1165, %v1173
          %v1185 = vmul.f32 %v1166, %v1173
          %v1186 = vmul.f32 %v1167, %v1173
          %v1187 = vmul.f32 %v1168, %v1173
          %v1188 = vmul.f32 %v1169, %v1173
          %v1189 = vmul.f32 %v1170, %v1173
          %v1190 = vmul.f32 %v1171, %v1173
          %v1192 = vperm.slane %v844, 0
          %v1194 = vadd.f32 %v1175, %v1192
          %v1195 = vadd.f32 %v1176, %v1192
          %v1196 = vadd.f32 %v1177, %v1192
          %v1197 = vadd.f32 %v1178, %v1192
          %v1198 = vadd.f32 %v1179, %v1192
          %v1199 = vadd.f32 %v1180, %v1192
          %v1200 = vadd.f32 %v1181, %v1192
          %v1201 = vadd.f32 %v1182, %v1192
          %v1202 = vadd.f32 %v1183, %v1192
          %v1203 = vadd.f32 %v1184, %v1192
          %v1204 = vadd.f32 %v1185, %v1192
          %v1205 = vadd.f32 %v1186, %v1192
          %v1206 = vadd.f32 %v1187, %v1192
          %v1207 = vadd.f32 %v1188, %v1192
          %v1208 = vadd.f32 %v1189, %v1192
          %v1209 = vadd.f32 %v1190, %v1192
          %1210 = vst [vmem:[#allocation2] sm:$0xff] %v1194
          %1211 = vst [vmem:[#allocation2 + $0x8] sm:$0xff] %v1195
          %1212 = vst [vmem:[#allocation2 + $0x10] sm:$0xff] %v1196
          %1213 = vst [vmem:[#allocation2 + $0x18] sm:$0xff] %v1197
          %1214 = vst [vmem:[#allocation2 + $0x20] sm:$0xff] %v1198
          %1215 = vst [vmem:[#allocation2 + $0x28] sm:$0xff] %v1199
          %1216 = vst [vmem:[#allocation2 + $0x30] sm:$0xff] %v1200
          %1217 = vst [vmem:[#allocation2 + $0x38] sm:$0xff] %v1201
          %1218 = vst [vmem:[#allocation2 + $0x40] sm:$0xff] %v1202
          %1219 = vst [vmem:[#allocation2 + $0x48] sm:$0xff] %v1203
          %1220 = vst [vmem:[#allocation2 + $0x50] sm:$0xff] %v1204
          %1221 = vst [vmem:[#allocation2 + $0x58] sm:$0xff] %v1205
          %1222 = vst [vmem:[#allocation2 + $0x60] sm:$0xff] %v1206
          %1223 = vst [vmem:[#allocation2 + $0x68] sm:$0xff] %v1207
          %1224 = vst [vmem:[#allocation2 + $0x70] sm:$0xff] %v1208
          %1225 = vst [vmem:[#allocation2 + $0x78] sm:$0xff] %v1209
        $region96: #{bge_forward.1} parent=91 // pred_fallthru
          _
        %v1226 = vld [vmem:[#allocation2] sm:$0xff]
        %v1227 = vld [vmem:[#allocation2 + $0x8] sm:$0xff]
        %v1228 = vld [vmem:[#allocation2 + $0x10] sm:$0xff]
        %v1229 = vld [vmem:[#allocation2 + $0x18] sm:$0xff]
        %v1230 = vld [vmem:[#allocation2 + $0x20] sm:$0xff]
        %v1231 = vld [vmem:[#allocation2 + $0x28] sm:$0xff]
        %v1232 = vld [vmem:[#allocation2 + $0x30] sm:$0xff]
        %v1233 = vld [vmem:[#allocation2 + $0x38] sm:$0xff]
        %v1234 = vld [vmem:[#allocation2 + $0x40] sm:$0xff]
        %v1235 = vld [vmem:[#allocation2 + $0x48] sm:$0xff]
        %v1236 = vld [vmem:[#allocation2 + $0x50] sm:$0xff]
        %v1237 = vld [vmem:[#allocation2 + $0x58] sm:$0xff]
        %v1238 = vld [vmem:[#allocation2 + $0x60] sm:$0xff]
        %v1239 = vld [vmem:[#allocation2 + $0x68] sm:$0xff]
        %v1240 = vld [vmem:[#allocation2 + $0x70] sm:$0xff]
        %v1241 = vld [vmem:[#allocation2 + $0x78] sm:$0xff]
        %v1242 = vpack.c.bf16 %v1227, %v1226
        %v1243 = vpack.c.bf16 %v1229, %v1228
        %v1244 = vpack.c.bf16 %v1231, %v1230
        %v1245 = vpack.c.bf16 %v1233, %v1232
        %v1246 = vpack.c.bf16 %v1235, %v1234
        %v1247 = vpack.c.bf16 %v1237, %v1236
        %v1248 = vpack.c.bf16 %v1239, %v1238
        %v1249 = vpack.c.bf16 %v1241, %v1240
        %v1250 = vld [vmem:[%s763] sm:$0xff]
        %v1251 = vld [vmem:[%s763 + $0x8] sm:$0xf]
        %v1252 = vld [vmem:[%s763 + $0xc] sm:$0xff]
        %v1253 = vld [vmem:[%s763 + $0x14] sm:$0xf]
        %v1254 = vld [vmem:[%s763 + $0x18] sm:$0xff]
        %v1255 = vld [vmem:[%s763 + $0x20] sm:$0xf]
        %v1256 = vld [vmem:[%s763 + $0x24] sm:$0xff]
        %v1257 = vld [vmem:[%s763 + $0x2c] sm:$0xf]
        %v1258 = vld [vmem:[%s763 + $0x30] sm:$0xff]
        %v1259 = vld [vmem:[%s763 + $0x38] sm:$0xf]
        %v1260 = vld [vmem:[%s763 + $0x3c] sm:$0xff]
        %v1261 = vld [vmem:[%s763 + $0x44] sm:$0xf]
        %v1262 = vld [vmem:[%s763 + $0x48] sm:$0xff]
        %v1263 = vld [vmem:[%s763 + $0x50] sm:$0xf]
        %v1264 = vld [vmem:[%s763 + $0x54] sm:$0xff]
        %v1265 = vld [vmem:[%s763 + $0x5c] sm:$0xf]
        %v1266 = vld [vmem:[%s763 + $0x60] sm:$0xff]
        %v1267 = vld [vmem:[%s763 + $0x68] sm:$0xf]
        %v1268 = vld [vmem:[%s763 + $0x6c] sm:$0xff]
        %v1269 = vld [vmem:[%s763 + $0x74] sm:$0xf]
        %v1270 = vld [vmem:[%s763 + $0x78] sm:$0xff]
        %v1271 = vld [vmem:[%s763 + $0x80] sm:$0xf]
        %v1272 = vld [vmem:[%s763 + $0x84] sm:$0xff]
        %v1273 = vld [vmem:[%s763 + $0x8c] sm:$0xf]
        %v1274 = vld [vmem:[%s763 + $0x90] sm:$0xff]
        %v1275 = vld [vmem:[%s763 + $0x98] sm:$0xf]
        %v1276 = vld [vmem:[%s763 + $0x9c] sm:$0xff]
        %v1277 = vld [vmem:[%s763 + $0xa4] sm:$0xf]
        %v1278 = vld [vmem:[%s763 + $0xa8] sm:$0xff]
        %v1279 = vld [vmem:[%s763 + $0xb0] sm:$0xf]
        %v1280 = vld [vmem:[%s763 + $0xb4] sm:$0xff]
        %v1281 = vld [vmem:[%s763 + $0xbc] sm:$0xf]
        %v1282 = vld [vmem:[%s767] sm:$0x7]
        %v1284 = vperm.slane %v1282, 0
        %v1285 = vperm.slane %v1282, 1
        %v1286 = vperm.slane %v1282, 2
        %v1322 = vunpack.c.l.b16 %v1250
        %v1323 = vunpack.c.h.b16 %v1250
        %v1324 = vunpack.c.l.b16 %v1251
        %v1325 = vunpack.c.l.b16 %v1252
        %v1326 = vunpack.c.h.b16 %v1252
        %v1327 = vunpack.c.l.b16 %v1253
        %v1328 = vunpack.c.l.b16 %v1254
        %v1329 = vunpack.c.h.b16 %v1254
        %v1330 = vunpack.c.l.b16 %v1255
        %v1331 = vunpack.c.l.b16 %v1256
        %v1332 = vunpack.c.h.b16 %v1256
        %v1333 = vunpack.c.l.b16 %v1257
        %v1334 = vunpack.c.l.b16 %v1258
        %v1335 = vunpack.c.h.b16 %v1258
        %v1336 = vunpack.c.l.b16 %v1259
        %v1337 = vunpack.c.l.b16 %v1260
        %v1338 = vunpack.c.h.b16 %v1260
        %v1339 = vunpack.c.l.b16 %v1261
        %v1340 = vunpack.c.l.b16 %v1262
        %v1341 = vunpack.c.h.b16 %v1262
        %v1342 = vunpack.c.l.b16 %v1263
        %v1343 = vunpack.c.l.b16 %v1264
        %v1344 = vunpack.c.h.b16 %v1264
        %v1345 = vunpack.c.l.b16 %v1265
        %v1346 = vunpack.c.l.b16 %v1266
        %v1347 = vunpack.c.h.b16 %v1266
        %v1348 = vunpack.c.l.b16 %v1267
        %v1349 = vunpack.c.l.b16 %v1268
        %v1350 = vunpack.c.h.b16 %v1268
        %v1351 = vunpack.c.l.b16 %v1269
        %v1352 = vunpack.c.l.b16 %v1270
        %v1353 = vunpack.c.h.b16 %v1270
        %v1354 = vunpack.c.l.b16 %v1271
        %v1355 = vunpack.c.l.b16 %v1272
        %v1356 = vunpack.c.h.b16 %v1272
        %v1357 = vunpack.c.l.b16 %v1273
        %v1358 = vunpack.c.l.b16 %v1274
        %v1359 = vunpack.c.h.b16 %v1274
        %v1360 = vunpack.c.l.b16 %v1275
        %v1361 = vunpack.c.l.b16 %v1276
        %v1362 = vunpack.c.h.b16 %v1276
        %v1363 = vunpack.c.l.b16 %v1277
        %v1364 = vunpack.c.l.b16 %v1278
        %v1365 = vunpack.c.h.b16 %v1278
        %v1366 = vunpack.c.l.b16 %v1279
        %v1367 = vunpack.c.l.b16 %v1280
        %v1368 = vunpack.c.h.b16 %v1280
        %v1369 = vunpack.c.l.b16 %v1281
        %v1370 = vpack.c.b16 %v1325, %v1322
        %v1371 = vpack.c.b16 %v1326, %v1323
        %v1372 = vpack.c.b16 %v1327, %v1324
        %v1373 = vpack.c.b16 %v1331, %v1328
        %v1374 = vpack.c.b16 %v1332, %v1329
        %v1375 = vpack.c.b16 %v1333, %v1330
        %v1376 = vpack.c.b16 %v1337, %v1334
        %v1377 = vpack.c.b16 %v1338, %v1335
        %v1378 = vpack.c.b16 %v1339, %v1336
        %v1379 = vpack.c.b16 %v1343, %v1340
        %v1380 = vpack.c.b16 %v1344, %v1341
        %v1381 = vpack.c.b16 %v1345, %v1342
        %v1382 = vpack.c.b16 %v1349, %v1346
        %v1383 = vpack.c.b16 %v1350, %v1347
        %v1384 = vpack.c.b16 %v1351, %v1348
        %v1385 = vpack.c.b16 %v1355, %v1352
        %v1386 = vpack.c.b16 %v1356, %v1353
        %v1387 = vpack.c.b16 %v1357, %v1354
        %v1388 = vpack.c.b16 %v1361, %v1358
        %v1389 = vpack.c.b16 %v1362, %v1359
        %v1390 = vpack.c.b16 %v1363, %v1360
        %v1391 = vpack.c.b16 %v1367, %v1364
        %v1392 = vpack.c.b16 %v1368, %v1365
        %v1393 = vpack.c.b16 %v1369, %v1366
        %1418 = vmatpush.bf16.msra.mxu0 %v1391
        %1419 = vmatpush.bf16.msra.mxu0 %v1388
        %1420 = vmatpush.bf16.msra.mxu0 %v1385
        %1421 = vmatpush.bf16.msra.mxu0 %v1382
        %1422 = vmatpush.bf16.msra.mxu0 %v1379
        %1423 = vmatpush.bf16.msra.mxu0 %v1376
        %1424 = vmatpush.bf16.msra.mxu0 %v1373
        %1425 = vmatpush.bf16.msra.mxu0 %v1370
        %1426 = vmatmul.bf16.gmra.mxu0 %v1242
        %v1427 = vpop.f32.mrf.mxu0
        %v1428 = vadd.f32 %v1284, %v1427
        %v1429 = vpop.f32.mrf.mxu0
        %v1430 = vadd.f32 %v1284, %v1429
        %1431 = vmatmul.bf16.gmra.mxu0 %v1243
        %v1432 = vpop.f32.mrf.mxu0
        %v1433 = vadd.f32 %v1284, %v1432
        %v1434 = vpop.f32.mrf.mxu0
        %v1435 = vadd.f32 %v1284, %v1434
        %1436 = vmatmul.bf16.gmra.mxu0 %v1244
        %v1437 = vpop.f32.mrf.mxu0
        %v1438 = vadd.f32 %v1284, %v1437
        %v1439 = vpop.f32.mrf.mxu0
        %v1440 = vadd.f32 %v1284, %v1439
        %1441 = vmatmul.bf16.gmra.mxu0 %v1245
        %v1442 = vpop.f32.mrf.mxu0
        %v1443 = vadd.f32 %v1284, %v1442
        %v1444 = vpop.f32.mrf.mxu0
        %v1445 = vadd.f32 %v1284, %v1444
        %1446 = vmatmul.bf16.gmra.mxu0 %v1246
        %v1447 = vpop.f32.mrf.mxu0
        %v1448 = vadd.f32 %v1284, %v1447
        %v1449 = vpop.f32.mrf.mxu0
        %v1450 = vadd.f32 %v1284, %v1449
        %1451 = vmatmul.bf16.gmra.mxu0 %v1247
        %v1452 = vpop.f32.mrf.mxu0
        %v1453 = vadd.f32 %v1284, %v1452
        %v1454 = vpop.f32.mrf.mxu0
        %v1455 = vadd.f32 %v1284, %v1454
        %1456 = vmatmul.bf16.gmra.mxu0 %v1248
        %v1457 = vpop.f32.mrf.mxu0
        %v1458 = vadd.f32 %v1284, %v1457
        %v1459 = vpop.f32.mrf.mxu0
        %v1460 = vadd.f32 %v1284, %v1459
        %1461 = vmatmul.bf16.gmra.mxu0 %v1249
        %v1462 = vpop.f32.mrf.mxu0
        %v1463 = vadd.f32 %v1284, %v1462
        %v1464 = vpop.f32.mrf.mxu0
        %v1465 = vadd.f32 %v1284, %v1464
        %1466 = vdwg.mxu0
        %1467 = vmatpush.bf16.msra.mxu0 %v1392
        %1468 = vmatpush.bf16.msra.mxu0 %v1389
        %1469 = vmatpush.bf16.msra.mxu0 %v1386
        %1470 = vmatpush.bf16.msra.mxu0 %v1383
        %1471 = vmatpush.bf16.msra.mxu0 %v1380
        %1472 = vmatpush.bf16.msra.mxu0 %v1377
        %1473 = vmatpush.bf16.msra.mxu0 %v1374
        %1474 = vmatpush.bf16.msra.mxu0 %v1371
        %1475 = vmatmul.bf16.gmra.mxu0 %v1242
        %v1476 = vpop.f32.mrf.mxu0
        %v1477 = vadd.f32 %v1285, %v1476
        %v1478 = vpop.f32.mrf.mxu0
        %v1479 = vadd.f32 %v1285, %v1478
        %1480 = vmatmul.bf16.gmra.mxu0 %v1243
        %v1481 = vpop.f32.mrf.mxu0
        %v1482 = vadd.f32 %v1285, %v1481
        %v1483 = vpop.f32.mrf.mxu0
        %v1484 = vadd.f32 %v1285, %v1483
        %1485 = vmatmul.bf16.gmra.mxu0 %v1244
        %v1486 = vpop.f32.mrf.mxu0
        %v1487 = vadd.f32 %v1285, %v1486
        %v1488 = vpop.f32.mrf.mxu0
        %v1489 = vadd.f32 %v1285, %v1488
        %1490 = vmatmul.bf16.gmra.mxu0 %v1245
        %v1491 = vpop.f32.mrf.mxu0
        %v1492 = vadd.f32 %v1285, %v1491
        %v1493 = vpop.f32.mrf.mxu0
        %v1494 = vadd.f32 %v1285, %v1493
        %1495 = vmatmul.bf16.gmra.mxu0 %v1246
        %v1496 = vpop.f32.mrf.mxu0
        %v1497 = vadd.f32 %v1285, %v1496
        %v1498 = vpop.f32.mrf.mxu0
        %v1499 = vadd.f32 %v1285, %v1498
        %1500 = vmatmul.bf16.gmra.mxu0 %v1247
        %v1501 = vpop.f32.mrf.mxu0
        %v1502 = vadd.f32 %v1285, %v1501
        %v1503 = vpop.f32.mrf.mxu0
        %v1504 = vadd.f32 %v1285, %v1503
        %1505 = vmatmul.bf16.gmra.mxu0 %v1248
        %v1506 = vpop.f32.mrf.mxu0
        %v1507 = vadd.f32 %v1285, %v1506
        %v1508 = vpop.f32.mrf.mxu0
        %v1509 = vadd.f32 %v1285, %v1508
        %1510 = vmatmul.bf16.gmra.mxu0 %v1249
        %v1511 = vpop.f32.mrf.mxu0
        %v1512 = vadd.f32 %v1285, %v1511
        %v1513 = vpop.f32.mrf.mxu0
        %v1514 = vadd.f32 %v1285, %v1513
        %1515 = vdwg.mxu0
        %1516 = vmatpush.bf16.msra.mxu0 %v1393
        %1517 = vmatpush.bf16.msra.mxu0 %v1390
        %1518 = vmatpush.bf16.msra.mxu0 %v1387
        %1519 = vmatpush.bf16.msra.mxu0 %v1384
        %1520 = vmatpush.bf16.msra.mxu0 %v1381
        %1521 = vmatpush.bf16.msra.mxu0 %v1378
        %1522 = vmatpush.bf16.msra.mxu0 %v1375
        %1523 = vmatpush.bf16.msra.mxu0 %v1372
        %1524 = vmatmul.bf16.gmra.mxu0 %v1242
        %v1525 = vpop.f32.mrf.mxu0
        %v1526 = vadd.f32 %v1286, %v1525
        %v1527 = vpop.f32.mrf.mxu0
        %v1528 = vadd.f32 %v1286, %v1527
        %1529 = vmatmul.bf16.gmra.mxu0 %v1243
        %v1530 = vpop.f32.mrf.mxu0
        %v1531 = vadd.f32 %v1286, %v1530
        %v1532 = vpop.f32.mrf.mxu0
        %v1533 = vadd.f32 %v1286, %v1532
        %1534 = vmatmul.bf16.gmra.mxu0 %v1244
        %v1535 = vpop.f32.mrf.mxu0
        %v1536 = vadd.f32 %v1286, %v1535
        %v1537 = vpop.f32.mrf.mxu0
        %v1538 = vadd.f32 %v1286, %v1537
        %1539 = vmatmul.bf16.gmra.mxu0 %v1245
        %v1540 = vpop.f32.mrf.mxu0
        %v1541 = vadd.f32 %v1286, %v1540
        %v1542 = vpop.f32.mrf.mxu0
        %v1543 = vadd.f32 %v1286, %v1542
        %1544 = vmatmul.bf16.gmra.mxu0 %v1246
        %v1545 = vpop.f32.mrf.mxu0
        %v1546 = vadd.f32 %v1286, %v1545
        %v1547 = vpop.f32.mrf.mxu0
        %v1548 = vadd.f32 %v1286, %v1547
        %1549 = vmatmul.bf16.gmra.mxu0 %v1247
        %v1550 = vpop.f32.mrf.mxu0
        %v1551 = vadd.f32 %v1286, %v1550
        %v1552 = vpop.f32.mrf.mxu0
        %v1553 = vadd.f32 %v1286, %v1552
        %1554 = vmatmul.bf16.gmra.mxu0 %v1248
        %v1555 = vpop.f32.mrf.mxu0
        %v1556 = vadd.f32 %v1286, %v1555
        %v1557 = vpop.f32.mrf.mxu0
        %v1558 = vadd.f32 %v1286, %v1557
        %1559 = vmatmul.bf16.gmra.mxu0 %v1249
        %v1560 = vpop.f32.mrf.mxu0
        %v1561 = vadd.f32 %v1286, %v1560
        %v1562 = vpop.f32.mrf.mxu0
        %v1563 = vadd.f32 %v1286, %v1562
        %1564 = vdwg.mxu0
        %1581 = vrot.lane.b32.xlu0 %v1428, 96
        %v1582 = vpop.permute.xlu0 %1581
        %1583 = vrot.lane.b32.xlu0 %v1430, 96
        %v1584 = vpop.permute.xlu0 %1583
        %1585 = vrot.lane.b32.xlu0 %v1433, 96
        %v1586 = vpop.permute.xlu0 %1585
        %1587 = vrot.lane.b32.xlu0 %v1435, 96
        %v1588 = vpop.permute.xlu0 %1587
        %1589 = vrot.lane.b32.xlu0 %v1438, 96
        %v1590 = vpop.permute.xlu0 %1589
        %1591 = vrot.lane.b32.xlu0 %v1440, 96
        %v1592 = vpop.permute.xlu0 %1591
        %1593 = vrot.lane.b32.xlu0 %v1443, 96
        %v1594 = vpop.permute.xlu0 %1593
        %1595 = vrot.lane.b32.xlu0 %v1445, 96
        %v1596 = vpop.permute.xlu0 %1595
        %1597 = vrot.lane.b32.xlu0 %v1448, 96
        %v1598 = vpop.permute.xlu0 %1597
        %1599 = vrot.lane.b32.xlu0 %v1450, 96
        %v1600 = vpop.permute.xlu0 %1599
        %1601 = vrot.lane.b32.xlu0 %v1453, 96
        %v1602 = vpop.permute.xlu0 %1601
        %1603 = vrot.lane.b32.xlu0 %v1455, 96
        %v1604 = vpop.permute.xlu0 %1603
        %1605 = vrot.lane.b32.xlu0 %v1458, 96
        %v1606 = vpop.permute.xlu0 %1605
        %1607 = vrot.lane.b32.xlu0 %v1460, 96
        %v1608 = vpop.permute.xlu0 %1607
        %1609 = vrot.lane.b32.xlu0 %v1463, 96
        %v1610 = vpop.permute.xlu0 %1609
        %1611 = vrot.lane.b32.xlu0 %v1465, 96
        %v1612 = vpop.permute.xlu0 %1611
        %1629 = vrot.lane.b32.xlu0 %v1428, 64
        %v1630 = vpop.permute.xlu0 %1629
        %1631 = vrot.lane.b32.xlu0 %v1430, 64
        %v1632 = vpop.permute.xlu0 %1631
        %1633 = vrot.lane.b32.xlu0 %v1433, 64
        %v1634 = vpop.permute.xlu0 %1633
        %1635 = vrot.lane.b32.xlu0 %v1435, 64
        %v1636 = vpop.permute.xlu0 %1635
        %1637 = vrot.lane.b32.xlu0 %v1438, 64
        %v1638 = vpop.permute.xlu0 %1637
        %1639 = vrot.lane.b32.xlu0 %v1440, 64
        %v1640 = vpop.permute.xlu0 %1639
        %1641 = vrot.lane.b32.xlu0 %v1443, 64
        %v1642 = vpop.permute.xlu0 %1641
        %1643 = vrot.lane.b32.xlu0 %v1445, 64
        %v1644 = vpop.permute.xlu0 %1643
        %1645 = vrot.lane.b32.xlu0 %v1448, 64
        %v1646 = vpop.permute.xlu0 %1645
        %1647 = vrot.lane.b32.xlu0 %v1450, 64
        %v1648 = vpop.permute.xlu0 %1647
        %1649 = vrot.lane.b32.xlu0 %v1453, 64
        %v1650 = vpop.permute.xlu0 %1649
        %1651 = vrot.lane.b32.xlu0 %v1455, 64
        %v1652 = vpop.permute.xlu0 %1651
        %1653 = vrot.lane.b32.xlu0 %v1458, 64
        %v1654 = vpop.permute.xlu0 %1653
        %1655 = vrot.lane.b32.xlu0 %v1460, 64
        %v1656 = vpop.permute.xlu0 %1655
        %1657 = vrot.lane.b32.xlu0 %v1463, 64
        %v1658 = vpop.permute.xlu0 %1657
        %1659 = vrot.lane.b32.xlu0 %v1465, 64
        %v1660 = vpop.permute.xlu0 %1659
        %1677 = vrot.lane.b32.xlu0 %v1428, 32
        %v1678 = vpop.permute.xlu0 %1677
        %1679 = vrot.lane.b32.xlu0 %v1430, 32
        %v1680 = vpop.permute.xlu0 %1679
        %1681 = vrot.lane.b32.xlu0 %v1433, 32
        %v1682 = vpop.permute.xlu0 %1681
        %1683 = vrot.lane.b32.xlu0 %v1435, 32
        %v1684 = vpop.permute.xlu0 %1683
        %1685 = vrot.lane.b32.xlu0 %v1438, 32
        %v1686 = vpop.permute.xlu0 %1685
        %1687 = vrot.lane.b32.xlu0 %v1440, 32
        %v1688 = vpop.permute.xlu0 %1687
        %1689 = vrot.lane.b32.xlu0 %v1443, 32
        %v1690 = vpop.permute.xlu0 %1689
        %1691 = vrot.lane.b32.xlu0 %v1445, 32
        %v1692 = vpop.permute.xlu0 %1691
        %1693 = vrot.lane.b32.xlu0 %v1448, 32
        %v1694 = vpop.permute.xlu0 %1693
        %1695 = vrot.lane.b32.xlu0 %v1450, 32
        %v1696 = vpop.permute.xlu0 %1695
        %1697 = vrot.lane.b32.xlu0 %v1453, 32
        %v1698 = vpop.permute.xlu0 %1697
        %1699 = vrot.lane.b32.xlu0 %v1455, 32
        %v1700 = vpop.permute.xlu0 %1699
        %1701 = vrot.lane.b32.xlu0 %v1458, 32
        %v1702 = vpop.permute.xlu0 %1701
        %1703 = vrot.lane.b32.xlu0 %v1460, 32
        %v1704 = vpop.permute.xlu0 %1703
        %1705 = vrot.lane.b32.xlu0 %v1463, 32
        %v1706 = vpop.permute.xlu0 %1705
        %1707 = vrot.lane.b32.xlu0 %v1465, 32
        %v1708 = vpop.permute.xlu0 %1707
        %v1725 = vpack.c.bf16 %v1428, %v1428
        %v1726 = vpack.c.bf16 %v1430, %v1430
        %v1727 = vpack.c.bf16 %v1433, %v1433
        %v1728 = vpack.c.bf16 %v1435, %v1435
        %v1729 = vpack.c.bf16 %v1438, %v1438
        %v1730 = vpack.c.bf16 %v1440, %v1440
        %v1731 = vpack.c.bf16 %v1443, %v1443
        %v1732 = vpack.c.bf16 %v1445, %v1445
        %v1733 = vpack.c.bf16 %v1448, %v1448
        %v1734 = vpack.c.bf16 %v1450, %v1450
        %v1735 = vpack.c.bf16 %v1453, %v1453
        %v1736 = vpack.c.bf16 %v1455, %v1455
        %v1737 = vpack.c.bf16 %v1458, %v1458
        %v1738 = vpack.c.bf16 %v1460, %v1460
        %v1739 = vpack.c.bf16 %v1463, %v1463
        %v1740 = vpack.c.bf16 %v1465, %v1465
        %v1741 = vpack.c.bf16 %v1582, %v1582
        %v1742 = vpack.c.bf16 %v1584, %v1584
        %v1743 = vpack.c.bf16 %v1586, %v1586
        %v1744 = vpack.c.bf16 %v1588, %v1588
        %v1745 = vpack.c.bf16 %v1590, %v1590
        %v1746 = vpack.c.bf16 %v1592, %v1592
        %v1747 = vpack.c.bf16 %v1594, %v1594
        %v1748 = vpack.c.bf16 %v1596, %v1596
        %v1749 = vpack.c.bf16 %v1598, %v1598
        %v1750 = vpack.c.bf16 %v1600, %v1600
        %v1751 = vpack.c.bf16 %v1602, %v1602
        %v1752 = vpack.c.bf16 %v1604, %v1604
        %v1753 = vpack.c.bf16 %v1606, %v1606
        %v1754 = vpack.c.bf16 %v1608, %v1608
        %v1755 = vpack.c.bf16 %v1610, %v1610
        %v1756 = vpack.c.bf16 %v1612, %v1612
        %v1757 = vpack.c.bf16 %v1630, %v1630
        %v1758 = vpack.c.bf16 %v1632, %v1632
        %v1759 = vpack.c.bf16 %v1634, %v1634
        %v1760 = vpack.c.bf16 %v1636, %v1636
        %v1761 = vpack.c.bf16 %v1638, %v1638
        %v1762 = vpack.c.bf16 %v1640, %v1640
        %v1763 = vpack.c.bf16 %v1642, %v1642
        %v1764 = vpack.c.bf16 %v1644, %v1644
        %v1765 = vpack.c.bf16 %v1646, %v1646
        %v1766 = vpack.c.bf16 %v1648, %v1648
        %v1767 = vpack.c.bf16 %v1650, %v1650
        %v1768 = vpack.c.bf16 %v1652, %v1652
        %v1769 = vpack.c.bf16 %v1654, %v1654
        %v1770 = vpack.c.bf16 %v1656, %v1656
        %v1771 = vpack.c.bf16 %v1658, %v1658
        %v1772 = vpack.c.bf16 %v1660, %v1660
        %v1773 = vpack.c.bf16 %v1678, %v1678
        %v1774 = vpack.c.bf16 %v1680, %v1680
        %v1775 = vpack.c.bf16 %v1682, %v1682
        %v1776 = vpack.c.bf16 %v1684, %v1684
        %v1777 = vpack.c.bf16 %v1686, %v1686
        %v1778 = vpack.c.bf16 %v1688, %v1688
        %v1779 = vpack.c.bf16 %v1690, %v1690
        %v1780 = vpack.c.bf16 %v1692, %v1692
        %v1781 = vpack.c.bf16 %v1694, %v1694
        %v1782 = vpack.c.bf16 %v1696, %v1696
        %v1783 = vpack.c.bf16 %v1698, %v1698
        %v1784 = vpack.c.bf16 %v1700, %v1700
        %v1785 = vpack.c.bf16 %v1702, %v1702
        %v1786 = vpack.c.bf16 %v1704, %v1704
        %v1787 = vpack.c.bf16 %v1706, %v1706
        %v1788 = vpack.c.bf16 %v1708, %v1708
        %1805 = vrot.lane.b32.xlu0 %v1477, 96
        %v1806 = vpop.permute.xlu0 %1805
        %1807 = vrot.lane.b32.xlu0 %v1479, 96
        %v1808 = vpop.permute.xlu0 %1807
        %1809 = vrot.lane.b32.xlu0 %v1482, 96
        %v1810 = vpop.permute.xlu0 %1809
        %1811 = vrot.lane.b32.xlu0 %v1484, 96
        %v1812 = vpop.permute.xlu0 %1811
        %1813 = vrot.lane.b32.xlu0 %v1487, 96
        %v1814 = vpop.permute.xlu0 %1813
        %1815 = vrot.lane.b32.xlu0 %v1489, 96
        %v1816 = vpop.permute.xlu0 %1815
        %1817 = vrot.lane.b32.xlu0 %v1492, 96
        %v1818 = vpop.permute.xlu0 %1817
        %1819 = vrot.lane.b32.xlu0 %v1494, 96
        %v1820 = vpop.permute.xlu0 %1819
        %1821 = vrot.lane.b32.xlu0 %v1497, 96
        %v1822 = vpop.permute.xlu0 %1821
        %1823 = vrot.lane.b32.xlu0 %v1499, 96
        %v1824 = vpop.permute.xlu0 %1823
        %1825 = vrot.lane.b32.xlu0 %v1502, 96
        %v1826 = vpop.permute.xlu0 %1825
        %1827 = vrot.lane.b32.xlu0 %v1504, 96
        %v1828 = vpop.permute.xlu0 %1827
        %1829 = vrot.lane.b32.xlu0 %v1507, 96
        %v1830 = vpop.permute.xlu0 %1829
        %1831 = vrot.lane.b32.xlu0 %v1509, 96
        %v1832 = vpop.permute.xlu0 %1831
        %1833 = vrot.lane.b32.xlu0 %v1512, 96
        %v1834 = vpop.permute.xlu0 %1833
        %1835 = vrot.lane.b32.xlu0 %v1514, 96
        %v1836 = vpop.permute.xlu0 %1835
        %1853 = vrot.lane.b32.xlu0 %v1477, 64
        %v1854 = vpop.permute.xlu0 %1853
        %1855 = vrot.lane.b32.xlu0 %v1479, 64
        %v1856 = vpop.permute.xlu0 %1855
        %1857 = vrot.lane.b32.xlu0 %v1482, 64
        %v1858 = vpop.permute.xlu0 %1857
        %1859 = vrot.lane.b32.xlu0 %v1484, 64
        %v1860 = vpop.permute.xlu0 %1859
        %1861 = vrot.lane.b32.xlu0 %v1487, 64
        %v1862 = vpop.permute.xlu0 %1861
        %1863 = vrot.lane.b32.xlu0 %v1489, 64
        %v1864 = vpop.permute.xlu0 %1863
        %1865 = vrot.lane.b32.xlu0 %v1492, 64
        %v1866 = vpop.permute.xlu0 %1865
        %1867 = vrot.lane.b32.xlu0 %v1494, 64
        %v1868 = vpop.permute.xlu0 %1867
        %1869 = vrot.lane.b32.xlu0 %v1497, 64
        %v1870 = vpop.permute.xlu0 %1869
        %1871 = vrot.lane.b32.xlu0 %v1499, 64
        %v1872 = vpop.permute.xlu0 %1871
        %1873 = vrot.lane.b32.xlu0 %v1502, 64
        %v1874 = vpop.permute.xlu0 %1873
        %1875 = vrot.lane.b32.xlu0 %v1504, 64
        %v1876 = vpop.permute.xlu0 %1875
        %1877 = vrot.lane.b32.xlu0 %v1507, 64
        %v1878 = vpop.permute.xlu0 %1877
        %1879 = vrot.lane.b32.xlu0 %v1509, 64
        %v1880 = vpop.permute.xlu0 %1879
        %1881 = vrot.lane.b32.xlu0 %v1512, 64
        %v1882 = vpop.permute.xlu0 %1881
        %1883 = vrot.lane.b32.xlu0 %v1514, 64
        %v1884 = vpop.permute.xlu0 %1883
        %1901 = vrot.lane.b32.xlu0 %v1477, 32
        %v1902 = vpop.permute.xlu0 %1901
        %1903 = vrot.lane.b32.xlu0 %v1479, 32
        %v1904 = vpop.permute.xlu0 %1903
        %1905 = vrot.lane.b32.xlu0 %v1482, 32
        %v1906 = vpop.permute.xlu0 %1905
        %1907 = vrot.lane.b32.xlu0 %v1484, 32
        %v1908 = vpop.permute.xlu0 %1907
        %1909 = vrot.lane.b32.xlu0 %v1487, 32
        %v1910 = vpop.permute.xlu0 %1909
        %1911 = vrot.lane.b32.xlu0 %v1489, 32
        %v1912 = vpop.permute.xlu0 %1911
        %1913 = vrot.lane.b32.xlu0 %v1492, 32
        %v1914 = vpop.permute.xlu0 %1913
        %1915 = vrot.lane.b32.xlu0 %v1494, 32
        %v1916 = vpop.permute.xlu0 %1915
        %1917 = vrot.lane.b32.xlu0 %v1497, 32
        %v1918 = vpop.permute.xlu0 %1917
        %1919 = vrot.lane.b32.xlu0 %v1499, 32
        %v1920 = vpop.permute.xlu0 %1919
        %1921 = vrot.lane.b32.xlu0 %v1502, 32
        %v1922 = vpop.permute.xlu0 %1921
        %1923 = vrot.lane.b32.xlu0 %v1504, 32
        %v1924 = vpop.permute.xlu0 %1923
        %1925 = vrot.lane.b32.xlu0 %v1507, 32
        %v1926 = vpop.permute.xlu0 %1925
        %1927 = vrot.lane.b32.xlu0 %v1509, 32
        %v1928 = vpop.permute.xlu0 %1927
        %1929 = vrot.lane.b32.xlu0 %v1512, 32
        %v1930 = vpop.permute.xlu0 %1929
        %1931 = vrot.lane.b32.xlu0 %v1514, 32
        %v1932 = vpop.permute.xlu0 %1931
        %v1949 = vpack.c.bf16 %v1477, %v1477
        %v1950 = vpack.c.bf16 %v1479, %v1479
        %v1951 = vpack.c.bf16 %v1482, %v1482
        %v1952 = vpack.c.bf16 %v1484, %v1484
        %v1953 = vpack.c.bf16 %v1487, %v1487
        %v1954 = vpack.c.bf16 %v1489, %v1489
        %v1955 = vpack.c.bf16 %v1492, %v1492
        %v1956 = vpack.c.bf16 %v1494, %v1494
        %v1957 = vpack.c.bf16 %v1497, %v1497
        %v1958 = vpack.c.bf16 %v1499, %v1499
        %v1959 = vpack.c.bf16 %v1502, %v1502
        %v1960 = vpack.c.bf16 %v1504, %v1504
        %v1961 = vpack.c.bf16 %v1507, %v1507
        %v1962 = vpack.c.bf16 %v1509, %v1509
        %v1963 = vpack.c.bf16 %v1512, %v1512
        %v1964 = vpack.c.bf16 %v1514, %v1514
        %v1965 = vpack.c.bf16 %v1806, %v1806
        %v1966 = vpack.c.bf16 %v1808, %v1808
        %v1967 = vpack.c.bf16 %v1810, %v1810
        %v1968 = vpack.c.bf16 %v1812, %v1812
        %v1969 = vpack.c.bf16 %v1814, %v1814
        %v1970 = vpack.c.bf16 %v1816, %v1816
        %v1971 = vpack.c.bf16 %v1818, %v1818
        %v1972 = vpack.c.bf16 %v1820, %v1820
        %v1973 = vpack.c.bf16 %v1822, %v1822
        %v1974 = vpack.c.bf16 %v1824, %v1824
        %v1975 = vpack.c.bf16 %v1826, %v1826
        %v1976 = vpack.c.bf16 %v1828, %v1828
        %v1977 = vpack.c.bf16 %v1830, %v1830
        %v1978 = vpack.c.bf16 %v1832, %v1832
        %v1979 = vpack.c.bf16 %v1834, %v1834
        %v1980 = vpack.c.bf16 %v1836, %v1836
        %v1981 = vpack.c.bf16 %v1854, %v1854
        %v1982 = vpack.c.bf16 %v1856, %v1856
        %v1983 = vpack.c.bf16 %v1858, %v1858
        %v1984 = vpack.c.bf16 %v1860, %v1860
        %v1985 = vpack.c.bf16 %v1862, %v1862
        %v1986 = vpack.c.bf16 %v1864, %v1864
        %v1987 = vpack.c.bf16 %v1866, %v1866
        %v1988 = vpack.c.bf16 %v1868, %v1868
        %v1989 = vpack.c.bf16 %v1870, %v1870
        %v1990 = vpack.c.bf16 %v1872, %v1872
        %v1991 = vpack.c.bf16 %v1874, %v1874
        %v1992 = vpack.c.bf16 %v1876, %v1876
        %v1993 = vpack.c.bf16 %v1878, %v1878
        %v1994 = vpack.c.bf16 %v1880, %v1880
        %v1995 = vpack.c.bf16 %v1882, %v1882
        %v1996 = vpack.c.bf16 %v1884, %v1884
        %v1997 = vpack.c.bf16 %v1902, %v1902
        %v1998 = vpack.c.bf16 %v1904, %v1904
        %v1999 = vpack.c.bf16 %v1906, %v1906
        %v2000 = vpack.c.bf16 %v1908, %v1908
        %v2001 = vpack.c.bf16 %v1910, %v1910
        %v2002 = vpack.c.bf16 %v1912, %v1912
        %v2003 = vpack.c.bf16 %v1914, %v1914
        %v2004 = vpack.c.bf16 %v1916, %v1916
        %v2005 = vpack.c.bf16 %v1918, %v1918
        %v2006 = vpack.c.bf16 %v1920, %v1920
        %v2007 = vpack.c.bf16 %v1922, %v1922
        %v2008 = vpack.c.bf16 %v1924, %v1924
        %v2009 = vpack.c.bf16 %v1926, %v1926
        %v2010 = vpack.c.bf16 %v1928, %v1928
        %v2011 = vpack.c.bf16 %v1930, %v1930
        %v2012 = vpack.c.bf16 %v1932, %v1932
        %2029 = vrot.lane.b32.xlu0 %v1526, 96
        %v2030 = vpop.permute.xlu0 %2029
        %2031 = vrot.lane.b32.xlu0 %v1528, 96
        %v2032 = vpop.permute.xlu0 %2031
        %2033 = vrot.lane.b32.xlu0 %v1531, 96
        %v2034 = vpop.permute.xlu0 %2033
        %2035 = vrot.lane.b32.xlu0 %v1533, 96
        %v2036 = vpop.permute.xlu0 %2035
        %2037 = vrot.lane.b32.xlu0 %v1536, 96
        %v2038 = vpop.permute.xlu0 %2037
        %2039 = vrot.lane.b32.xlu0 %v1538, 96
        %v2040 = vpop.permute.xlu0 %2039
        %2041 = vrot.lane.b32.xlu0 %v1541, 96
        %v2042 = vpop.permute.xlu0 %2041
        %2043 = vrot.lane.b32.xlu0 %v1543, 96
        %v2044 = vpop.permute.xlu0 %2043
        %2045 = vrot.lane.b32.xlu0 %v1546, 96
        %v2046 = vpop.permute.xlu0 %2045
        %2047 = vrot.lane.b32.xlu0 %v1548, 96
        %v2048 = vpop.permute.xlu0 %2047
        %2049 = vrot.lane.b32.xlu0 %v1551, 96
        %v2050 = vpop.permute.xlu0 %2049
        %2051 = vrot.lane.b32.xlu0 %v1553, 96
        %v2052 = vpop.permute.xlu0 %2051
        %2053 = vrot.lane.b32.xlu0 %v1556, 96
        %v2054 = vpop.permute.xlu0 %2053
        %2055 = vrot.lane.b32.xlu0 %v1558, 96
        %v2056 = vpop.permute.xlu0 %2055
        %2057 = vrot.lane.b32.xlu0 %v1561, 96
        %v2058 = vpop.permute.xlu0 %2057
        %2059 = vrot.lane.b32.xlu0 %v1563, 96
        %v2060 = vpop.permute.xlu0 %2059
        %2077 = vrot.lane.b32.xlu0 %v1526, 64
        %v2078 = vpop.permute.xlu0 %2077
        %2079 = vrot.lane.b32.xlu0 %v1528, 64
        %v2080 = vpop.permute.xlu0 %2079
        %2081 = vrot.lane.b32.xlu0 %v1531, 64
        %v2082 = vpop.permute.xlu0 %2081
        %2083 = vrot.lane.b32.xlu0 %v1533, 64
        %v2084 = vpop.permute.xlu0 %2083
        %2085 = vrot.lane.b32.xlu0 %v1536, 64
        %v2086 = vpop.permute.xlu0 %2085
        %2087 = vrot.lane.b32.xlu0 %v1538, 64
        %v2088 = vpop.permute.xlu0 %2087
        %2089 = vrot.lane.b32.xlu0 %v1541, 64
        %v2090 = vpop.permute.xlu0 %2089
        %2091 = vrot.lane.b32.xlu0 %v1543, 64
        %v2092 = vpop.permute.xlu0 %2091
        %2093 = vrot.lane.b32.xlu0 %v1546, 64
        %v2094 = vpop.permute.xlu0 %2093
        %2095 = vrot.lane.b32.xlu0 %v1548, 64
        %v2096 = vpop.permute.xlu0 %2095
        %2097 = vrot.lane.b32.xlu0 %v1551, 64
        %v2098 = vpop.permute.xlu0 %2097
        %2099 = vrot.lane.b32.xlu0 %v1553, 64
        %v2100 = vpop.permute.xlu0 %2099
        %2101 = vrot.lane.b32.xlu0 %v1556, 64
        %v2102 = vpop.permute.xlu0 %2101
        %2103 = vrot.lane.b32.xlu0 %v1558, 64
        %v2104 = vpop.permute.xlu0 %2103
        %2105 = vrot.lane.b32.xlu0 %v1561, 64
        %v2106 = vpop.permute.xlu0 %2105
        %2107 = vrot.lane.b32.xlu0 %v1563, 64
        %v2108 = vpop.permute.xlu0 %2107
        %2125 = vrot.lane.b32.xlu0 %v1526, 32
        %v2126 = vpop.permute.xlu0 %2125
        %2127 = vrot.lane.b32.xlu0 %v1528, 32
        %v2128 = vpop.permute.xlu0 %2127
        %2129 = vrot.lane.b32.xlu0 %v1531, 32
        %v2130 = vpop.permute.xlu0 %2129
        %2131 = vrot.lane.b32.xlu0 %v1533, 32
        %v2132 = vpop.permute.xlu0 %2131
        %2133 = vrot.lane.b32.xlu0 %v1536, 32
        %v2134 = vpop.permute.xlu0 %2133
        %2135 = vrot.lane.b32.xlu0 %v1538, 32
        %v2136 = vpop.permute.xlu0 %2135
        %2137 = vrot.lane.b32.xlu0 %v1541, 32
        %v2138 = vpop.permute.xlu0 %2137
        %2139 = vrot.lane.b32.xlu0 %v1543, 32
        %v2140 = vpop.permute.xlu0 %2139
        %2141 = vrot.lane.b32.xlu0 %v1546, 32
        %v2142 = vpop.permute.xlu0 %2141
        %2143 = vrot.lane.b32.xlu0 %v1548, 32
        %v2144 = vpop.permute.xlu0 %2143
        %2145 = vrot.lane.b32.xlu0 %v1551, 32
        %v2146 = vpop.permute.xlu0 %2145
        %2147 = vrot.lane.b32.xlu0 %v1553, 32
        %v2148 = vpop.permute.xlu0 %2147
        %2149 = vrot.lane.b32.xlu0 %v1556, 32
        %v2150 = vpop.permute.xlu0 %2149
        %2151 = vrot.lane.b32.xlu0 %v1558, 32
        %v2152 = vpop.permute.xlu0 %2151
        %2153 = vrot.lane.b32.xlu0 %v1561, 32
        %v2154 = vpop.permute.xlu0 %2153
        %2155 = vrot.lane.b32.xlu0 %v1563, 32
        %v2156 = vpop.permute.xlu0 %2155
        %v2173 = vpack.c.bf16 %v1526, %v1526
        %v2174 = vpack.c.bf16 %v1528, %v1528
        %v2175 = vpack.c.bf16 %v1531, %v1531
        %v2176 = vpack.c.bf16 %v1533, %v1533
        %v2177 = vpack.c.bf16 %v1536, %v1536
        %v2178 = vpack.c.bf16 %v1538, %v1538
        %v2179 = vpack.c.bf16 %v1541, %v1541
        %v2180 = vpack.c.bf16 %v1543, %v1543
        %v2181 = vpack.c.bf16 %v1546, %v1546
        %v2182 = vpack.c.bf16 %v1548, %v1548
        %v2183 = vpack.c.bf16 %v1551, %v1551
        %v2184 = vpack.c.bf16 %v1553, %v1553
        %v2185 = vpack.c.bf16 %v1556, %v1556
        %v2186 = vpack.c.bf16 %v1558, %v1558
        %v2187 = vpack.c.bf16 %v1561, %v1561
        %v2188 = vpack.c.bf16 %v1563, %v1563
        %v2189 = vpack.c.bf16 %v2030, %v2030
        %v2190 = vpack.c.bf16 %v2032, %v2032
        %v2191 = vpack.c.bf16 %v2034, %v2034
        %v2192 = vpack.c.bf16 %v2036, %v2036
        %v2193 = vpack.c.bf16 %v2038, %v2038
        %v2194 = vpack.c.bf16 %v2040, %v2040
        %v2195 = vpack.c.bf16 %v2042, %v2042
        %v2196 = vpack.c.bf16 %v2044, %v2044
        %v2197 = vpack.c.bf16 %v2046, %v2046
        %v2198 = vpack.c.bf16 %v2048, %v2048
        %v2199 = vpack.c.bf16 %v2050, %v2050
        %v2200 = vpack.c.bf16 %v2052, %v2052
        %v2201 = vpack.c.bf16 %v2054, %v2054
        %v2202 = vpack.c.bf16 %v2056, %v2056
        %v2203 = vpack.c.bf16 %v2058, %v2058
        %v2204 = vpack.c.bf16 %v2060, %v2060
        %v2205 = vpack.c.bf16 %v2078, %v2078
        %v2206 = vpack.c.bf16 %v2080, %v2080
        %v2207 = vpack.c.bf16 %v2082, %v2082
        %v2208 = vpack.c.bf16 %v2084, %v2084
        %v2209 = vpack.c.bf16 %v2086, %v2086
        %v2210 = vpack.c.bf16 %v2088, %v2088
        %v2211 = vpack.c.bf16 %v2090, %v2090
        %v2212 = vpack.c.bf16 %v2092, %v2092
        %v2213 = vpack.c.bf16 %v2094, %v2094
        %v2214 = vpack.c.bf16 %v2096, %v2096
        %v2215 = vpack.c.bf16 %v2098, %v2098
        %v2216 = vpack.c.bf16 %v2100, %v2100
        %v2217 = vpack.c.bf16 %v2102, %v2102
        %v2218 = vpack.c.bf16 %v2104, %v2104
        %v2219 = vpack.c.bf16 %v2106, %v2106
        %v2220 = vpack.c.bf16 %v2108, %v2108
        %v2221 = vpack.c.bf16 %v2126, %v2126
        %v2222 = vpack.c.bf16 %v2128, %v2128
        %v2223 = vpack.c.bf16 %v2130, %v2130
        %v2224 = vpack.c.bf16 %v2132, %v2132
        %v2225 = vpack.c.bf16 %v2134, %v2134
        %v2226 = vpack.c.bf16 %v2136, %v2136
        %v2227 = vpack.c.bf16 %v2138, %v2138
        %v2228 = vpack.c.bf16 %v2140, %v2140
        %v2229 = vpack.c.bf16 %v2142, %v2142
        %v2230 = vpack.c.bf16 %v2144, %v2144
        %v2231 = vpack.c.bf16 %v2146, %v2146
        %v2232 = vpack.c.bf16 %v2148, %v2148
        %v2233 = vpack.c.bf16 %v2150, %v2150
        %v2234 = vpack.c.bf16 %v2152, %v2152
        %v2235 = vpack.c.bf16 %v2154, %v2154
        %v2236 = vpack.c.bf16 %v2156, %v2156
        %v2237 = vld [vmem:[%s757] sm:$0x1]
        %v2238 = vld [vmem:[%s757 + $0x1] sm:$0x1]
        %v2239 = vld [vmem:[%s757 + $0x2] sm:$0x1]
        %v2240 = vld [vmem:[%s757 + $0x3] sm:$0x1]
        %v2241 = vld [vmem:[%s757 + $0x4] sm:$0x1]
        %v2242 = vld [vmem:[%s757 + $0x5] sm:$0x1]
        %v2243 = vld [vmem:[%s757 + $0x6] sm:$0x1]
        %v2244 = vld [vmem:[%s757 + $0x7] sm:$0x1]
        %v2245 = vld [vmem:[%s757 + $0x8] sm:$0x1]
        %v2246 = vld [vmem:[%s757 + $0x9] sm:$0x1]
        %v2247 = vld [vmem:[%s757 + $0xa] sm:$0x1]
        %v2248 = vld [vmem:[%s757 + $0xb] sm:$0x1]
        %v2249 = vld [vmem:[%s757 + $0xc] sm:$0x1]
        %v2250 = vld [vmem:[%s757 + $0xd] sm:$0x1]
        %v2251 = vld [vmem:[%s757 + $0xe] sm:$0x1]
        %v2252 = vld [vmem:[%s757 + $0xf] sm:$0x1]
        %v2269 = vperm.slane %v2237, 0
        %v2270 = vperm.slane %v2238, 0
        %v2271 = vperm.slane %v2239, 0
        %v2272 = vperm.slane %v2240, 0
        %v2273 = vperm.slane %v2241, 0
        %v2274 = vperm.slane %v2242, 0
        %v2275 = vperm.slane %v2243, 0
        %v2276 = vperm.slane %v2244, 0
        %v2277 = vperm.slane %v2245, 0
        %v2278 = vperm.slane %v2246, 0
        %v2279 = vperm.slane %v2247, 0
        %v2280 = vperm.slane %v2248, 0
        %v2281 = vperm.slane %v2249, 0
        %v2282 = vperm.slane %v2250, 0
        %v2283 = vperm.slane %v2251, 0
        %v2284 = vperm.slane %v2252, 0
        %vm2301 = vcmask 261120
        %v2303 = vsel %vm2301, %v1725, 0
        %v2306 = vsel %vm2301, %v1949, 0
        %2308 = vmatpush.bf16.xpose.msra.mxu0 0
        %2309 = vmatpush.bf16.xpose.msra.mxu0 0
        %2310 = vmatpush.bf16.xpose.msra.mxu0 0
        %2311 = vmatpush.bf16.xpose.msra.mxu0 0
        %2312 = vmatpush.bf16.xpose.msra.mxu0 0
        %2313 = vmatpush.bf16.xpose.msra.mxu0 0
        %2314 = vmatpush.bf16.xpose.msra.mxu0 0
        %2315 = vmatpush.bf16.xpose.msra.mxu0 %v2306
        %2316 = vmatmul.bf16.gmra.mxu0 %v2303
        %v2317 = vpop.f32.mrf.mxu0
        %v2318 = vadd.f32 %v2269, %v2317
        %v2319 = vpop.f32.mrf.mxu0
        %2320 = vdwg.mxu0
        %v2322 = vsel %vm2301, %v1726, 0
        %v2325 = vsel %vm2301, %v1950, 0
        %2327 = vmatpush.bf16.xpose.msra.mxu0 0
        %2328 = vmatpush.bf16.xpose.msra.mxu0 0
        %2329 = vmatpush.bf16.xpose.msra.mxu0 0
        %2330 = vmatpush.bf16.xpose.msra.mxu0 0
        %2331 = vmatpush.bf16.xpose.msra.mxu0 0
        %2332 = vmatpush.bf16.xpose.msra.mxu0 0
        %2333 = vmatpush.bf16.xpose.msra.mxu0 0
        %2334 = vmatpush.bf16.xpose.msra.mxu0 %v2325
        %2335 = vmatmul.bf16.gmra.mxu0 %v2322
        %v2336 = vpop.f32.mrf.mxu0
        %v2337 = vadd.f32 %v2270, %v2336
        %v2338 = vpop.f32.mrf.mxu0
        %2339 = vdwg.mxu0
        %v2341 = vsel %vm2301, %v1727, 0
        %v2344 = vsel %vm2301, %v1951, 0
        %2346 = vmatpush.bf16.xpose.msra.mxu0 0
        %2347 = vmatpush.bf16.xpose.msra.mxu0 0
        %2348 = vmatpush.bf16.xpose.msra.mxu0 0
        %2349 = vmatpush.bf16.xpose.msra.mxu0 0
        %2350 = vmatpush.bf16.xpose.msra.mxu0 0
        %2351 = vmatpush.bf16.xpose.msra.mxu0 0
        %2352 = vmatpush.bf16.xpose.msra.mxu0 0
        %2353 = vmatpush.bf16.xpose.msra.mxu0 %v2344
        %2354 = vmatmul.bf16.gmra.mxu0 %v2341
        %v2355 = vpop.f32.mrf.mxu0
        %v2356 = vadd.f32 %v2271, %v2355
        %v2357 = vpop.f32.mrf.mxu0
        %2358 = vdwg.mxu0
        %v2360 = vsel %vm2301, %v1728, 0
        %v2363 = vsel %vm2301, %v1952, 0
        %2365 = vmatpush.bf16.xpose.msra.mxu0 0
        %2366 = vmatpush.bf16.xpose.msra.mxu0 0
        %2367 = vmatpush.bf16.xpose.msra.mxu0 0
        %2368 = vmatpush.bf16.xpose.msra.mxu0 0
        %2369 = vmatpush.bf16.xpose.msra.mxu0 0
        %2370 = vmatpush.bf16.xpose.msra.mxu0 0
        %2371 = vmatpush.bf16.xpose.msra.mxu0 0
        %2372 = vmatpush.bf16.xpose.msra.mxu0 %v2363
        %2373 = vmatmul.bf16.gmra.mxu0 %v2360
        %v2374 = vpop.f32.mrf.mxu0
        %v2375 = vadd.f32 %v2272, %v2374
        %v2376 = vpop.f32.mrf.mxu0
        %2377 = vdwg.mxu0
        %v2379 = vsel %vm2301, %v1729, 0
        %v2382 = vsel %vm2301, %v1953, 0
        %2384 = vmatpush.bf16.xpose.msra.mxu0 0
        %2385 = vmatpush.bf16.xpose.msra.mxu0 0
        %2386 = vmatpush.bf16.xpose.msra.mxu0 0
        %2387 = vmatpush.bf16.xpose.msra.mxu0 0
        %2388 = vmatpush.bf16.xpose.msra.mxu0 0
        %2389 = vmatpush.bf16.xpose.msra.mxu0 0
        %2390 = vmatpush.bf16.xpose.msra.mxu0 0
        %2391 = vmatpush.bf16.xpose.msra.mxu0 %v2382
        %2392 = vmatmul.bf16.gmra.mxu0 %v2379
        %v2393 = vpop.f32.mrf.mxu0
        %v2394 = vadd.f32 %v2273, %v2393
        %v2395 = vpop.f32.mrf.mxu0
        %2396 = vdwg.mxu0
        %v2398 = vsel %vm2301, %v1730, 0
        %v2401 = vsel %vm2301, %v1954, 0
        %2403 = vmatpush.bf16.xpose.msra.mxu0 0
        %2404 = vmatpush.bf16.xpose.msra.mxu0 0
        %2405 = vmatpush.bf16.xpose.msra.mxu0 0
        %2406 = vmatpush.bf16.xpose.msra.mxu0 0
        %2407 = vmatpush.bf16.xpose.msra.mxu0 0
        %2408 = vmatpush.bf16.xpose.msra.mxu0 0
        %2409 = vmatpush.bf16.xpose.msra.mxu0 0
        %2410 = vmatpush.bf16.xpose.msra.mxu0 %v2401
        %2411 = vmatmul.bf16.gmra.mxu0 %v2398
        %v2412 = vpop.f32.mrf.mxu0
        %v2413 = vadd.f32 %v2274, %v2412
        %v2414 = vpop.f32.mrf.mxu0
        %2415 = vdwg.mxu0
        %v2417 = vsel %vm2301, %v1731, 0
        %v2420 = vsel %vm2301, %v1955, 0
        %2422 = vmatpush.bf16.xpose.msra.mxu0 0
        %2423 = vmatpush.bf16.xpose.msra.mxu0 0
        %2424 = vmatpush.bf16.xpose.msra.mxu0 0
        %2425 = vmatpush.bf16.xpose.msra.mxu0 0
        %2426 = vmatpush.bf16.xpose.msra.mxu0 0
        %2427 = vmatpush.bf16.xpose.msra.mxu0 0
        %2428 = vmatpush.bf16.xpose.msra.mxu0 0
        %2429 = vmatpush.bf16.xpose.msra.mxu0 %v2420
        %2430 = vmatmul.bf16.gmra.mxu0 %v2417
        %v2431 = vpop.f32.mrf.mxu0
        %v2432 = vadd.f32 %v2275, %v2431
        %v2433 = vpop.f32.mrf.mxu0
        %2434 = vdwg.mxu0
        %v2436 = vsel %vm2301, %v1732, 0
        %v2439 = vsel %vm2301, %v1956, 0
        %2441 = vmatpush.bf16.xpose.msra.mxu0 0
        %2442 = vmatpush.bf16.xpose.msra.mxu0 0
        %2443 = vmatpush.bf16.xpose.msra.mxu0 0
        %2444 = vmatpush.bf16.xpose.msra.mxu0 0
        %2445 = vmatpush.bf16.xpose.msra.mxu0 0
        %2446 = vmatpush.bf16.xpose.msra.mxu0 0
        %2447 = vmatpush.bf16.xpose.msra.mxu0 0
        %2448 = vmatpush.bf16.xpose.msra.mxu0 %v2439
        %2449 = vmatmul.bf16.gmra.mxu0 %v2436
        %v2450 = vpop.f32.mrf.mxu0
        %v2451 = vadd.f32 %v2276, %v2450
        %v2452 = vpop.f32.mrf.mxu0
        %2453 = vdwg.mxu0
        %v2455 = vsel %vm2301, %v1733, 0
        %v2458 = vsel %vm2301, %v1957, 0
        %2460 = vmatpush.bf16.xpose.msra.mxu0 0
        %2461 = vmatpush.bf16.xpose.msra.mxu0 0
        %2462 = vmatpush.bf16.xpose.msra.mxu0 0
        %2463 = vmatpush.bf16.xpose.msra.mxu0 0
        %2464 = vmatpush.bf16.xpose.msra.mxu0 0
        %2465 = vmatpush.bf16.xpose.msra.mxu0 0
        %2466 = vmatpush.bf16.xpose.msra.mxu0 0
        %2467 = vmatpush.bf16.xpose.msra.mxu0 %v2458
        %2468 = vmatmul.bf16.gmra.mxu0 %v2455
        %v2469 = vpop.f32.mrf.mxu0
        %v2470 = vadd.f32 %v2277, %v2469
        %v2471 = vpop.f32.mrf.mxu0
        %2472 = vdwg.mxu0
        %v2474 = vsel %vm2301, %v1734, 0
        %v2477 = vsel %vm2301, %v1958, 0
        %2479 = vmatpush.bf16.xpose.msra.mxu0 0
        %2480 = vmatpush.bf16.xpose.msra.mxu0 0
        %2481 = vmatpush.bf16.xpose.msra.mxu0 0
        %2482 = vmatpush.bf16.xpose.msra.mxu0 0
        %2483 = vmatpush.bf16.xpose.msra.mxu0 0
        %2484 = vmatpush.bf16.xpose.msra.mxu0 0
        %2485 = vmatpush.bf16.xpose.msra.mxu0 0
        %2486 = vmatpush.bf16.xpose.msra.mxu0 %v2477
        %2487 = vmatmul.bf16.gmra.mxu0 %v2474
        %v2488 = vpop.f32.mrf.mxu0
        %v2489 = vadd.f32 %v2278, %v2488
        %v2490 = vpop.f32.mrf.mxu0
        %2491 = vdwg.mxu0
        %v2493 = vsel %vm2301, %v1735, 0
        %v2496 = vsel %vm2301, %v1959, 0
        %2498 = vmatpush.bf16.xpose.msra.mxu0 0
        %2499 = vmatpush.bf16.xpose.msra.mxu0 0
        %2500 = vmatpush.bf16.xpose.msra.mxu0 0
        %2501 = vmatpush.bf16.xpose.msra.mxu0 0
        %2502 = vmatpush.bf16.xpose.msra.mxu0 0
        %2503 = vmatpush.bf16.xpose.msra.mxu0 0
        %2504 = vmatpush.bf16.xpose.msra.mxu0 0
        %2505 = vmatpush.bf16.xpose.msra.mxu0 %v2496
        %2506 = vmatmul.bf16.gmra.mxu0 %v2493
        %v2507 = vpop.f32.mrf.mxu0
        %v2508 = vadd.f32 %v2279, %v2507
        %v2509 = vpop.f32.mrf.mxu0
        %2510 = vdwg.mxu0
        %v2512 = vsel %vm2301, %v1736, 0
        %v2515 = vsel %vm2301, %v1960, 0
        %2517 = vmatpush.bf16.xpose.msra.mxu0 0
        %2518 = vmatpush.bf16.xpose.msra.mxu0 0
        %2519 = vmatpush.bf16.xpose.msra.mxu0 0
        %2520 = vmatpush.bf16.xpose.msra.mxu0 0
        %2521 = vmatpush.bf16.xpose.msra.mxu0 0
        %2522 = vmatpush.bf16.xpose.msra.mxu0 0
        %2523 = vmatpush.bf16.xpose.msra.mxu0 0
        %2524 = vmatpush.bf16.xpose.msra.mxu0 %v2515
        %2525 = vmatmul.bf16.gmra.mxu0 %v2512
        %v2526 = vpop.f32.mrf.mxu0
        %v2527 = vadd.f32 %v2280, %v2526
        %v2528 = vpop.f32.mrf.mxu0
        %2529 = vdwg.mxu0
        %v2531 = vsel %vm2301, %v1737, 0
        %v2534 = vsel %vm2301, %v1961, 0
        %2536 = vmatpush.bf16.xpose.msra.mxu0 0
        %2537 = vmatpush.bf16.xpose.msra.mxu0 0
        %2538 = vmatpush.bf16.xpose.msra.mxu0 0
        %2539 = vmatpush.bf16.xpose.msra.mxu0 0
        %2540 = vmatpush.bf16.xpose.msra.mxu0 0
        %2541 = vmatpush.bf16.xpose.msra.mxu0 0
        %2542 = vmatpush.bf16.xpose.msra.mxu0 0
        %2543 = vmatpush.bf16.xpose.msra.mxu0 %v2534
        %2544 = vmatmul.bf16.gmra.mxu0 %v2531
        %v2545 = vpop.f32.mrf.mxu0
        %v2546 = vadd.f32 %v2281, %v2545
        %v2547 = vpop.f32.mrf.mxu0
        %2548 = vdwg.mxu0
        %v2550 = vsel %vm2301, %v1738, 0
        %v2553 = vsel %vm2301, %v1962, 0
        %2555 = vmatpush.bf16.xpose.msra.mxu0 0
        %2556 = vmatpush.bf16.xpose.msra.mxu0 0
        %2557 = vmatpush.bf16.xpose.msra.mxu0 0
        %2558 = vmatpush.bf16.xpose.msra.mxu0 0
        %2559 = vmatpush.bf16.xpose.msra.mxu0 0
        %2560 = vmatpush.bf16.xpose.msra.mxu0 0
        %2561 = vmatpush.bf16.xpose.msra.mxu0 0
        %2562 = vmatpush.bf16.xpose.msra.mxu0 %v2553
        %2563 = vmatmul.bf16.gmra.mxu0 %v2550
        %v2564 = vpop.f32.mrf.mxu0
        %v2565 = vadd.f32 %v2282, %v2564
        %v2566 = vpop.f32.mrf.mxu0
        %2567 = vdwg.mxu0
        %v2569 = vsel %vm2301, %v1739, 0
        %v2572 = vsel %vm2301, %v1963, 0
        %2574 = vmatpush.bf16.xpose.msra.mxu0 0
        %2575 = vmatpush.bf16.xpose.msra.mxu0 0
        %2576 = vmatpush.bf16.xpose.msra.mxu0 0
        %2577 = vmatpush.bf16.xpose.msra.mxu0 0
        %2578 = vmatpush.bf16.xpose.msra.mxu0 0
        %2579 = vmatpush.bf16.xpose.msra.mxu0 0
        %2580 = vmatpush.bf16.xpose.msra.mxu0 0
        %2581 = vmatpush.bf16.xpose.msra.mxu0 %v2572
        %2582 = vmatmul.bf16.gmra.mxu0 %v2569
        %v2583 = vpop.f32.mrf.mxu0
        %v2584 = vadd.f32 %v2283, %v2583
        %v2585 = vpop.f32.mrf.mxu0
        %2586 = vdwg.mxu0
        %v2588 = vsel %vm2301, %v1740, 0
        %v2591 = vsel %vm2301, %v1964, 0
        %2593 = vmatpush.bf16.xpose.msra.mxu0 0
        %2594 = vmatpush.bf16.xpose.msra.mxu0 0
        %2595 = vmatpush.bf16.xpose.msra.mxu0 0
        %2596 = vmatpush.bf16.xpose.msra.mxu0 0
        %2597 = vmatpush.bf16.xpose.msra.mxu0 0
        %2598 = vmatpush.bf16.xpose.msra.mxu0 0
        %2599 = vmatpush.bf16.xpose.msra.mxu0 0
        %2600 = vmatpush.bf16.xpose.msra.mxu0 %v2591
        %2601 = vmatmul.bf16.gmra.mxu0 %v2588
        %v2602 = vpop.f32.mrf.mxu0
        %v2603 = vadd.f32 %v2284, %v2602
        %v2604 = vpop.f32.mrf.mxu0
        %2605 = vdwg.mxu0
        %v2607 = vsel %vm2301, %v1741, 0
        %v2610 = vsel %vm2301, %v1965, 0
        %2612 = vmatpush.bf16.xpose.msra.mxu0 0
        %2613 = vmatpush.bf16.xpose.msra.mxu0 0
        %2614 = vmatpush.bf16.xpose.msra.mxu0 0
        %2615 = vmatpush.bf16.xpose.msra.mxu0 0
        %2616 = vmatpush.bf16.xpose.msra.mxu0 0
        %2617 = vmatpush.bf16.xpose.msra.mxu0 0
        %2618 = vmatpush.bf16.xpose.msra.mxu0 0
        %2619 = vmatpush.bf16.xpose.msra.mxu0 %v2610
        %2620 = vmatmul.bf16.gmra.mxu0 %v2607
        %v2621 = vpop.f32.mrf.mxu0
        %v2622 = vadd.f32 %v2269, %v2621
        %v2623 = vpop.f32.mrf.mxu0
        %2624 = vdwg.mxu0
        %v2626 = vsel %vm2301, %v1742, 0
        %v2629 = vsel %vm2301, %v1966, 0
        %2631 = vmatpush.bf16.xpose.msra.mxu0 0
        %2632 = vmatpush.bf16.xpose.msra.mxu0 0
        %2633 = vmatpush.bf16.xpose.msra.mxu0 0
        %2634 = vmatpush.bf16.xpose.msra.mxu0 0
        %2635 = vmatpush.bf16.xpose.msra.mxu0 0
        %2636 = vmatpush.bf16.xpose.msra.mxu0 0
        %2637 = vmatpush.bf16.xpose.msra.mxu0 0
        %2638 = vmatpush.bf16.xpose.msra.mxu0 %v2629
        %2639 = vmatmul.bf16.gmra.mxu0 %v2626
        %v2640 = vpop.f32.mrf.mxu0
        %v2641 = vadd.f32 %v2270, %v2640
        %v2642 = vpop.f32.mrf.mxu0
        %2643 = vdwg.mxu0
        %v2645 = vsel %vm2301, %v1743, 0
        %v2648 = vsel %vm2301, %v1967, 0
        %2650 = vmatpush.bf16.xpose.msra.mxu0 0
        %2651 = vmatpush.bf16.xpose.msra.mxu0 0
        %2652 = vmatpush.bf16.xpose.msra.mxu0 0
        %2653 = vmatpush.bf16.xpose.msra.mxu0 0
        %2654 = vmatpush.bf16.xpose.msra.mxu0 0
        %2655 = vmatpush.bf16.xpose.msra.mxu0 0
        %2656 = vmatpush.bf16.xpose.msra.mxu0 0
        %2657 = vmatpush.bf16.xpose.msra.mxu0 %v2648
        %2658 = vmatmul.bf16.gmra.mxu0 %v2645
        %v2659 = vpop.f32.mrf.mxu0
        %v2660 = vadd.f32 %v2271, %v2659
        %v2661 = vpop.f32.mrf.mxu0
        %2662 = vdwg.mxu0
        %v2664 = vsel %vm2301, %v1744, 0
        %v2667 = vsel %vm2301, %v1968, 0
        %2669 = vmatpush.bf16.xpose.msra.mxu0 0
        %2670 = vmatpush.bf16.xpose.msra.mxu0 0
        %2671 = vmatpush.bf16.xpose.msra.mxu0 0
        %2672 = vmatpush.bf16.xpose.msra.mxu0 0
        %2673 = vmatpush.bf16.xpose.msra.mxu0 0
        %2674 = vmatpush.bf16.xpose.msra.mxu0 0
        %2675 = vmatpush.bf16.xpose.msra.mxu0 0
        %2676 = vmatpush.bf16.xpose.msra.mxu0 %v2667
        %2677 = vmatmul.bf16.gmra.mxu0 %v2664
        %v2678 = vpop.f32.mrf.mxu0
        %v2679 = vadd.f32 %v2272, %v2678
        %v2680 = vpop.f32.mrf.mxu0
        %2681 = vdwg.mxu0
        %v2683 = vsel %vm2301, %v1745, 0
        %v2686 = vsel %vm2301, %v1969, 0
        %2688 = vmatpush.bf16.xpose.msra.mxu0 0
        %2689 = vmatpush.bf16.xpose.msra.mxu0 0
        %2690 = vmatpush.bf16.xpose.msra.mxu0 0
        %2691 = vmatpush.bf16.xpose.msra.mxu0 0
        %2692 = vmatpush.bf16.xpose.msra.mxu0 0
        %2693 = vmatpush.bf16.xpose.msra.mxu0 0
        %2694 = vmatpush.bf16.xpose.msra.mxu0 0
        %2695 = vmatpush.bf16.xpose.msra.mxu0 %v2686
        %2696 = vmatmul.bf16.gmra.mxu0 %v2683
        %v2697 = vpop.f32.mrf.mxu0
        %v2698 = vadd.f32 %v2273, %v2697
        %v2699 = vpop.f32.mrf.mxu0
        %2700 = vdwg.mxu0
        %v2702 = vsel %vm2301, %v1746, 0
        %v2705 = vsel %vm2301, %v1970, 0
        %2707 = vmatpush.bf16.xpose.msra.mxu0 0
        %2708 = vmatpush.bf16.xpose.msra.mxu0 0
        %2709 = vmatpush.bf16.xpose.msra.mxu0 0
        %2710 = vmatpush.bf16.xpose.msra.mxu0 0
        %2711 = vmatpush.bf16.xpose.msra.mxu0 0
        %2712 = vmatpush.bf16.xpose.msra.mxu0 0
        %2713 = vmatpush.bf16.xpose.msra.mxu0 0
        %2714 = vmatpush.bf16.xpose.msra.mxu0 %v2705
        %2715 = vmatmul.bf16.gmra.mxu0 %v2702
        %v2716 = vpop.f32.mrf.mxu0
        %v2717 = vadd.f32 %v2274, %v2716
        %v2718 = vpop.f32.mrf.mxu0
        %2719 = vdwg.mxu0
        %v2721 = vsel %vm2301, %v1747, 0
        %v2724 = vsel %vm2301, %v1971, 0
        %2726 = vmatpush.bf16.xpose.msra.mxu0 0
        %2727 = vmatpush.bf16.xpose.msra.mxu0 0
        %2728 = vmatpush.bf16.xpose.msra.mxu0 0
        %2729 = vmatpush.bf16.xpose.msra.mxu0 0
        %2730 = vmatpush.bf16.xpose.msra.mxu0 0
        %2731 = vmatpush.bf16.xpose.msra.mxu0 0
        %2732 = vmatpush.bf16.xpose.msra.mxu0 0
        %2733 = vmatpush.bf16.xpose.msra.mxu0 %v2724
        %2734 = vmatmul.bf16.gmra.mxu0 %v2721
        %v2735 = vpop.f32.mrf.mxu0
        %v2736 = vadd.f32 %v2275, %v2735
        %v2737 = vpop.f32.mrf.mxu0
        %2738 = vdwg.mxu0
        %v2740 = vsel %vm2301, %v1748, 0
        %v2743 = vsel %vm2301, %v1972, 0
        %2745 = vmatpush.bf16.xpose.msra.mxu0 0
        %2746 = vmatpush.bf16.xpose.msra.mxu0 0
        %2747 = vmatpush.bf16.xpose.msra.mxu0 0
        %2748 = vmatpush.bf16.xpose.msra.mxu0 0
        %2749 = vmatpush.bf16.xpose.msra.mxu0 0
        %2750 = vmatpush.bf16.xpose.msra.mxu0 0
        %2751 = vmatpush.bf16.xpose.msra.mxu0 0
        %2752 = vmatpush.bf16.xpose.msra.mxu0 %v2743
        %2753 = vmatmul.bf16.gmra.mxu0 %v2740
        %v2754 = vpop.f32.mrf.mxu0
        %v2755 = vadd.f32 %v2276, %v2754
        %v2756 = vpop.f32.mrf.mxu0
        %2757 = vdwg.mxu0
        %v2759 = vsel %vm2301, %v1749, 0
        %v2762 = vsel %vm2301, %v1973, 0
        %2764 = vmatpush.bf16.xpose.msra.mxu0 0
        %2765 = vmatpush.bf16.xpose.msra.mxu0 0
        %2766 = vmatpush.bf16.xpose.msra.mxu0 0
        %2767 = vmatpush.bf16.xpose.msra.mxu0 0
        %2768 = vmatpush.bf16.xpose.msra.mxu0 0
        %2769 = vmatpush.bf16.xpose.msra.mxu0 0
        %2770 = vmatpush.bf16.xpose.msra.mxu0 0
        %2771 = vmatpush.bf16.xpose.msra.mxu0 %v2762
        %2772 = vmatmul.bf16.gmra.mxu0 %v2759
        %v2773 = vpop.f32.mrf.mxu0
        %v2774 = vadd.f32 %v2277, %v2773
        %v2775 = vpop.f32.mrf.mxu0
        %2776 = vdwg.mxu0
        %v2778 = vsel %vm2301, %v1750, 0
        %v2781 = vsel %vm2301, %v1974, 0
        %2783 = vmatpush.bf16.xpose.msra.mxu0 0
        %2784 = vmatpush.bf16.xpose.msra.mxu0 0
        %2785 = vmatpush.bf16.xpose.msra.mxu0 0
        %2786 = vmatpush.bf16.xpose.msra.mxu0 0
        %2787 = vmatpush.bf16.xpose.msra.mxu0 0
        %2788 = vmatpush.bf16.xpose.msra.mxu0 0
        %2789 = vmatpush.bf16.xpose.msra.mxu0 0
        %2790 = vmatpush.bf16.xpose.msra.mxu0 %v2781
        %2791 = vmatmul.bf16.gmra.mxu0 %v2778
        %v2792 = vpop.f32.mrf.mxu0
        %v2793 = vadd.f32 %v2278, %v2792
        %v2794 = vpop.f32.mrf.mxu0
        %2795 = vdwg.mxu0
        %v2797 = vsel %vm2301, %v1751, 0
        %v2800 = vsel %vm2301, %v1975, 0
        %2802 = vmatpush.bf16.xpose.msra.mxu0 0
        %2803 = vmatpush.bf16.xpose.msra.mxu0 0
        %2804 = vmatpush.bf16.xpose.msra.mxu0 0
        %2805 = vmatpush.bf16.xpose.msra.mxu0 0
        %2806 = vmatpush.bf16.xpose.msra.mxu0 0
        %2807 = vmatpush.bf16.xpose.msra.mxu0 0
        %2808 = vmatpush.bf16.xpose.msra.mxu0 0
        %2809 = vmatpush.bf16.xpose.msra.mxu0 %v2800
        %2810 = vmatmul.bf16.gmra.mxu0 %v2797
        %v2811 = vpop.f32.mrf.mxu0
        %v2812 = vadd.f32 %v2279, %v2811
        %v2813 = vpop.f32.mrf.mxu0
        %2814 = vdwg.mxu0
        %v2816 = vsel %vm2301, %v1752, 0
        %v2819 = vsel %vm2301, %v1976, 0
        %2821 = vmatpush.bf16.xpose.msra.mxu0 0
        %2822 = vmatpush.bf16.xpose.msra.mxu0 0
        %2823 = vmatpush.bf16.xpose.msra.mxu0 0
        %2824 = vmatpush.bf16.xpose.msra.mxu0 0
        %2825 = vmatpush.bf16.xpose.msra.mxu0 0
        %2826 = vmatpush.bf16.xpose.msra.mxu0 0
        %2827 = vmatpush.bf16.xpose.msra.mxu0 0
        %2828 = vmatpush.bf16.xpose.msra.mxu0 %v2819
        %2829 = vmatmul.bf16.gmra.mxu0 %v2816
        %v2830 = vpop.f32.mrf.mxu0
        %v2831 = vadd.f32 %v2280, %v2830
        %v2832 = vpop.f32.mrf.mxu0
        %2833 = vdwg.mxu0
        %v2835 = vsel %vm2301, %v1753, 0
        %v2838 = vsel %vm2301, %v1977, 0
        %2840 = vmatpush.bf16.xpose.msra.mxu0 0
        %2841 = vmatpush.bf16.xpose.msra.mxu0 0
        %2842 = vmatpush.bf16.xpose.msra.mxu0 0
        %2843 = vmatpush.bf16.xpose.msra.mxu0 0
        %2844 = vmatpush.bf16.xpose.msra.mxu0 0
        %2845 = vmatpush.bf16.xpose.msra.mxu0 0
        %2846 = vmatpush.bf16.xpose.msra.mxu0 0
        %2847 = vmatpush.bf16.xpose.msra.mxu0 %v2838
        %2848 = vmatmul.bf16.gmra.mxu0 %v2835
        %v2849 = vpop.f32.mrf.mxu0
        %v2850 = vadd.f32 %v2281, %v2849
        %v2851 = vpop.f32.mrf.mxu0
        %2852 = vdwg.mxu0
        %v2854 = vsel %vm2301, %v1754, 0
        %v2857 = vsel %vm2301, %v1978, 0
        %2859 = vmatpush.bf16.xpose.msra.mxu0 0
        %2860 = vmatpush.bf16.xpose.msra.mxu0 0
        %2861 = vmatpush.bf16.xpose.msra.mxu0 0
        %2862 = vmatpush.bf16.xpose.msra.mxu0 0
        %2863 = vmatpush.bf16.xpose.msra.mxu0 0
        %2864 = vmatpush.bf16.xpose.msra.mxu0 0
        %2865 = vmatpush.bf16.xpose.msra.mxu0 0
        %2866 = vmatpush.bf16.xpose.msra.mxu0 %v2857
        %2867 = vmatmul.bf16.gmra.mxu0 %v2854
        %v2868 = vpop.f32.mrf.mxu0
        %v2869 = vadd.f32 %v2282, %v2868
        %v2870 = vpop.f32.mrf.mxu0
        %2871 = vdwg.mxu0
        %v2873 = vsel %vm2301, %v1755, 0
        %v2876 = vsel %vm2301, %v1979, 0
        %2878 = vmatpush.bf16.xpose.msra.mxu0 0
        %2879 = vmatpush.bf16.xpose.msra.mxu0 0
        %2880 = vmatpush.bf16.xpose.msra.mxu0 0
        %2881 = vmatpush.bf16.xpose.msra.mxu0 0
        %2882 = vmatpush.bf16.xpose.msra.mxu0 0
        %2883 = vmatpush.bf16.xpose.msra.mxu0 0
        %2884 = vmatpush.bf16.xpose.msra.mxu0 0
        %2885 = vmatpush.bf16.xpose.msra.mxu0 %v2876
        %2886 = vmatmul.bf16.gmra.mxu0 %v2873
        %v2887 = vpop.f32.mrf.mxu0
        %v2888 = vadd.f32 %v2283, %v2887
        %v2889 = vpop.f32.mrf.mxu0
        %2890 = vdwg.mxu0
        %v2892 = vsel %vm2301, %v1756, 0
        %v2895 = vsel %vm2301, %v1980, 0
        %2897 = vmatpush.bf16.xpose.msra.mxu0 0
        %2898 = vmatpush.bf16.xpose.msra.mxu0 0
        %2899 = vmatpush.bf16.xpose.msra.mxu0 0
        %2900 = vmatpush.bf16.xpose.msra.mxu0 0
        %2901 = vmatpush.bf16.xpose.msra.mxu0 0
        %2902 = vmatpush.bf16.xpose.msra.mxu0 0
        %2903 = vmatpush.bf16.xpose.msra.mxu0 0
        %2904 = vmatpush.bf16.xpose.msra.mxu0 %v2895
        %2905 = vmatmul.bf16.gmra.mxu0 %v2892
        %v2906 = vpop.f32.mrf.mxu0
        %v2907 = vadd.f32 %v2284, %v2906
        %v2908 = vpop.f32.mrf.mxu0
        %2909 = vdwg.mxu0
        %v2911 = vsel %vm2301, %v1757, 0
        %v2914 = vsel %vm2301, %v1981, 0
        %2916 = vmatpush.bf16.xpose.msra.mxu0 0
        %2917 = vmatpush.bf16.xpose.msra.mxu0 0
        %2918 = vmatpush.bf16.xpose.msra.mxu0 0
        %2919 = vmatpush.bf16.xpose.msra.mxu0 0
        %2920 = vmatpush.bf16.xpose.msra.mxu0 0
        %2921 = vmatpush.bf16.xpose.msra.mxu0 0
        %2922 = vmatpush.bf16.xpose.msra.mxu0 0
        %2923 = vmatpush.bf16.xpose.msra.mxu0 %v2914
        %2924 = vmatmul.bf16.gmra.mxu0 %v2911
        %v2925 = vpop.f32.mrf.mxu0
        %v2926 = vadd.f32 %v2269, %v2925
        %v2927 = vpop.f32.mrf.mxu0
        %2928 = vdwg.mxu0
        %v2930 = vsel %vm2301, %v1758, 0
        %v2933 = vsel %vm2301, %v1982, 0
        %2935 = vmatpush.bf16.xpose.msra.mxu0 0
        %2936 = vmatpush.bf16.xpose.msra.mxu0 0
        %2937 = vmatpush.bf16.xpose.msra.mxu0 0
        %2938 = vmatpush.bf16.xpose.msra.mxu0 0
        %2939 = vmatpush.bf16.xpose.msra.mxu0 0
        %2940 = vmatpush.bf16.xpose.msra.mxu0 0
        %2941 = vmatpush.bf16.xpose.msra.mxu0 0
        %2942 = vmatpush.bf16.xpose.msra.mxu0 %v2933
        %2943 = vmatmul.bf16.gmra.mxu0 %v2930
        %v2944 = vpop.f32.mrf.mxu0
        %v2945 = vadd.f32 %v2270, %v2944
        %v2946 = vpop.f32.mrf.mxu0
        %2947 = vdwg.mxu0
        %v2949 = vsel %vm2301, %v1759, 0
        %v2952 = vsel %vm2301, %v1983, 0
        %2954 = vmatpush.bf16.xpose.msra.mxu0 0
        %2955 = vmatpush.bf16.xpose.msra.mxu0 0
        %2956 = vmatpush.bf16.xpose.msra.mxu0 0
        %2957 = vmatpush.bf16.xpose.msra.mxu0 0
        %2958 = vmatpush.bf16.xpose.msra.mxu0 0
        %2959 = vmatpush.bf16.xpose.msra.mxu0 0
        %2960 = vmatpush.bf16.xpose.msra.mxu0 0
        %2961 = vmatpush.bf16.xpose.msra.mxu0 %v2952
        %2962 = vmatmul.bf16.gmra.mxu0 %v2949
        %v2963 = vpop.f32.mrf.mxu0
        %v2964 = vadd.f32 %v2271, %v2963
        %v2965 = vpop.f32.mrf.mxu0
        %2966 = vdwg.mxu0
        %v2968 = vsel %vm2301, %v1760, 0
        %v2971 = vsel %vm2301, %v1984, 0
        %2973 = vmatpush.bf16.xpose.msra.mxu0 0
        %2974 = vmatpush.bf16.xpose.msra.mxu0 0
        %2975 = vmatpush.bf16.xpose.msra.mxu0 0
        %2976 = vmatpush.bf16.xpose.msra.mxu0 0
        %2977 = vmatpush.bf16.xpose.msra.mxu0 0
        %2978 = vmatpush.bf16.xpose.msra.mxu0 0
        %2979 = vmatpush.bf16.xpose.msra.mxu0 0
        %2980 = vmatpush.bf16.xpose.msra.mxu0 %v2971
        %2981 = vmatmul.bf16.gmra.mxu0 %v2968
        %v2982 = vpop.f32.mrf.mxu0
        %v2983 = vadd.f32 %v2272, %v2982
        %v2984 = vpop.f32.mrf.mxu0
        %2985 = vdwg.mxu0
        %v2987 = vsel %vm2301, %v1761, 0
        %v2990 = vsel %vm2301, %v1985, 0
        %2992 = vmatpush.bf16.xpose.msra.mxu0 0
        %2993 = vmatpush.bf16.xpose.msra.mxu0 0
        %2994 = vmatpush.bf16.xpose.msra.mxu0 0
        %2995 = vmatpush.bf16.xpose.msra.mxu0 0
        %2996 = vmatpush.bf16.xpose.msra.mxu0 0
        %2997 = vmatpush.bf16.xpose.msra.mxu0 0
        %2998 = vmatpush.bf16.xpose.msra.mxu0 0
        %2999 = vmatpush.bf16.xpose.msra.mxu0 %v2990
        %3000 = vmatmul.bf16.gmra.mxu0 %v2987
        %v3001 = vpop.f32.mrf.mxu0
        %v3002 = vadd.f32 %v2273, %v3001
        %v3003 = vpop.f32.mrf.mxu0
        %3004 = vdwg.mxu0
        %v3006 = vsel %vm2301, %v1762, 0
        %v3009 = vsel %vm2301, %v1986, 0
        %3011 = vmatpush.bf16.xpose.msra.mxu0 0
        %3012 = vmatpush.bf16.xpose.msra.mxu0 0
        %3013 = vmatpush.bf16.xpose.msra.mxu0 0
        %3014 = vmatpush.bf16.xpose.msra.mxu0 0
        %3015 = vmatpush.bf16.xpose.msra.mxu0 0
        %3016 = vmatpush.bf16.xpose.msra.mxu0 0
        %3017 = vmatpush.bf16.xpose.msra.mxu0 0
        %3018 = vmatpush.bf16.xpose.msra.mxu0 %v3009
        %3019 = vmatmul.bf16.gmra.mxu0 %v3006
        %v3020 = vpop.f32.mrf.mxu0
        %v3021 = vadd.f32 %v2274, %v3020
        %v3022 = vpop.f32.mrf.mxu0
        %3023 = vdwg.mxu0
        %v3025 = vsel %vm2301, %v1763, 0
        %v3028 = vsel %vm2301, %v1987, 0
        %3030 = vmatpush.bf16.xpose.msra.mxu0 0
        %3031 = vmatpush.bf16.xpose.msra.mxu0 0
        %3032 = vmatpush.bf16.xpose.msra.mxu0 0
        %3033 = vmatpush.bf16.xpose.msra.mxu0 0
        %3034 = vmatpush.bf16.xpose.msra.mxu0 0
        %3035 = vmatpush.bf16.xpose.msra.mxu0 0
        %3036 = vmatpush.bf16.xpose.msra.mxu0 0
        %3037 = vmatpush.bf16.xpose.msra.mxu0 %v3028
        %3038 = vmatmul.bf16.gmra.mxu0 %v3025
        %v3039 = vpop.f32.mrf.mxu0
        %v3040 = vadd.f32 %v2275, %v3039
        %v3041 = vpop.f32.mrf.mxu0
        %3042 = vdwg.mxu0
        %v3044 = vsel %vm2301, %v1764, 0
        %v3047 = vsel %vm2301, %v1988, 0
        %3049 = vmatpush.bf16.xpose.msra.mxu0 0
        %3050 = vmatpush.bf16.xpose.msra.mxu0 0
        %3051 = vmatpush.bf16.xpose.msra.mxu0 0
        %3052 = vmatpush.bf16.xpose.msra.mxu0 0
        %3053 = vmatpush.bf16.xpose.msra.mxu0 0
        %3054 = vmatpush.bf16.xpose.msra.mxu0 0
        %3055 = vmatpush.bf16.xpose.msra.mxu0 0
        %3056 = vmatpush.bf16.xpose.msra.mxu0 %v3047
        %3057 = vmatmul.bf16.gmra.mxu0 %v3044
        %v3058 = vpop.f32.mrf.mxu0
        %v3059 = vadd.f32 %v2276, %v3058
        %v3060 = vpop.f32.mrf.mxu0
        %3061 = vdwg.mxu0
        %v3063 = vsel %vm2301, %v1765, 0
        %v3066 = vsel %vm2301, %v1989, 0
        %3068 = vmatpush.bf16.xpose.msra.mxu0 0
        %3069 = vmatpush.bf16.xpose.msra.mxu0 0
        %3070 = vmatpush.bf16.xpose.msra.mxu0 0
        %3071 = vmatpush.bf16.xpose.msra.mxu0 0
        %3072 = vmatpush.bf16.xpose.msra.mxu0 0
        %3073 = vmatpush.bf16.xpose.msra.mxu0 0
        %3074 = vmatpush.bf16.xpose.msra.mxu0 0
        %3075 = vmatpush.bf16.xpose.msra.mxu0 %v3066
        %3076 = vmatmul.bf16.gmra.mxu0 %v3063
        %v3077 = vpop.f32.mrf.mxu0
        %v3078 = vadd.f32 %v2277, %v3077
        %v3079 = vpop.f32.mrf.mxu0
        %3080 = vdwg.mxu0
        %v3082 = vsel %vm2301, %v1766, 0
        %v3085 = vsel %vm2301, %v1990, 0
        %3087 = vmatpush.bf16.xpose.msra.mxu0 0
        %3088 = vmatpush.bf16.xpose.msra.mxu0 0
        %3089 = vmatpush.bf16.xpose.msra.mxu0 0
        %3090 = vmatpush.bf16.xpose.msra.mxu0 0
        %3091 = vmatpush.bf16.xpose.msra.mxu0 0
        %3092 = vmatpush.bf16.xpose.msra.mxu0 0
        %3093 = vmatpush.bf16.xpose.msra.mxu0 0
        %3094 = vmatpush.bf16.xpose.msra.mxu0 %v3085
        %3095 = vmatmul.bf16.gmra.mxu0 %v3082
        %v3096 = vpop.f32.mrf.mxu0
        %v3097 = vadd.f32 %v2278, %v3096
        %v3098 = vpop.f32.mrf.mxu0
        %3099 = vdwg.mxu0
        %v3101 = vsel %vm2301, %v1767, 0
        %v3104 = vsel %vm2301, %v1991, 0
        %3106 = vmatpush.bf16.xpose.msra.mxu0 0
        %3107 = vmatpush.bf16.xpose.msra.mxu0 0
        %3108 = vmatpush.bf16.xpose.msra.mxu0 0
        %3109 = vmatpush.bf16.xpose.msra.mxu0 0
        %3110 = vmatpush.bf16.xpose.msra.mxu0 0
        %3111 = vmatpush.bf16.xpose.msra.mxu0 0
        %3112 = vmatpush.bf16.xpose.msra.mxu0 0
        %3113 = vmatpush.bf16.xpose.msra.mxu0 %v3104
        %3114 = vmatmul.bf16.gmra.mxu0 %v3101
        %v3115 = vpop.f32.mrf.mxu0
        %v3116 = vadd.f32 %v2279, %v3115
        %v3117 = vpop.f32.mrf.mxu0
        %3118 = vdwg.mxu0
        %v3120 = vsel %vm2301, %v1768, 0
        %v3123 = vsel %vm2301, %v1992, 0
        %3125 = vmatpush.bf16.xpose.msra.mxu0 0
        %3126 = vmatpush.bf16.xpose.msra.mxu0 0
        %3127 = vmatpush.bf16.xpose.msra.mxu0 0
        %3128 = vmatpush.bf16.xpose.msra.mxu0 0
        %3129 = vmatpush.bf16.xpose.msra.mxu0 0
        %3130 = vmatpush.bf16.xpose.msra.mxu0 0
        %3131 = vmatpush.bf16.xpose.msra.mxu0 0
        %3132 = vmatpush.bf16.xpose.msra.mxu0 %v3123
        %3133 = vmatmul.bf16.gmra.mxu0 %v3120
        %v3134 = vpop.f32.mrf.mxu0
        %v3135 = vadd.f32 %v2280, %v3134
        %v3136 = vpop.f32.mrf.mxu0
        %3137 = vdwg.mxu0
        %v3139 = vsel %vm2301, %v1769, 0
        %v3142 = vsel %vm2301, %v1993, 0
        %3144 = vmatpush.bf16.xpose.msra.mxu0 0
        %3145 = vmatpush.bf16.xpose.msra.mxu0 0
        %3146 = vmatpush.bf16.xpose.msra.mxu0 0
        %3147 = vmatpush.bf16.xpose.msra.mxu0 0
        %3148 = vmatpush.bf16.xpose.msra.mxu0 0
        %3149 = vmatpush.bf16.xpose.msra.mxu0 0
        %3150 = vmatpush.bf16.xpose.msra.mxu0 0
        %3151 = vmatpush.bf16.xpose.msra.mxu0 %v3142
        %3152 = vmatmul.bf16.gmra.mxu0 %v3139
        %v3153 = vpop.f32.mrf.mxu0
        %v3154 = vadd.f32 %v2281, %v3153
        %v3155 = vpop.f32.mrf.mxu0
        %3156 = vdwg.mxu0
        %v3158 = vsel %vm2301, %v1770, 0
        %v3161 = vsel %vm2301, %v1994, 0
        %3163 = vmatpush.bf16.xpose.msra.mxu0 0
        %3164 = vmatpush.bf16.xpose.msra.mxu0 0
        %3165 = vmatpush.bf16.xpose.msra.mxu0 0
        %3166 = vmatpush.bf16.xpose.msra.mxu0 0
        %3167 = vmatpush.bf16.xpose.msra.mxu0 0
        %3168 = vmatpush.bf16.xpose.msra.mxu0 0
        %3169 = vmatpush.bf16.xpose.msra.mxu0 0
        %3170 = vmatpush.bf16.xpose.msra.mxu0 %v3161
        %3171 = vmatmul.bf16.gmra.mxu0 %v3158
        %v3172 = vpop.f32.mrf.mxu0
        %v3173 = vadd.f32 %v2282, %v3172
        %v3174 = vpop.f32.mrf.mxu0
        %3175 = vdwg.mxu0
        %v3177 = vsel %vm2301, %v1771, 0
        %v3180 = vsel %vm2301, %v1995, 0
        %3182 = vmatpush.bf16.xpose.msra.mxu0 0
        %3183 = vmatpush.bf16.xpose.msra.mxu0 0
        %3184 = vmatpush.bf16.xpose.msra.mxu0 0
        %3185 = vmatpush.bf16.xpose.msra.mxu0 0
        %3186 = vmatpush.bf16.xpose.msra.mxu0 0
        %3187 = vmatpush.bf16.xpose.msra.mxu0 0
        %3188 = vmatpush.bf16.xpose.msra.mxu0 0
        %3189 = vmatpush.bf16.xpose.msra.mxu0 %v3180
        %3190 = vmatmul.bf16.gmra.mxu0 %v3177
        %v3191 = vpop.f32.mrf.mxu0
        %v3192 = vadd.f32 %v2283, %v3191
        %v3193 = vpop.f32.mrf.mxu0
        %3194 = vdwg.mxu0
        %v3196 = vsel %vm2301, %v1772, 0
        %v3199 = vsel %vm2301, %v1996, 0
        %3201 = vmatpush.bf16.xpose.msra.mxu0 0
        %3202 = vmatpush.bf16.xpose.msra.mxu0 0
        %3203 = vmatpush.bf16.xpose.msra.mxu0 0
        %3204 = vmatpush.bf16.xpose.msra.mxu0 0
        %3205 = vmatpush.bf16.xpose.msra.mxu0 0
        %3206 = vmatpush.bf16.xpose.msra.mxu0 0
        %3207 = vmatpush.bf16.xpose.msra.mxu0 0
        %3208 = vmatpush.bf16.xpose.msra.mxu0 %v3199
        %3209 = vmatmul.bf16.gmra.mxu0 %v3196
        %v3210 = vpop.f32.mrf.mxu0
        %v3211 = vadd.f32 %v2284, %v3210
        %v3212 = vpop.f32.mrf.mxu0
        %3213 = vdwg.mxu0
        %v3215 = vsel %vm2301, %v1773, 0
        %v3218 = vsel %vm2301, %v1997, 0
        %3220 = vmatpush.bf16.xpose.msra.mxu0 0
        %3221 = vmatpush.bf16.xpose.msra.mxu0 0
        %3222 = vmatpush.bf16.xpose.msra.mxu0 0
        %3223 = vmatpush.bf16.xpose.msra.mxu0 0
        %3224 = vmatpush.bf16.xpose.msra.mxu0 0
        %3225 = vmatpush.bf16.xpose.msra.mxu0 0
        %3226 = vmatpush.bf16.xpose.msra.mxu0 0
        %3227 = vmatpush.bf16.xpose.msra.mxu0 %v3218
        %3228 = vmatmul.bf16.gmra.mxu0 %v3215
        %v3229 = vpop.f32.mrf.mxu0
        %v3230 = vadd.f32 %v2269, %v3229
        %v3231 = vpop.f32.mrf.mxu0
        %3232 = vdwg.mxu0
        %v3234 = vsel %vm2301, %v1774, 0
        %v3237 = vsel %vm2301, %v1998, 0
        %3239 = vmatpush.bf16.xpose.msra.mxu0 0
        %3240 = vmatpush.bf16.xpose.msra.mxu0 0
        %3241 = vmatpush.bf16.xpose.msra.mxu0 0
        %3242 = vmatpush.bf16.xpose.msra.mxu0 0
        %3243 = vmatpush.bf16.xpose.msra.mxu0 0
        %3244 = vmatpush.bf16.xpose.msra.mxu0 0
        %3245 = vmatpush.bf16.xpose.msra.mxu0 0
        %3246 = vmatpush.bf16.xpose.msra.mxu0 %v3237
        %3247 = vmatmul.bf16.gmra.mxu0 %v3234
        %v3248 = vpop.f32.mrf.mxu0
        %v3249 = vadd.f32 %v2270, %v3248
        %v3250 = vpop.f32.mrf.mxu0
        %3251 = vdwg.mxu0
        %v3253 = vsel %vm2301, %v1775, 0
        %v3256 = vsel %vm2301, %v1999, 0
        %3258 = vmatpush.bf16.xpose.msra.mxu0 0
        %3259 = vmatpush.bf16.xpose.msra.mxu0 0
        %3260 = vmatpush.bf16.xpose.msra.mxu0 0
        %3261 = vmatpush.bf16.xpose.msra.mxu0 0
        %3262 = vmatpush.bf16.xpose.msra.mxu0 0
        %3263 = vmatpush.bf16.xpose.msra.mxu0 0
        %3264 = vmatpush.bf16.xpose.msra.mxu0 0
        %3265 = vmatpush.bf16.xpose.msra.mxu0 %v3256
        %3266 = vmatmul.bf16.gmra.mxu0 %v3253
        %v3267 = vpop.f32.mrf.mxu0
        %v3268 = vadd.f32 %v2271, %v3267
        %v3269 = vpop.f32.mrf.mxu0
        %3270 = vdwg.mxu0
        %v3272 = vsel %vm2301, %v1776, 0
        %v3275 = vsel %vm2301, %v2000, 0
        %3277 = vmatpush.bf16.xpose.msra.mxu0 0
        %3278 = vmatpush.bf16.xpose.msra.mxu0 0
        %3279 = vmatpush.bf16.xpose.msra.mxu0 0
        %3280 = vmatpush.bf16.xpose.msra.mxu0 0
        %3281 = vmatpush.bf16.xpose.msra.mxu0 0
        %3282 = vmatpush.bf16.xpose.msra.mxu0 0
        %3283 = vmatpush.bf16.xpose.msra.mxu0 0
        %3284 = vmatpush.bf16.xpose.msra.mxu0 %v3275
        %3285 = vmatmul.bf16.gmra.mxu0 %v3272
        %v3286 = vpop.f32.mrf.mxu0
        %v3287 = vadd.f32 %v2272, %v3286
        %v3288 = vpop.f32.mrf.mxu0
        %3289 = vdwg.mxu0
        %v3291 = vsel %vm2301, %v1777, 0
        %v3294 = vsel %vm2301, %v2001, 0
        %3296 = vmatpush.bf16.xpose.msra.mxu0 0
        %3297 = vmatpush.bf16.xpose.msra.mxu0 0
        %3298 = vmatpush.bf16.xpose.msra.mxu0 0
        %3299 = vmatpush.bf16.xpose.msra.mxu0 0
        %3300 = vmatpush.bf16.xpose.msra.mxu0 0
        %3301 = vmatpush.bf16.xpose.msra.mxu0 0
        %3302 = vmatpush.bf16.xpose.msra.mxu0 0
        %3303 = vmatpush.bf16.xpose.msra.mxu0 %v3294
        %3304 = vmatmul.bf16.gmra.mxu0 %v3291
        %v3305 = vpop.f32.mrf.mxu0
        %v3306 = vadd.f32 %v2273, %v3305
        %v3307 = vpop.f32.mrf.mxu0
        %3308 = vdwg.mxu0
        %v3310 = vsel %vm2301, %v1778, 0
        %v3313 = vsel %vm2301, %v2002, 0
        %3315 = vmatpush.bf16.xpose.msra.mxu0 0
        %3316 = vmatpush.bf16.xpose.msra.mxu0 0
        %3317 = vmatpush.bf16.xpose.msra.mxu0 0
        %3318 = vmatpush.bf16.xpose.msra.mxu0 0
        %3319 = vmatpush.bf16.xpose.msra.mxu0 0
        %3320 = vmatpush.bf16.xpose.msra.mxu0 0
        %3321 = vmatpush.bf16.xpose.msra.mxu0 0
        %3322 = vmatpush.bf16.xpose.msra.mxu0 %v3313
        %3323 = vmatmul.bf16.gmra.mxu0 %v3310
        %v3324 = vpop.f32.mrf.mxu0
        %v3325 = vadd.f32 %v2274, %v3324
        %v3326 = vpop.f32.mrf.mxu0
        %3327 = vdwg.mxu0
        %v3329 = vsel %vm2301, %v1779, 0
        %v3332 = vsel %vm2301, %v2003, 0
        %3334 = vmatpush.bf16.xpose.msra.mxu0 0
        %3335 = vmatpush.bf16.xpose.msra.mxu0 0
        %3336 = vmatpush.bf16.xpose.msra.mxu0 0
        %3337 = vmatpush.bf16.xpose.msra.mxu0 0
        %3338 = vmatpush.bf16.xpose.msra.mxu0 0
        %3339 = vmatpush.bf16.xpose.msra.mxu0 0
        %3340 = vmatpush.bf16.xpose.msra.mxu0 0
        %3341 = vmatpush.bf16.xpose.msra.mxu0 %v3332
        %3342 = vmatmul.bf16.gmra.mxu0 %v3329
        %v3343 = vpop.f32.mrf.mxu0
        %v3344 = vadd.f32 %v2275, %v3343
        %v3345 = vpop.f32.mrf.mxu0
        %3346 = vdwg.mxu0
        %v3348 = vsel %vm2301, %v1780, 0
        %v3351 = vsel %vm2301, %v2004, 0
        %3353 = vmatpush.bf16.xpose.msra.mxu0 0
        %3354 = vmatpush.bf16.xpose.msra.mxu0 0
        %3355 = vmatpush.bf16.xpose.msra.mxu0 0
        %3356 = vmatpush.bf16.xpose.msra.mxu0 0
        %3357 = vmatpush.bf16.xpose.msra.mxu0 0
        %3358 = vmatpush.bf16.xpose.msra.mxu0 0
        %3359 = vmatpush.bf16.xpose.msra.mxu0 0
        %3360 = vmatpush.bf16.xpose.msra.mxu0 %v3351
        %3361 = vmatmul.bf16.gmra.mxu0 %v3348
        %v3362 = vpop.f32.mrf.mxu0
        %v3363 = vadd.f32 %v2276, %v3362
        %v3364 = vpop.f32.mrf.mxu0
        %3365 = vdwg.mxu0
        %v3367 = vsel %vm2301, %v1781, 0
        %v3370 = vsel %vm2301, %v2005, 0
        %3372 = vmatpush.bf16.xpose.msra.mxu0 0
        %3373 = vmatpush.bf16.xpose.msra.mxu0 0
        %3374 = vmatpush.bf16.xpose.msra.mxu0 0
        %3375 = vmatpush.bf16.xpose.msra.mxu0 0
        %3376 = vmatpush.bf16.xpose.msra.mxu0 0
        %3377 = vmatpush.bf16.xpose.msra.mxu0 0
        %3378 = vmatpush.bf16.xpose.msra.mxu0 0
        %3379 = vmatpush.bf16.xpose.msra.mxu0 %v3370
        %3380 = vmatmul.bf16.gmra.mxu0 %v3367
        %v3381 = vpop.f32.mrf.mxu0
        %v3382 = vadd.f32 %v2277, %v3381
        %v3383 = vpop.f32.mrf.mxu0
        %3384 = vdwg.mxu0
        %v3386 = vsel %vm2301, %v1782, 0
        %v3389 = vsel %vm2301, %v2006, 0
        %3391 = vmatpush.bf16.xpose.msra.mxu0 0
        %3392 = vmatpush.bf16.xpose.msra.mxu0 0
        %3393 = vmatpush.bf16.xpose.msra.mxu0 0
        %3394 = vmatpush.bf16.xpose.msra.mxu0 0
        %3395 = vmatpush.bf16.xpose.msra.mxu0 0
        %3396 = vmatpush.bf16.xpose.msra.mxu0 0
        %3397 = vmatpush.bf16.xpose.msra.mxu0 0
        %3398 = vmatpush.bf16.xpose.msra.mxu0 %v3389
        %3399 = vmatmul.bf16.gmra.mxu0 %v3386
        %v3400 = vpop.f32.mrf.mxu0
        %v3401 = vadd.f32 %v2278, %v3400
        %v3402 = vpop.f32.mrf.mxu0
        %3403 = vdwg.mxu0
        %v3405 = vsel %vm2301, %v1783, 0
        %v3408 = vsel %vm2301, %v2007, 0
        %3410 = vmatpush.bf16.xpose.msra.mxu0 0
        %3411 = vmatpush.bf16.xpose.msra.mxu0 0
        %3412 = vmatpush.bf16.xpose.msra.mxu0 0
        %3413 = vmatpush.bf16.xpose.msra.mxu0 0
        %3414 = vmatpush.bf16.xpose.msra.mxu0 0
        %3415 = vmatpush.bf16.xpose.msra.mxu0 0
        %3416 = vmatpush.bf16.xpose.msra.mxu0 0
        %3417 = vmatpush.bf16.xpose.msra.mxu0 %v3408
        %3418 = vmatmul.bf16.gmra.mxu0 %v3405
        %v3419 = vpop.f32.mrf.mxu0
        %v3420 = vadd.f32 %v2279, %v3419
        %v3421 = vpop.f32.mrf.mxu0
        %3422 = vdwg.mxu0
        %v3424 = vsel %vm2301, %v1784, 0
        %v3427 = vsel %vm2301, %v2008, 0
        %3429 = vmatpush.bf16.xpose.msra.mxu0 0
        %3430 = vmatpush.bf16.xpose.msra.mxu0 0
        %3431 = vmatpush.bf16.xpose.msra.mxu0 0
        %3432 = vmatpush.bf16.xpose.msra.mxu0 0
        %3433 = vmatpush.bf16.xpose.msra.mxu0 0
        %3434 = vmatpush.bf16.xpose.msra.mxu0 0
        %3435 = vmatpush.bf16.xpose.msra.mxu0 0
        %3436 = vmatpush.bf16.xpose.msra.mxu0 %v3427
        %3437 = vmatmul.bf16.gmra.mxu0 %v3424
        %v3438 = vpop.f32.mrf.mxu0
        %v3439 = vadd.f32 %v2280, %v3438
        %v3440 = vpop.f32.mrf.mxu0
        %3441 = vdwg.mxu0
        %v3443 = vsel %vm2301, %v1785, 0
        %v3446 = vsel %vm2301, %v2009, 0
        %3448 = vmatpush.bf16.xpose.msra.mxu0 0
        %3449 = vmatpush.bf16.xpose.msra.mxu0 0
        %3450 = vmatpush.bf16.xpose.msra.mxu0 0
        %3451 = vmatpush.bf16.xpose.msra.mxu0 0
        %3452 = vmatpush.bf16.xpose.msra.mxu0 0
        %3453 = vmatpush.bf16.xpose.msra.mxu0 0
        %3454 = vmatpush.bf16.xpose.msra.mxu0 0
        %3455 = vmatpush.bf16.xpose.msra.mxu0 %v3446
        %3456 = vmatmul.bf16.gmra.mxu0 %v3443
        %v3457 = vpop.f32.mrf.mxu0
        %v3458 = vadd.f32 %v2281, %v3457
        %v3459 = vpop.f32.mrf.mxu0
        %3460 = vdwg.mxu0
        %v3462 = vsel %vm2301, %v1786, 0
        %v3465 = vsel %vm2301, %v2010, 0
        %3467 = vmatpush.bf16.xpose.msra.mxu0 0
        %3468 = vmatpush.bf16.xpose.msra.mxu0 0
        %3469 = vmatpush.bf16.xpose.msra.mxu0 0
        %3470 = vmatpush.bf16.xpose.msra.mxu0 0
        %3471 = vmatpush.bf16.xpose.msra.mxu0 0
        %3472 = vmatpush.bf16.xpose.msra.mxu0 0
        %3473 = vmatpush.bf16.xpose.msra.mxu0 0
        %3474 = vmatpush.bf16.xpose.msra.mxu0 %v3465
        %3475 = vmatmul.bf16.gmra.mxu0 %v3462
        %v3476 = vpop.f32.mrf.mxu0
        %v3477 = vadd.f32 %v2282, %v3476
        %v3478 = vpop.f32.mrf.mxu0
        %3479 = vdwg.mxu0
        %v3481 = vsel %vm2301, %v1787, 0
        %v3484 = vsel %vm2301, %v2011, 0
        %3486 = vmatpush.bf16.xpose.msra.mxu0 0
        %3487 = vmatpush.bf16.xpose.msra.mxu0 0
        %3488 = vmatpush.bf16.xpose.msra.mxu0 0
        %3489 = vmatpush.bf16.xpose.msra.mxu0 0
        %3490 = vmatpush.bf16.xpose.msra.mxu0 0
        %3491 = vmatpush.bf16.xpose.msra.mxu0 0
        %3492 = vmatpush.bf16.xpose.msra.mxu0 0
        %3493 = vmatpush.bf16.xpose.msra.mxu0 %v3484
        %3494 = vmatmul.bf16.gmra.mxu0 %v3481
        %v3495 = vpop.f32.mrf.mxu0
        %v3496 = vadd.f32 %v2283, %v3495
        %v3497 = vpop.f32.mrf.mxu0
        %3498 = vdwg.mxu0
        %v3500 = vsel %vm2301, %v1788, 0
        %v3503 = vsel %vm2301, %v2012, 0
        %3505 = vmatpush.bf16.xpose.msra.mxu0 0
        %3506 = vmatpush.bf16.xpose.msra.mxu0 0
        %3507 = vmatpush.bf16.xpose.msra.mxu0 0
        %3508 = vmatpush.bf16.xpose.msra.mxu0 0
        %3509 = vmatpush.bf16.xpose.msra.mxu0 0
        %3510 = vmatpush.bf16.xpose.msra.mxu0 0
        %3511 = vmatpush.bf16.xpose.msra.mxu0 0
        %3512 = vmatpush.bf16.xpose.msra.mxu0 %v3503
        %3513 = vmatmul.bf16.gmra.mxu0 %v3500
        %v3514 = vpop.f32.mrf.mxu0
        %v3515 = vadd.f32 %v2284, %v3514
        %v3516 = vpop.f32.mrf.mxu0
        %3517 = vdwg.mxu0
        %vm3518 = vcmask 64512
        %v3519 = vsel %vm3518, %v2318, -inf
        %3520 = vmax.xlane.f32.xlu0 %v3519
        %v3521 = vpop.xlane.xlu0 %3520
        %v3522 = vsel %vm3518, %v2337, -inf
        %3523 = vmax.xlane.f32.xlu0 %v3522
        %v3524 = vpop.xlane.xlu0 %3523
        %v3525 = vsel %vm3518, %v2356, -inf
        %3526 = vmax.xlane.f32.xlu0 %v3525
        %v3527 = vpop.xlane.xlu0 %3526
        %v3528 = vsel %vm3518, %v2375, -inf
        %3529 = vmax.xlane.f32.xlu0 %v3528
        %v3530 = vpop.xlane.xlu0 %3529
        %v3531 = vsel %vm3518, %v2394, -inf
        %3532 = vmax.xlane.f32.xlu0 %v3531
        %v3533 = vpop.xlane.xlu0 %3532
        %v3534 = vsel %vm3518, %v2413, -inf
        %3535 = vmax.xlane.f32.xlu0 %v3534
        %v3536 = vpop.xlane.xlu0 %3535
        %v3537 = vsel %vm3518, %v2432, -inf
        %3538 = vmax.xlane.f32.xlu0 %v3537
        %v3539 = vpop.xlane.xlu0 %3538
        %v3540 = vsel %vm3518, %v2451, -inf
        %3541 = vmax.xlane.f32.xlu0 %v3540
        %v3542 = vpop.xlane.xlu0 %3541
        %v3543 = vsel %vm3518, %v2470, -inf
        %3544 = vmax.xlane.f32.xlu0 %v3543
        %v3545 = vpop.xlane.xlu0 %3544
        %v3546 = vsel %vm3518, %v2489, -inf
        %3547 = vmax.xlane.f32.xlu0 %v3546
        %v3548 = vpop.xlane.xlu0 %3547
        %v3549 = vsel %vm3518, %v2508, -inf
        %3550 = vmax.xlane.f32.xlu0 %v3549
        %v3551 = vpop.xlane.xlu0 %3550
        %v3552 = vsel %vm3518, %v2527, -inf
        %3553 = vmax.xlane.f32.xlu0 %v3552
        %v3554 = vpop.xlane.xlu0 %3553
        %v3555 = vsel %vm3518, %v2546, -inf
        %3556 = vmax.xlane.f32.xlu0 %v3555
        %v3557 = vpop.xlane.xlu0 %3556
        %v3558 = vsel %vm3518, %v2565, -inf
        %3559 = vmax.xlane.f32.xlu0 %v3558
        %v3560 = vpop.xlane.xlu0 %3559
        %v3561 = vsel %vm3518, %v2584, -inf
        %3562 = vmax.xlane.f32.xlu0 %v3561
        %v3563 = vpop.xlane.xlu0 %3562
        %v3564 = vsel %vm3518, %v2603, -inf
        %3565 = vmax.xlane.f32.xlu0 %v3564
        %v3566 = vpop.xlane.xlu0 %3565
        %v3567 = vsel %vm3518, %v2622, -inf
        %3568 = vmax.xlane.f32.xlu0 %v3567
        %v3569 = vpop.xlane.xlu0 %3568
        %v3570 = vsel %vm3518, %v2641, -inf
        %3571 = vmax.xlane.f32.xlu0 %v3570
        %v3572 = vpop.xlane.xlu0 %3571
        %v3573 = vsel %vm3518, %v2660, -inf
        %3574 = vmax.xlane.f32.xlu0 %v3573
        %v3575 = vpop.xlane.xlu0 %3574
        %v3576 = vsel %vm3518, %v2679, -inf
        %3577 = vmax.xlane.f32.xlu0 %v3576
        %v3578 = vpop.xlane.xlu0 %3577
        %v3579 = vsel %vm3518, %v2698, -inf
        %3580 = vmax.xlane.f32.xlu0 %v3579
        %v3581 = vpop.xlane.xlu0 %3580
        %v3582 = vsel %vm3518, %v2717, -inf
        %3583 = vmax.xlane.f32.xlu0 %v3582
        %v3584 = vpop.xlane.xlu0 %3583
        %v3585 = vsel %vm3518, %v2736, -inf
        %3586 = vmax.xlane.f32.xlu0 %v3585
        %v3587 = vpop.xlane.xlu0 %3586
        %v3588 = vsel %vm3518, %v2755, -inf
        %3589 = vmax.xlane.f32.xlu0 %v3588
        %v3590 = vpop.xlane.xlu0 %3589
        %v3591 = vsel %vm3518, %v2774, -inf
        %3592 = vmax.xlane.f32.xlu0 %v3591
        %v3593 = vpop.xlane.xlu0 %3592
        %v3594 = vsel %vm3518, %v2793, -inf
        %3595 = vmax.xlane.f32.xlu0 %v3594
        %v3596 = vpop.xlane.xlu0 %3595
        %v3597 = vsel %vm3518, %v2812, -inf
        %3598 = vmax.xlane.f32.xlu0 %v3597
        %v3599 = vpop.xlane.xlu0 %3598
        %v3600 = vsel %vm3518, %v2831, -inf
        %3601 = vmax.xlane.f32.xlu0 %v3600
        %v3602 = vpop.xlane.xlu0 %3601
        %v3603 = vsel %vm3518, %v2850, -inf
        %3604 = vmax.xlane.f32.xlu0 %v3603
        %v3605 = vpop.xlane.xlu0 %3604
        %v3606 = vsel %vm3518, %v2869, -inf
        %3607 = vmax.xlane.f32.xlu0 %v3606
        %v3608 = vpop.xlane.xlu0 %3607
        %v3609 = vsel %vm3518, %v2888, -inf
        %3610 = vmax.xlane.f32.xlu0 %v3609
        %v3611 = vpop.xlane.xlu0 %3610
        %v3612 = vsel %vm3518, %v2907, -inf
        %3613 = vmax.xlane.f32.xlu0 %v3612
        %v3614 = vpop.xlane.xlu0 %3613
        %v3615 = vsel %vm3518, %v2926, -inf
        %3616 = vmax.xlane.f32.xlu0 %v3615
        %v3617 = vpop.xlane.xlu0 %3616
        %v3618 = vsel %vm3518, %v2945, -inf
        %3619 = vmax.xlane.f32.xlu0 %v3618
        %v3620 = vpop.xlane.xlu0 %3619
        %v3621 = vsel %vm3518, %v2964, -inf
        %3622 = vmax.xlane.f32.xlu0 %v3621
        %v3623 = vpop.xlane.xlu0 %3622
        %v3624 = vsel %vm3518, %v2983, -inf
        %3625 = vmax.xlane.f32.xlu0 %v3624
        %v3626 = vpop.xlane.xlu0 %3625
        %v3627 = vsel %vm3518, %v3002, -inf
        %3628 = vmax.xlane.f32.xlu0 %v3627
        %v3629 = vpop.xlane.xlu0 %3628
        %v3630 = vsel %vm3518, %v3021, -inf
        %3631 = vmax.xlane.f32.xlu0 %v3630
        %v3632 = vpop.xlane.xlu0 %3631
        %v3633 = vsel %vm3518, %v3040, -inf
        %3634 = vmax.xlane.f32.xlu0 %v3633
        %v3635 = vpop.xlane.xlu0 %3634
        %v3636 = vsel %vm3518, %v3059, -inf
        %3637 = vmax.xlane.f32.xlu0 %v3636
        %v3638 = vpop.xlane.xlu0 %3637
        %v3639 = vsel %vm3518, %v3078, -inf
        %3640 = vmax.xlane.f32.xlu0 %v3639
        %v3641 = vpop.xlane.xlu0 %3640
        %v3642 = vsel %vm3518, %v3097, -inf
        %3643 = vmax.xlane.f32.xlu0 %v3642
        %v3644 = vpop.xlane.xlu0 %3643
        %v3645 = vsel %vm3518, %v3116, -inf
        %3646 = vmax.xlane.f32.xlu0 %v3645
        %v3647 = vpop.xlane.xlu0 %3646
        %v3648 = vsel %vm3518, %v3135, -inf
        %3649 = vmax.xlane.f32.xlu0 %v3648
        %v3650 = vpop.xlane.xlu0 %3649
        %v3651 = vsel %vm3518, %v3154, -inf
        %3652 = vmax.xlane.f32.xlu0 %v3651
        %v3653 = vpop.xlane.xlu0 %3652
        %v3654 = vsel %vm3518, %v3173, -inf
        %3655 = vmax.xlane.f32.xlu0 %v3654
        %v3656 = vpop.xlane.xlu0 %3655
        %v3657 = vsel %vm3518, %v3192, -inf
        %3658 = vmax.xlane.f32.xlu0 %v3657
        %v3659 = vpop.xlane.xlu0 %3658
        %v3660 = vsel %vm3518, %v3211, -inf
        %3661 = vmax.xlane.f32.xlu0 %v3660
        %v3662 = vpop.xlane.xlu0 %3661
        %v3663 = vsel %vm3518, %v3230, -inf
        %3664 = vmax.xlane.f32.xlu0 %v3663
        %v3665 = vpop.xlane.xlu0 %3664
        %v3666 = vsel %vm3518, %v3249, -inf
        %3667 = vmax.xlane.f32.xlu0 %v3666
        %v3668 = vpop.xlane.xlu0 %3667
        %v3669 = vsel %vm3518, %v3268, -inf
        %3670 = vmax.xlane.f32.xlu0 %v3669
        %v3671 = vpop.xlane.xlu0 %3670
        %v3672 = vsel %vm3518, %v3287, -inf
        %3673 = vmax.xlane.f32.xlu0 %v3672
        %v3674 = vpop.xlane.xlu0 %3673
        %v3675 = vsel %vm3518, %v3306, -inf
        %3676 = vmax.xlane.f32.xlu0 %v3675
        %v3677 = vpop.xlane.xlu0 %3676
        %v3678 = vsel %vm3518, %v3325, -inf
        %3679 = vmax.xlane.f32.xlu0 %v3678
        %v3680 = vpop.xlane.xlu0 %3679
        %v3681 = vsel %vm3518, %v3344, -inf
        %3682 = vmax.xlane.f32.xlu0 %v3681
        %v3683 = vpop.xlane.xlu0 %3682
        %v3684 = vsel %vm3518, %v3363, -inf
        %3685 = vmax.xlane.f32.xlu0 %v3684
        %v3686 = vpop.xlane.xlu0 %3685
        %v3687 = vsel %vm3518, %v3382, -inf
        %3688 = vmax.xlane.f32.xlu0 %v3687
        %v3689 = vpop.xlane.xlu0 %3688
        %v3690 = vsel %vm3518, %v3401, -inf
        %3691 = vmax.xlane.f32.xlu0 %v3690
        %v3692 = vpop.xlane.xlu0 %3691
        %v3693 = vsel %vm3518, %v3420, -inf
        %3694 = vmax.xlane.f32.xlu0 %v3693
        %v3695 = vpop.xlane.xlu0 %3694
        %v3696 = vsel %vm3518, %v3439, -inf
        %3697 = vmax.xlane.f32.xlu0 %v3696
        %v3698 = vpop.xlane.xlu0 %3697
        %v3699 = vsel %vm3518, %v3458, -inf
        %3700 = vmax.xlane.f32.xlu0 %v3699
        %v3701 = vpop.xlane.xlu0 %3700
        %v3702 = vsel %vm3518, %v3477, -inf
        %3703 = vmax.xlane.f32.xlu0 %v3702
        %v3704 = vpop.xlane.xlu0 %3703
        %v3705 = vsel %vm3518, %v3496, -inf
        %3706 = vmax.xlane.f32.xlu0 %v3705
        %v3707 = vpop.xlane.xlu0 %3706
        %v3708 = vsel %vm3518, %v3515, -inf
        %3709 = vmax.xlane.f32.xlu0 %v3708
        %v3710 = vpop.xlane.xlu0 %3709
        %v3711 = vsub.f32 %v2318, %v3521
        %v3712 = vsub.f32 %v2337, %v3524
        %v3713 = vsub.f32 %v2356, %v3527
        %v3714 = vsub.f32 %v2375, %v3530
        %v3715 = vsub.f32 %v2394, %v3533
        %v3716 = vsub.f32 %v2413, %v3536
        %v3717 = vsub.f32 %v2432, %v3539
        %v3718 = vsub.f32 %v2451, %v3542
        %v3719 = vsub.f32 %v2470, %v3545
        %v3720 = vsub.f32 %v2489, %v3548
        %v3721 = vsub.f32 %v2508, %v3551
        %v3722 = vsub.f32 %v2527, %v3554
        %v3723 = vsub.f32 %v2546, %v3557
        %v3724 = vsub.f32 %v2565, %v3560
        %v3725 = vsub.f32 %v2584, %v3563
        %v3726 = vsub.f32 %v2603, %v3566
        %v3727 = vsub.f32 %v2622, %v3569
        %v3728 = vsub.f32 %v2641, %v3572
        %v3729 = vsub.f32 %v2660, %v3575
        %v3730 = vsub.f32 %v2679, %v3578
        %v3731 = vsub.f32 %v2698, %v3581
        %v3732 = vsub.f32 %v2717, %v3584
        %v3733 = vsub.f32 %v2736, %v3587
        %v3734 = vsub.f32 %v2755, %v3590
        %v3735 = vsub.f32 %v2774, %v3593
        %v3736 = vsub.f32 %v2793, %v3596
        %v3737 = vsub.f32 %v2812, %v3599
        %v3738 = vsub.f32 %v2831, %v3602
        %v3739 = vsub.f32 %v2850, %v3605
        %v3740 = vsub.f32 %v2869, %v3608
        %v3741 = vsub.f32 %v2888, %v3611
        %v3742 = vsub.f32 %v2907, %v3614
        %v3743 = vsub.f32 %v2926, %v3617
        %v3744 = vsub.f32 %v2945, %v3620
        %v3745 = vsub.f32 %v2964, %v3623
        %v3746 = vsub.f32 %v2983, %v3626
        %v3747 = vsub.f32 %v3002, %v3629
        %v3748 = vsub.f32 %v3021, %v3632
        %v3749 = vsub.f32 %v3040, %v3635
        %v3750 = vsub.f32 %v3059, %v3638
        %v3751 = vsub.f32 %v3078, %v3641
        %v3752 = vsub.f32 %v3097, %v3644
        %v3753 = vsub.f32 %v3116, %v3647
        %v3754 = vsub.f32 %v3135, %v3650
        %v3755 = vsub.f32 %v3154, %v3653
        %v3756 = vsub.f32 %v3173, %v3656
        %v3757 = vsub.f32 %v3192, %v3659
        %v3758 = vsub.f32 %v3211, %v3662
        %v3759 = vsub.f32 %v3230, %v3665
        %v3760 = vsub.f32 %v3249, %v3668
        %v3761 = vsub.f32 %v3268, %v3671
        %v3762 = vsub.f32 %v3287, %v3674
        %v3763 = vsub.f32 %v3306, %v3677
        %v3764 = vsub.f32 %v3325, %v3680
        %v3765 = vsub.f32 %v3344, %v3683
        %v3766 = vsub.f32 %v3363, %v3686
        %v3767 = vsub.f32 %v3382, %v3689
        %v3768 = vsub.f32 %v3401, %v3692
        %v3769 = vsub.f32 %v3420, %v3695
        %v3770 = vsub.f32 %v3439, %v3698
        %v3771 = vsub.f32 %v3458, %v3701
        %v3772 = vsub.f32 %v3477, %v3704
        %v3773 = vsub.f32 %v3496, %v3707
        %v3774 = vsub.f32 %v3515, %v3710
        %v3775 = vmul.f32 %v3711, 1.442695
        %v3776 = vpow.pop %v3775
        %v3777 = vmul.f32 %v3712, 1.442695
        %v3778 = vpow.pop %v3777
        %v3779 = vmul.f32 %v3713, 1.442695
        %v3780 = vpow.pop %v3779
        %v3781 = vmul.f32 %v3714, 1.442695
        %v3782 = vpow.pop %v3781
        %v3783 = vmul.f32 %v3715, 1.442695
        %v3784 = vpow.pop %v3783
        %v3785 = vmul.f32 %v3716, 1.442695
        %v3786 = vpow.pop %v3785
        %v3787 = vmul.f32 %v3717, 1.442695
        %v3788 = vpow.pop %v3787
        %v3789 = vmul.f32 %v3718, 1.442695
        %v3790 = vpow.pop %v3789
        %v3791 = vmul.f32 %v3719, 1.442695
        %v3792 = vpow.pop %v3791
        %v3793 = vmul.f32 %v3720, 1.442695
        %v3794 = vpow.pop %v3793
        %v3795 = vmul.f32 %v3721, 1.442695
        %v3796 = vpow.pop %v3795
        %v3797 = vmul.f32 %v3722, 1.442695
        %v3798 = vpow.pop %v3797
        %v3799 = vmul.f32 %v3723, 1.442695
        %v3800 = vpow.pop %v3799
        %v3801 = vmul.f32 %v3724, 1.442695
        %v3802 = vpow.pop %v3801
        %v3803 = vmul.f32 %v3725, 1.442695
        %v3804 = vpow.pop %v3803
        %v3805 = vmul.f32 %v3726, 1.442695
        %v3806 = vpow.pop %v3805
        %v3807 = vmul.f32 %v3727, 1.442695
        %v3808 = vpow.pop %v3807
        %v3809 = vmul.f32 %v3728, 1.442695
        %v3810 = vpow.pop %v3809
        %v3811 = vmul.f32 %v3729, 1.442695
        %v3812 = vpow.pop %v3811
        %v3813 = vmul.f32 %v3730, 1.442695
        %v3814 = vpow.pop %v3813
        %v3815 = vmul.f32 %v3731, 1.442695
        %v3816 = vpow.pop %v3815
        %v3817 = vmul.f32 %v3732, 1.442695
        %v3818 = vpow.pop %v3817
        %v3819 = vmul.f32 %v3733, 1.442695
        %v3820 = vpow.pop %v3819
        %v3821 = vmul.f32 %v3734, 1.442695
        %v3822 = vpow.pop %v3821
        %v3823 = vmul.f32 %v3735, 1.442695
        %v3824 = vpow.pop %v3823
        %v3825 = vmul.f32 %v3736, 1.442695
        %v3826 = vpow.pop %v3825
        %v3827 = vmul.f32 %v3737, 1.442695
        %v3828 = vpow.pop %v3827
        %v3829 = vmul.f32 %v3738, 1.442695
        %v3830 = vpow.pop %v3829
        %v3831 = vmul.f32 %v3739, 1.442695
        %v3832 = vpow.pop %v3831
        %v3833 = vmul.f32 %v3740, 1.442695
        %v3834 = vpow.pop %v3833
        %v3835 = vmul.f32 %v3741, 1.442695
        %v3836 = vpow.pop %v3835
        %v3837 = vmul.f32 %v3742, 1.442695
        %v3838 = vpow.pop %v3837
        %v3839 = vmul.f32 %v3743, 1.442695
        %v3840 = vpow.pop %v3839
        %v3841 = vmul.f32 %v3744, 1.442695
        %v3842 = vpow.pop %v3841
        %v3843 = vmul.f32 %v3745, 1.442695
        %v3844 = vpow.pop %v3843
        %v3845 = vmul.f32 %v3746, 1.442695
        %v3846 = vpow.pop %v3845
        %v3847 = vmul.f32 %v3747, 1.442695
        %v3848 = vpow.pop %v3847
        %v3849 = vmul.f32 %v3748, 1.442695
        %v3850 = vpow.pop %v3849
        %v3851 = vmul.f32 %v3749, 1.442695
        %v3852 = vpow.pop %v3851
        %v3853 = vmul.f32 %v3750, 1.442695
        %v3854 = vpow.pop %v3853
        %v3855 = vmul.f32 %v3751, 1.442695
        %v3856 = vpow.pop %v3855
        %v3857 = vmul.f32 %v3752, 1.442695
        %v3858 = vpow.pop %v3857
        %v3859 = vmul.f32 %v3753, 1.442695
        %v3860 = vpow.pop %v3859
        %v3861 = vmul.f32 %v3754, 1.442695
        %v3862 = vpow.pop %v3861
        %v3863 = vmul.f32 %v3755, 1.442695
        %v3864 = vpow.pop %v3863
        %v3865 = vmul.f32 %v3756, 1.442695
        %v3866 = vpow.pop %v3865
        %v3867 = vmul.f32 %v3757, 1.442695
        %v3868 = vpow.pop %v3867
        %v3869 = vmul.f32 %v3758, 1.442695
        %v3870 = vpow.pop %v3869
        %v3871 = vmul.f32 %v3759, 1.442695
        %v3872 = vpow.pop %v3871
        %v3873 = vmul.f32 %v3760, 1.442695
        %v3874 = vpow.pop %v3873
        %v3875 = vmul.f32 %v3761, 1.442695
        %v3876 = vpow.pop %v3875
        %v3877 = vmul.f32 %v3762, 1.442695
        %v3878 = vpow.pop %v3877
        %v3879 = vmul.f32 %v3763, 1.442695
        %v3880 = vpow.pop %v3879
        %v3881 = vmul.f32 %v3764, 1.442695
        %v3882 = vpow.pop %v3881
        %v3883 = vmul.f32 %v3765, 1.442695
        %v3884 = vpow.pop %v3883
        %v3885 = vmul.f32 %v3766, 1.442695
        %v3886 = vpow.pop %v3885
        %v3887 = vmul.f32 %v3767, 1.442695
        %v3888 = vpow.pop %v3887
        %v3889 = vmul.f32 %v3768, 1.442695
        %v3890 = vpow.pop %v3889
        %v3891 = vmul.f32 %v3769, 1.442695
        %v3892 = vpow.pop %v3891
        %v3893 = vmul.f32 %v3770, 1.442695
        %v3894 = vpow.pop %v3893
        %v3895 = vmul.f32 %v3771, 1.442695
        %v3896 = vpow.pop %v3895
        %v3897 = vmul.f32 %v3772, 1.442695
        %v3898 = vpow.pop %v3897
        %v3899 = vmul.f32 %v3773, 1.442695
        %v3900 = vpow.pop %v3899
        %v3901 = vmul.f32 %v3774, 1.442695
        %v3902 = vpow.pop %v3901
        %v3903 = vsel %vm3518, %v3776, 0.0
        %3904 = vadd.xlane.f32.xlu0 %v3903
        %v3905 = vpop.xlane.xlu0 %3904
        %v3906 = vsel %vm3518, %v3778, 0.0
        %3907 = vadd.xlane.f32.xlu0 %v3906
        %v3908 = vpop.xlane.xlu0 %3907
        %v3909 = vsel %vm3518, %v3780, 0.0
        %3910 = vadd.xlane.f32.xlu0 %v3909
        %v3911 = vpop.xlane.xlu0 %3910
        %v3912 = vsel %vm3518, %v3782, 0.0
        %3913 = vadd.xlane.f32.xlu0 %v3912
        %v3914 = vpop.xlane.xlu0 %3913
        %v3915 = vsel %vm3518, %v3784, 0.0
        %3916 = vadd.xlane.f32.xlu0 %v3915
        %v3917 = vpop.xlane.xlu0 %3916
        %v3918 = vsel %vm3518, %v3786, 0.0
        %3919 = vadd.xlane.f32.xlu0 %v3918
        %v3920 = vpop.xlane.xlu0 %3919
        %v3921 = vsel %vm3518, %v3788, 0.0
        %3922 = vadd.xlane.f32.xlu0 %v3921
        %v3923 = vpop.xlane.xlu0 %3922
        %v3924 = vsel %vm3518, %v3790, 0.0
        %3925 = vadd.xlane.f32.xlu0 %v3924
        %v3926 = vpop.xlane.xlu0 %3925
        %v3927 = vsel %vm3518, %v3792, 0.0
        %3928 = vadd.xlane.f32.xlu0 %v3927
        %v3929 = vpop.xlane.xlu0 %3928
        %v3930 = vsel %vm3518, %v3794, 0.0
        %3931 = vadd.xlane.f32.xlu0 %v3930
        %v3932 = vpop.xlane.xlu0 %3931
        %v3933 = vsel %vm3518, %v3796, 0.0
        %3934 = vadd.xlane.f32.xlu0 %v3933
        %v3935 = vpop.xlane.xlu0 %3934
        %v3936 = vsel %vm3518, %v3798, 0.0
        %3937 = vadd.xlane.f32.xlu0 %v3936
        %v3938 = vpop.xlane.xlu0 %3937
        %v3939 = vsel %vm3518, %v3800, 0.0
        %3940 = vadd.xlane.f32.xlu0 %v3939
        %v3941 = vpop.xlane.xlu0 %3940
        %v3942 = vsel %vm3518, %v3802, 0.0
        %3943 = vadd.xlane.f32.xlu0 %v3942
        %v3944 = vpop.xlane.xlu0 %3943
        %v3945 = vsel %vm3518, %v3804, 0.0
        %3946 = vadd.xlane.f32.xlu0 %v3945
        %v3947 = vpop.xlane.xlu0 %3946
        %v3948 = vsel %vm3518, %v3806, 0.0
        %3949 = vadd.xlane.f32.xlu0 %v3948
        %v3950 = vpop.xlane.xlu0 %3949
        %v3951 = vsel %vm3518, %v3808, 0.0
        %3952 = vadd.xlane.f32.xlu0 %v3951
        %v3953 = vpop.xlane.xlu0 %3952
        %v3954 = vsel %vm3518, %v3810, 0.0
        %3955 = vadd.xlane.f32.xlu0 %v3954
        %v3956 = vpop.xlane.xlu0 %3955
        %v3957 = vsel %vm3518, %v3812, 0.0
        %3958 = vadd.xlane.f32.xlu0 %v3957
        %v3959 = vpop.xlane.xlu0 %3958
        %v3960 = vsel %vm3518, %v3814, 0.0
        %3961 = vadd.xlane.f32.xlu0 %v3960
        %v3962 = vpop.xlane.xlu0 %3961
        %v3963 = vsel %vm3518, %v3816, 0.0
        %3964 = vadd.xlane.f32.xlu0 %v3963
        %v3965 = vpop.xlane.xlu0 %3964
        %v3966 = vsel %vm3518, %v3818, 0.0
        %3967 = vadd.xlane.f32.xlu0 %v3966
        %v3968 = vpop.xlane.xlu0 %3967
        %v3969 = vsel %vm3518, %v3820, 0.0
        %3970 = vadd.xlane.f32.xlu0 %v3969
        %v3971 = vpop.xlane.xlu0 %3970
        %v3972 = vsel %vm3518, %v3822, 0.0
        %3973 = vadd.xlane.f32.xlu0 %v3972
        %v3974 = vpop.xlane.xlu0 %3973
        %v3975 = vsel %vm3518, %v3824, 0.0
        %3976 = vadd.xlane.f32.xlu0 %v3975
        %v3977 = vpop.xlane.xlu0 %3976
        %v3978 = vsel %vm3518, %v3826, 0.0
        %3979 = vadd.xlane.f32.xlu0 %v3978
        %v3980 = vpop.xlane.xlu0 %3979
        %v3981 = vsel %vm3518, %v3828, 0.0
        %3982 = vadd.xlane.f32.xlu0 %v3981
        %v3983 = vpop.xlane.xlu0 %3982
        %v3984 = vsel %vm3518, %v3830, 0.0
        %3985 = vadd.xlane.f32.xlu0 %v3984
        %v3986 = vpop.xlane.xlu0 %3985
        %v3987 = vsel %vm3518, %v3832, 0.0
        %3988 = vadd.xlane.f32.xlu0 %v3987
        %v3989 = vpop.xlane.xlu0 %3988
        %v3990 = vsel %vm3518, %v3834, 0.0
        %3991 = vadd.xlane.f32.xlu0 %v3990
        %v3992 = vpop.xlane.xlu0 %3991
        %v3993 = vsel %vm3518, %v3836, 0.0
        %3994 = vadd.xlane.f32.xlu0 %v3993
        %v3995 = vpop.xlane.xlu0 %3994
        %v3996 = vsel %vm3518, %v3838, 0.0
        %3997 = vadd.xlane.f32.xlu0 %v3996
        %v3998 = vpop.xlane.xlu0 %3997
        %v3999 = vsel %vm3518, %v3840, 0.0
        %4000 = vadd.xlane.f32.xlu0 %v3999
        %v4001 = vpop.xlane.xlu0 %4000
        %v4002 = vsel %vm3518, %v3842, 0.0
        %4003 = vadd.xlane.f32.xlu0 %v4002
        %v4004 = vpop.xlane.xlu0 %4003
        %v4005 = vsel %vm3518, %v3844, 0.0
        %4006 = vadd.xlane.f32.xlu0 %v4005
        %v4007 = vpop.xlane.xlu0 %4006
        %v4008 = vsel %vm3518, %v3846, 0.0
        %4009 = vadd.xlane.f32.xlu0 %v4008
        %v4010 = vpop.xlane.xlu0 %4009
        %v4011 = vsel %vm3518, %v3848, 0.0
        %4012 = vadd.xlane.f32.xlu0 %v4011
        %v4013 = vpop.xlane.xlu0 %4012
        %v4014 = vsel %vm3518, %v3850, 0.0
        %4015 = vadd.xlane.f32.xlu0 %v4014
        %v4016 = vpop.xlane.xlu0 %4015
        %v4017 = vsel %vm3518, %v3852, 0.0
        %4018 = vadd.xlane.f32.xlu0 %v4017
        %v4019 = vpop.xlane.xlu0 %4018
        %v4020 = vsel %vm3518, %v3854, 0.0
        %4021 = vadd.xlane.f32.xlu0 %v4020
        %v4022 = vpop.xlane.xlu0 %4021
        %v4023 = vsel %vm3518, %v3856, 0.0
        %4024 = vadd.xlane.f32.xlu0 %v4023
        %v4025 = vpop.xlane.xlu0 %4024
        %v4026 = vsel %vm3518, %v3858, 0.0
        %4027 = vadd.xlane.f32.xlu0 %v4026
        %v4028 = vpop.xlane.xlu0 %4027
        %v4029 = vsel %vm3518, %v3860, 0.0
        %4030 = vadd.xlane.f32.xlu0 %v4029
        %v4031 = vpop.xlane.xlu0 %4030
        %v4032 = vsel %vm3518, %v3862, 0.0
        %4033 = vadd.xlane.f32.xlu0 %v4032
        %v4034 = vpop.xlane.xlu0 %4033
        %v4035 = vsel %vm3518, %v3864, 0.0
        %4036 = vadd.xlane.f32.xlu0 %v4035
        %v4037 = vpop.xlane.xlu0 %4036
        %v4038 = vsel %vm3518, %v3866, 0.0
        %4039 = vadd.xlane.f32.xlu0 %v4038
        %v4040 = vpop.xlane.xlu0 %4039
        %v4041 = vsel %vm3518, %v3868, 0.0
        %4042 = vadd.xlane.f32.xlu0 %v4041
        %v4043 = vpop.xlane.xlu0 %4042
        %v4044 = vsel %vm3518, %v3870, 0.0
        %4045 = vadd.xlane.f32.xlu0 %v4044
        %v4046 = vpop.xlane.xlu0 %4045
        %v4047 = vsel %vm3518, %v3872, 0.0
        %4048 = vadd.xlane.f32.xlu0 %v4047
        %v4049 = vpop.xlane.xlu0 %4048
        %v4050 = vsel %vm3518, %v3874, 0.0
        %4051 = vadd.xlane.f32.xlu0 %v4050
        %v4052 = vpop.xlane.xlu0 %4051
        %v4053 = vsel %vm3518, %v3876, 0.0
        %4054 = vadd.xlane.f32.xlu0 %v4053
        %v4055 = vpop.xlane.xlu0 %4054
        %v4056 = vsel %vm3518, %v3878, 0.0
        %4057 = vadd.xlane.f32.xlu0 %v4056
        %v4058 = vpop.xlane.xlu0 %4057
        %v4059 = vsel %vm3518, %v3880, 0.0
        %4060 = vadd.xlane.f32.xlu0 %v4059
        %v4061 = vpop.xlane.xlu0 %4060
        %v4062 = vsel %vm3518, %v3882, 0.0
        %4063 = vadd.xlane.f32.xlu0 %v4062
        %v4064 = vpop.xlane.xlu0 %4063
        %v4065 = vsel %vm3518, %v3884, 0.0
        %4066 = vadd.xlane.f32.xlu0 %v4065
        %v4067 = vpop.xlane.xlu0 %4066
        %v4068 = vsel %vm3518, %v3886, 0.0
        %4069 = vadd.xlane.f32.xlu0 %v4068
        %v4070 = vpop.xlane.xlu0 %4069
        %v4071 = vsel %vm3518, %v3888, 0.0
        %4072 = vadd.xlane.f32.xlu0 %v4071
        %v4073 = vpop.xlane.xlu0 %4072
        %v4074 = vsel %vm3518, %v3890, 0.0
        %4075 = vadd.xlane.f32.xlu0 %v4074
        %v4076 = vpop.xlane.xlu0 %4075
        %v4077 = vsel %vm3518, %v3892, 0.0
        %4078 = vadd.xlane.f32.xlu0 %v4077
        %v4079 = vpop.xlane.xlu0 %4078
        %v4080 = vsel %vm3518, %v3894, 0.0
        %4081 = vadd.xlane.f32.xlu0 %v4080
        %v4082 = vpop.xlane.xlu0 %4081
        %v4083 = vsel %vm3518, %v3896, 0.0
        %4084 = vadd.xlane.f32.xlu0 %v4083
        %v4085 = vpop.xlane.xlu0 %4084
        %v4086 = vsel %vm3518, %v3898, 0.0
        %4087 = vadd.xlane.f32.xlu0 %v4086
        %v4088 = vpop.xlane.xlu0 %4087
        %v4089 = vsel %vm3518, %v3900, 0.0
        %4090 = vadd.xlane.f32.xlu0 %v4089
        %v4091 = vpop.xlane.xlu0 %4090
        %v4092 = vsel %vm3518, %v3902, 0.0
        %4093 = vadd.xlane.f32.xlu0 %v4092
        %v4094 = vpop.xlane.xlu0 %4093
        %v4095 = vrcp.pop %v3905
        %v4096 = vrcp.pop %v3908
        %v4097 = vrcp.pop %v3911
        %v4098 = vrcp.pop %v3914
        %v4099 = vrcp.pop %v3917
        %v4100 = vrcp.pop %v3920
        %v4101 = vrcp.pop %v3923
        %v4102 = vrcp.pop %v3926
        %v4103 = vrcp.pop %v3929
        %v4104 = vrcp.pop %v3932
        %v4105 = vrcp.pop %v3935
        %v4106 = vrcp.pop %v3938
        %v4107 = vrcp.pop %v3941
        %v4108 = vrcp.pop %v3944
        %v4109 = vrcp.pop %v3947
        %v4110 = vrcp.pop %v3950
        %v4111 = vrcp.pop %v3953
        %v4112 = vrcp.pop %v3956
        %v4113 = vrcp.pop %v3959
        %v4114 = vrcp.pop %v3962
        %v4115 = vrcp.pop %v3965
        %v4116 = vrcp.pop %v3968
        %v4117 = vrcp.pop %v3971
        %v4118 = vrcp.pop %v3974
        %v4119 = vrcp.pop %v3977
        %v4120 = vrcp.pop %v3980
        %v4121 = vrcp.pop %v3983
        %v4122 = vrcp.pop %v3986
        %v4123 = vrcp.pop %v3989
        %v4124 = vrcp.pop %v3992
        %v4125 = vrcp.pop %v3995
        %v4126 = vrcp.pop %v3998
        %v4127 = vrcp.pop %v4001
        %v4128 = vrcp.pop %v4004
        %v4129 = vrcp.pop %v4007
        %v4130 = vrcp.pop %v4010
        %v4131 = vrcp.pop %v4013
        %v4132 = vrcp.pop %v4016
        %v4133 = vrcp.pop %v4019
        %v4134 = vrcp.pop %v4022
        %v4135 = vrcp.pop %v4025
        %v4136 = vrcp.pop %v4028
        %v4137 = vrcp.pop %v4031
        %v4138 = vrcp.pop %v4034
        %v4139 = vrcp.pop %v4037
        %v4140 = vrcp.pop %v4040
        %v4141 = vrcp.pop %v4043
        %v4142 = vrcp.pop %v4046
        %v4143 = vrcp.pop %v4049
        %v4144 = vrcp.pop %v4052
        %v4145 = vrcp.pop %v4055
        %v4146 = vrcp.pop %v4058
        %v4147 = vrcp.pop %v4061
        %v4148 = vrcp.pop %v4064
        %v4149 = vrcp.pop %v4067
        %v4150 = vrcp.pop %v4070
        %v4151 = vrcp.pop %v4073
        %v4152 = vrcp.pop %v4076
        %v4153 = vrcp.pop %v4079
        %v4154 = vrcp.pop %v4082
        %v4155 = vrcp.pop %v4085
        %v4156 = vrcp.pop %v4088
        %v4157 = vrcp.pop %v4091
        %v4158 = vrcp.pop %v4094
        %v4159 = vmul.f32 %v3776, %v4095
        %v4160 = vmul.f32 %v3778, %v4096
        %v4161 = vmul.f32 %v3780, %v4097
        %v4162 = vmul.f32 %v3782, %v4098
        %v4163 = vmul.f32 %v3784, %v4099
        %v4164 = vmul.f32 %v3786, %v4100
        %v4165 = vmul.f32 %v3788, %v4101
        %v4166 = vmul.f32 %v3790, %v4102
        %v4167 = vmul.f32 %v3792, %v4103
        %v4168 = vmul.f32 %v3794, %v4104
        %v4169 = vmul.f32 %v3796, %v4105
        %v4170 = vmul.f32 %v3798, %v4106
        %v4171 = vmul.f32 %v3800, %v4107
        %v4172 = vmul.f32 %v3802, %v4108
        %v4173 = vmul.f32 %v3804, %v4109
        %v4174 = vmul.f32 %v3806, %v4110
        %v4175 = vmul.f32 %v3808, %v4111
        %v4176 = vmul.f32 %v3810, %v4112
        %v4177 = vmul.f32 %v3812, %v4113
        %v4178 = vmul.f32 %v3814, %v4114
        %v4179 = vmul.f32 %v3816, %v4115
        %v4180 = vmul.f32 %v3818, %v4116
        %v4181 = vmul.f32 %v3820, %v4117
        %v4182 = vmul.f32 %v3822, %v4118
        %v4183 = vmul.f32 %v3824, %v4119
        %v4184 = vmul.f32 %v3826, %v4120
        %v4185 = vmul.f32 %v3828, %v4121
        %v4186 = vmul.f32 %v3830, %v4122
        %v4187 = vmul.f32 %v3832, %v4123
        %v4188 = vmul.f32 %v3834, %v4124
        %v4189 = vmul.f32 %v3836, %v4125
        %v4190 = vmul.f32 %v3838, %v4126
        %v4191 = vmul.f32 %v3840, %v4127
        %v4192 = vmul.f32 %v3842, %v4128
        %v4193 = vmul.f32 %v3844, %v4129
        %v4194 = vmul.f32 %v3846, %v4130
        %v4195 = vmul.f32 %v3848, %v4131
        %v4196 = vmul.f32 %v3850, %v4132
        %v4197 = vmul.f32 %v3852, %v4133
        %v4198 = vmul.f32 %v3854, %v4134
        %v4199 = vmul.f32 %v3856, %v4135
        %v4200 = vmul.f32 %v3858, %v4136
        %v4201 = vmul.f32 %v3860, %v4137
        %v4202 = vmul.f32 %v3862, %v4138
        %v4203 = vmul.f32 %v3864, %v4139
        %v4204 = vmul.f32 %v3866, %v4140
        %v4205 = vmul.f32 %v3868, %v4141
        %v4206 = vmul.f32 %v3870, %v4142
        %v4207 = vmul.f32 %v3872, %v4143
        %v4208 = vmul.f32 %v3874, %v4144
        %v4209 = vmul.f32 %v3876, %v4145
        %v4210 = vmul.f32 %v3878, %v4146
        %v4211 = vmul.f32 %v3880, %v4147
        %v4212 = vmul.f32 %v3882, %v4148
        %v4213 = vmul.f32 %v3884, %v4149
        %v4214 = vmul.f32 %v3886, %v4150
        %v4215 = vmul.f32 %v3888, %v4151
        %v4216 = vmul.f32 %v3890, %v4152
        %v4217 = vmul.f32 %v3892, %v4153
        %v4218 = vmul.f32 %v3894, %v4154
        %v4219 = vmul.f32 %v3896, %v4155
        %v4220 = vmul.f32 %v3898, %v4156
        %v4221 = vmul.f32 %v3900, %v4157
        %v4222 = vmul.f32 %v3902, %v4158
        %v4223 = vpack.c.bf16 %v4159, %v4159
        %v4224 = vpack.c.bf16 %v4160, %v4160
        %v4225 = vpack.c.bf16 %v4161, %v4161
        %v4226 = vpack.c.bf16 %v4162, %v4162
        %v4227 = vpack.c.bf16 %v4163, %v4163
        %v4228 = vpack.c.bf16 %v4164, %v4164
        %v4229 = vpack.c.bf16 %v4165, %v4165
        %v4230 = vpack.c.bf16 %v4166, %v4166
        %v4231 = vpack.c.bf16 %v4167, %v4167
        %v4232 = vpack.c.bf16 %v4168, %v4168
        %v4233 = vpack.c.bf16 %v4169, %v4169
        %v4234 = vpack.c.bf16 %v4170, %v4170
        %v4235 = vpack.c.bf16 %v4171, %v4171
        %v4236 = vpack.c.bf16 %v4172, %v4172
        %v4237 = vpack.c.bf16 %v4173, %v4173
        %v4238 = vpack.c.bf16 %v4174, %v4174
        %v4239 = vpack.c.bf16 %v4175, %v4175
        %v4240 = vpack.c.bf16 %v4176, %v4176
        %v4241 = vpack.c.bf16 %v4177, %v4177
        %v4242 = vpack.c.bf16 %v4178, %v4178
        %v4243 = vpack.c.bf16 %v4179, %v4179
        %v4244 = vpack.c.bf16 %v4180, %v4180
        %v4245 = vpack.c.bf16 %v4181, %v4181
        %v4246 = vpack.c.bf16 %v4182, %v4182
        %v4247 = vpack.c.bf16 %v4183, %v4183
        %v4248 = vpack.c.bf16 %v4184, %v4184
        %v4249 = vpack.c.bf16 %v4185, %v4185
        %v4250 = vpack.c.bf16 %v4186, %v4186
        %v4251 = vpack.c.bf16 %v4187, %v4187
        %v4252 = vpack.c.bf16 %v4188, %v4188
        %v4253 = vpack.c.bf16 %v4189, %v4189
        %v4254 = vpack.c.bf16 %v4190, %v4190
        %v4255 = vpack.c.bf16 %v4191, %v4191
        %v4256 = vpack.c.bf16 %v4192, %v4192
        %v4257 = vpack.c.bf16 %v4193, %v4193
        %v4258 = vpack.c.bf16 %v4194, %v4194
        %v4259 = vpack.c.bf16 %v4195, %v4195
        %v4260 = vpack.c.bf16 %v4196, %v4196
        %v4261 = vpack.c.bf16 %v4197, %v4197
        %v4262 = vpack.c.bf16 %v4198, %v4198
        %v4263 = vpack.c.bf16 %v4199, %v4199
        %v4264 = vpack.c.bf16 %v4200, %v4200
        %v4265 = vpack.c.bf16 %v4201, %v4201
        %v4266 = vpack.c.bf16 %v4202, %v4202
        %v4267 = vpack.c.bf16 %v4203, %v4203
        %v4268 = vpack.c.bf16 %v4204, %v4204
        %v4269 = vpack.c.bf16 %v4205, %v4205
        %v4270 = vpack.c.bf16 %v4206, %v4206
        %v4271 = vpack.c.bf16 %v4207, %v4207
        %v4272 = vpack.c.bf16 %v4208, %v4208
        %v4273 = vpack.c.bf16 %v4209, %v4209
        %v4274 = vpack.c.bf16 %v4210, %v4210
        %v4275 = vpack.c.bf16 %v4211, %v4211
        %v4276 = vpack.c.bf16 %v4212, %v4212
        %v4277 = vpack.c.bf16 %v4213, %v4213
        %v4278 = vpack.c.bf16 %v4214, %v4214
        %v4279 = vpack.c.bf16 %v4215, %v4215
        %v4280 = vpack.c.bf16 %v4216, %v4216
        %v4281 = vpack.c.bf16 %v4217, %v4217
        %v4282 = vpack.c.bf16 %v4218, %v4218
        %v4283 = vpack.c.bf16 %v4219, %v4219
        %v4284 = vpack.c.bf16 %v4220, %v4220
        %v4285 = vpack.c.bf16 %v4221, %v4221
        %v4286 = vpack.c.bf16 %v4222, %v4222
        %v4288 = vsel %vm3518, %v4223, 0
        %vm4290 = vcmask 1043456
        %v4292 = vsel %vm4290, %v2173, 0
        %4294 = vmatpush.bf16.msra.mxu0 0
        %4295 = vmatpush.bf16.msra.mxu0 0
        %4296 = vmatpush.bf16.msra.mxu0 0
        %4297 = vmatpush.bf16.msra.mxu0 0
        %4298 = vmatpush.bf16.msra.mxu0 0
        %4299 = vmatpush.bf16.msra.mxu0 0
        %4300 = vmatpush.bf16.msra.mxu0 0
        %4301 = vmatpush.bf16.msra.mxu0 %v4292
        %4302 = vmatmul.bf16.gmra.mxu0 %v4288
        %v4303 = vpop.f32.mrf.mxu0
        %v4304 = vadd.f32 0.0, %v4303
        %v4305 = vpop.f32.mrf.mxu0
        %4306 = vdwg.mxu0
        %v4308 = vsel %vm3518, %v4224, 0
        %v4311 = vsel %vm4290, %v2174, 0
        %4313 = vmatpush.bf16.msra.mxu0 0
        %4314 = vmatpush.bf16.msra.mxu0 0
        %4315 = vmatpush.bf16.msra.mxu0 0
        %4316 = vmatpush.bf16.msra.mxu0 0
        %4317 = vmatpush.bf16.msra.mxu0 0
        %4318 = vmatpush.bf16.msra.mxu0 0
        %4319 = vmatpush.bf16.msra.mxu0 0
        %4320 = vmatpush.bf16.msra.mxu0 %v4311
        %4321 = vmatmul.bf16.gmra.mxu0 %v4308
        %v4322 = vpop.f32.mrf.mxu0
        %v4323 = vadd.f32 0.0, %v4322
        %v4324 = vpop.f32.mrf.mxu0
        %4325 = vdwg.mxu0
        %v4327 = vsel %vm3518, %v4225, 0
        %v4330 = vsel %vm4290, %v2175, 0
        %4332 = vmatpush.bf16.msra.mxu0 0
        %4333 = vmatpush.bf16.msra.mxu0 0
        %4334 = vmatpush.bf16.msra.mxu0 0
        %4335 = vmatpush.bf16.msra.mxu0 0
        %4336 = vmatpush.bf16.msra.mxu0 0
        %4337 = vmatpush.bf16.msra.mxu0 0
        %4338 = vmatpush.bf16.msra.mxu0 0
        %4339 = vmatpush.bf16.msra.mxu0 %v4330
        %4340 = vmatmul.bf16.gmra.mxu0 %v4327
        %v4341 = vpop.f32.mrf.mxu0
        %v4342 = vadd.f32 0.0, %v4341
        %v4343 = vpop.f32.mrf.mxu0
        %4344 = vdwg.mxu0
        %v4346 = vsel %vm3518, %v4226, 0
        %v4349 = vsel %vm4290, %v2176, 0
        %4351 = vmatpush.bf16.msra.mxu0 0
        %4352 = vmatpush.bf16.msra.mxu0 0
        %4353 = vmatpush.bf16.msra.mxu0 0
        %4354 = vmatpush.bf16.msra.mxu0 0
        %4355 = vmatpush.bf16.msra.mxu0 0
        %4356 = vmatpush.bf16.msra.mxu0 0
        %4357 = vmatpush.bf16.msra.mxu0 0
        %4358 = vmatpush.bf16.msra.mxu0 %v4349
        %4359 = vmatmul.bf16.gmra.mxu0 %v4346
        %v4360 = vpop.f32.mrf.mxu0
        %v4361 = vadd.f32 0.0, %v4360
        %v4362 = vpop.f32.mrf.mxu0
        %4363 = vdwg.mxu0
        %v4365 = vsel %vm3518, %v4227, 0
        %v4368 = vsel %vm4290, %v2177, 0
        %4370 = vmatpush.bf16.msra.mxu0 0
        %4371 = vmatpush.bf16.msra.mxu0 0
        %4372 = vmatpush.bf16.msra.mxu0 0
        %4373 = vmatpush.bf16.msra.mxu0 0
        %4374 = vmatpush.bf16.msra.mxu0 0
        %4375 = vmatpush.bf16.msra.mxu0 0
        %4376 = vmatpush.bf16.msra.mxu0 0
        %4377 = vmatpush.bf16.msra.mxu0 %v4368
        %4378 = vmatmul.bf16.gmra.mxu0 %v4365
        %v4379 = vpop.f32.mrf.mxu0
        %v4380 = vadd.f32 0.0, %v4379
        %v4381 = vpop.f32.mrf.mxu0
        %4382 = vdwg.mxu0
        %v4384 = vsel %vm3518, %v4228, 0
        %v4387 = vsel %vm4290, %v2178, 0
        %4389 = vmatpush.bf16.msra.mxu0 0
        %4390 = vmatpush.bf16.msra.mxu0 0
        %4391 = vmatpush.bf16.msra.mxu0 0
        %4392 = vmatpush.bf16.msra.mxu0 0
        %4393 = vmatpush.bf16.msra.mxu0 0
        %4394 = vmatpush.bf16.msra.mxu0 0
        %4395 = vmatpush.bf16.msra.mxu0 0
        %4396 = vmatpush.bf16.msra.mxu0 %v4387
        %4397 = vmatmul.bf16.gmra.mxu0 %v4384
        %v4398 = vpop.f32.mrf.mxu0
        %v4399 = vadd.f32 0.0, %v4398
        %v4400 = vpop.f32.mrf.mxu0
        %4401 = vdwg.mxu0
        %v4403 = vsel %vm3518, %v4229, 0
        %v4406 = vsel %vm4290, %v2179, 0
        %4408 = vmatpush.bf16.msra.mxu0 0
        %4409 = vmatpush.bf16.msra.mxu0 0
        %4410 = vmatpush.bf16.msra.mxu0 0
        %4411 = vmatpush.bf16.msra.mxu0 0
        %4412 = vmatpush.bf16.msra.mxu0 0
        %4413 = vmatpush.bf16.msra.mxu0 0
        %4414 = vmatpush.bf16.msra.mxu0 0
        %4415 = vmatpush.bf16.msra.mxu0 %v4406
        %4416 = vmatmul.bf16.gmra.mxu0 %v4403
        %v4417 = vpop.f32.mrf.mxu0
        %v4418 = vadd.f32 0.0, %v4417
        %v4419 = vpop.f32.mrf.mxu0
        %4420 = vdwg.mxu0
        %v4422 = vsel %vm3518, %v4230, 0
        %v4425 = vsel %vm4290, %v2180, 0
        %4427 = vmatpush.bf16.msra.mxu0 0
        %4428 = vmatpush.bf16.msra.mxu0 0
        %4429 = vmatpush.bf16.msra.mxu0 0
        %4430 = vmatpush.bf16.msra.mxu0 0
        %4431 = vmatpush.bf16.msra.mxu0 0
        %4432 = vmatpush.bf16.msra.mxu0 0
        %4433 = vmatpush.bf16.msra.mxu0 0
        %4434 = vmatpush.bf16.msra.mxu0 %v4425
        %4435 = vmatmul.bf16.gmra.mxu0 %v4422
        %v4436 = vpop.f32.mrf.mxu0
        %v4437 = vadd.f32 0.0, %v4436
        %v4438 = vpop.f32.mrf.mxu0
        %4439 = vdwg.mxu0
        %v4441 = vsel %vm3518, %v4231, 0
        %v4444 = vsel %vm4290, %v2181, 0
        %4446 = vmatpush.bf16.msra.mxu0 0
        %4447 = vmatpush.bf16.msra.mxu0 0
        %4448 = vmatpush.bf16.msra.mxu0 0
        %4449 = vmatpush.bf16.msra.mxu0 0
        %4450 = vmatpush.bf16.msra.mxu0 0
        %4451 = vmatpush.bf16.msra.mxu0 0
        %4452 = vmatpush.bf16.msra.mxu0 0
        %4453 = vmatpush.bf16.msra.mxu0 %v4444
        %4454 = vmatmul.bf16.gmra.mxu0 %v4441
        %v4455 = vpop.f32.mrf.mxu0
        %v4456 = vadd.f32 0.0, %v4455
        %v4457 = vpop.f32.mrf.mxu0
        %4458 = vdwg.mxu0
        %v4460 = vsel %vm3518, %v4232, 0
        %v4463 = vsel %vm4290, %v2182, 0
        %4465 = vmatpush.bf16.msra.mxu0 0
        %4466 = vmatpush.bf16.msra.mxu0 0
        %4467 = vmatpush.bf16.msra.mxu0 0
        %4468 = vmatpush.bf16.msra.mxu0 0
        %4469 = vmatpush.bf16.msra.mxu0 0
        %4470 = vmatpush.bf16.msra.mxu0 0
        %4471 = vmatpush.bf16.msra.mxu0 0
        %4472 = vmatpush.bf16.msra.mxu0 %v4463
        %4473 = vmatmul.bf16.gmra.mxu0 %v4460
        %v4474 = vpop.f32.mrf.mxu0
        %v4475 = vadd.f32 0.0, %v4474
        %v4476 = vpop.f32.mrf.mxu0
        %4477 = vdwg.mxu0
        %v4479 = vsel %vm3518, %v4233, 0
        %v4482 = vsel %vm4290, %v2183, 0
        %4484 = vmatpush.bf16.msra.mxu0 0
        %4485 = vmatpush.bf16.msra.mxu0 0
        %4486 = vmatpush.bf16.msra.mxu0 0
        %4487 = vmatpush.bf16.msra.mxu0 0
        %4488 = vmatpush.bf16.msra.mxu0 0
        %4489 = vmatpush.bf16.msra.mxu0 0
        %4490 = vmatpush.bf16.msra.mxu0 0
        %4491 = vmatpush.bf16.msra.mxu0 %v4482
        %4492 = vmatmul.bf16.gmra.mxu0 %v4479
        %v4493 = vpop.f32.mrf.mxu0
        %v4494 = vadd.f32 0.0, %v4493
        %v4495 = vpop.f32.mrf.mxu0
        %4496 = vdwg.mxu0
        %v4498 = vsel %vm3518, %v4234, 0
        %v4501 = vsel %vm4290, %v2184, 0
        %4503 = vmatpush.bf16.msra.mxu0 0
        %4504 = vmatpush.bf16.msra.mxu0 0
        %4505 = vmatpush.bf16.msra.mxu0 0
        %4506 = vmatpush.bf16.msra.mxu0 0
        %4507 = vmatpush.bf16.msra.mxu0 0
        %4508 = vmatpush.bf16.msra.mxu0 0
        %4509 = vmatpush.bf16.msra.mxu0 0
        %4510 = vmatpush.bf16.msra.mxu0 %v4501
        %4511 = vmatmul.bf16.gmra.mxu0 %v4498
        %v4512 = vpop.f32.mrf.mxu0
        %v4513 = vadd.f32 0.0, %v4512
        %v4514 = vpop.f32.mrf.mxu0
        %4515 = vdwg.mxu0
        %v4517 = vsel %vm3518, %v4235, 0
        %v4520 = vsel %vm4290, %v2185, 0
        %4522 = vmatpush.bf16.msra.mxu0 0
        %4523 = vmatpush.bf16.msra.mxu0 0
        %4524 = vmatpush.bf16.msra.mxu0 0
        %4525 = vmatpush.bf16.msra.mxu0 0
        %4526 = vmatpush.bf16.msra.mxu0 0
        %4527 = vmatpush.bf16.msra.mxu0 0
        %4528 = vmatpush.bf16.msra.mxu0 0
        %4529 = vmatpush.bf16.msra.mxu0 %v4520
        %4530 = vmatmul.bf16.gmra.mxu0 %v4517
        %v4531 = vpop.f32.mrf.mxu0
        %v4532 = vadd.f32 0.0, %v4531
        %v4533 = vpop.f32.mrf.mxu0
        %4534 = vdwg.mxu0
        %v4536 = vsel %vm3518, %v4236, 0
        %v4539 = vsel %vm4290, %v2186, 0
        %4541 = vmatpush.bf16.msra.mxu0 0
        %4542 = vmatpush.bf16.msra.mxu0 0
        %4543 = vmatpush.bf16.msra.mxu0 0
        %4544 = vmatpush.bf16.msra.mxu0 0
        %4545 = vmatpush.bf16.msra.mxu0 0
        %4546 = vmatpush.bf16.msra.mxu0 0
        %4547 = vmatpush.bf16.msra.mxu0 0
        %4548 = vmatpush.bf16.msra.mxu0 %v4539
        %4549 = vmatmul.bf16.gmra.mxu0 %v4536
        %v4550 = vpop.f32.mrf.mxu0
        %v4551 = vadd.f32 0.0, %v4550
        %v4552 = vpop.f32.mrf.mxu0
        %4553 = vdwg.mxu0
        %v4555 = vsel %vm3518, %v4237, 0
        %v4558 = vsel %vm4290, %v2187, 0
        %4560 = vmatpush.bf16.msra.mxu0 0
        %4561 = vmatpush.bf16.msra.mxu0 0
        %4562 = vmatpush.bf16.msra.mxu0 0
        %4563 = vmatpush.bf16.msra.mxu0 0
        %4564 = vmatpush.bf16.msra.mxu0 0
        %4565 = vmatpush.bf16.msra.mxu0 0
        %4566 = vmatpush.bf16.msra.mxu0 0
        %4567 = vmatpush.bf16.msra.mxu0 %v4558
        %4568 = vmatmul.bf16.gmra.mxu0 %v4555
        %v4569 = vpop.f32.mrf.mxu0
        %v4570 = vadd.f32 0.0, %v4569
        %v4571 = vpop.f32.mrf.mxu0
        %4572 = vdwg.mxu0
        %v4574 = vsel %vm3518, %v4238, 0
        %v4577 = vsel %vm4290, %v2188, 0
        %4579 = vmatpush.bf16.msra.mxu0 0
        %4580 = vmatpush.bf16.msra.mxu0 0
        %4581 = vmatpush.bf16.msra.mxu0 0
        %4582 = vmatpush.bf16.msra.mxu0 0
        %4583 = vmatpush.bf16.msra.mxu0 0
        %4584 = vmatpush.bf16.msra.mxu0 0
        %4585 = vmatpush.bf16.msra.mxu0 0
        %4586 = vmatpush.bf16.msra.mxu0 %v4577
        %4587 = vmatmul.bf16.gmra.mxu0 %v4574
        %v4588 = vpop.f32.mrf.mxu0
        %v4589 = vadd.f32 0.0, %v4588
        %v4590 = vpop.f32.mrf.mxu0
        %4591 = vdwg.mxu0
        %v4593 = vsel %vm3518, %v4239, 0
        %v4596 = vsel %vm4290, %v2189, 0
        %4598 = vmatpush.bf16.msra.mxu0 0
        %4599 = vmatpush.bf16.msra.mxu0 0
        %4600 = vmatpush.bf16.msra.mxu0 0
        %4601 = vmatpush.bf16.msra.mxu0 0
        %4602 = vmatpush.bf16.msra.mxu0 0
        %4603 = vmatpush.bf16.msra.mxu0 0
        %4604 = vmatpush.bf16.msra.mxu0 0
        %4605 = vmatpush.bf16.msra.mxu0 %v4596
        %4606 = vmatmul.bf16.gmra.mxu0 %v4593
        %v4607 = vpop.f32.mrf.mxu0
        %v4608 = vadd.f32 0.0, %v4607
        %v4609 = vpop.f32.mrf.mxu0
        %4610 = vdwg.mxu0
        %v4612 = vsel %vm3518, %v4240, 0
        %v4615 = vsel %vm4290, %v2190, 0
        %4617 = vmatpush.bf16.msra.mxu0 0
        %4618 = vmatpush.bf16.msra.mxu0 0
        %4619 = vmatpush.bf16.msra.mxu0 0
        %4620 = vmatpush.bf16.msra.mxu0 0
        %4621 = vmatpush.bf16.msra.mxu0 0
        %4622 = vmatpush.bf16.msra.mxu0 0
        %4623 = vmatpush.bf16.msra.mxu0 0
        %4624 = vmatpush.bf16.msra.mxu0 %v4615
        %4625 = vmatmul.bf16.gmra.mxu0 %v4612
        %v4626 = vpop.f32.mrf.mxu0
        %v4627 = vadd.f32 0.0, %v4626
        %v4628 = vpop.f32.mrf.mxu0
        %4629 = vdwg.mxu0
        %v4631 = vsel %vm3518, %v4241, 0
        %v4634 = vsel %vm4290, %v2191, 0
        %4636 = vmatpush.bf16.msra.mxu0 0
        %4637 = vmatpush.bf16.msra.mxu0 0
        %4638 = vmatpush.bf16.msra.mxu0 0
        %4639 = vmatpush.bf16.msra.mxu0 0
        %4640 = vmatpush.bf16.msra.mxu0 0
        %4641 = vmatpush.bf16.msra.mxu0 0
        %4642 = vmatpush.bf16.msra.mxu0 0
        %4643 = vmatpush.bf16.msra.mxu0 %v4634
        %4644 = vmatmul.bf16.gmra.mxu0 %v4631
        %v4645 = vpop.f32.mrf.mxu0
        %v4646 = vadd.f32 0.0, %v4645
        %v4647 = vpop.f32.mrf.mxu0
        %4648 = vdwg.mxu0
        %v4650 = vsel %vm3518, %v4242, 0
        %v4653 = vsel %vm4290, %v2192, 0
        %4655 = vmatpush.bf16.msra.mxu0 0
        %4656 = vmatpush.bf16.msra.mxu0 0
        %4657 = vmatpush.bf16.msra.mxu0 0
        %4658 = vmatpush.bf16.msra.mxu0 0
        %4659 = vmatpush.bf16.msra.mxu0 0
        %4660 = vmatpush.bf16.msra.mxu0 0
        %4661 = vmatpush.bf16.msra.mxu0 0
        %4662 = vmatpush.bf16.msra.mxu0 %v4653
        %4663 = vmatmul.bf16.gmra.mxu0 %v4650
        %v4664 = vpop.f32.mrf.mxu0
        %v4665 = vadd.f32 0.0, %v4664
        %v4666 = vpop.f32.mrf.mxu0
        %4667 = vdwg.mxu0
        %v4669 = vsel %vm3518, %v4243, 0
        %v4672 = vsel %vm4290, %v2193, 0
        %4674 = vmatpush.bf16.msra.mxu0 0
        %4675 = vmatpush.bf16.msra.mxu0 0
        %4676 = vmatpush.bf16.msra.mxu0 0
        %4677 = vmatpush.bf16.msra.mxu0 0
        %4678 = vmatpush.bf16.msra.mxu0 0
        %4679 = vmatpush.bf16.msra.mxu0 0
        %4680 = vmatpush.bf16.msra.mxu0 0
        %4681 = vmatpush.bf16.msra.mxu0 %v4672
        %4682 = vmatmul.bf16.gmra.mxu0 %v4669
        %v4683 = vpop.f32.mrf.mxu0
        %v4684 = vadd.f32 0.0, %v4683
        %v4685 = vpop.f32.mrf.mxu0
        %4686 = vdwg.mxu0
        %v4688 = vsel %vm3518, %v4244, 0
        %v4691 = vsel %vm4290, %v2194, 0
        %4693 = vmatpush.bf16.msra.mxu0 0
        %4694 = vmatpush.bf16.msra.mxu0 0
        %4695 = vmatpush.bf16.msra.mxu0 0
        %4696 = vmatpush.bf16.msra.mxu0 0
        %4697 = vmatpush.bf16.msra.mxu0 0
        %4698 = vmatpush.bf16.msra.mxu0 0
        %4699 = vmatpush.bf16.msra.mxu0 0
        %4700 = vmatpush.bf16.msra.mxu0 %v4691
        %4701 = vmatmul.bf16.gmra.mxu0 %v4688
        %v4702 = vpop.f32.mrf.mxu0
        %v4703 = vadd.f32 0.0, %v4702
        %v4704 = vpop.f32.mrf.mxu0
        %4705 = vdwg.mxu0
        %v4707 = vsel %vm3518, %v4245, 0
        %v4710 = vsel %vm4290, %v2195, 0
        %4712 = vmatpush.bf16.msra.mxu0 0
        %4713 = vmatpush.bf16.msra.mxu0 0
        %4714 = vmatpush.bf16.msra.mxu0 0
        %4715 = vmatpush.bf16.msra.mxu0 0
        %4716 = vmatpush.bf16.msra.mxu0 0
        %4717 = vmatpush.bf16.msra.mxu0 0
        %4718 = vmatpush.bf16.msra.mxu0 0
        %4719 = vmatpush.bf16.msra.mxu0 %v4710
        %4720 = vmatmul.bf16.gmra.mxu0 %v4707
        %v4721 = vpop.f32.mrf.mxu0
        %v4722 = vadd.f32 0.0, %v4721
        %v4723 = vpop.f32.mrf.mxu0
        %4724 = vdwg.mxu0
        %v4726 = vsel %vm3518, %v4246, 0
        %v4729 = vsel %vm4290, %v2196, 0
        %4731 = vmatpush.bf16.msra.mxu0 0
        %4732 = vmatpush.bf16.msra.mxu0 0
        %4733 = vmatpush.bf16.msra.mxu0 0
        %4734 = vmatpush.bf16.msra.mxu0 0
        %4735 = vmatpush.bf16.msra.mxu0 0
        %4736 = vmatpush.bf16.msra.mxu0 0
        %4737 = vmatpush.bf16.msra.mxu0 0
        %4738 = vmatpush.bf16.msra.mxu0 %v4729
        %4739 = vmatmul.bf16.gmra.mxu0 %v4726
        %v4740 = vpop.f32.mrf.mxu0
        %v4741 = vadd.f32 0.0, %v4740
        %v4742 = vpop.f32.mrf.mxu0
        %4743 = vdwg.mxu0
        %v4745 = vsel %vm3518, %v4247, 0
        %v4748 = vsel %vm4290, %v2197, 0
        %4750 = vmatpush.bf16.msra.mxu0 0
        %4751 = vmatpush.bf16.msra.mxu0 0
        %4752 = vmatpush.bf16.msra.mxu0 0
        %4753 = vmatpush.bf16.msra.mxu0 0
        %4754 = vmatpush.bf16.msra.mxu0 0
        %4755 = vmatpush.bf16.msra.mxu0 0
        %4756 = vmatpush.bf16.msra.mxu0 0
        %4757 = vmatpush.bf16.msra.mxu0 %v4748
        %4758 = vmatmul.bf16.gmra.mxu0 %v4745
        %v4759 = vpop.f32.mrf.mxu0
        %v4760 = vadd.f32 0.0, %v4759
        %v4761 = vpop.f32.mrf.mxu0
        %4762 = vdwg.mxu0
        %v4764 = vsel %vm3518, %v4248, 0
        %v4767 = vsel %vm4290, %v2198, 0
        %4769 = vmatpush.bf16.msra.mxu0 0
        %4770 = vmatpush.bf16.msra.mxu0 0
        %4771 = vmatpush.bf16.msra.mxu0 0
        %4772 = vmatpush.bf16.msra.mxu0 0
        %4773 = vmatpush.bf16.msra.mxu0 0
        %4774 = vmatpush.bf16.msra.mxu0 0
        %4775 = vmatpush.bf16.msra.mxu0 0
        %4776 = vmatpush.bf16.msra.mxu0 %v4767
        %4777 = vmatmul.bf16.gmra.mxu0 %v4764
        %v4778 = vpop.f32.mrf.mxu0
        %v4779 = vadd.f32 0.0, %v4778
        %v4780 = vpop.f32.mrf.mxu0
        %4781 = vdwg.mxu0
        %v4783 = vsel %vm3518, %v4249, 0
        %v4786 = vsel %vm4290, %v2199, 0
        %4788 = vmatpush.bf16.msra.mxu0 0
        %4789 = vmatpush.bf16.msra.mxu0 0
        %4790 = vmatpush.bf16.msra.mxu0 0
        %4791 = vmatpush.bf16.msra.mxu0 0
        %4792 = vmatpush.bf16.msra.mxu0 0
        %4793 = vmatpush.bf16.msra.mxu0 0
        %4794 = vmatpush.bf16.msra.mxu0 0
        %4795 = vmatpush.bf16.msra.mxu0 %v4786
        %4796 = vmatmul.bf16.gmra.mxu0 %v4783
        %v4797 = vpop.f32.mrf.mxu0
        %v4798 = vadd.f32 0.0, %v4797
        %v4799 = vpop.f32.mrf.mxu0
        %4800 = vdwg.mxu0
        %v4802 = vsel %vm3518, %v4250, 0
        %v4805 = vsel %vm4290, %v2200, 0
        %4807 = vmatpush.bf16.msra.mxu0 0
        %4808 = vmatpush.bf16.msra.mxu0 0
        %4809 = vmatpush.bf16.msra.mxu0 0
        %4810 = vmatpush.bf16.msra.mxu0 0
        %4811 = vmatpush.bf16.msra.mxu0 0
        %4812 = vmatpush.bf16.msra.mxu0 0
        %4813 = vmatpush.bf16.msra.mxu0 0
        %4814 = vmatpush.bf16.msra.mxu0 %v4805
        %4815 = vmatmul.bf16.gmra.mxu0 %v4802
        %v4816 = vpop.f32.mrf.mxu0
        %v4817 = vadd.f32 0.0, %v4816
        %v4818 = vpop.f32.mrf.mxu0
        %4819 = vdwg.mxu0
        %v4821 = vsel %vm3518, %v4251, 0
        %v4824 = vsel %vm4290, %v2201, 0
        %4826 = vmatpush.bf16.msra.mxu0 0
        %4827 = vmatpush.bf16.msra.mxu0 0
        %4828 = vmatpush.bf16.msra.mxu0 0
        %4829 = vmatpush.bf16.msra.mxu0 0
        %4830 = vmatpush.bf16.msra.mxu0 0
        %4831 = vmatpush.bf16.msra.mxu0 0
        %4832 = vmatpush.bf16.msra.mxu0 0
        %4833 = vmatpush.bf16.msra.mxu0 %v4824
        %4834 = vmatmul.bf16.gmra.mxu0 %v4821
        %v4835 = vpop.f32.mrf.mxu0
        %v4836 = vadd.f32 0.0, %v4835
        %v4837 = vpop.f32.mrf.mxu0
        %4838 = vdwg.mxu0
        %v4840 = vsel %vm3518, %v4252, 0
        %v4843 = vsel %vm4290, %v2202, 0
        %4845 = vmatpush.bf16.msra.mxu0 0
        %4846 = vmatpush.bf16.msra.mxu0 0
        %4847 = vmatpush.bf16.msra.mxu0 0
        %4848 = vmatpush.bf16.msra.mxu0 0
        %4849 = vmatpush.bf16.msra.mxu0 0
        %4850 = vmatpush.bf16.msra.mxu0 0
        %4851 = vmatpush.bf16.msra.mxu0 0
        %4852 = vmatpush.bf16.msra.mxu0 %v4843
        %4853 = vmatmul.bf16.gmra.mxu0 %v4840
        %v4854 = vpop.f32.mrf.mxu0
        %v4855 = vadd.f32 0.0, %v4854
        %v4856 = vpop.f32.mrf.mxu0
        %4857 = vdwg.mxu0
        %v4859 = vsel %vm3518, %v4253, 0
        %v4862 = vsel %vm4290, %v2203, 0
        %4864 = vmatpush.bf16.msra.mxu0 0
        %4865 = vmatpush.bf16.msra.mxu0 0
        %4866 = vmatpush.bf16.msra.mxu0 0
        %4867 = vmatpush.bf16.msra.mxu0 0
        %4868 = vmatpush.bf16.msra.mxu0 0
        %4869 = vmatpush.bf16.msra.mxu0 0
        %4870 = vmatpush.bf16.msra.mxu0 0
        %4871 = vmatpush.bf16.msra.mxu0 %v4862
        %4872 = vmatmul.bf16.gmra.mxu0 %v4859
        %v4873 = vpop.f32.mrf.mxu0
        %v4874 = vadd.f32 0.0, %v4873
        %v4875 = vpop.f32.mrf.mxu0
        %4876 = vdwg.mxu0
        %v4878 = vsel %vm3518, %v4254, 0
        %v4881 = vsel %vm4290, %v2204, 0
        %4883 = vmatpush.bf16.msra.mxu0 0
        %4884 = vmatpush.bf16.msra.mxu0 0
        %4885 = vmatpush.bf16.msra.mxu0 0
        %4886 = vmatpush.bf16.msra.mxu0 0
        %4887 = vmatpush.bf16.msra.mxu0 0
        %4888 = vmatpush.bf16.msra.mxu0 0
        %4889 = vmatpush.bf16.msra.mxu0 0
        %4890 = vmatpush.bf16.msra.mxu0 %v4881
        %4891 = vmatmul.bf16.gmra.mxu0 %v4878
        %v4892 = vpop.f32.mrf.mxu0
        %v4893 = vadd.f32 0.0, %v4892
        %v4894 = vpop.f32.mrf.mxu0
        %4895 = vdwg.mxu0
        %v4897 = vsel %vm3518, %v4255, 0
        %v4900 = vsel %vm4290, %v2205, 0
        %4902 = vmatpush.bf16.msra.mxu0 0
        %4903 = vmatpush.bf16.msra.mxu0 0
        %4904 = vmatpush.bf16.msra.mxu0 0
        %4905 = vmatpush.bf16.msra.mxu0 0
        %4906 = vmatpush.bf16.msra.mxu0 0
        %4907 = vmatpush.bf16.msra.mxu0 0
        %4908 = vmatpush.bf16.msra.mxu0 0
        %4909 = vmatpush.bf16.msra.mxu0 %v4900
        %4910 = vmatmul.bf16.gmra.mxu0 %v4897
        %v4911 = vpop.f32.mrf.mxu0
        %v4912 = vadd.f32 0.0, %v4911
        %v4913 = vpop.f32.mrf.mxu0
        %4914 = vdwg.mxu0
        %v4916 = vsel %vm3518, %v4256, 0
        %v4919 = vsel %vm4290, %v2206, 0
        %4921 = vmatpush.bf16.msra.mxu0 0
        %4922 = vmatpush.bf16.msra.mxu0 0
        %4923 = vmatpush.bf16.msra.mxu0 0
        %4924 = vmatpush.bf16.msra.mxu0 0
        %4925 = vmatpush.bf16.msra.mxu0 0
        %4926 = vmatpush.bf16.msra.mxu0 0
        %4927 = vmatpush.bf16.msra.mxu0 0
        %4928 = vmatpush.bf16.msra.mxu0 %v4919
        %4929 = vmatmul.bf16.gmra.mxu0 %v4916
        %v4930 = vpop.f32.mrf.mxu0
        %v4931 = vadd.f32 0.0, %v4930
        %v4932 = vpop.f32.mrf.mxu0
        %4933 = vdwg.mxu0
        %v4935 = vsel %vm3518, %v4257, 0
        %v4938 = vsel %vm4290, %v2207, 0
        %4940 = vmatpush.bf16.msra.mxu0 0
        %4941 = vmatpush.bf16.msra.mxu0 0
        %4942 = vmatpush.bf16.msra.mxu0 0
        %4943 = vmatpush.bf16.msra.mxu0 0
        %4944 = vmatpush.bf16.msra.mxu0 0
        %4945 = vmatpush.bf16.msra.mxu0 0
        %4946 = vmatpush.bf16.msra.mxu0 0
        %4947 = vmatpush.bf16.msra.mxu0 %v4938
        %4948 = vmatmul.bf16.gmra.mxu0 %v4935
        %v4949 = vpop.f32.mrf.mxu0
        %v4950 = vadd.f32 0.0, %v4949
        %v4951 = vpop.f32.mrf.mxu0
        %4952 = vdwg.mxu0
        %v4954 = vsel %vm3518, %v4258, 0
        %v4957 = vsel %vm4290, %v2208, 0
        %4959 = vmatpush.bf16.msra.mxu0 0
        %4960 = vmatpush.bf16.msra.mxu0 0
        %4961 = vmatpush.bf16.msra.mxu0 0
        %4962 = vmatpush.bf16.msra.mxu0 0
        %4963 = vmatpush.bf16.msra.mxu0 0
        %4964 = vmatpush.bf16.msra.mxu0 0
        %4965 = vmatpush.bf16.msra.mxu0 0
        %4966 = vmatpush.bf16.msra.mxu0 %v4957
        %4967 = vmatmul.bf16.gmra.mxu0 %v4954
        %v4968 = vpop.f32.mrf.mxu0
        %v4969 = vadd.f32 0.0, %v4968
        %v4970 = vpop.f32.mrf.mxu0
        %4971 = vdwg.mxu0
        %v4973 = vsel %vm3518, %v4259, 0
        %v4976 = vsel %vm4290, %v2209, 0
        %4978 = vmatpush.bf16.msra.mxu0 0
        %4979 = vmatpush.bf16.msra.mxu0 0
        %4980 = vmatpush.bf16.msra.mxu0 0
        %4981 = vmatpush.bf16.msra.mxu0 0
        %4982 = vmatpush.bf16.msra.mxu0 0
        %4983 = vmatpush.bf16.msra.mxu0 0
        %4984 = vmatpush.bf16.msra.mxu0 0
        %4985 = vmatpush.bf16.msra.mxu0 %v4976
        %4986 = vmatmul.bf16.gmra.mxu0 %v4973
        %v4987 = vpop.f32.mrf.mxu0
        %v4988 = vadd.f32 0.0, %v4987
        %v4989 = vpop.f32.mrf.mxu0
        %4990 = vdwg.mxu0
        %v4992 = vsel %vm3518, %v4260, 0
        %v4995 = vsel %vm4290, %v2210, 0
        %4997 = vmatpush.bf16.msra.mxu0 0
        %4998 = vmatpush.bf16.msra.mxu0 0
        %4999 = vmatpush.bf16.msra.mxu0 0
        %5000 = vmatpush.bf16.msra.mxu0 0
        %5001 = vmatpush.bf16.msra.mxu0 0
        %5002 = vmatpush.bf16.msra.mxu0 0
        %5003 = vmatpush.bf16.msra.mxu0 0
        %5004 = vmatpush.bf16.msra.mxu0 %v4995
        %5005 = vmatmul.bf16.gmra.mxu0 %v4992
        %v5006 = vpop.f32.mrf.mxu0
        %v5007 = vadd.f32 0.0, %v5006
        %v5008 = vpop.f32.mrf.mxu0
        %5009 = vdwg.mxu0
        %v5011 = vsel %vm3518, %v4261, 0
        %v5014 = vsel %vm4290, %v2211, 0
        %5016 = vmatpush.bf16.msra.mxu0 0
        %5017 = vmatpush.bf16.msra.mxu0 0
        %5018 = vmatpush.bf16.msra.mxu0 0
        %5019 = vmatpush.bf16.msra.mxu0 0
        %5020 = vmatpush.bf16.msra.mxu0 0
        %5021 = vmatpush.bf16.msra.mxu0 0
        %5022 = vmatpush.bf16.msra.mxu0 0
        %5023 = vmatpush.bf16.msra.mxu0 %v5014
        %5024 = vmatmul.bf16.gmra.mxu0 %v5011
        %v5025 = vpop.f32.mrf.mxu0
        %v5026 = vadd.f32 0.0, %v5025
        %v5027 = vpop.f32.mrf.mxu0
        %5028 = vdwg.mxu0
        %v5030 = vsel %vm3518, %v4262, 0
        %v5033 = vsel %vm4290, %v2212, 0
        %5035 = vmatpush.bf16.msra.mxu0 0
        %5036 = vmatpush.bf16.msra.mxu0 0
        %5037 = vmatpush.bf16.msra.mxu0 0
        %5038 = vmatpush.bf16.msra.mxu0 0
        %5039 = vmatpush.bf16.msra.mxu0 0
        %5040 = vmatpush.bf16.msra.mxu0 0
        %5041 = vmatpush.bf16.msra.mxu0 0
        %5042 = vmatpush.bf16.msra.mxu0 %v5033
        %5043 = vmatmul.bf16.gmra.mxu0 %v5030
        %v5044 = vpop.f32.mrf.mxu0
        %v5045 = vadd.f32 0.0, %v5044
        %v5046 = vpop.f32.mrf.mxu0
        %5047 = vdwg.mxu0
        %v5049 = vsel %vm3518, %v4263, 0
        %v5052 = vsel %vm4290, %v2213, 0
        %5054 = vmatpush.bf16.msra.mxu0 0
        %5055 = vmatpush.bf16.msra.mxu0 0
        %5056 = vmatpush.bf16.msra.mxu0 0
        %5057 = vmatpush.bf16.msra.mxu0 0
        %5058 = vmatpush.bf16.msra.mxu0 0
        %5059 = vmatpush.bf16.msra.mxu0 0
        %5060 = vmatpush.bf16.msra.mxu0 0
        %5061 = vmatpush.bf16.msra.mxu0 %v5052
        %5062 = vmatmul.bf16.gmra.mxu0 %v5049
        %v5063 = vpop.f32.mrf.mxu0
        %v5064 = vadd.f32 0.0, %v5063
        %v5065 = vpop.f32.mrf.mxu0
        %5066 = vdwg.mxu0
        %v5068 = vsel %vm3518, %v4264, 0
        %v5071 = vsel %vm4290, %v2214, 0
        %5073 = vmatpush.bf16.msra.mxu0 0
        %5074 = vmatpush.bf16.msra.mxu0 0
        %5075 = vmatpush.bf16.msra.mxu0 0
        %5076 = vmatpush.bf16.msra.mxu0 0
        %5077 = vmatpush.bf16.msra.mxu0 0
        %5078 = vmatpush.bf16.msra.mxu0 0
        %5079 = vmatpush.bf16.msra.mxu0 0
        %5080 = vmatpush.bf16.msra.mxu0 %v5071
        %5081 = vmatmul.bf16.gmra.mxu0 %v5068
        %v5082 = vpop.f32.mrf.mxu0
        %v5083 = vadd.f32 0.0, %v5082
        %v5084 = vpop.f32.mrf.mxu0
        %5085 = vdwg.mxu0
        %v5087 = vsel %vm3518, %v4265, 0
        %v5090 = vsel %vm4290, %v2215, 0
        %5092 = vmatpush.bf16.msra.mxu0 0
        %5093 = vmatpush.bf16.msra.mxu0 0
        %5094 = vmatpush.bf16.msra.mxu0 0
        %5095 = vmatpush.bf16.msra.mxu0 0
        %5096 = vmatpush.bf16.msra.mxu0 0
        %5097 = vmatpush.bf16.msra.mxu0 0
        %5098 = vmatpush.bf16.msra.mxu0 0
        %5099 = vmatpush.bf16.msra.mxu0 %v5090
        %5100 = vmatmul.bf16.gmra.mxu0 %v5087
        %v5101 = vpop.f32.mrf.mxu0
        %v5102 = vadd.f32 0.0, %v5101
        %v5103 = vpop.f32.mrf.mxu0
        %5104 = vdwg.mxu0
        %v5106 = vsel %vm3518, %v4266, 0
        %v5109 = vsel %vm4290, %v2216, 0
        %5111 = vmatpush.bf16.msra.mxu0 0
        %5112 = vmatpush.bf16.msra.mxu0 0
        %5113 = vmatpush.bf16.msra.mxu0 0
        %5114 = vmatpush.bf16.msra.mxu0 0
        %5115 = vmatpush.bf16.msra.mxu0 0
        %5116 = vmatpush.bf16.msra.mxu0 0
        %5117 = vmatpush.bf16.msra.mxu0 0
        %5118 = vmatpush.bf16.msra.mxu0 %v5109
        %5119 = vmatmul.bf16.gmra.mxu0 %v5106
        %v5120 = vpop.f32.mrf.mxu0
        %v5121 = vadd.f32 0.0, %v5120
        %v5122 = vpop.f32.mrf.mxu0
        %5123 = vdwg.mxu0
        %v5125 = vsel %vm3518, %v4267, 0
        %v5128 = vsel %vm4290, %v2217, 0
        %5130 = vmatpush.bf16.msra.mxu0 0
        %5131 = vmatpush.bf16.msra.mxu0 0
        %5132 = vmatpush.bf16.msra.mxu0 0
        %5133 = vmatpush.bf16.msra.mxu0 0
        %5134 = vmatpush.bf16.msra.mxu0 0
        %5135 = vmatpush.bf16.msra.mxu0 0
        %5136 = vmatpush.bf16.msra.mxu0 0
        %5137 = vmatpush.bf16.msra.mxu0 %v5128
        %5138 = vmatmul.bf16.gmra.mxu0 %v5125
        %v5139 = vpop.f32.mrf.mxu0
        %v5140 = vadd.f32 0.0, %v5139
        %v5141 = vpop.f32.mrf.mxu0
        %5142 = vdwg.mxu0
        %v5144 = vsel %vm3518, %v4268, 0
        %v5147 = vsel %vm4290, %v2218, 0
        %5149 = vmatpush.bf16.msra.mxu0 0
        %5150 = vmatpush.bf16.msra.mxu0 0
        %5151 = vmatpush.bf16.msra.mxu0 0
        %5152 = vmatpush.bf16.msra.mxu0 0
        %5153 = vmatpush.bf16.msra.mxu0 0
        %5154 = vmatpush.bf16.msra.mxu0 0
        %5155 = vmatpush.bf16.msra.mxu0 0
        %5156 = vmatpush.bf16.msra.mxu0 %v5147
        %5157 = vmatmul.bf16.gmra.mxu0 %v5144
        %v5158 = vpop.f32.mrf.mxu0
        %v5159 = vadd.f32 0.0, %v5158
        %v5160 = vpop.f32.mrf.mxu0
        %5161 = vdwg.mxu0
        %v5163 = vsel %vm3518, %v4269, 0
        %v5166 = vsel %vm4290, %v2219, 0
        %5168 = vmatpush.bf16.msra.mxu0 0
        %5169 = vmatpush.bf16.msra.mxu0 0
        %5170 = vmatpush.bf16.msra.mxu0 0
        %5171 = vmatpush.bf16.msra.mxu0 0
        %5172 = vmatpush.bf16.msra.mxu0 0
        %5173 = vmatpush.bf16.msra.mxu0 0
        %5174 = vmatpush.bf16.msra.mxu0 0
        %5175 = vmatpush.bf16.msra.mxu0 %v5166
        %5176 = vmatmul.bf16.gmra.mxu0 %v5163
        %v5177 = vpop.f32.mrf.mxu0
        %v5178 = vadd.f32 0.0, %v5177
        %v5179 = vpop.f32.mrf.mxu0
        %5180 = vdwg.mxu0
        %v5182 = vsel %vm3518, %v4270, 0
        %v5185 = vsel %vm4290, %v2220, 0
        %5187 = vmatpush.bf16.msra.mxu0 0
        %5188 = vmatpush.bf16.msra.mxu0 0
        %5189 = vmatpush.bf16.msra.mxu0 0
        %5190 = vmatpush.bf16.msra.mxu0 0
        %5191 = vmatpush.bf16.msra.mxu0 0
        %5192 = vmatpush.bf16.msra.mxu0 0
        %5193 = vmatpush.bf16.msra.mxu0 0
        %5194 = vmatpush.bf16.msra.mxu0 %v5185
        %5195 = vmatmul.bf16.gmra.mxu0 %v5182
        %v5196 = vpop.f32.mrf.mxu0
        %v5197 = vadd.f32 0.0, %v5196
        %v5198 = vpop.f32.mrf.mxu0
        %5199 = vdwg.mxu0
        %v5201 = vsel %vm3518, %v4271, 0
        %v5204 = vsel %vm4290, %v2221, 0
        %5206 = vmatpush.bf16.msra.mxu0 0
        %5207 = vmatpush.bf16.msra.mxu0 0
        %5208 = vmatpush.bf16.msra.mxu0 0
        %5209 = vmatpush.bf16.msra.mxu0 0
        %5210 = vmatpush.bf16.msra.mxu0 0
        %5211 = vmatpush.bf16.msra.mxu0 0
        %5212 = vmatpush.bf16.msra.mxu0 0
        %5213 = vmatpush.bf16.msra.mxu0 %v5204
        %5214 = vmatmul.bf16.gmra.mxu0 %v5201
        %v5215 = vpop.f32.mrf.mxu0
        %v5216 = vadd.f32 0.0, %v5215
        %v5217 = vpop.f32.mrf.mxu0
        %5218 = vdwg.mxu0
        %v5220 = vsel %vm3518, %v4272, 0
        %v5223 = vsel %vm4290, %v2222, 0
        %5225 = vmatpush.bf16.msra.mxu0 0
        %5226 = vmatpush.bf16.msra.mxu0 0
        %5227 = vmatpush.bf16.msra.mxu0 0
        %5228 = vmatpush.bf16.msra.mxu0 0
        %5229 = vmatpush.bf16.msra.mxu0 0
        %5230 = vmatpush.bf16.msra.mxu0 0
        %5231 = vmatpush.bf16.msra.mxu0 0
        %5232 = vmatpush.bf16.msra.mxu0 %v5223
        %5233 = vmatmul.bf16.gmra.mxu0 %v5220
        %v5234 = vpop.f32.mrf.mxu0
        %v5235 = vadd.f32 0.0, %v5234
        %v5236 = vpop.f32.mrf.mxu0
        %5237 = vdwg.mxu0
        %v5239 = vsel %vm3518, %v4273, 0
        %v5242 = vsel %vm4290, %v2223, 0
        %5244 = vmatpush.bf16.msra.mxu0 0
        %5245 = vmatpush.bf16.msra.mxu0 0
        %5246 = vmatpush.bf16.msra.mxu0 0
        %5247 = vmatpush.bf16.msra.mxu0 0
        %5248 = vmatpush.bf16.msra.mxu0 0
        %5249 = vmatpush.bf16.msra.mxu0 0
        %5250 = vmatpush.bf16.msra.mxu0 0
        %5251 = vmatpush.bf16.msra.mxu0 %v5242
        %5252 = vmatmul.bf16.gmra.mxu0 %v5239
        %v5253 = vpop.f32.mrf.mxu0
        %v5254 = vadd.f32 0.0, %v5253
        %v5255 = vpop.f32.mrf.mxu0
        %5256 = vdwg.mxu0
        %v5258 = vsel %vm3518, %v4274, 0
        %v5261 = vsel %vm4290, %v2224, 0
        %5263 = vmatpush.bf16.msra.mxu0 0
        %5264 = vmatpush.bf16.msra.mxu0 0
        %5265 = vmatpush.bf16.msra.mxu0 0
        %5266 = vmatpush.bf16.msra.mxu0 0
        %5267 = vmatpush.bf16.msra.mxu0 0
        %5268 = vmatpush.bf16.msra.mxu0 0
        %5269 = vmatpush.bf16.msra.mxu0 0
        %5270 = vmatpush.bf16.msra.mxu0 %v5261
        %5271 = vmatmul.bf16.gmra.mxu0 %v5258
        %v5272 = vpop.f32.mrf.mxu0
        %v5273 = vadd.f32 0.0, %v5272
        %v5274 = vpop.f32.mrf.mxu0
        %5275 = vdwg.mxu0
        %v5277 = vsel %vm3518, %v4275, 0
        %v5280 = vsel %vm4290, %v2225, 0
        %5282 = vmatpush.bf16.msra.mxu0 0
        %5283 = vmatpush.bf16.msra.mxu0 0
        %5284 = vmatpush.bf16.msra.mxu0 0
        %5285 = vmatpush.bf16.msra.mxu0 0
        %5286 = vmatpush.bf16.msra.mxu0 0
        %5287 = vmatpush.bf16.msra.mxu0 0
        %5288 = vmatpush.bf16.msra.mxu0 0
        %5289 = vmatpush.bf16.msra.mxu0 %v5280
        %5290 = vmatmul.bf16.gmra.mxu0 %v5277
        %v5291 = vpop.f32.mrf.mxu0
        %v5292 = vadd.f32 0.0, %v5291
        %v5293 = vpop.f32.mrf.mxu0
        %5294 = vdwg.mxu0
        %v5296 = vsel %vm3518, %v4276, 0
        %v5299 = vsel %vm4290, %v2226, 0
        %5301 = vmatpush.bf16.msra.mxu0 0
        %5302 = vmatpush.bf16.msra.mxu0 0
        %5303 = vmatpush.bf16.msra.mxu0 0
        %5304 = vmatpush.bf16.msra.mxu0 0
        %5305 = vmatpush.bf16.msra.mxu0 0
        %5306 = vmatpush.bf16.msra.mxu0 0
        %5307 = vmatpush.bf16.msra.mxu0 0
        %5308 = vmatpush.bf16.msra.mxu0 %v5299
        %5309 = vmatmul.bf16.gmra.mxu0 %v5296
        %v5310 = vpop.f32.mrf.mxu0
        %v5311 = vadd.f32 0.0, %v5310
        %v5312 = vpop.f32.mrf.mxu0
        %5313 = vdwg.mxu0
        %v5315 = vsel %vm3518, %v4277, 0
        %v5318 = vsel %vm4290, %v2227, 0
        %5320 = vmatpush.bf16.msra.mxu0 0
        %5321 = vmatpush.bf16.msra.mxu0 0
        %5322 = vmatpush.bf16.msra.mxu0 0
        %5323 = vmatpush.bf16.msra.mxu0 0
        %5324 = vmatpush.bf16.msra.mxu0 0
        %5325 = vmatpush.bf16.msra.mxu0 0
        %5326 = vmatpush.bf16.msra.mxu0 0
        %5327 = vmatpush.bf16.msra.mxu0 %v5318
        %5328 = vmatmul.bf16.gmra.mxu0 %v5315
        %v5329 = vpop.f32.mrf.mxu0
        %v5330 = vadd.f32 0.0, %v5329
        %v5331 = vpop.f32.mrf.mxu0
        %5332 = vdwg.mxu0
        %v5334 = vsel %vm3518, %v4278, 0
        %v5337 = vsel %vm4290, %v2228, 0
        %5339 = vmatpush.bf16.msra.mxu0 0
        %5340 = vmatpush.bf16.msra.mxu0 0
        %5341 = vmatpush.bf16.msra.mxu0 0
        %5342 = vmatpush.bf16.msra.mxu0 0
        %5343 = vmatpush.bf16.msra.mxu0 0
        %5344 = vmatpush.bf16.msra.mxu0 0
        %5345 = vmatpush.bf16.msra.mxu0 0
        %5346 = vmatpush.bf16.msra.mxu0 %v5337
        %5347 = vmatmul.bf16.gmra.mxu0 %v5334
        %v5348 = vpop.f32.mrf.mxu0
        %v5349 = vadd.f32 0.0, %v5348
        %v5350 = vpop.f32.mrf.mxu0
        %5351 = vdwg.mxu0
        %v5353 = vsel %vm3518, %v4279, 0
        %v5356 = vsel %vm4290, %v2229, 0
        %5358 = vmatpush.bf16.msra.mxu0 0
        %5359 = vmatpush.bf16.msra.mxu0 0
        %5360 = vmatpush.bf16.msra.mxu0 0
        %5361 = vmatpush.bf16.msra.mxu0 0
        %5362 = vmatpush.bf16.msra.mxu0 0
        %5363 = vmatpush.bf16.msra.mxu0 0
        %5364 = vmatpush.bf16.msra.mxu0 0
        %5365 = vmatpush.bf16.msra.mxu0 %v5356
        %5366 = vmatmul.bf16.gmra.mxu0 %v5353
        %v5367 = vpop.f32.mrf.mxu0
        %v5368 = vadd.f32 0.0, %v5367
        %v5369 = vpop.f32.mrf.mxu0
        %5370 = vdwg.mxu0
        %v5372 = vsel %vm3518, %v4280, 0
        %v5375 = vsel %vm4290, %v2230, 0
        %5377 = vmatpush.bf16.msra.mxu0 0
        %5378 = vmatpush.bf16.msra.mxu0 0
        %5379 = vmatpush.bf16.msra.mxu0 0
        %5380 = vmatpush.bf16.msra.mxu0 0
        %5381 = vmatpush.bf16.msra.mxu0 0
        %5382 = vmatpush.bf16.msra.mxu0 0
        %5383 = vmatpush.bf16.msra.mxu0 0
        %5384 = vmatpush.bf16.msra.mxu0 %v5375
        %5385 = vmatmul.bf16.gmra.mxu0 %v5372
        %v5386 = vpop.f32.mrf.mxu0
        %v5387 = vadd.f32 0.0, %v5386
        %v5388 = vpop.f32.mrf.mxu0
        %5389 = vdwg.mxu0
        %v5391 = vsel %vm3518, %v4281, 0
        %v5394 = vsel %vm4290, %v2231, 0
        %5396 = vmatpush.bf16.msra.mxu0 0
        %5397 = vmatpush.bf16.msra.mxu0 0
        %5398 = vmatpush.bf16.msra.mxu0 0
        %5399 = vmatpush.bf16.msra.mxu0 0
        %5400 = vmatpush.bf16.msra.mxu0 0
        %5401 = vmatpush.bf16.msra.mxu0 0
        %5402 = vmatpush.bf16.msra.mxu0 0
        %5403 = vmatpush.bf16.msra.mxu0 %v5394
        %5404 = vmatmul.bf16.gmra.mxu0 %v5391
        %v5405 = vpop.f32.mrf.mxu0
        %v5406 = vadd.f32 0.0, %v5405
        %v5407 = vpop.f32.mrf.mxu0
        %5408 = vdwg.mxu0
        %v5410 = vsel %vm3518, %v4282, 0
        %v5413 = vsel %vm4290, %v2232, 0
        %5415 = vmatpush.bf16.msra.mxu0 0
        %5416 = vmatpush.bf16.msra.mxu0 0
        %5417 = vmatpush.bf16.msra.mxu0 0
        %5418 = vmatpush.bf16.msra.mxu0 0
        %5419 = vmatpush.bf16.msra.mxu0 0
        %5420 = vmatpush.bf16.msra.mxu0 0
        %5421 = vmatpush.bf16.msra.mxu0 0
        %5422 = vmatpush.bf16.msra.mxu0 %v5413
        %5423 = vmatmul.bf16.gmra.mxu0 %v5410
        %v5424 = vpop.f32.mrf.mxu0
        %v5425 = vadd.f32 0.0, %v5424
        %v5426 = vpop.f32.mrf.mxu0
        %5427 = vdwg.mxu0
        %v5429 = vsel %vm3518, %v4283, 0
        %v5432 = vsel %vm4290, %v2233, 0
        %5434 = vmatpush.bf16.msra.mxu0 0
        %5435 = vmatpush.bf16.msra.mxu0 0
        %5436 = vmatpush.bf16.msra.mxu0 0
        %5437 = vmatpush.bf16.msra.mxu0 0
        %5438 = vmatpush.bf16.msra.mxu0 0
        %5439 = vmatpush.bf16.msra.mxu0 0
        %5440 = vmatpush.bf16.msra.mxu0 0
        %5441 = vmatpush.bf16.msra.mxu0 %v5432
        %5442 = vmatmul.bf16.gmra.mxu0 %v5429
        %v5443 = vpop.f32.mrf.mxu0
        %v5444 = vadd.f32 0.0, %v5443
        %v5445 = vpop.f32.mrf.mxu0
        %5446 = vdwg.mxu0
        %v5448 = vsel %vm3518, %v4284, 0
        %v5451 = vsel %vm4290, %v2234, 0
        %5453 = vmatpush.bf16.msra.mxu0 0
        %5454 = vmatpush.bf16.msra.mxu0 0
        %5455 = vmatpush.bf16.msra.mxu0 0
        %5456 = vmatpush.bf16.msra.mxu0 0
        %5457 = vmatpush.bf16.msra.mxu0 0
        %5458 = vmatpush.bf16.msra.mxu0 0
        %5459 = vmatpush.bf16.msra.mxu0 0
        %5460 = vmatpush.bf16.msra.mxu0 %v5451
        %5461 = vmatmul.bf16.gmra.mxu0 %v5448
        %v5462 = vpop.f32.mrf.mxu0
        %v5463 = vadd.f32 0.0, %v5462
        %v5464 = vpop.f32.mrf.mxu0
        %5465 = vdwg.mxu0
        %v5467 = vsel %vm3518, %v4285, 0
        %v5470 = vsel %vm4290, %v2235, 0
        %5472 = vmatpush.bf16.msra.mxu0 0
        %5473 = vmatpush.bf16.msra.mxu0 0
        %5474 = vmatpush.bf16.msra.mxu0 0
        %5475 = vmatpush.bf16.msra.mxu0 0
        %5476 = vmatpush.bf16.msra.mxu0 0
        %5477 = vmatpush.bf16.msra.mxu0 0
        %5478 = vmatpush.bf16.msra.mxu0 0
        %5479 = vmatpush.bf16.msra.mxu0 %v5470
        %5480 = vmatmul.bf16.gmra.mxu0 %v5467
        %v5481 = vpop.f32.mrf.mxu0
        %v5482 = vadd.f32 0.0, %v5481
        %v5483 = vpop.f32.mrf.mxu0
        %5484 = vdwg.mxu0
        %v5486 = vsel %vm3518, %v4286, 0
        %v5489 = vsel %vm4290, %v2236, 0
        %5491 = vmatpush.bf16.msra.mxu0 0
        %5492 = vmatpush.bf16.msra.mxu0 0
        %5493 = vmatpush.bf16.msra.mxu0 0
        %5494 = vmatpush.bf16.msra.mxu0 0
        %5495 = vmatpush.bf16.msra.mxu0 0
        %5496 = vmatpush.bf16.msra.mxu0 0
        %5497 = vmatpush.bf16.msra.mxu0 0
        %5498 = vmatpush.bf16.msra.mxu0 %v5489
        %5499 = vmatmul.bf16.gmra.mxu0 %v5486
        %v5500 = vpop.f32.mrf.mxu0
        %v5501 = vadd.f32 0.0, %v5500
        %v5502 = vpop.f32.mrf.mxu0
        %5503 = vdwg.mxu0
        %v5504 = vpack.c.bf16 %v4304, %v4304
        %v5505 = vpack.c.bf16 %v4323, %v4323
        %v5506 = vpack.c.bf16 %v4342, %v4342
        %v5507 = vpack.c.bf16 %v4361, %v4361
        %v5508 = vpack.c.bf16 %v4380, %v4380
        %v5509 = vpack.c.bf16 %v4399, %v4399
        %v5510 = vpack.c.bf16 %v4418, %v4418
        %v5511 = vpack.c.bf16 %v4437, %v4437
        %v5512 = vpack.c.bf16 %v4456, %v4456
        %v5513 = vpack.c.bf16 %v4475, %v4475
        %v5514 = vpack.c.bf16 %v4494, %v4494
        %v5515 = vpack.c.bf16 %v4513, %v4513
        %v5516 = vpack.c.bf16 %v4532, %v4532
        %v5517 = vpack.c.bf16 %v4551, %v4551
        %v5518 = vpack.c.bf16 %v4570, %v4570
        %v5519 = vpack.c.bf16 %v4589, %v4589
        %v5520 = vpack.c.bf16 %v4608, %v4608
        %v5521 = vpack.c.bf16 %v4627, %v4627
        %v5522 = vpack.c.bf16 %v4646, %v4646
        %v5523 = vpack.c.bf16 %v4665, %v4665
        %v5524 = vpack.c.bf16 %v4684, %v4684
        %v5525 = vpack.c.bf16 %v4703, %v4703
        %v5526 = vpack.c.bf16 %v4722, %v4722
        %v5527 = vpack.c.bf16 %v4741, %v4741
        %v5528 = vpack.c.bf16 %v4760, %v4760
        %v5529 = vpack.c.bf16 %v4779, %v4779
        %v5530 = vpack.c.bf16 %v4798, %v4798
        %v5531 = vpack.c.bf16 %v4817, %v4817
        %v5532 = vpack.c.bf16 %v4836, %v4836
        %v5533 = vpack.c.bf16 %v4855, %v4855
        %v5534 = vpack.c.bf16 %v4874, %v4874
        %v5535 = vpack.c.bf16 %v4893, %v4893
        %v5536 = vpack.c.bf16 %v4912, %v4912
        %v5537 = vpack.c.bf16 %v4931, %v4931
        %v5538 = vpack.c.bf16 %v4950, %v4950
        %v5539 = vpack.c.bf16 %v4969, %v4969
        %v5540 = vpack.c.bf16 %v4988, %v4988
        %v5541 = vpack.c.bf16 %v5007, %v5007
        %v5542 = vpack.c.bf16 %v5026, %v5026
        %v5543 = vpack.c.bf16 %v5045, %v5045
        %v5544 = vpack.c.bf16 %v5064, %v5064
        %v5545 = vpack.c.bf16 %v5083, %v5083
        %v5546 = vpack.c.bf16 %v5102, %v5102
        %v5547 = vpack.c.bf16 %v5121, %v5121
        %v5548 = vpack.c.bf16 %v5140, %v5140
        %v5549 = vpack.c.bf16 %v5159, %v5159
        %v5550 = vpack.c.bf16 %v5178, %v5178
        %v5551 = vpack.c.bf16 %v5197, %v5197
        %v5552 = vpack.c.bf16 %v5216, %v5216
        %v5553 = vpack.c.bf16 %v5235, %v5235
        %v5554 = vpack.c.bf16 %v5254, %v5254
        %v5555 = vpack.c.bf16 %v5273, %v5273
        %v5556 = vpack.c.bf16 %v5292, %v5292
        %v5557 = vpack.c.bf16 %v5311, %v5311
        %v5558 = vpack.c.bf16 %v5330, %v5330
        %v5559 = vpack.c.bf16 %v5349, %v5349
        %v5560 = vpack.c.bf16 %v5368, %v5368
        %v5561 = vpack.c.bf16 %v5387, %v5387
        %v5562 = vpack.c.bf16 %v5406, %v5406
        %v5563 = vpack.c.bf16 %v5425, %v5425
        %v5564 = vpack.c.bf16 %v5444, %v5444
        %v5565 = vpack.c.bf16 %v5463, %v5463
        %v5566 = vpack.c.bf16 %v5482, %v5482
        %v5567 = vpack.c.bf16 %v5501, %v5501
        %v5568 = vld [vmem:[%s772] sm:$0xf]
        %v5569 = vld [vmem:[%s772 + $0x4] sm:$0xf]
        %v5570 = vld [vmem:[%s772 + $0x8] sm:$0xf]
        %v5571 = vld [vmem:[%s772 + $0xc] sm:$0xf]
        %v5572 = vld [vmem:[%s772 + $0x10] sm:$0xf]
        %v5573 = vld [vmem:[%s772 + $0x14] sm:$0xf]
        %v5574 = vld [vmem:[%s772 + $0x18] sm:$0xf]
        %v5575 = vld [vmem:[%s772 + $0x1c] sm:$0xf]
        %v5576 = vld [vmem:[%s772 + $0x20] sm:$0xf]
        %v5577 = vld [vmem:[%s772 + $0x24] sm:$0xf]
        %v5578 = vld [vmem:[%s772 + $0x28] sm:$0xf]
        %v5579 = vld [vmem:[%s772 + $0x2c] sm:$0xf]
        %v5580 = vld [vmem:[%s772 + $0x30] sm:$0xf]
        %v5581 = vld [vmem:[%s772 + $0x34] sm:$0xf]
        %v5582 = vld [vmem:[%s772 + $0x38] sm:$0xf]
        %v5583 = vld [vmem:[%s772 + $0x3c] sm:$0xf]
        %v5600 = vunpack.c.l.b16 %v5504
        %v5601 = vunpack.c.l.b16 %v5505
        %v5602 = vunpack.c.l.b16 %v5506
        %v5603 = vunpack.c.l.b16 %v5507
        %v5604 = vunpack.c.l.b16 %v5508
        %v5605 = vunpack.c.l.b16 %v5509
        %v5606 = vunpack.c.l.b16 %v5510
        %v5607 = vunpack.c.l.b16 %v5511
        %v5608 = vunpack.c.l.b16 %v5512
        %v5609 = vunpack.c.l.b16 %v5513
        %v5610 = vunpack.c.l.b16 %v5514
        %v5611 = vunpack.c.l.b16 %v5515
        %v5612 = vunpack.c.l.b16 %v5516
        %v5613 = vunpack.c.l.b16 %v5517
        %v5614 = vunpack.c.l.b16 %v5518
        %v5615 = vunpack.c.l.b16 %v5519
        %v5616 = vpack.c.b16 %v5601, %v5600
        %v5617 = vpack.c.b16 %v5603, %v5602
        %v5618 = vpack.c.b16 %v5605, %v5604
        %v5619 = vpack.c.b16 %v5607, %v5606
        %v5620 = vpack.c.b16 %v5609, %v5608
        %v5621 = vpack.c.b16 %v5611, %v5610
        %v5622 = vpack.c.b16 %v5613, %v5612
        %v5623 = vpack.c.b16 %v5615, %v5614
        %v5628 = vunpack.c.l.b16 %v5568
        %v5629 = vunpack.c.l.b16 %v5569
        %v5630 = vunpack.c.l.b16 %v5570
        %v5631 = vunpack.c.l.b16 %v5571
        %v5632 = vpack.c.b16 %v5629, %v5628
        %v5633 = vpack.c.b16 %v5631, %v5630
        %v5637 = vsel %vm2301, %v5616, 0
        %v5640 = vsel %vm2301, %v5617, 0
        %v5643 = vsel %vm2301, %v5618, 0
        %v5646 = vsel %vm2301, %v5619, 0
        %v5649 = vsel %vm2301, %v5620, 0
        %v5652 = vsel %vm2301, %v5621, 0
        %v5655 = vsel %vm2301, %v5622, 0
        %v5658 = vsel %vm2301, %v5623, 0
        %5660 = vmatpush.bf16.msra.mxu0 0
        %5661 = vmatpush.bf16.msra.mxu0 0
        %5662 = vmatpush.bf16.msra.mxu0 0
        %5663 = vmatpush.bf16.msra.mxu0 0
        %5664 = vmatpush.bf16.msra.mxu0 0
        %5665 = vmatpush.bf16.msra.mxu0 0
        %5666 = vmatpush.bf16.msra.mxu0 %v5633
        %5667 = vmatpush.bf16.msra.mxu0 %v5632
        %5668 = vmatmul.bf16.gmra.mxu0 %v5637
        %v5669 = vpop.f32.mrf.mxu0
        %v5670 = vadd.f32 0.0, %v5669
        %v5671 = vpop.f32.mrf.mxu0
        %v5672 = vadd.f32 0.0, %v5671
        %5673 = vmatmul.bf16.gmra.mxu0 %v5640
        %v5674 = vpop.f32.mrf.mxu0
        %v5675 = vadd.f32 0.0, %v5674
        %v5676 = vpop.f32.mrf.mxu0
        %v5677 = vadd.f32 0.0, %v5676
        %5678 = vmatmul.bf16.gmra.mxu0 %v5643
        %v5679 = vpop.f32.mrf.mxu0
        %v5680 = vadd.f32 0.0, %v5679
        %v5681 = vpop.f32.mrf.mxu0
        %v5682 = vadd.f32 0.0, %v5681
        %5683 = vmatmul.bf16.gmra.mxu0 %v5646
        %v5684 = vpop.f32.mrf.mxu0
        %v5685 = vadd.f32 0.0, %v5684
        %v5686 = vpop.f32.mrf.mxu0
        %v5687 = vadd.f32 0.0, %v5686
        %5688 = vmatmul.bf16.gmra.mxu0 %v5649
        %v5689 = vpop.f32.mrf.mxu0
        %v5690 = vadd.f32 0.0, %v5689
        %v5691 = vpop.f32.mrf.mxu0
        %v5692 = vadd.f32 0.0, %v5691
        %5693 = vmatmul.bf16.gmra.mxu0 %v5652
        %v5694 = vpop.f32.mrf.mxu0
        %v5695 = vadd.f32 0.0, %v5694
        %v5696 = vpop.f32.mrf.mxu0
        %v5697 = vadd.f32 0.0, %v5696
        %5698 = vmatmul.bf16.gmra.mxu0 %v5655
        %v5699 = vpop.f32.mrf.mxu0
        %v5700 = vadd.f32 0.0, %v5699
        %v5701 = vpop.f32.mrf.mxu0
        %v5702 = vadd.f32 0.0, %v5701
        %5703 = vmatmul.bf16.gmra.mxu0 %v5658
        %v5704 = vpop.f32.mrf.mxu0
        %v5705 = vadd.f32 0.0, %v5704
        %v5706 = vpop.f32.mrf.mxu0
        %v5707 = vadd.f32 0.0, %v5706
        %5708 = vdwg.mxu0
        %v5725 = vunpack.c.l.b16 %v5520
        %v5726 = vunpack.c.l.b16 %v5521
        %v5727 = vunpack.c.l.b16 %v5522
        %v5728 = vunpack.c.l.b16 %v5523
        %v5729 = vunpack.c.l.b16 %v5524
        %v5730 = vunpack.c.l.b16 %v5525
        %v5731 = vunpack.c.l.b16 %v5526
        %v5732 = vunpack.c.l.b16 %v5527
        %v5733 = vunpack.c.l.b16 %v5528
        %v5734 = vunpack.c.l.b16 %v5529
        %v5735 = vunpack.c.l.b16 %v5530
        %v5736 = vunpack.c.l.b16 %v5531
        %v5737 = vunpack.c.l.b16 %v5532
        %v5738 = vunpack.c.l.b16 %v5533
        %v5739 = vunpack.c.l.b16 %v5534
        %v5740 = vunpack.c.l.b16 %v5535
        %v5741 = vpack.c.b16 %v5726, %v5725
        %v5742 = vpack.c.b16 %v5728, %v5727
        %v5743 = vpack.c.b16 %v5730, %v5729
        %v5744 = vpack.c.b16 %v5732, %v5731
        %v5745 = vpack.c.b16 %v5734, %v5733
        %v5746 = vpack.c.b16 %v5736, %v5735
        %v5747 = vpack.c.b16 %v5738, %v5737
        %v5748 = vpack.c.b16 %v5740, %v5739
        %v5753 = vunpack.c.l.b16 %v5572
        %v5754 = vunpack.c.l.b16 %v5573
        %v5755 = vunpack.c.l.b16 %v5574
        %v5756 = vunpack.c.l.b16 %v5575
        %v5757 = vpack.c.b16 %v5754, %v5753
        %v5758 = vpack.c.b16 %v5756, %v5755
        %v5762 = vsel %vm2301, %v5741, 0
        %v5765 = vsel %vm2301, %v5742, 0
        %v5768 = vsel %vm2301, %v5743, 0
        %v5771 = vsel %vm2301, %v5744, 0
        %v5774 = vsel %vm2301, %v5745, 0
        %v5777 = vsel %vm2301, %v5746, 0
        %v5780 = vsel %vm2301, %v5747, 0
        %v5783 = vsel %vm2301, %v5748, 0
        %5785 = vmatpush.bf16.msra.mxu0 0
        %5786 = vmatpush.bf16.msra.mxu0 0
        %5787 = vmatpush.bf16.msra.mxu0 0
        %5788 = vmatpush.bf16.msra.mxu0 0
        %5789 = vmatpush.bf16.msra.mxu0 0
        %5790 = vmatpush.bf16.msra.mxu0 0
        %5791 = vmatpush.bf16.msra.mxu0 %v5758
        %5792 = vmatpush.bf16.msra.mxu0 %v5757
        %5793 = vmatmul.bf16.gmra.mxu0 %v5762
        %v5794 = vpop.f32.mrf.mxu0
        %v5795 = vadd.f32 0.0, %v5794
        %v5796 = vpop.f32.mrf.mxu0
        %v5797 = vadd.f32 0.0, %v5796
        %5798 = vmatmul.bf16.gmra.mxu0 %v5765
        %v5799 = vpop.f32.mrf.mxu0
        %v5800 = vadd.f32 0.0, %v5799
        %v5801 = vpop.f32.mrf.mxu0
        %v5802 = vadd.f32 0.0, %v5801
        %5803 = vmatmul.bf16.gmra.mxu0 %v5768
        %v5804 = vpop.f32.mrf.mxu0
        %v5805 = vadd.f32 0.0, %v5804
        %v5806 = vpop.f32.mrf.mxu0
        %v5807 = vadd.f32 0.0, %v5806
        %5808 = vmatmul.bf16.gmra.mxu0 %v5771
        %v5809 = vpop.f32.mrf.mxu0
        %v5810 = vadd.f32 0.0, %v5809
        %v5811 = vpop.f32.mrf.mxu0
        %v5812 = vadd.f32 0.0, %v5811
        %5813 = vmatmul.bf16.gmra.mxu0 %v5774
        %v5814 = vpop.f32.mrf.mxu0
        %v5815 = vadd.f32 0.0, %v5814
        %v5816 = vpop.f32.mrf.mxu0
        %v5817 = vadd.f32 0.0, %v5816
        %5818 = vmatmul.bf16.gmra.mxu0 %v5777
        %v5819 = vpop.f32.mrf.mxu0
        %v5820 = vadd.f32 0.0, %v5819
        %v5821 = vpop.f32.mrf.mxu0
        %v5822 = vadd.f32 0.0, %v5821
        %5823 = vmatmul.bf16.gmra.mxu0 %v5780
        %v5824 = vpop.f32.mrf.mxu0
        %v5825 = vadd.f32 0.0, %v5824
        %v5826 = vpop.f32.mrf.mxu0
        %v5827 = vadd.f32 0.0, %v5826
        %5828 = vmatmul.bf16.gmra.mxu0 %v5783
        %v5829 = vpop.f32.mrf.mxu0
        %v5830 = vadd.f32 0.0, %v5829
        %v5831 = vpop.f32.mrf.mxu0
        %v5832 = vadd.f32 0.0, %v5831
        %5833 = vdwg.mxu0
        %v5850 = vunpack.c.l.b16 %v5536
        %v5851 = vunpack.c.l.b16 %v5537
        %v5852 = vunpack.c.l.b16 %v5538
        %v5853 = vunpack.c.l.b16 %v5539
        %v5854 = vunpack.c.l.b16 %v5540
        %v5855 = vunpack.c.l.b16 %v5541
        %v5856 = vunpack.c.l.b16 %v5542
        %v5857 = vunpack.c.l.b16 %v5543
        %v5858 = vunpack.c.l.b16 %v5544
        %v5859 = vunpack.c.l.b16 %v5545
        %v5860 = vunpack.c.l.b16 %v5546
        %v5861 = vunpack.c.l.b16 %v5547
        %v5862 = vunpack.c.l.b16 %v5548
        %v5863 = vunpack.c.l.b16 %v5549
        %v5864 = vunpack.c.l.b16 %v5550
        %v5865 = vunpack.c.l.b16 %v5551
        %v5866 = vpack.c.b16 %v5851, %v5850
        %v5867 = vpack.c.b16 %v5853, %v5852
        %v5868 = vpack.c.b16 %v5855, %v5854
        %v5869 = vpack.c.b16 %v5857, %v5856
        %v5870 = vpack.c.b16 %v5859, %v5858
        %v5871 = vpack.c.b16 %v5861, %v5860
        %v5872 = vpack.c.b16 %v5863, %v5862
        %v5873 = vpack.c.b16 %v5865, %v5864
        %v5878 = vunpack.c.l.b16 %v5576
        %v5879 = vunpack.c.l.b16 %v5577
        %v5880 = vunpack.c.l.b16 %v5578
        %v5881 = vunpack.c.l.b16 %v5579
        %v5882 = vpack.c.b16 %v5879, %v5878
        %v5883 = vpack.c.b16 %v5881, %v5880
        %v5887 = vsel %vm2301, %v5866, 0
        %v5890 = vsel %vm2301, %v5867, 0
        %v5893 = vsel %vm2301, %v5868, 0
        %v5896 = vsel %vm2301, %v5869, 0
        %v5899 = vsel %vm2301, %v5870, 0
        %v5902 = vsel %vm2301, %v5871, 0
        %v5905 = vsel %vm2301, %v5872, 0
        %v5908 = vsel %vm2301, %v5873, 0
        %5910 = vmatpush.bf16.msra.mxu0 0
        %5911 = vmatpush.bf16.msra.mxu0 0
        %5912 = vmatpush.bf16.msra.mxu0 0
        %5913 = vmatpush.bf16.msra.mxu0 0
        %5914 = vmatpush.bf16.msra.mxu0 0
        %5915 = vmatpush.bf16.msra.mxu0 0
        %5916 = vmatpush.bf16.msra.mxu0 %v5883
        %5917 = vmatpush.bf16.msra.mxu0 %v5882
        %5918 = vmatmul.bf16.gmra.mxu0 %v5887
        %v5919 = vpop.f32.mrf.mxu0
        %v5920 = vadd.f32 0.0, %v5919
        %v5921 = vpop.f32.mrf.mxu0
        %v5922 = vadd.f32 0.0, %v5921
        %5923 = vmatmul.bf16.gmra.mxu0 %v5890
        %v5924 = vpop.f32.mrf.mxu0
        %v5925 = vadd.f32 0.0, %v5924
        %v5926 = vpop.f32.mrf.mxu0
        %v5927 = vadd.f32 0.0, %v5926
        %5928 = vmatmul.bf16.gmra.mxu0 %v5893
        %v5929 = vpop.f32.mrf.mxu0
        %v5930 = vadd.f32 0.0, %v5929
        %v5931 = vpop.f32.mrf.mxu0
        %v5932 = vadd.f32 0.0, %v5931
        %5933 = vmatmul.bf16.gmra.mxu0 %v5896
        %v5934 = vpop.f32.mrf.mxu0
        %v5935 = vadd.f32 0.0, %v5934
        %v5936 = vpop.f32.mrf.mxu0
        %v5937 = vadd.f32 0.0, %v5936
        %5938 = vmatmul.bf16.gmra.mxu0 %v5899
        %v5939 = vpop.f32.mrf.mxu0
        %v5940 = vadd.f32 0.0, %v5939
        %v5941 = vpop.f32.mrf.mxu0
        %v5942 = vadd.f32 0.0, %v5941
        %5943 = vmatmul.bf16.gmra.mxu0 %v5902
        %v5944 = vpop.f32.mrf.mxu0
        %v5945 = vadd.f32 0.0, %v5944
        %v5946 = vpop.f32.mrf.mxu0
        %v5947 = vadd.f32 0.0, %v5946
        %5948 = vmatmul.bf16.gmra.mxu0 %v5905
        %v5949 = vpop.f32.mrf.mxu0
        %v5950 = vadd.f32 0.0, %v5949
        %v5951 = vpop.f32.mrf.mxu0
        %v5952 = vadd.f32 0.0, %v5951
        %5953 = vmatmul.bf16.gmra.mxu0 %v5908
        %v5954 = vpop.f32.mrf.mxu0
        %v5955 = vadd.f32 0.0, %v5954
        %v5956 = vpop.f32.mrf.mxu0
        %v5957 = vadd.f32 0.0, %v5956
        %5958 = vdwg.mxu0
        %v5975 = vunpack.c.l.b16 %v5552
        %v5976 = vunpack.c.l.b16 %v5553
        %v5977 = vunpack.c.l.b16 %v5554
        %v5978 = vunpack.c.l.b16 %v5555
        %v5979 = vunpack.c.l.b16 %v5556
        %v5980 = vunpack.c.l.b16 %v5557
        %v5981 = vunpack.c.l.b16 %v5558
        %v5982 = vunpack.c.l.b16 %v5559
        %v5983 = vunpack.c.l.b16 %v5560
        %v5984 = vunpack.c.l.b16 %v5561
        %v5985 = vunpack.c.l.b16 %v5562
        %v5986 = vunpack.c.l.b16 %v5563
        %v5987 = vunpack.c.l.b16 %v5564
        %v5988 = vunpack.c.l.b16 %v5565
        %v5989 = vunpack.c.l.b16 %v5566
        %v5990 = vunpack.c.l.b16 %v5567
        %v5991 = vpack.c.b16 %v5976, %v5975
        %v5992 = vpack.c.b16 %v5978, %v5977
        %v5993 = vpack.c.b16 %v5980, %v5979
        %v5994 = vpack.c.b16 %v5982, %v5981
        %v5995 = vpack.c.b16 %v5984, %v5983
        %v5996 = vpack.c.b16 %v5986, %v5985
        %v5997 = vpack.c.b16 %v5988, %v5987
        %v5998 = vpack.c.b16 %v5990, %v5989
        %v6003 = vunpack.c.l.b16 %v5580
        %v6004 = vunpack.c.l.b16 %v5581
        %v6005 = vunpack.c.l.b16 %v5582
        %v6006 = vunpack.c.l.b16 %v5583
        %v6007 = vpack.c.b16 %v6004, %v6003
        %v6008 = vpack.c.b16 %v6006, %v6005
        %v6012 = vsel %vm2301, %v5991, 0
        %v6015 = vsel %vm2301, %v5992, 0
        %v6018 = vsel %vm2301, %v5993, 0
        %v6021 = vsel %vm2301, %v5994, 0
        %v6024 = vsel %vm2301, %v5995, 0
        %v6027 = vsel %vm2301, %v5996, 0
        %v6030 = vsel %vm2301, %v5997, 0
        %v6033 = vsel %vm2301, %v5998, 0
        %6035 = vmatpush.bf16.msra.mxu0 0
        %6036 = vmatpush.bf16.msra.mxu0 0
        %6037 = vmatpush.bf16.msra.mxu0 0
        %6038 = vmatpush.bf16.msra.mxu0 0
        %6039 = vmatpush.bf16.msra.mxu0 0
        %6040 = vmatpush.bf16.msra.mxu0 0
        %6041 = vmatpush.bf16.msra.mxu0 %v6008
        %6042 = vmatpush.bf16.msra.mxu0 %v6007
        %6043 = vmatmul.bf16.gmra.mxu0 %v6012
        %v6044 = vpop.f32.mrf.mxu0
        %v6045 = vadd.f32 0.0, %v6044
        %v6046 = vpop.f32.mrf.mxu0
        %v6047 = vadd.f32 0.0, %v6046
        %6048 = vmatmul.bf16.gmra.mxu0 %v6015
        %v6049 = vpop.f32.mrf.mxu0
        %v6050 = vadd.f32 0.0, %v6049
        %v6051 = vpop.f32.mrf.mxu0
        %v6052 = vadd.f32 0.0, %v6051
        %6053 = vmatmul.bf16.gmra.mxu0 %v6018
        %v6054 = vpop.f32.mrf.mxu0
        %v6055 = vadd.f32 0.0, %v6054
        %v6056 = vpop.f32.mrf.mxu0
        %v6057 = vadd.f32 0.0, %v6056
        %6058 = vmatmul.bf16.gmra.mxu0 %v6021
        %v6059 = vpop.f32.mrf.mxu0
        %v6060 = vadd.f32 0.0, %v6059
        %v6061 = vpop.f32.mrf.mxu0
        %v6062 = vadd.f32 0.0, %v6061
        %6063 = vmatmul.bf16.gmra.mxu0 %v6024
        %v6064 = vpop.f32.mrf.mxu0
        %v6065 = vadd.f32 0.0, %v6064
        %v6066 = vpop.f32.mrf.mxu0
        %v6067 = vadd.f32 0.0, %v6066
        %6068 = vmatmul.bf16.gmra.mxu0 %v6027
        %v6069 = vpop.f32.mrf.mxu0
        %v6070 = vadd.f32 0.0, %v6069
        %v6071 = vpop.f32.mrf.mxu0
        %v6072 = vadd.f32 0.0, %v6071
        %6073 = vmatmul.bf16.gmra.mxu0 %v6030
        %v6074 = vpop.f32.mrf.mxu0
        %v6075 = vadd.f32 0.0, %v6074
        %v6076 = vpop.f32.mrf.mxu0
        %v6077 = vadd.f32 0.0, %v6076
        %6078 = vmatmul.bf16.gmra.mxu0 %v6033
        %v6079 = vpop.f32.mrf.mxu0
        %v6080 = vadd.f32 0.0, %v6079
        %v6081 = vpop.f32.mrf.mxu0
        %v6082 = vadd.f32 0.0, %v6081
        %6083 = vdwg.mxu0
        %v6084 = vadd.f32 %v5670, %v5795
        %v6085 = vadd.f32 %v6084, %v5920
        %v6086 = vadd.f32 %v6085, %v6045
        %v6087 = vadd.f32 %v5672, %v5797
        %v6088 = vadd.f32 %v6087, %v5922
        %v6089 = vadd.f32 %v6088, %v6047
        %v6090 = vadd.f32 %v5675, %v5800
        %v6091 = vadd.f32 %v6090, %v5925
        %v6092 = vadd.f32 %v6091, %v6050
        %v6093 = vadd.f32 %v5677, %v5802
        %v6094 = vadd.f32 %v6093, %v5927
        %v6095 = vadd.f32 %v6094, %v6052
        %v6096 = vadd.f32 %v5680, %v5805
        %v6097 = vadd.f32 %v6096, %v5930
        %v6098 = vadd.f32 %v6097, %v6055
        %v6099 = vadd.f32 %v5682, %v5807
        %v6100 = vadd.f32 %v6099, %v5932
        %v6101 = vadd.f32 %v6100, %v6057
        %v6102 = vadd.f32 %v5685, %v5810
        %v6103 = vadd.f32 %v6102, %v5935
        %v6104 = vadd.f32 %v6103, %v6060
        %v6105 = vadd.f32 %v5687, %v5812
        %v6106 = vadd.f32 %v6105, %v5937
        %v6107 = vadd.f32 %v6106, %v6062
        %v6108 = vadd.f32 %v5690, %v5815
        %v6109 = vadd.f32 %v6108, %v5940
        %v6110 = vadd.f32 %v6109, %v6065
        %v6111 = vadd.f32 %v5692, %v5817
        %v6112 = vadd.f32 %v6111, %v5942
        %v6113 = vadd.f32 %v6112, %v6067
        %v6114 = vadd.f32 %v5695, %v5820
        %v6115 = vadd.f32 %v6114, %v5945
        %v6116 = vadd.f32 %v6115, %v6070
        %v6117 = vadd.f32 %v5697, %v5822
        %v6118 = vadd.f32 %v6117, %v5947
        %v6119 = vadd.f32 %v6118, %v6072
        %v6120 = vadd.f32 %v5700, %v5825
        %v6121 = vadd.f32 %v6120, %v5950
        %v6122 = vadd.f32 %v6121, %v6075
        %v6123 = vadd.f32 %v5702, %v5827
        %v6124 = vadd.f32 %v6123, %v5952
        %v6125 = vadd.f32 %v6124, %v6077
        %v6126 = vadd.f32 %v5705, %v5830
        %v6127 = vadd.f32 %v6126, %v5955
        %v6128 = vadd.f32 %v6127, %v6080
        %v6129 = vadd.f32 %v5707, %v5832
        %v6130 = vadd.f32 %v6129, %v5957
        %v6131 = vadd.f32 %v6130, %v6082
        %v6132 = vld [vmem:[%s775] sm:$0x1]
        %v6134 = vperm.slane %v6132, 0
        %v6136 = vadd.f32 %v6086, %v6134
        %v6137 = vadd.f32 %v6089, %v6134
        %v6138 = vadd.f32 %v6092, %v6134
        %v6139 = vadd.f32 %v6095, %v6134
        %v6140 = vadd.f32 %v6098, %v6134
        %v6141 = vadd.f32 %v6101, %v6134
        %v6142 = vadd.f32 %v6104, %v6134
        %v6143 = vadd.f32 %v6107, %v6134
        %v6144 = vadd.f32 %v6110, %v6134
        %v6145 = vadd.f32 %v6113, %v6134
        %v6146 = vadd.f32 %v6116, %v6134
        %v6147 = vadd.f32 %v6119, %v6134
        %v6148 = vadd.f32 %v6122, %v6134
        %v6149 = vadd.f32 %v6125, %v6134
        %v6150 = vadd.f32 %v6128, %v6134
        %v6151 = vadd.f32 %v6131, %v6134
        %v6152 = vadd.f32 %v1226, %v6136
        %v6153 = vadd.f32 %v1227, %v6137
        %v6154 = vadd.f32 %v1228, %v6138
        %v6155 = vadd.f32 %v1229, %v6139
        %v6156 = vadd.f32 %v1230, %v6140
        %v6157 = vadd.f32 %v1231, %v6141
        %v6158 = vadd.f32 %v1232, %v6142
        %v6159 = vadd.f32 %v1233, %v6143
        %v6160 = vadd.f32 %v1234, %v6144
        %v6161 = vadd.f32 %v1235, %v6145
        %v6162 = vadd.f32 %v1236, %v6146
        %v6163 = vadd.f32 %v1237, %v6147
        %v6164 = vadd.f32 %v1238, %v6148
        %v6165 = vadd.f32 %v1239, %v6149
        %v6166 = vadd.f32 %v1240, %v6150
        %v6167 = vadd.f32 %v1241, %v6151
        %v6168 = vld [vmem:[%s778] sm:$0x1]
        %v6169 = vld [vmem:[%s781] sm:$0x1]
        %6170 = vadd.xlane.f32.xlu0 %v6152
        %v6171 = vpop.xlane.xlu0 %6170
        %6172 = vadd.xlane.f32.xlu0 %v6153
        %v6173 = vpop.xlane.xlu0 %6172
        %6174 = vadd.xlane.f32.xlu0 %v6154
        %v6175 = vpop.xlane.xlu0 %6174
        %6176 = vadd.xlane.f32.xlu0 %v6155
        %v6177 = vpop.xlane.xlu0 %6176
        %6178 = vadd.xlane.f32.xlu0 %v6156
        %v6179 = vpop.xlane.xlu0 %6178
        %6180 = vadd.xlane.f32.xlu0 %v6157
        %v6181 = vpop.xlane.xlu0 %6180
        %6182 = vadd.xlane.f32.xlu0 %v6158
        %v6183 = vpop.xlane.xlu0 %6182
        %6184 = vadd.xlane.f32.xlu0 %v6159
        %v6185 = vpop.xlane.xlu0 %6184
        %6186 = vadd.xlane.f32.xlu0 %v6160
        %v6187 = vpop.xlane.xlu0 %6186
        %6188 = vadd.xlane.f32.xlu0 %v6161
        %v6189 = vpop.xlane.xlu0 %6188
        %6190 = vadd.xlane.f32.xlu0 %v6162
        %v6191 = vpop.xlane.xlu0 %6190
        %6192 = vadd.xlane.f32.xlu0 %v6163
        %v6193 = vpop.xlane.xlu0 %6192
        %6194 = vadd.xlane.f32.xlu0 %v6164
        %v6195 = vpop.xlane.xlu0 %6194
        %6196 = vadd.xlane.f32.xlu0 %v6165
        %v6197 = vpop.xlane.xlu0 %6196
        %6198 = vadd.xlane.f32.xlu0 %v6166
        %v6199 = vpop.xlane.xlu0 %6198
        %6200 = vadd.xlane.f32.xlu0 %v6167
        %v6201 = vpop.xlane.xlu0 %6200
        %v6202 = vrcp.pop 128.0
        %v6203 = vmul.f32 128.0, %v6202
        %v6204 = vsub.f32 1.0, %v6203
        %v6205 = vmul.f32 %v6202, %v6204
        %v6206 = vadd.f32 %v6202, %v6205
        %vm6207 = vweird.f32 %v6202
        %v6208 = vsel %vm6207, %v6202, %v6206
        %v6209 = vmul.f32 %v6171, %v6208
        %v6210 = vmul.f32 %v6173, %v6208
        %v6211 = vmul.f32 %v6175, %v6208
        %v6212 = vmul.f32 %v6177, %v6208
        %v6213 = vmul.f32 %v6179, %v6208
        %v6214 = vmul.f32 %v6181, %v6208
        %v6215 = vmul.f32 %v6183, %v6208
        %v6216 = vmul.f32 %v6185, %v6208
        %v6217 = vmul.f32 %v6187, %v6208
        %v6218 = vmul.f32 %v6189, %v6208
        %v6219 = vmul.f32 %v6191, %v6208
        %v6220 = vmul.f32 %v6193, %v6208
        %v6221 = vmul.f32 %v6195, %v6208
        %v6222 = vmul.f32 %v6197, %v6208
        %v6223 = vmul.f32 %v6199, %v6208
        %v6224 = vmul.f32 %v6201, %v6208
        %v6225 = vsub.f32 %v6152, %v6209
        %v6226 = vsub.f32 %v6153, %v6210
        %v6227 = vsub.f32 %v6154, %v6211
        %v6228 = vsub.f32 %v6155, %v6212
        %v6229 = vsub.f32 %v6156, %v6213
        %v6230 = vsub.f32 %v6157, %v6214
        %v6231 = vsub.f32 %v6158, %v6215
        %v6232 = vsub.f32 %v6159, %v6216
        %v6233 = vsub.f32 %v6160, %v6217
        %v6234 = vsub.f32 %v6161, %v6218
        %v6235 = vsub.f32 %v6162, %v6219
        %v6236 = vsub.f32 %v6163, %v6220
        %v6237 = vsub.f32 %v6164, %v6221
        %v6238 = vsub.f32 %v6165, %v6222
        %v6239 = vsub.f32 %v6166, %v6223
        %v6240 = vsub.f32 %v6167, %v6224
        %v6241 = vmul.f32 %v6225, %v6225
        %v6242 = vmul.f32 %v6226, %v6226
        %v6243 = vmul.f32 %v6227, %v6227
        %v6244 = vmul.f32 %v6228, %v6228
        %v6245 = vmul.f32 %v6229, %v6229
        %v6246 = vmul.f32 %v6230, %v6230
        %v6247 = vmul.f32 %v6231, %v6231
        %v6248 = vmul.f32 %v6232, %v6232
        %v6249 = vmul.f32 %v6233, %v6233
        %v6250 = vmul.f32 %v6234, %v6234
        %v6251 = vmul.f32 %v6235, %v6235
        %v6252 = vmul.f32 %v6236, %v6236
        %v6253 = vmul.f32 %v6237, %v6237
        %v6254 = vmul.f32 %v6238, %v6238
        %v6255 = vmul.f32 %v6239, %v6239
        %v6256 = vmul.f32 %v6240, %v6240
        %6257 = vadd.xlane.f32.xlu0 %v6241
        %v6258 = vpop.xlane.xlu0 %6257
        %6259 = vadd.xlane.f32.xlu0 %v6242
        %v6260 = vpop.xlane.xlu0 %6259
        %6261 = vadd.xlane.f32.xlu0 %v6243
        %v6262 = vpop.xlane.xlu0 %6261
        %6263 = vadd.xlane.f32.xlu0 %v6244
        %v6264 = vpop.xlane.xlu0 %6263
        %6265 = vadd.xlane.f32.xlu0 %v6245
        %v6266 = vpop.xlane.xlu0 %6265
        %6267 = vadd.xlane.f32.xlu0 %v6246
        %v6268 = vpop.xlane.xlu0 %6267
        %6269 = vadd.xlane.f32.xlu0 %v6247
        %v6270 = vpop.xlane.xlu0 %6269
        %6271 = vadd.xlane.f32.xlu0 %v6248
        %v6272 = vpop.xlane.xlu0 %6271
        %6273 = vadd.xlane.f32.xlu0 %v6249
        %v6274 = vpop.xlane.xlu0 %6273
        %6275 = vadd.xlane.f32.xlu0 %v6250
        %v6276 = vpop.xlane.xlu0 %6275
        %6277 = vadd.xlane.f32.xlu0 %v6251
        %v6278 = vpop.xlane.xlu0 %6277
        %6279 = vadd.xlane.f32.xlu0 %v6252
        %v6280 = vpop.xlane.xlu0 %6279
        %6281 = vadd.xlane.f32.xlu0 %v6253
        %v6282 = vpop.xlane.xlu0 %6281
        %6283 = vadd.xlane.f32.xlu0 %v6254
        %v6284 = vpop.xlane.xlu0 %6283
        %6285 = vadd.xlane.f32.xlu0 %v6255
        %v6286 = vpop.xlane.xlu0 %6285
        %6287 = vadd.xlane.f32.xlu0 %v6256
        %v6288 = vpop.xlane.xlu0 %6287
        %v6289 = vmul.f32 %v6258, %v6208
        %v6290 = vmul.f32 %v6260, %v6208
        %v6291 = vmul.f32 %v6262, %v6208
        %v6292 = vmul.f32 %v6264, %v6208
        %v6293 = vmul.f32 %v6266, %v6208
        %v6294 = vmul.f32 %v6268, %v6208
        %v6295 = vmul.f32 %v6270, %v6208
        %v6296 = vmul.f32 %v6272, %v6208
        %v6297 = vmul.f32 %v6274, %v6208
        %v6298 = vmul.f32 %v6276, %v6208
        %v6299 = vmul.f32 %v6278, %v6208
        %v6300 = vmul.f32 %v6280, %v6208
        %v6301 = vmul.f32 %v6282, %v6208
        %v6302 = vmul.f32 %v6284, %v6208
        %v6303 = vmul.f32 %v6286, %v6208
        %v6304 = vmul.f32 %v6288, %v6208
        %v6305 = vadd.f32 %v6289, 1e-12
        %v6306 = vadd.f32 %v6290, 1e-12
        %v6307 = vadd.f32 %v6291, 1e-12
        %v6308 = vadd.f32 %v6292, 1e-12
        %v6309 = vadd.f32 %v6293, 1e-12
        %v6310 = vadd.f32 %v6294, 1e-12
        %v6311 = vadd.f32 %v6295, 1e-12
        %v6312 = vadd.f32 %v6296, 1e-12
        %v6313 = vadd.f32 %v6297, 1e-12
        %v6314 = vadd.f32 %v6298, 1e-12
        %v6315 = vadd.f32 %v6299, 1e-12
        %v6316 = vadd.f32 %v6300, 1e-12
        %v6317 = vadd.f32 %v6301, 1e-12
        %v6318 = vadd.f32 %v6302, 1e-12
        %v6319 = vadd.f32 %v6303, 1e-12
        %v6320 = vadd.f32 %v6304, 1e-12
        %v6321 = vrsqrt.pop %v6305
        %v6322 = vmul.f32 %v6321, %v6305
        %v6323 = vmul.f32 %v6322, %v6321
        %v6324 = vmul.f32 0.5, %v6323
        %v6325 = vsub.f32 1.5, %v6324
        %v6326 = vmul.f32 %v6321, %v6325
        %vm6327 = vweird.f32 %v6305
        %vm6328 = vweird.f32 %v6321
        %vm6329 = vmor %vm6327, %vm6328
        %v6330 = vsel %vm6329, %v6321, %v6326
        %v6331 = vrsqrt.pop %v6306
        %v6332 = vmul.f32 %v6331, %v6306
        %v6333 = vmul.f32 %v6332, %v6331
        %v6334 = vmul.f32 0.5, %v6333
        %v6335 = vsub.f32 1.5, %v6334
        %v6336 = vmul.f32 %v6331, %v6335
        %vm6337 = vweird.f32 %v6306
        %vm6338 = vweird.f32 %v6331
        %vm6339 = vmor %vm6337, %vm6338
        %v6340 = vsel %vm6339, %v6331, %v6336
        %v6341 = vrsqrt.pop %v6307
        %v6342 = vmul.f32 %v6341, %v6307
        %v6343 = vmul.f32 %v6342, %v6341
        %v6344 = vmul.f32 0.5, %v6343
        %v6345 = vsub.f32 1.5, %v6344
        %v6346 = vmul.f32 %v6341, %v6345
        %vm6347 = vweird.f32 %v6307
        %vm6348 = vweird.f32 %v6341
        %vm6349 = vmor %vm6347, %vm6348
        %v6350 = vsel %vm6349, %v6341, %v6346
        %v6351 = vrsqrt.pop %v6308
        %v6352 = vmul.f32 %v6351, %v6308
        %v6353 = vmul.f32 %v6352, %v6351
        %v6354 = vmul.f32 0.5, %v6353
        %v6355 = vsub.f32 1.5, %v6354
        %v6356 = vmul.f32 %v6351, %v6355
        %vm6357 = vweird.f32 %v6308
        %vm6358 = vweird.f32 %v6351
        %vm6359 = vmor %vm6357, %vm6358
        %v6360 = vsel %vm6359, %v6351, %v6356
        %v6361 = vrsqrt.pop %v6309
        %v6362 = vmul.f32 %v6361, %v6309
        %v6363 = vmul.f32 %v6362, %v6361
        %v6364 = vmul.f32 0.5, %v6363
        %v6365 = vsub.f32 1.5, %v6364
        %v6366 = vmul.f32 %v6361, %v6365
        %vm6367 = vweird.f32 %v6309
        %vm6368 = vweird.f32 %v6361
        %vm6369 = vmor %vm6367, %vm6368
        %v6370 = vsel %vm6369, %v6361, %v6366
        %v6371 = vrsqrt.pop %v6310
        %v6372 = vmul.f32 %v6371, %v6310
        %v6373 = vmul.f32 %v6372, %v6371
        %v6374 = vmul.f32 0.5, %v6373
        %v6375 = vsub.f32 1.5, %v6374
        %v6376 = vmul.f32 %v6371, %v6375
        %vm6377 = vweird.f32 %v6310
        %vm6378 = vweird.f32 %v6371
        %vm6379 = vmor %vm6377, %vm6378
        %v6380 = vsel %vm6379, %v6371, %v6376
        %v6381 = vrsqrt.pop %v6311
        %v6382 = vmul.f32 %v6381, %v6311
        %v6383 = vmul.f32 %v6382, %v6381
        %v6384 = vmul.f32 0.5, %v6383
        %v6385 = vsub.f32 1.5, %v6384
        %v6386 = vmul.f32 %v6381, %v6385
        %vm6387 = vweird.f32 %v6311
        %vm6388 = vweird.f32 %v6381
        %vm6389 = vmor %vm6387, %vm6388
        %v6390 = vsel %vm6389, %v6381, %v6386
        %v6391 = vrsqrt.pop %v6312
        %v6392 = vmul.f32 %v6391, %v6312
        %v6393 = vmul.f32 %v6392, %v6391
        %v6394 = vmul.f32 0.5, %v6393
        %v6395 = vsub.f32 1.5, %v6394
        %v6396 = vmul.f32 %v6391, %v6395
        %vm6397 = vweird.f32 %v6312
        %vm6398 = vweird.f32 %v6391
        %vm6399 = vmor %vm6397, %vm6398
        %v6400 = vsel %vm6399, %v6391, %v6396
        %v6401 = vrsqrt.pop %v6313
        %v6402 = vmul.f32 %v6401, %v6313
        %v6403 = vmul.f32 %v6402, %v6401
        %v6404 = vmul.f32 0.5, %v6403
        %v6405 = vsub.f32 1.5, %v6404
        %v6406 = vmul.f32 %v6401, %v6405
        %vm6407 = vweird.f32 %v6313
        %vm6408 = vweird.f32 %v6401
        %vm6409 = vmor %vm6407, %vm6408
        %v6410 = vsel %vm6409, %v6401, %v6406
        %v6411 = vrsqrt.pop %v6314
        %v6412 = vmul.f32 %v6411, %v6314
        %v6413 = vmul.f32 %v6412, %v6411
        %v6414 = vmul.f32 0.5, %v6413
        %v6415 = vsub.f32 1.5, %v6414
        %v6416 = vmul.f32 %v6411, %v6415
        %vm6417 = vweird.f32 %v6314
        %vm6418 = vweird.f32 %v6411
        %vm6419 = vmor %vm6417, %vm6418
        %v6420 = vsel %vm6419, %v6411, %v6416
        %v6421 = vrsqrt.pop %v6315
        %v6422 = vmul.f32 %v6421, %v6315
        %v6423 = vmul.f32 %v6422, %v6421
        %v6424 = vmul.f32 0.5, %v6423
        %v6425 = vsub.f32 1.5, %v6424
        %v6426 = vmul.f32 %v6421, %v6425
        %vm6427 = vweird.f32 %v6315
        %vm6428 = vweird.f32 %v6421
        %vm6429 = vmor %vm6427, %vm6428
        %v6430 = vsel %vm6429, %v6421, %v6426
        %v6431 = vrsqrt.pop %v6316
        %v6432 = vmul.f32 %v6431, %v6316
        %v6433 = vmul.f32 %v6432, %v6431
        %v6434 = vmul.f32 0.5, %v6433
        %v6435 = vsub.f32 1.5, %v6434
        %v6436 = vmul.f32 %v6431, %v6435
        %vm6437 = vweird.f32 %v6316
        %vm6438 = vweird.f32 %v6431
        %vm6439 = vmor %vm6437, %vm6438
        %v6440 = vsel %vm6439, %v6431, %v6436
        %v6441 = vrsqrt.pop %v6317
        %v6442 = vmul.f32 %v6441, %v6317
        %v6443 = vmul.f32 %v6442, %v6441
        %v6444 = vmul.f32 0.5, %v6443
        %v6445 = vsub.f32 1.5, %v6444
        %v6446 = vmul.f32 %v6441, %v6445
        %vm6447 = vweird.f32 %v6317
        %vm6448 = vweird.f32 %v6441
        %vm6449 = vmor %vm6447, %vm6448
        %v6450 = vsel %vm6449, %v6441, %v6446
        %v6451 = vrsqrt.pop %v6318
        %v6452 = vmul.f32 %v6451, %v6318
        %v6453 = vmul.f32 %v6452, %v6451
        %v6454 = vmul.f32 0.5, %v6453
        %v6455 = vsub.f32 1.5, %v6454
        %v6456 = vmul.f32 %v6451, %v6455
        %vm6457 = vweird.f32 %v6318
        %vm6458 = vweird.f32 %v6451
        %vm6459 = vmor %vm6457, %vm6458
        %v6460 = vsel %vm6459, %v6451, %v6456
        %v6461 = vrsqrt.pop %v6319
        %v6462 = vmul.f32 %v6461, %v6319
        %v6463 = vmul.f32 %v6462, %v6461
        %v6464 = vmul.f32 0.5, %v6463
        %v6465 = vsub.f32 1.5, %v6464
        %v6466 = vmul.f32 %v6461, %v6465
        %vm6467 = vweird.f32 %v6319
        %vm6468 = vweird.f32 %v6461
        %vm6469 = vmor %vm6467, %vm6468
        %v6470 = vsel %vm6469, %v6461, %v6466
        %v6471 = vrsqrt.pop %v6320
        %v6472 = vmul.f32 %v6471, %v6320
        %v6473 = vmul.f32 %v6472, %v6471
        %v6474 = vmul.f32 0.5, %v6473
        %v6475 = vsub.f32 1.5, %v6474
        %v6476 = vmul.f32 %v6471, %v6475
        %vm6477 = vweird.f32 %v6320
        %vm6478 = vweird.f32 %v6471
        %vm6479 = vmor %vm6477, %vm6478
        %v6480 = vsel %vm6479, %v6471, %v6476
        %v6481 = vmul.f32 %v6225, %v6330
        %v6482 = vmul.f32 %v6226, %v6340
        %v6483 = vmul.f32 %v6227, %v6350
        %v6484 = vmul.f32 %v6228, %v6360
        %v6485 = vmul.f32 %v6229, %v6370
        %v6486 = vmul.f32 %v6230, %v6380
        %v6487 = vmul.f32 %v6231, %v6390
        %v6488 = vmul.f32 %v6232, %v6400
        %v6489 = vmul.f32 %v6233, %v6410
        %v6490 = vmul.f32 %v6234, %v6420
        %v6491 = vmul.f32 %v6235, %v6430
        %v6492 = vmul.f32 %v6236, %v6440
        %v6493 = vmul.f32 %v6237, %v6450
        %v6494 = vmul.f32 %v6238, %v6460
        %v6495 = vmul.f32 %v6239, %v6470
        %v6496 = vmul.f32 %v6240, %v6480
        %v6498 = vperm.slane %v6168, 0
        %v6500 = vmul.f32 %v6481, %v6498
        %v6501 = vmul.f32 %v6482, %v6498
        %v6502 = vmul.f32 %v6483, %v6498
        %v6503 = vmul.f32 %v6484, %v6498
        %v6504 = vmul.f32 %v6485, %v6498
        %v6505 = vmul.f32 %v6486, %v6498
        %v6506 = vmul.f32 %v6487, %v6498
        %v6507 = vmul.f32 %v6488, %v6498
        %v6508 = vmul.f32 %v6489, %v6498
        %v6509 = vmul.f32 %v6490, %v6498
        %v6510 = vmul.f32 %v6491, %v6498
        %v6511 = vmul.f32 %v6492, %v6498
        %v6512 = vmul.f32 %v6493, %v6498
        %v6513 = vmul.f32 %v6494, %v6498
        %v6514 = vmul.f32 %v6495, %v6498
        %v6515 = vmul.f32 %v6496, %v6498
        %v6517 = vperm.slane %v6169, 0
        %v6519 = vadd.f32 %v6500, %v6517
        %v6520 = vadd.f32 %v6501, %v6517
        %v6521 = vadd.f32 %v6502, %v6517
        %v6522 = vadd.f32 %v6503, %v6517
        %v6523 = vadd.f32 %v6504, %v6517
        %v6524 = vadd.f32 %v6505, %v6517
        %v6525 = vadd.f32 %v6506, %v6517
        %v6526 = vadd.f32 %v6507, %v6517
        %v6527 = vadd.f32 %v6508, %v6517
        %v6528 = vadd.f32 %v6509, %v6517
        %v6529 = vadd.f32 %v6510, %v6517
        %v6530 = vadd.f32 %v6511, %v6517
        %v6531 = vadd.f32 %v6512, %v6517
        %v6532 = vadd.f32 %v6513, %v6517
        %v6533 = vadd.f32 %v6514, %v6517
        %v6534 = vadd.f32 %v6515, %v6517
        %v6535 = vpack.c.bf16 %v6520, %v6519
        %v6536 = vpack.c.bf16 %v6522, %v6521
        %v6537 = vpack.c.bf16 %v6524, %v6523
        %v6538 = vpack.c.bf16 %v6526, %v6525
        %v6539 = vpack.c.bf16 %v6528, %v6527
        %v6540 = vpack.c.bf16 %v6530, %v6529
        %v6541 = vpack.c.bf16 %v6532, %v6531
        %v6542 = vpack.c.bf16 %v6534, %v6533
        %v6543 = vld [vmem:[%s786] sm:$0xff]
        %v6544 = vld [vmem:[%s786 + $0x8] sm:$0xff]
        %v6545 = vld [vmem:[%s786 + $0x10] sm:$0xff]
        %v6546 = vld [vmem:[%s786 + $0x18] sm:$0xff]
        %v6547 = vld [vmem:[%s786 + $0x20] sm:$0xff]
        %v6548 = vld [vmem:[%s786 + $0x28] sm:$0xff]
        %v6549 = vld [vmem:[%s786 + $0x30] sm:$0xff]
        %v6550 = vld [vmem:[%s786 + $0x38] sm:$0xff]
        %v6551 = vld [vmem:[%s786 + $0x40] sm:$0xff]
        %v6552 = vld [vmem:[%s786 + $0x48] sm:$0xff]
        %v6553 = vld [vmem:[%s786 + $0x50] sm:$0xff]
        %v6554 = vld [vmem:[%s786 + $0x58] sm:$0xff]
        %v6555 = vld [vmem:[%s786 + $0x60] sm:$0xff]
        %v6556 = vld [vmem:[%s786 + $0x68] sm:$0xff]
        %v6557 = vld [vmem:[%s786 + $0x70] sm:$0xff]
        %v6558 = vld [vmem:[%s786 + $0x78] sm:$0xff]
        %v6559 = vld [vmem:[%s790] sm:$0x3]
        %v6561 = vperm.slane %v6559, 0
        %v6562 = vperm.slane %v6559, 1
        %v6581 = vunpack.c.l.b16 %v6543
        %v6582 = vunpack.c.h.b16 %v6543
        %v6583 = vunpack.c.l.b16 %v6544
        %v6584 = vunpack.c.h.b16 %v6544
        %v6585 = vunpack.c.l.b16 %v6545
        %v6586 = vunpack.c.h.b16 %v6545
        %v6587 = vunpack.c.l.b16 %v6546
        %v6588 = vunpack.c.h.b16 %v6546
        %v6589 = vunpack.c.l.b16 %v6547
        %v6590 = vunpack.c.h.b16 %v6547
        %v6591 = vunpack.c.l.b16 %v6548
        %v6592 = vunpack.c.h.b16 %v6548
        %v6593 = vunpack.c.l.b16 %v6549
        %v6594 = vunpack.c.h.b16 %v6549
        %v6595 = vunpack.c.l.b16 %v6550
        %v6596 = vunpack.c.h.b16 %v6550
        %v6597 = vunpack.c.l.b16 %v6551
        %v6598 = vunpack.c.h.b16 %v6551
        %v6599 = vunpack.c.l.b16 %v6552
        %v6600 = vunpack.c.h.b16 %v6552
        %v6601 = vunpack.c.l.b16 %v6553
        %v6602 = vunpack.c.h.b16 %v6553
        %v6603 = vunpack.c.l.b16 %v6554
        %v6604 = vunpack.c.h.b16 %v6554
        %v6605 = vunpack.c.l.b16 %v6555
        %v6606 = vunpack.c.h.b16 %v6555
        %v6607 = vunpack.c.l.b16 %v6556
        %v6608 = vunpack.c.h.b16 %v6556
        %v6609 = vunpack.c.l.b16 %v6557
        %v6610 = vunpack.c.h.b16 %v6557
        %v6611 = vunpack.c.l.b16 %v6558
        %v6612 = vunpack.c.h.b16 %v6558
        %v6613 = vpack.c.b16 %v6583, %v6581
        %v6614 = vpack.c.b16 %v6584, %v6582
        %v6615 = vpack.c.b16 %v6587, %v6585
        %v6616 = vpack.c.b16 %v6588, %v6586
        %v6617 = vpack.c.b16 %v6591, %v6589
        %v6618 = vpack.c.b16 %v6592, %v6590
        %v6619 = vpack.c.b16 %v6595, %v6593
        %v6620 = vpack.c.b16 %v6596, %v6594
        %v6621 = vpack.c.b16 %v6599, %v6597
        %v6622 = vpack.c.b16 %v6600, %v6598
        %v6623 = vpack.c.b16 %v6603, %v6601
        %v6624 = vpack.c.b16 %v6604, %v6602
        %v6625 = vpack.c.b16 %v6607, %v6605
        %v6626 = vpack.c.b16 %v6608, %v6606
        %v6627 = vpack.c.b16 %v6611, %v6609
        %v6628 = vpack.c.b16 %v6612, %v6610
        %6645 = vmatpush.bf16.msra.mxu0 %v6627
        %6646 = vmatpush.bf16.msra.mxu0 %v6625
        %6647 = vmatpush.bf16.msra.mxu0 %v6623
        %6648 = vmatpush.bf16.msra.mxu0 %v6621
        %6649 = vmatpush.bf16.msra.mxu0 %v6619
        %6650 = vmatpush.bf16.msra.mxu0 %v6617
        %6651 = vmatpush.bf16.msra.mxu0 %v6615
        %6652 = vmatpush.bf16.msra.mxu0 %v6613
        %6653 = vmatmul.bf16.gmra.mxu0 %v6535
        %v6654 = vpop.f32.mrf.mxu0
        %v6655 = vadd.f32 %v6561, %v6654
        %v6656 = vpop.f32.mrf.mxu0
        %v6657 = vadd.f32 %v6561, %v6656
        %6658 = vmatmul.bf16.gmra.mxu0 %v6536
        %v6659 = vpop.f32.mrf.mxu0
        %v6660 = vadd.f32 %v6561, %v6659
        %v6661 = vpop.f32.mrf.mxu0
        %v6662 = vadd.f32 %v6561, %v6661
        %6663 = vmatmul.bf16.gmra.mxu0 %v6537
        %v6664 = vpop.f32.mrf.mxu0
        %v6665 = vadd.f32 %v6561, %v6664
        %v6666 = vpop.f32.mrf.mxu0
        %v6667 = vadd.f32 %v6561, %v6666
        %6668 = vmatmul.bf16.gmra.mxu0 %v6538
        %v6669 = vpop.f32.mrf.mxu0
        %v6670 = vadd.f32 %v6561, %v6669
        %v6671 = vpop.f32.mrf.mxu0
        %v6672 = vadd.f32 %v6561, %v6671
        %6673 = vmatmul.bf16.gmra.mxu0 %v6539
        %v6674 = vpop.f32.mrf.mxu0
        %v6675 = vadd.f32 %v6561, %v6674
        %v6676 = vpop.f32.mrf.mxu0
        %v6677 = vadd.f32 %v6561, %v6676
        %6678 = vmatmul.bf16.gmra.mxu0 %v6540
        %v6679 = vpop.f32.mrf.mxu0
        %v6680 = vadd.f32 %v6561, %v6679
        %v6681 = vpop.f32.mrf.mxu0
        %v6682 = vadd.f32 %v6561, %v6681
        %6683 = vmatmul.bf16.gmra.mxu0 %v6541
        %v6684 = vpop.f32.mrf.mxu0
        %v6685 = vadd.f32 %v6561, %v6684
        %v6686 = vpop.f32.mrf.mxu0
        %v6687 = vadd.f32 %v6561, %v6686
        %6688 = vmatmul.bf16.gmra.mxu0 %v6542
        %v6689 = vpop.f32.mrf.mxu0
        %v6690 = vadd.f32 %v6561, %v6689
        %v6691 = vpop.f32.mrf.mxu0
        %v6692 = vadd.f32 %v6561, %v6691
        %6693 = vdwg.mxu0
        %6694 = vmatpush.bf16.msra.mxu0 %v6628
        %6695 = vmatpush.bf16.msra.mxu0 %v6626
        %6696 = vmatpush.bf16.msra.mxu0 %v6624
        %6697 = vmatpush.bf16.msra.mxu0 %v6622
        %6698 = vmatpush.bf16.msra.mxu0 %v6620
        %6699 = vmatpush.bf16.msra.mxu0 %v6618
        %6700 = vmatpush.bf16.msra.mxu0 %v6616
        %6701 = vmatpush.bf16.msra.mxu0 %v6614
        %6702 = vmatmul.bf16.gmra.mxu0 %v6535
        %v6703 = vpop.f32.mrf.mxu0
        %v6704 = vadd.f32 %v6562, %v6703
        %v6705 = vpop.f32.mrf.mxu0
        %v6706 = vadd.f32 %v6562, %v6705
        %6707 = vmatmul.bf16.gmra.mxu0 %v6536
        %v6708 = vpop.f32.mrf.mxu0
        %v6709 = vadd.f32 %v6562, %v6708
        %v6710 = vpop.f32.mrf.mxu0
        %v6711 = vadd.f32 %v6562, %v6710
        %6712 = vmatmul.bf16.gmra.mxu0 %v6537
        %v6713 = vpop.f32.mrf.mxu0
        %v6714 = vadd.f32 %v6562, %v6713
        %v6715 = vpop.f32.mrf.mxu0
        %v6716 = vadd.f32 %v6562, %v6715
        %6717 = vmatmul.bf16.gmra.mxu0 %v6538
        %v6718 = vpop.f32.mrf.mxu0
        %v6719 = vadd.f32 %v6562, %v6718
        %v6720 = vpop.f32.mrf.mxu0
        %v6721 = vadd.f32 %v6562, %v6720
        %6722 = vmatmul.bf16.gmra.mxu0 %v6539
        %v6723 = vpop.f32.mrf.mxu0
        %v6724 = vadd.f32 %v6562, %v6723
        %v6725 = vpop.f32.mrf.mxu0
        %v6726 = vadd.f32 %v6562, %v6725
        %6727 = vmatmul.bf16.gmra.mxu0 %v6540
        %v6728 = vpop.f32.mrf.mxu0
        %v6729 = vadd.f32 %v6562, %v6728
        %v6730 = vpop.f32.mrf.mxu0
        %v6731 = vadd.f32 %v6562, %v6730
        %6732 = vmatmul.bf16.gmra.mxu0 %v6541
        %v6733 = vpop.f32.mrf.mxu0
        %v6734 = vadd.f32 %v6562, %v6733
        %v6735 = vpop.f32.mrf.mxu0
        %v6736 = vadd.f32 %v6562, %v6735
        %6737 = vmatmul.bf16.gmra.mxu0 %v6542
        %v6738 = vpop.f32.mrf.mxu0
        %v6739 = vadd.f32 %v6562, %v6738
        %v6740 = vpop.f32.mrf.mxu0
        %v6741 = vadd.f32 %v6562, %v6740
        %6742 = vdwg.mxu0
        %v6743 = vmul.f32 %v6655, 0.5
        %v6744 = vmul.f32 %v6704, 0.5
        %v6745 = vmul.f32 %v6657, 0.5
        %v6746 = vmul.f32 %v6706, 0.5
        %v6747 = vmul.f32 %v6660, 0.5
        %v6748 = vmul.f32 %v6709, 0.5
        %v6749 = vmul.f32 %v6662, 0.5
        %v6750 = vmul.f32 %v6711, 0.5
        %v6751 = vmul.f32 %v6665, 0.5
        %v6752 = vmul.f32 %v6714, 0.5
        %v6753 = vmul.f32 %v6667, 0.5
        %v6754 = vmul.f32 %v6716, 0.5
        %v6755 = vmul.f32 %v6670, 0.5
        %v6756 = vmul.f32 %v6719, 0.5
        %v6757 = vmul.f32 %v6672, 0.5
        %v6758 = vmul.f32 %v6721, 0.5
        %v6759 = vmul.f32 %v6675, 0.5
        %v6760 = vmul.f32 %v6724, 0.5
        %v6761 = vmul.f32 %v6677, 0.5
        %v6762 = vmul.f32 %v6726, 0.5
        %v6763 = vmul.f32 %v6680, 0.5
        %v6764 = vmul.f32 %v6729, 0.5
        %v6765 = vmul.f32 %v6682, 0.5
        %v6766 = vmul.f32 %v6731, 0.5
        %v6767 = vmul.f32 %v6685, 0.5
        %v6768 = vmul.f32 %v6734, 0.5
        %v6769 = vmul.f32 %v6687, 0.5
        %v6770 = vmul.f32 %v6736, 0.5
        %v6771 = vmul.f32 %v6690, 0.5
        %v6772 = vmul.f32 %v6739, 0.5
        %v6773 = vmul.f32 %v6692, 0.5
        %v6774 = vmul.f32 %v6741, 0.5
        %v6775 = vmul.f32 %v6655, 0.044715
        %v6776 = vmul.f32 %v6704, 0.044715
        %v6777 = vmul.f32 %v6657, 0.044715
        %v6778 = vmul.f32 %v6706, 0.044715
        %v6779 = vmul.f32 %v6660, 0.044715
        %v6780 = vmul.f32 %v6709, 0.044715
        %v6781 = vmul.f32 %v6662, 0.044715
        %v6782 = vmul.f32 %v6711, 0.044715
        %v6783 = vmul.f32 %v6665, 0.044715
        %v6784 = vmul.f32 %v6714, 0.044715
        %v6785 = vmul.f32 %v6667, 0.044715
        %v6786 = vmul.f32 %v6716, 0.044715
        %v6787 = vmul.f32 %v6670, 0.044715
        %v6788 = vmul.f32 %v6719, 0.044715
        %v6789 = vmul.f32 %v6672, 0.044715
        %v6790 = vmul.f32 %v6721, 0.044715
        %v6791 = vmul.f32 %v6675, 0.044715
        %v6792 = vmul.f32 %v6724, 0.044715
        %v6793 = vmul.f32 %v6677, 0.044715
        %v6794 = vmul.f32 %v6726, 0.044715
        %v6795 = vmul.f32 %v6680, 0.044715
        %v6796 = vmul.f32 %v6729, 0.044715
        %v6797 = vmul.f32 %v6682, 0.044715
        %v6798 = vmul.f32 %v6731, 0.044715
        %v6799 = vmul.f32 %v6685, 0.044715
        %v6800 = vmul.f32 %v6734, 0.044715
        %v6801 = vmul.f32 %v6687, 0.044715
        %v6802 = vmul.f32 %v6736, 0.044715
        %v6803 = vmul.f32 %v6690, 0.044715
        %v6804 = vmul.f32 %v6739, 0.044715
        %v6805 = vmul.f32 %v6692, 0.044715
        %v6806 = vmul.f32 %v6741, 0.044715
        %v6807 = vmul.f32 %v6775, %v6655
        %v6808 = vmul.f32 %v6776, %v6704
        %v6809 = vmul.f32 %v6777, %v6657
        %v6810 = vmul.f32 %v6778, %v6706
        %v6811 = vmul.f32 %v6779, %v6660
        %v6812 = vmul.f32 %v6780, %v6709
        %v6813 = vmul.f32 %v6781, %v6662
        %v6814 = vmul.f32 %v6782, %v6711
        %v6815 = vmul.f32 %v6783, %v6665
        %v6816 = vmul.f32 %v6784, %v6714
        %v6817 = vmul.f32 %v6785, %v6667
        %v6818 = vmul.f32 %v6786, %v6716
        %v6819 = vmul.f32 %v6787, %v6670
        %v6820 = vmul.f32 %v6788, %v6719
        %v6821 = vmul.f32 %v6789, %v6672
        %v6822 = vmul.f32 %v6790, %v6721
        %v6823 = vmul.f32 %v6791, %v6675
        %v6824 = vmul.f32 %v6792, %v6724
        %v6825 = vmul.f32 %v6793, %v6677
        %v6826 = vmul.f32 %v6794, %v6726
        %v6827 = vmul.f32 %v6795, %v6680
        %v6828 = vmul.f32 %v6796, %v6729
        %v6829 = vmul.f32 %v6797, %v6682
        %v6830 = vmul.f32 %v6798, %v6731
        %v6831 = vmul.f32 %v6799, %v6685
        %v6832 = vmul.f32 %v6800, %v6734
        %v6833 = vmul.f32 %v6801, %v6687
        %v6834 = vmul.f32 %v6802, %v6736
        %v6835 = vmul.f32 %v6803, %v6690
        %v6836 = vmul.f32 %v6804, %v6739
        %v6837 = vmul.f32 %v6805, %v6692
        %v6838 = vmul.f32 %v6806, %v6741
        %v6839 = vmul.f32 %v6807, %v6655
        %v6840 = vmul.f32 %v6808, %v6704
        %v6841 = vmul.f32 %v6809, %v6657
        %v6842 = vmul.f32 %v6810, %v6706
        %v6843 = vmul.f32 %v6811, %v6660
        %v6844 = vmul.f32 %v6812, %v6709
        %v6845 = vmul.f32 %v6813, %v6662
        %v6846 = vmul.f32 %v6814, %v6711
        %v6847 = vmul.f32 %v6815, %v6665
        %v6848 = vmul.f32 %v6816, %v6714
        %v6849 = vmul.f32 %v6817, %v6667
        %v6850 = vmul.f32 %v6818, %v6716
        %v6851 = vmul.f32 %v6819, %v6670
        %v6852 = vmul.f32 %v6820, %v6719
        %v6853 = vmul.f32 %v6821, %v6672
        %v6854 = vmul.f32 %v6822, %v6721
        %v6855 = vmul.f32 %v6823, %v6675
        %v6856 = vmul.f32 %v6824, %v6724
        %v6857 = vmul.f32 %v6825, %v6677
        %v6858 = vmul.f32 %v6826, %v6726
        %v6859 = vmul.f32 %v6827, %v6680
        %v6860 = vmul.f32 %v6828, %v6729
        %v6861 = vmul.f32 %v6829, %v6682
        %v6862 = vmul.f32 %v6830, %v6731
        %v6863 = vmul.f32 %v6831, %v6685
        %v6864 = vmul.f32 %v6832, %v6734
        %v6865 = vmul.f32 %v6833, %v6687
        %v6866 = vmul.f32 %v6834, %v6736
        %v6867 = vmul.f32 %v6835, %v6690
        %v6868 = vmul.f32 %v6836, %v6739
        %v6869 = vmul.f32 %v6837, %v6692
        %v6870 = vmul.f32 %v6838, %v6741
        %v6871 = vadd.f32 %v6655, %v6839
        %v6872 = vadd.f32 %v6704, %v6840
        %v6873 = vadd.f32 %v6657, %v6841
        %v6874 = vadd.f32 %v6706, %v6842
        %v6875 = vadd.f32 %v6660, %v6843
        %v6876 = vadd.f32 %v6709, %v6844
        %v6877 = vadd.f32 %v6662, %v6845
        %v6878 = vadd.f32 %v6711, %v6846
        %v6879 = vadd.f32 %v6665, %v6847
        %v6880 = vadd.f32 %v6714, %v6848
        %v6881 = vadd.f32 %v6667, %v6849
        %v6882 = vadd.f32 %v6716, %v6850
        %v6883 = vadd.f32 %v6670, %v6851
        %v6884 = vadd.f32 %v6719, %v6852
        %v6885 = vadd.f32 %v6672, %v6853
        %v6886 = vadd.f32 %v6721, %v6854
        %v6887 = vadd.f32 %v6675, %v6855
        %v6888 = vadd.f32 %v6724, %v6856
        %v6889 = vadd.f32 %v6677, %v6857
        %v6890 = vadd.f32 %v6726, %v6858
        %v6891 = vadd.f32 %v6680, %v6859
        %v6892 = vadd.f32 %v6729, %v6860
        %v6893 = vadd.f32 %v6682, %v6861
        %v6894 = vadd.f32 %v6731, %v6862
        %v6895 = vadd.f32 %v6685, %v6863
        %v6896 = vadd.f32 %v6734, %v6864
        %v6897 = vadd.f32 %v6687, %v6865
        %v6898 = vadd.f32 %v6736, %v6866
        %v6899 = vadd.f32 %v6690, %v6867
        %v6900 = vadd.f32 %v6739, %v6868
        %v6901 = vadd.f32 %v6692, %v6869
        %v6902 = vadd.f32 %v6741, %v6870
        %v6903 = vmul.f32 %v6871, 0.7978846
        %v6904 = vmul.f32 %v6872, 0.7978846
        %v6905 = vmul.f32 %v6873, 0.7978846
        %v6906 = vmul.f32 %v6874, 0.7978846
        %v6907 = vmul.f32 %v6875, 0.7978846
        %v6908 = vmul.f32 %v6876, 0.7978846
        %v6909 = vmul.f32 %v6877, 0.7978846
        %v6910 = vmul.f32 %v6878, 0.7978846
        %v6911 = vmul.f32 %v6879, 0.7978846
        %v6912 = vmul.f32 %v6880, 0.7978846
        %v6913 = vmul.f32 %v6881, 0.7978846
        %v6914 = vmul.f32 %v6882, 0.7978846
        %v6915 = vmul.f32 %v6883, 0.7978846
        %v6916 = vmul.f32 %v6884, 0.7978846
        %v6917 = vmul.f32 %v6885, 0.7978846
        %v6918 = vmul.f32 %v6886, 0.7978846
        %v6919 = vmul.f32 %v6887, 0.7978846
        %v6920 = vmul.f32 %v6888, 0.7978846
        %v6921 = vmul.f32 %v6889, 0.7978846
        %v6922 = vmul.f32 %v6890, 0.7978846
        %v6923 = vmul.f32 %v6891, 0.7978846
        %v6924 = vmul.f32 %v6892, 0.7978846
        %v6925 = vmul.f32 %v6893, 0.7978846
        %v6926 = vmul.f32 %v6894, 0.7978846
        %v6927 = vmul.f32 %v6895, 0.7978846
        %v6928 = vmul.f32 %v6896, 0.7978846
        %v6929 = vmul.f32 %v6897, 0.7978846
        %v6930 = vmul.f32 %v6898, 0.7978846
        %v6931 = vmul.f32 %v6899, 0.7978846
        %v6932 = vmul.f32 %v6900, 0.7978846
        %v6933 = vmul.f32 %v6901, 0.7978846
        %v6934 = vmul.f32 %v6902, 0.7978846
        %v6935 = vtanh.pop %v6903
        %v6936 = vtanh.pop %v6904
        %v6937 = vtanh.pop %v6905
        %v6938 = vtanh.pop %v6906
        %v6939 = vtanh.pop %v6907
        %v6940 = vtanh.pop %v6908
        %v6941 = vtanh.pop %v6909
        %v6942 = vtanh.pop %v6910
        %v6943 = vtanh.pop %v6911
        %v6944 = vtanh.pop %v6912
        %v6945 = vtanh.pop %v6913
        %v6946 = vtanh.pop %v6914
        %v6947 = vtanh.pop %v6915
        %v6948 = vtanh.pop %v6916
        %v6949 = vtanh.pop %v6917
        %v6950 = vtanh.pop %v6918
        %v6951 = vtanh.pop %v6919
        %v6952 = vtanh.pop %v6920
        %v6953 = vtanh.pop %v6921
        %v6954 = vtanh.pop %v6922
        %v6955 = vtanh.pop %v6923
        %v6956 = vtanh.pop %v6924
        %v6957 = vtanh.pop %v6925
        %v6958 = vtanh.pop %v6926
        %v6959 = vtanh.pop %v6927
        %v6960 = vtanh.pop %v6928
        %v6961 = vtanh.pop %v6929
        %v6962 = vtanh.pop %v6930
        %v6963 = vtanh.pop %v6931
        %v6964 = vtanh.pop %v6932
        %v6965 = vtanh.pop %v6933
        %v6966 = vtanh.pop %v6934
        %v6967 = vadd.f32 %v6935, 1.0
        %v6968 = vadd.f32 %v6936, 1.0
        %v6969 = vadd.f32 %v6937, 1.0
        %v6970 = vadd.f32 %v6938, 1.0
        %v6971 = vadd.f32 %v6939, 1.0
        %v6972 = vadd.f32 %v6940, 1.0
        %v6973 = vadd.f32 %v6941, 1.0
        %v6974 = vadd.f32 %v6942, 1.0
        %v6975 = vadd.f32 %v6943, 1.0
        %v6976 = vadd.f32 %v6944, 1.0
        %v6977 = vadd.f32 %v6945, 1.0
        %v6978 = vadd.f32 %v6946, 1.0
        %v6979 = vadd.f32 %v6947, 1.0
        %v6980 = vadd.f32 %v6948, 1.0
        %v6981 = vadd.f32 %v6949, 1.0
        %v6982 = vadd.f32 %v6950, 1.0
        %v6983 = vadd.f32 %v6951, 1.0
        %v6984 = vadd.f32 %v6952, 1.0
        %v6985 = vadd.f32 %v6953, 1.0
        %v6986 = vadd.f32 %v6954, 1.0
        %v6987 = vadd.f32 %v6955, 1.0
        %v6988 = vadd.f32 %v6956, 1.0
        %v6989 = vadd.f32 %v6957, 1.0
        %v6990 = vadd.f32 %v6958, 1.0
        %v6991 = vadd.f32 %v6959, 1.0
        %v6992 = vadd.f32 %v6960, 1.0
        %v6993 = vadd.f32 %v6961, 1.0
        %v6994 = vadd.f32 %v6962, 1.0
        %v6995 = vadd.f32 %v6963, 1.0
        %v6996 = vadd.f32 %v6964, 1.0
        %v6997 = vadd.f32 %v6965, 1.0
        %v6998 = vadd.f32 %v6966, 1.0
        %v6999 = vmul.f32 %v6743, %v6967
        %v7000 = vmul.f32 %v6744, %v6968
        %v7001 = vmul.f32 %v6745, %v6969
        %v7002 = vmul.f32 %v6746, %v6970
        %v7003 = vmul.f32 %v6747, %v6971
        %v7004 = vmul.f32 %v6748, %v6972
        %v7005 = vmul.f32 %v6749, %v6973
        %v7006 = vmul.f32 %v6750, %v6974
        %v7007 = vmul.f32 %v6751, %v6975
        %v7008 = vmul.f32 %v6752, %v6976
        %v7009 = vmul.f32 %v6753, %v6977
        %v7010 = vmul.f32 %v6754, %v6978
        %v7011 = vmul.f32 %v6755, %v6979
        %v7012 = vmul.f32 %v6756, %v6980
        %v7013 = vmul.f32 %v6757, %v6981
        %v7014 = vmul.f32 %v6758, %v6982
        %v7015 = vmul.f32 %v6759, %v6983
        %v7016 = vmul.f32 %v6760, %v6984
        %v7017 = vmul.f32 %v6761, %v6985
        %v7018 = vmul.f32 %v6762, %v6986
        %v7019 = vmul.f32 %v6763, %v6987
        %v7020 = vmul.f32 %v6764, %v6988
        %v7021 = vmul.f32 %v6765, %v6989
        %v7022 = vmul.f32 %v6766, %v6990
        %v7023 = vmul.f32 %v6767, %v6991
        %v7024 = vmul.f32 %v6768, %v6992
        %v7025 = vmul.f32 %v6769, %v6993
        %v7026 = vmul.f32 %v6770, %v6994
        %v7027 = vmul.f32 %v6771, %v6995
        %v7028 = vmul.f32 %v6772, %v6996
        %v7029 = vmul.f32 %v6773, %v6997
        %v7030 = vmul.f32 %v6774, %v6998
        %v7031 = vpack.c.bf16 %v7001, %v6999
        %v7032 = vpack.c.bf16 %v7002, %v7000
        %v7033 = vpack.c.bf16 %v7005, %v7003
        %v7034 = vpack.c.bf16 %v7006, %v7004
        %v7035 = vpack.c.bf16 %v7009, %v7007
        %v7036 = vpack.c.bf16 %v7010, %v7008
        %v7037 = vpack.c.bf16 %v7013, %v7011
        %v7038 = vpack.c.bf16 %v7014, %v7012
        %v7039 = vpack.c.bf16 %v7017, %v7015
        %v7040 = vpack.c.bf16 %v7018, %v7016
        %v7041 = vpack.c.bf16 %v7021, %v7019
        %v7042 = vpack.c.bf16 %v7022, %v7020
        %v7043 = vpack.c.bf16 %v7025, %v7023
        %v7044 = vpack.c.bf16 %v7026, %v7024
        %v7045 = vpack.c.bf16 %v7029, %v7027
        %v7046 = vpack.c.bf16 %v7030, %v7028
        %v7047 = vld [vmem:[%s795] sm:$0xf]
        %v7048 = vld [vmem:[%s795 + $0x4] sm:$0xf]
        %v7049 = vld [vmem:[%s795 + $0x8] sm:$0xf]
        %v7050 = vld [vmem:[%s795 + $0xc] sm:$0xf]
        %v7051 = vld [vmem:[%s795 + $0x10] sm:$0xf]
        %v7052 = vld [vmem:[%s795 + $0x14] sm:$0xf]
        %v7053 = vld [vmem:[%s795 + $0x18] sm:$0xf]
        %v7054 = vld [vmem:[%s795 + $0x1c] sm:$0xf]
        %v7055 = vld [vmem:[%s795 + $0x20] sm:$0xf]
        %v7056 = vld [vmem:[%s795 + $0x24] sm:$0xf]
        %v7057 = vld [vmem:[%s795 + $0x28] sm:$0xf]
        %v7058 = vld [vmem:[%s795 + $0x2c] sm:$0xf]
        %v7059 = vld [vmem:[%s795 + $0x30] sm:$0xf]
        %v7060 = vld [vmem:[%s795 + $0x34] sm:$0xf]
        %v7061 = vld [vmem:[%s795 + $0x38] sm:$0xf]
        %v7062 = vld [vmem:[%s795 + $0x3c] sm:$0xf]
        %v7063 = vld [vmem:[%s795 + $0x40] sm:$0xf]
        %v7064 = vld [vmem:[%s795 + $0x44] sm:$0xf]
        %v7065 = vld [vmem:[%s795 + $0x48] sm:$0xf]
        %v7066 = vld [vmem:[%s795 + $0x4c] sm:$0xf]
        %v7067 = vld [vmem:[%s795 + $0x50] sm:$0xf]
        %v7068 = vld [vmem:[%s795 + $0x54] sm:$0xf]
        %v7069 = vld [vmem:[%s795 + $0x58] sm:$0xf]
        %v7070 = vld [vmem:[%s795 + $0x5c] sm:$0xf]
        %v7071 = vld [vmem:[%s795 + $0x60] sm:$0xf]
        %v7072 = vld [vmem:[%s795 + $0x64] sm:$0xf]
        %v7073 = vld [vmem:[%s795 + $0x68] sm:$0xf]
        %v7074 = vld [vmem:[%s795 + $0x6c] sm:$0xf]
        %v7075 = vld [vmem:[%s795 + $0x70] sm:$0xf]
        %v7076 = vld [vmem:[%s795 + $0x74] sm:$0xf]
        %v7077 = vld [vmem:[%s795 + $0x78] sm:$0xf]
        %v7078 = vld [vmem:[%s795 + $0x7c] sm:$0xf]
        %v7079 = vld [vmem:[%s798] sm:$0x1]
        %v7081 = vperm.slane %v7079, 0
        %v7115 = vunpack.c.l.b16 %v7047
        %v7116 = vunpack.c.l.b16 %v7048
        %v7117 = vunpack.c.l.b16 %v7049
        %v7118 = vunpack.c.l.b16 %v7050
        %v7119 = vunpack.c.l.b16 %v7051
        %v7120 = vunpack.c.l.b16 %v7052
        %v7121 = vunpack.c.l.b16 %v7053
        %v7122 = vunpack.c.l.b16 %v7054
        %v7123 = vunpack.c.l.b16 %v7055
        %v7124 = vunpack.c.l.b16 %v7056
        %v7125 = vunpack.c.l.b16 %v7057
        %v7126 = vunpack.c.l.b16 %v7058
        %v7127 = vunpack.c.l.b16 %v7059
        %v7128 = vunpack.c.l.b16 %v7060
        %v7129 = vunpack.c.l.b16 %v7061
        %v7130 = vunpack.c.l.b16 %v7062
        %v7131 = vunpack.c.l.b16 %v7063
        %v7132 = vunpack.c.l.b16 %v7064
        %v7133 = vunpack.c.l.b16 %v7065
        %v7134 = vunpack.c.l.b16 %v7066
        %v7135 = vunpack.c.l.b16 %v7067
        %v7136 = vunpack.c.l.b16 %v7068
        %v7137 = vunpack.c.l.b16 %v7069
        %v7138 = vunpack.c.l.b16 %v7070
        %v7139 = vunpack.c.l.b16 %v7071
        %v7140 = vunpack.c.l.b16 %v7072
        %v7141 = vunpack.c.l.b16 %v7073
        %v7142 = vunpack.c.l.b16 %v7074
        %v7143 = vunpack.c.l.b16 %v7075
        %v7144 = vunpack.c.l.b16 %v7076
        %v7145 = vunpack.c.l.b16 %v7077
        %v7146 = vunpack.c.l.b16 %v7078
        %v7147 = vpack.c.b16 %v7116, %v7115
        %v7148 = vpack.c.b16 %v7118, %v7117
        %v7149 = vpack.c.b16 %v7120, %v7119
        %v7150 = vpack.c.b16 %v7122, %v7121
        %v7151 = vpack.c.b16 %v7124, %v7123
        %v7152 = vpack.c.b16 %v7126, %v7125
        %v7153 = vpack.c.b16 %v7128, %v7127
        %v7154 = vpack.c.b16 %v7130, %v7129
        %v7155 = vpack.c.b16 %v7132, %v7131
        %v7156 = vpack.c.b16 %v7134, %v7133
        %v7157 = vpack.c.b16 %v7136, %v7135
        %v7158 = vpack.c.b16 %v7138, %v7137
        %v7159 = vpack.c.b16 %v7140, %v7139
        %v7160 = vpack.c.b16 %v7142, %v7141
        %v7161 = vpack.c.b16 %v7144, %v7143
        %v7162 = vpack.c.b16 %v7146, %v7145
        %7179 = vmatpush.bf16.msra.mxu0 %v7154
        %7180 = vmatpush.bf16.msra.mxu0 %v7153
        %7181 = vmatpush.bf16.msra.mxu0 %v7152
        %7182 = vmatpush.bf16.msra.mxu0 %v7151
        %7183 = vmatpush.bf16.msra.mxu0 %v7150
        %7184 = vmatpush.bf16.msra.mxu0 %v7149
        %7185 = vmatpush.bf16.msra.mxu0 %v7148
        %7186 = vmatpush.bf16.msra.mxu0 %v7147
        %7187 = vmatmul.bf16.gmra.mxu0 %v7031
        %v7188 = vpop.f32.mrf.mxu0
        %v7189 = vadd.f32 %v7081, %v7188
        %v7190 = vpop.f32.mrf.mxu0
        %v7191 = vadd.f32 %v7081, %v7190
        %7192 = vmatmul.bf16.gmra.mxu0 %v7033
        %v7193 = vpop.f32.mrf.mxu0
        %v7194 = vadd.f32 %v7081, %v7193
        %v7195 = vpop.f32.mrf.mxu0
        %v7196 = vadd.f32 %v7081, %v7195
        %7197 = vmatmul.bf16.gmra.mxu0 %v7035
        %v7198 = vpop.f32.mrf.mxu0
        %v7199 = vadd.f32 %v7081, %v7198
        %v7200 = vpop.f32.mrf.mxu0
        %v7201 = vadd.f32 %v7081, %v7200
        %7202 = vmatmul.bf16.gmra.mxu0 %v7037
        %v7203 = vpop.f32.mrf.mxu0
        %v7204 = vadd.f32 %v7081, %v7203
        %v7205 = vpop.f32.mrf.mxu0
        %v7206 = vadd.f32 %v7081, %v7205
        %7207 = vmatmul.bf16.gmra.mxu0 %v7039
        %v7208 = vpop.f32.mrf.mxu0
        %v7209 = vadd.f32 %v7081, %v7208
        %v7210 = vpop.f32.mrf.mxu0
        %v7211 = vadd.f32 %v7081, %v7210
        %7212 = vmatmul.bf16.gmra.mxu0 %v7041
        %v7213 = vpop.f32.mrf.mxu0
        %v7214 = vadd.f32 %v7081, %v7213
        %v7215 = vpop.f32.mrf.mxu0
        %v7216 = vadd.f32 %v7081, %v7215
        %7217 = vmatmul.bf16.gmra.mxu0 %v7043
        %v7218 = vpop.f32.mrf.mxu0
        %v7219 = vadd.f32 %v7081, %v7218
        %v7220 = vpop.f32.mrf.mxu0
        %v7221 = vadd.f32 %v7081, %v7220
        %7222 = vmatmul.bf16.gmra.mxu0 %v7045
        %v7223 = vpop.f32.mrf.mxu0
        %v7224 = vadd.f32 %v7081, %v7223
        %v7225 = vpop.f32.mrf.mxu0
        %v7226 = vadd.f32 %v7081, %v7225
        %7227 = vdwg.mxu0
        %7228 = vmatpush.bf16.msra.mxu0 %v7162
        %7229 = vmatpush.bf16.msra.mxu0 %v7161
        %7230 = vmatpush.bf16.msra.mxu0 %v7160
        %7231 = vmatpush.bf16.msra.mxu0 %v7159
        %7232 = vmatpush.bf16.msra.mxu0 %v7158
        %7233 = vmatpush.bf16.msra.mxu0 %v7157
        %7234 = vmatpush.bf16.msra.mxu0 %v7156
        %7235 = vmatpush.bf16.msra.mxu0 %v7155
        %7236 = vmatmul.bf16.gmra.mxu0 %v7032
        %v7237 = vpop.f32.mrf.mxu0
        %v7238 = vadd.f32 %v7189, %v7237
        %v7239 = vpop.f32.mrf.mxu0
        %v7240 = vadd.f32 %v7191, %v7239
        %7241 = vmatmul.bf16.gmra.mxu0 %v7034
        %v7242 = vpop.f32.mrf.mxu0
        %v7243 = vadd.f32 %v7194, %v7242
        %v7244 = vpop.f32.mrf.mxu0
        %v7245 = vadd.f32 %v7196, %v7244
        %7246 = vmatmul.bf16.gmra.mxu0 %v7036
        %v7247 = vpop.f32.mrf.mxu0
        %v7248 = vadd.f32 %v7199, %v7247
        %v7249 = vpop.f32.mrf.mxu0
        %v7250 = vadd.f32 %v7201, %v7249
        %7251 = vmatmul.bf16.gmra.mxu0 %v7038
        %v7252 = vpop.f32.mrf.mxu0
        %v7253 = vadd.f32 %v7204, %v7252
        %v7254 = vpop.f32.mrf.mxu0
        %v7255 = vadd.f32 %v7206, %v7254
        %7256 = vmatmul.bf16.gmra.mxu0 %v7040
        %v7257 = vpop.f32.mrf.mxu0
        %v7258 = vadd.f32 %v7209, %v7257
        %v7259 = vpop.f32.mrf.mxu0
        %v7260 = vadd.f32 %v7211, %v7259
        %7261 = vmatmul.bf16.gmra.mxu0 %v7042
        %v7262 = vpop.f32.mrf.mxu0
        %v7263 = vadd.f32 %v7214, %v7262
        %v7264 = vpop.f32.mrf.mxu0
        %v7265 = vadd.f32 %v7216, %v7264
        %7266 = vmatmul.bf16.gmra.mxu0 %v7044
        %v7267 = vpop.f32.mrf.mxu0
        %v7268 = vadd.f32 %v7219, %v7267
        %v7269 = vpop.f32.mrf.mxu0
        %v7270 = vadd.f32 %v7221, %v7269
        %7271 = vmatmul.bf16.gmra.mxu0 %v7046
        %v7272 = vpop.f32.mrf.mxu0
        %v7273 = vadd.f32 %v7224, %v7272
        %v7274 = vpop.f32.mrf.mxu0
        %v7275 = vadd.f32 %v7226, %v7274
        %7276 = vdwg.mxu0
        %v7277 = vadd.f32 %v6519, %v7238
        %v7278 = vadd.f32 %v6520, %v7240
        %v7279 = vadd.f32 %v6521, %v7243
        %v7280 = vadd.f32 %v6522, %v7245
        %v7281 = vadd.f32 %v6523, %v7248
        %v7282 = vadd.f32 %v6524, %v7250
        %v7283 = vadd.f32 %v6525, %v7253
        %v7284 = vadd.f32 %v6526, %v7255
        %v7285 = vadd.f32 %v6527, %v7258
        %v7286 = vadd.f32 %v6528, %v7260
        %v7287 = vadd.f32 %v6529, %v7263
        %v7288 = vadd.f32 %v6530, %v7265
        %v7289 = vadd.f32 %v6531, %v7268
        %v7290 = vadd.f32 %v6532, %v7270
        %v7291 = vadd.f32 %v6533, %v7273
        %v7292 = vadd.f32 %v6534, %v7275
        %v7293 = vld [vmem:[%s801] sm:$0x1]
        %v7294 = vld [vmem:[%s804] sm:$0x1]
        %7295 = vadd.xlane.f32.xlu0 %v7277
        %v7296 = vpop.xlane.xlu0 %7295
        %7297 = vadd.xlane.f32.xlu0 %v7278
        %v7298 = vpop.xlane.xlu0 %7297
        %7299 = vadd.xlane.f32.xlu0 %v7279
        %v7300 = vpop.xlane.xlu0 %7299
        %7301 = vadd.xlane.f32.xlu0 %v7280
        %v7302 = vpop.xlane.xlu0 %7301
        %7303 = vadd.xlane.f32.xlu0 %v7281
        %v7304 = vpop.xlane.xlu0 %7303
        %7305 = vadd.xlane.f32.xlu0 %v7282
        %v7306 = vpop.xlane.xlu0 %7305
        %7307 = vadd.xlane.f32.xlu0 %v7283
        %v7308 = vpop.xlane.xlu0 %7307
        %7309 = vadd.xlane.f32.xlu0 %v7284
        %v7310 = vpop.xlane.xlu0 %7309
        %7311 = vadd.xlane.f32.xlu0 %v7285
        %v7312 = vpop.xlane.xlu0 %7311
        %7313 = vadd.xlane.f32.xlu0 %v7286
        %v7314 = vpop.xlane.xlu0 %7313
        %7315 = vadd.xlane.f32.xlu0 %v7287
        %v7316 = vpop.xlane.xlu0 %7315
        %7317 = vadd.xlane.f32.xlu0 %v7288
        %v7318 = vpop.xlane.xlu0 %7317
        %7319 = vadd.xlane.f32.xlu0 %v7289
        %v7320 = vpop.xlane.xlu0 %7319
        %7321 = vadd.xlane.f32.xlu0 %v7290
        %v7322 = vpop.xlane.xlu0 %7321
        %7323 = vadd.xlane.f32.xlu0 %v7291
        %v7324 = vpop.xlane.xlu0 %7323
        %7325 = vadd.xlane.f32.xlu0 %v7292
        %v7326 = vpop.xlane.xlu0 %7325
        %v7327 = vmul.f32 %v7296, %v6208
        %v7328 = vmul.f32 %v7298, %v6208
        %v7329 = vmul.f32 %v7300, %v6208
        %v7330 = vmul.f32 %v7302, %v6208
        %v7331 = vmul.f32 %v7304, %v6208
        %v7332 = vmul.f32 %v7306, %v6208
        %v7333 = vmul.f32 %v7308, %v6208
        %v7334 = vmul.f32 %v7310, %v6208
        %v7335 = vmul.f32 %v7312, %v6208
        %v7336 = vmul.f32 %v7314, %v6208
        %v7337 = vmul.f32 %v7316, %v6208
        %v7338 = vmul.f32 %v7318, %v6208
        %v7339 = vmul.f32 %v7320, %v6208
        %v7340 = vmul.f32 %v7322, %v6208
        %v7341 = vmul.f32 %v7324, %v6208
        %v7342 = vmul.f32 %v7326, %v6208
        %v7343 = vsub.f32 %v7277, %v7327
        %v7344 = vsub.f32 %v7278, %v7328
        %v7345 = vsub.f32 %v7279, %v7329
        %v7346 = vsub.f32 %v7280, %v7330
        %v7347 = vsub.f32 %v7281, %v7331
        %v7348 = vsub.f32 %v7282, %v7332
        %v7349 = vsub.f32 %v7283, %v7333
        %v7350 = vsub.f32 %v7284, %v7334
        %v7351 = vsub.f32 %v7285, %v7335
        %v7352 = vsub.f32 %v7286, %v7336
        %v7353 = vsub.f32 %v7287, %v7337
        %v7354 = vsub.f32 %v7288, %v7338
        %v7355 = vsub.f32 %v7289, %v7339
        %v7356 = vsub.f32 %v7290, %v7340
        %v7357 = vsub.f32 %v7291, %v7341
        %v7358 = vsub.f32 %v7292, %v7342
        %v7359 = vmul.f32 %v7343, %v7343
        %v7360 = vmul.f32 %v7344, %v7344
        %v7361 = vmul.f32 %v7345, %v7345
        %v7362 = vmul.f32 %v7346, %v7346
        %v7363 = vmul.f32 %v7347, %v7347
        %v7364 = vmul.f32 %v7348, %v7348
        %v7365 = vmul.f32 %v7349, %v7349
        %v7366 = vmul.f32 %v7350, %v7350
        %v7367 = vmul.f32 %v7351, %v7351
        %v7368 = vmul.f32 %v7352, %v7352
        %v7369 = vmul.f32 %v7353, %v7353
        %v7370 = vmul.f32 %v7354, %v7354
        %v7371 = vmul.f32 %v7355, %v7355
        %v7372 = vmul.f32 %v7356, %v7356
        %v7373 = vmul.f32 %v7357, %v7357
        %v7374 = vmul.f32 %v7358, %v7358
        %7375 = vadd.xlane.f32.xlu0 %v7359
        %v7376 = vpop.xlane.xlu0 %7375
        %7377 = vadd.xlane.f32.xlu0 %v7360
        %v7378 = vpop.xlane.xlu0 %7377
        %7379 = vadd.xlane.f32.xlu0 %v7361
        %v7380 = vpop.xlane.xlu0 %7379
        %7381 = vadd.xlane.f32.xlu0 %v7362
        %v7382 = vpop.xlane.xlu0 %7381
        %7383 = vadd.xlane.f32.xlu0 %v7363
        %v7384 = vpop.xlane.xlu0 %7383
        %7385 = vadd.xlane.f32.xlu0 %v7364
        %v7386 = vpop.xlane.xlu0 %7385
        %7387 = vadd.xlane.f32.xlu0 %v7365
        %v7388 = vpop.xlane.xlu0 %7387
        %7389 = vadd.xlane.f32.xlu0 %v7366
        %v7390 = vpop.xlane.xlu0 %7389
        %7391 = vadd.xlane.f32.xlu0 %v7367
        %v7392 = vpop.xlane.xlu0 %7391
        %7393 = vadd.xlane.f32.xlu0 %v7368
        %v7394 = vpop.xlane.xlu0 %7393
        %7395 = vadd.xlane.f32.xlu0 %v7369
        %v7396 = vpop.xlane.xlu0 %7395
        %7397 = vadd.xlane.f32.xlu0 %v7370
        %v7398 = vpop.xlane.xlu0 %7397
        %7399 = vadd.xlane.f32.xlu0 %v7371
        %v7400 = vpop.xlane.xlu0 %7399
        %7401 = vadd.xlane.f32.xlu0 %v7372
        %v7402 = vpop.xlane.xlu0 %7401
        %7403 = vadd.xlane.f32.xlu0 %v7373
        %v7404 = vpop.xlane.xlu0 %7403
        %7405 = vadd.xlane.f32.xlu0 %v7374
        %v7406 = vpop.xlane.xlu0 %7405
        %v7407 = vmul.f32 %v7376, %v6208
        %v7408 = vmul.f32 %v7378, %v6208
        %v7409 = vmul.f32 %v7380, %v6208
        %v7410 = vmul.f32 %v7382, %v6208
        %v7411 = vmul.f32 %v7384, %v6208
        %v7412 = vmul.f32 %v7386, %v6208
        %v7413 = vmul.f32 %v7388, %v6208
        %v7414 = vmul.f32 %v7390, %v6208
        %v7415 = vmul.f32 %v7392, %v6208
        %v7416 = vmul.f32 %v7394, %v6208
        %v7417 = vmul.f32 %v7396, %v6208
        %v7418 = vmul.f32 %v7398, %v6208
        %v7419 = vmul.f32 %v7400, %v6208
        %v7420 = vmul.f32 %v7402, %v6208
        %v7421 = vmul.f32 %v7404, %v6208
        %v7422 = vmul.f32 %v7406, %v6208
        %v7423 = vadd.f32 %v7407, 1e-12
        %v7424 = vadd.f32 %v7408, 1e-12
        %v7425 = vadd.f32 %v7409, 1e-12
        %v7426 = vadd.f32 %v7410, 1e-12
        %v7427 = vadd.f32 %v7411, 1e-12
        %v7428 = vadd.f32 %v7412, 1e-12
        %v7429 = vadd.f32 %v7413, 1e-12
        %v7430 = vadd.f32 %v7414, 1e-12
        %v7431 = vadd.f32 %v7415, 1e-12
        %v7432 = vadd.f32 %v7416, 1e-12
        %v7433 = vadd.f32 %v7417, 1e-12
        %v7434 = vadd.f32 %v7418, 1e-12
        %v7435 = vadd.f32 %v7419, 1e-12
        %v7436 = vadd.f32 %v7420, 1e-12
        %v7437 = vadd.f32 %v7421, 1e-12
        %v7438 = vadd.f32 %v7422, 1e-12
        %v7439 = vrsqrt.pop %v7423
        %v7440 = vmul.f32 %v7439, %v7423
        %v7441 = vmul.f32 %v7440, %v7439
        %v7442 = vmul.f32 0.5, %v7441
        %v7443 = vsub.f32 1.5, %v7442
        %v7444 = vmul.f32 %v7439, %v7443
        %vm7445 = vweird.f32 %v7423
        %vm7446 = vweird.f32 %v7439
        %vm7447 = vmor %vm7445, %vm7446
        %v7448 = vsel %vm7447, %v7439, %v7444
        %v7449 = vrsqrt.pop %v7424
        %v7450 = vmul.f32 %v7449, %v7424
        %v7451 = vmul.f32 %v7450, %v7449
        %v7452 = vmul.f32 0.5, %v7451
        %v7453 = vsub.f32 1.5, %v7452
        %v7454 = vmul.f32 %v7449, %v7453
        %vm7455 = vweird.f32 %v7424
        %vm7456 = vweird.f32 %v7449
        %vm7457 = vmor %vm7455, %vm7456
        %v7458 = vsel %vm7457, %v7449, %v7454
        %v7459 = vrsqrt.pop %v7425
        %v7460 = vmul.f32 %v7459, %v7425
        %v7461 = vmul.f32 %v7460, %v7459
        %v7462 = vmul.f32 0.5, %v7461
        %v7463 = vsub.f32 1.5, %v7462
        %v7464 = vmul.f32 %v7459, %v7463
        %vm7465 = vweird.f32 %v7425
        %vm7466 = vweird.f32 %v7459
        %vm7467 = vmor %vm7465, %vm7466
        %v7468 = vsel %vm7467, %v7459, %v7464
        %v7469 = vrsqrt.pop %v7426
        %v7470 = vmul.f32 %v7469, %v7426
        %v7471 = vmul.f32 %v7470, %v7469
        %v7472 = vmul.f32 0.5, %v7471
        %v7473 = vsub.f32 1.5, %v7472
        %v7474 = vmul.f32 %v7469, %v7473
        %vm7475 = vweird.f32 %v7426
        %vm7476 = vweird.f32 %v7469
        %vm7477 = vmor %vm7475, %vm7476
        %v7478 = vsel %vm7477, %v7469, %v7474
        %v7479 = vrsqrt.pop %v7427
        %v7480 = vmul.f32 %v7479, %v7427
        %v7481 = vmul.f32 %v7480, %v7479
        %v7482 = vmul.f32 0.5, %v7481
        %v7483 = vsub.f32 1.5, %v7482
        %v7484 = vmul.f32 %v7479, %v7483
        %vm7485 = vweird.f32 %v7427
        %vm7486 = vweird.f32 %v7479
        %vm7487 = vmor %vm7485, %vm7486
        %v7488 = vsel %vm7487, %v7479, %v7484
        %v7489 = vrsqrt.pop %v7428
        %v7490 = vmul.f32 %v7489, %v7428
        %v7491 = vmul.f32 %v7490, %v7489
        %v7492 = vmul.f32 0.5, %v7491
        %v7493 = vsub.f32 1.5, %v7492
        %v7494 = vmul.f32 %v7489, %v7493
        %vm7495 = vweird.f32 %v7428
        %vm7496 = vweird.f32 %v7489
        %vm7497 = vmor %vm7495, %vm7496
        %v7498 = vsel %vm7497, %v7489, %v7494
        %v7499 = vrsqrt.pop %v7429
        %v7500 = vmul.f32 %v7499, %v7429
        %v7501 = vmul.f32 %v7500, %v7499
        %v7502 = vmul.f32 0.5, %v7501
        %v7503 = vsub.f32 1.5, %v7502
        %v7504 = vmul.f32 %v7499, %v7503
        %vm7505 = vweird.f32 %v7429
        %vm7506 = vweird.f32 %v7499
        %vm7507 = vmor %vm7505, %vm7506
        %v7508 = vsel %vm7507, %v7499, %v7504
        %v7509 = vrsqrt.pop %v7430
        %v7510 = vmul.f32 %v7509, %v7430
        %v7511 = vmul.f32 %v7510, %v7509
        %v7512 = vmul.f32 0.5, %v7511
        %v7513 = vsub.f32 1.5, %v7512
        %v7514 = vmul.f32 %v7509, %v7513
        %vm7515 = vweird.f32 %v7430
        %vm7516 = vweird.f32 %v7509
        %vm7517 = vmor %vm7515, %vm7516
        %v7518 = vsel %vm7517, %v7509, %v7514
        %v7519 = vrsqrt.pop %v7431
        %v7520 = vmul.f32 %v7519, %v7431
        %v7521 = vmul.f32 %v7520, %v7519
        %v7522 = vmul.f32 0.5, %v7521
        %v7523 = vsub.f32 1.5, %v7522
        %v7524 = vmul.f32 %v7519, %v7523
        %vm7525 = vweird.f32 %v7431
        %vm7526 = vweird.f32 %v7519
        %vm7527 = vmor %vm7525, %vm7526
        %v7528 = vsel %vm7527, %v7519, %v7524
        %v7529 = vrsqrt.pop %v7432
        %v7530 = vmul.f32 %v7529, %v7432
        %v7531 = vmul.f32 %v7530, %v7529
        %v7532 = vmul.f32 0.5, %v7531
        %v7533 = vsub.f32 1.5, %v7532
        %v7534 = vmul.f32 %v7529, %v7533
        %vm7535 = vweird.f32 %v7432
        %vm7536 = vweird.f32 %v7529
        %vm7537 = vmor %vm7535, %vm7536
        %v7538 = vsel %vm7537, %v7529, %v7534
        %v7539 = vrsqrt.pop %v7433
        %v7540 = vmul.f32 %v7539, %v7433
        %v7541 = vmul.f32 %v7540, %v7539
        %v7542 = vmul.f32 0.5, %v7541
        %v7543 = vsub.f32 1.5, %v7542
        %v7544 = vmul.f32 %v7539, %v7543
        %vm7545 = vweird.f32 %v7433
        %vm7546 = vweird.f32 %v7539
        %vm7547 = vmor %vm7545, %vm7546
        %v7548 = vsel %vm7547, %v7539, %v7544
        %v7549 = vrsqrt.pop %v7434
        %v7550 = vmul.f32 %v7549, %v7434
        %v7551 = vmul.f32 %v7550, %v7549
        %v7552 = vmul.f32 0.5, %v7551
        %v7553 = vsub.f32 1.5, %v7552
        %v7554 = vmul.f32 %v7549, %v7553
        %vm7555 = vweird.f32 %v7434
        %vm7556 = vweird.f32 %v7549
        %vm7557 = vmor %vm7555, %vm7556
        %v7558 = vsel %vm7557, %v7549, %v7554
        %v7559 = vrsqrt.pop %v7435
        %v7560 = vmul.f32 %v7559, %v7435
        %v7561 = vmul.f32 %v7560, %v7559
        %v7562 = vmul.f32 0.5, %v7561
        %v7563 = vsub.f32 1.5, %v7562
        %v7564 = vmul.f32 %v7559, %v7563
        %vm7565 = vweird.f32 %v7435
        %vm7566 = vweird.f32 %v7559
        %vm7567 = vmor %vm7565, %vm7566
        %v7568 = vsel %vm7567, %v7559, %v7564
        %v7569 = vrsqrt.pop %v7436
        %v7570 = vmul.f32 %v7569, %v7436
        %v7571 = vmul.f32 %v7570, %v7569
        %v7572 = vmul.f32 0.5, %v7571
        %v7573 = vsub.f32 1.5, %v7572
        %v7574 = vmul.f32 %v7569, %v7573
        %vm7575 = vweird.f32 %v7436
        %vm7576 = vweird.f32 %v7569
        %vm7577 = vmor %vm7575, %vm7576
        %v7578 = vsel %vm7577, %v7569, %v7574
        %v7579 = vrsqrt.pop %v7437
        %v7580 = vmul.f32 %v7579, %v7437
        %v7581 = vmul.f32 %v7580, %v7579
        %v7582 = vmul.f32 0.5, %v7581
        %v7583 = vsub.f32 1.5, %v7582
        %v7584 = vmul.f32 %v7579, %v7583
        %vm7585 = vweird.f32 %v7437
        %vm7586 = vweird.f32 %v7579
        %vm7587 = vmor %vm7585, %vm7586
        %v7588 = vsel %vm7587, %v7579, %v7584
        %v7589 = vrsqrt.pop %v7438
        %v7590 = vmul.f32 %v7589, %v7438
        %v7591 = vmul.f32 %v7590, %v7589
        %v7592 = vmul.f32 0.5, %v7591
        %v7593 = vsub.f32 1.5, %v7592
        %v7594 = vmul.f32 %v7589, %v7593
        %vm7595 = vweird.f32 %v7438
        %vm7596 = vweird.f32 %v7589
        %vm7597 = vmor %vm7595, %vm7596
        %v7598 = vsel %vm7597, %v7589, %v7594
        %v7599 = vmul.f32 %v7343, %v7448
        %v7600 = vmul.f32 %v7344, %v7458
        %v7601 = vmul.f32 %v7345, %v7468
        %v7602 = vmul.f32 %v7346, %v7478
        %v7603 = vmul.f32 %v7347, %v7488
        %v7604 = vmul.f32 %v7348, %v7498
        %v7605 = vmul.f32 %v7349, %v7508
        %v7606 = vmul.f32 %v7350, %v7518
        %v7607 = vmul.f32 %v7351, %v7528
        %v7608 = vmul.f32 %v7352, %v7538
        %v7609 = vmul.f32 %v7353, %v7548
        %v7610 = vmul.f32 %v7354, %v7558
        %v7611 = vmul.f32 %v7355, %v7568
        %v7612 = vmul.f32 %v7356, %v7578
        %v7613 = vmul.f32 %v7357, %v7588
        %v7614 = vmul.f32 %v7358, %v7598
        %v7616 = vperm.slane %v7293, 0
        %v7618 = vmul.f32 %v7599, %v7616
        %v7619 = vmul.f32 %v7600, %v7616
        %v7620 = vmul.f32 %v7601, %v7616
        %v7621 = vmul.f32 %v7602, %v7616
        %v7622 = vmul.f32 %v7603, %v7616
        %v7623 = vmul.f32 %v7604, %v7616
        %v7624 = vmul.f32 %v7605, %v7616
        %v7625 = vmul.f32 %v7606, %v7616
        %v7626 = vmul.f32 %v7607, %v7616
        %v7627 = vmul.f32 %v7608, %v7616
        %v7628 = vmul.f32 %v7609, %v7616
        %v7629 = vmul.f32 %v7610, %v7616
        %v7630 = vmul.f32 %v7611, %v7616
        %v7631 = vmul.f32 %v7612, %v7616
        %v7632 = vmul.f32 %v7613, %v7616
        %v7633 = vmul.f32 %v7614, %v7616
        %v7635 = vperm.slane %v7294, 0
        %v7637 = vadd.f32 %v7618, %v7635
        %v7638 = vadd.f32 %v7619, %v7635
        %v7639 = vadd.f32 %v7620, %v7635
        %v7640 = vadd.f32 %v7621, %v7635
        %v7641 = vadd.f32 %v7622, %v7635
        %v7642 = vadd.f32 %v7623, %v7635
        %v7643 = vadd.f32 %v7624, %v7635
        %v7644 = vadd.f32 %v7625, %v7635
        %v7645 = vadd.f32 %v7626, %v7635
        %v7646 = vadd.f32 %v7627, %v7635
        %v7647 = vadd.f32 %v7628, %v7635
        %v7648 = vadd.f32 %v7629, %v7635
        %v7649 = vadd.f32 %v7630, %v7635
        %v7650 = vadd.f32 %v7631, %v7635
        %v7651 = vadd.f32 %v7632, %v7635
        %v7652 = vadd.f32 %v7633, %v7635
        %7653 = vst [vmem:[#allocation2] sm:$0xff] %v7637
        %7654 = vst [vmem:[#allocation2 + $0x8] sm:$0xff] %v7638
        %7655 = vst [vmem:[#allocation2 + $0x10] sm:$0xff] %v7639
        %7656 = vst [vmem:[#allocation2 + $0x18] sm:$0xff] %v7640
        %7657 = vst [vmem:[#allocation2 + $0x20] sm:$0xff] %v7641
        %7658 = vst [vmem:[#allocation2 + $0x28] sm:$0xff] %v7642
        %7659 = vst [vmem:[#allocation2 + $0x30] sm:$0xff] %v7643
        %7660 = vst [vmem:[#allocation2 + $0x38] sm:$0xff] %v7644
        %7661 = vst [vmem:[#allocation2 + $0x40] sm:$0xff] %v7645
        %7662 = vst [vmem:[#allocation2 + $0x48] sm:$0xff] %v7646
        %7663 = vst [vmem:[#allocation2 + $0x50] sm:$0xff] %v7647
        %7664 = vst [vmem:[#allocation2 + $0x58] sm:$0xff] %v7648
        %7665 = vst [vmem:[#allocation2 + $0x60] sm:$0xff] %v7649
        %7666 = vst [vmem:[#allocation2 + $0x68] sm:$0xff] %v7650
        %7667 = vst [vmem:[#allocation2 + $0x70] sm:$0xff] %v7651
        %7668 = vst [vmem:[#allocation2 + $0x78] sm:$0xff] %v7652
        %p7669 = scmp.eq.s32.totalorder %s37, 1
        // Predicated region
        $region97: #{bge_forward.1} parent=91 // pred_check
          %p7670 = pneg %p7669
        $region98: #{bge_forward.1} parent=91 // pred_check_branch
          %7672 = sbr.rel (%p7670) target = $region100
        $region99: #{bge_forward.1} parent=91 // pred_region
          %v7673 = vpack.c.bf16 %v7637, %v7637
          %v7674 = vpack.c.bf16 %v7638, %v7638
          %v7675 = vpack.c.bf16 %v7639, %v7639
          %v7676 = vpack.c.bf16 %v7640, %v7640
          %v7677 = vpack.c.bf16 %v7641, %v7641
          %v7678 = vpack.c.bf16 %v7642, %v7642
          %v7679 = vpack.c.bf16 %v7643, %v7643
          %v7680 = vpack.c.bf16 %v7644, %v7644
          %v7681 = vpack.c.bf16 %v7645, %v7645
          %v7682 = vpack.c.bf16 %v7646, %v7646
          %v7683 = vpack.c.bf16 %v7647, %v7647
          %v7684 = vpack.c.bf16 %v7648, %v7648
          %v7685 = vpack.c.bf16 %v7649, %v7649
          %v7686 = vpack.c.bf16 %v7650, %v7650
          %v7687 = vpack.c.bf16 %v7651, %v7651
          %v7688 = vpack.c.bf16 %v7652, %v7652
          %v7689 = vld [vmem:[%s16] sm:$0xf]
          %v7690 = vld [vmem:[%s16 + $0x4] sm:$0xf]
          %v7691 = vld [vmem:[%s16 + $0x8] sm:$0xf]
          %v7692 = vld [vmem:[%s16 + $0xc] sm:$0xf]
          %v7693 = vld [vmem:[%s16 + $0x10] sm:$0xf]
          %v7694 = vld [vmem:[%s16 + $0x14] sm:$0xf]
          %v7695 = vld [vmem:[%s16 + $0x18] sm:$0xf]
          %v7696 = vld [vmem:[%s16 + $0x1c] sm:$0xf]
          %v7697 = vld [vmem:[%s16 + $0x20] sm:$0xf]
          %v7698 = vld [vmem:[%s16 + $0x24] sm:$0xf]
          %v7699 = vld [vmem:[%s16 + $0x28] sm:$0xf]
          %v7700 = vld [vmem:[%s16 + $0x2c] sm:$0xf]
          %v7701 = vld [vmem:[%s16 + $0x30] sm:$0xf]
          %v7702 = vld [vmem:[%s16 + $0x34] sm:$0xf]
          %v7703 = vld [vmem:[%s16 + $0x38] sm:$0xf]
          %v7704 = vld [vmem:[%s16 + $0x3c] sm:$0xf]
          %v7705 = vld [vmem:[%s17] sm:$0x1]
          %v7707 = vperm.slane %v7705, 0
          %v7725 = vunpack.c.l.b16 %v7673
          %v7726 = vunpack.c.l.b16 %v7674
          %v7727 = vunpack.c.l.b16 %v7675
          %v7728 = vunpack.c.l.b16 %v7676
          %v7729 = vunpack.c.l.b16 %v7677
          %v7730 = vunpack.c.l.b16 %v7678
          %v7731 = vunpack.c.l.b16 %v7679
          %v7732 = vunpack.c.l.b16 %v7680
          %v7733 = vunpack.c.l.b16 %v7681
          %v7734 = vunpack.c.l.b16 %v7682
          %v7735 = vunpack.c.l.b16 %v7683
          %v7736 = vunpack.c.l.b16 %v7684
          %v7737 = vunpack.c.l.b16 %v7685
          %v7738 = vunpack.c.l.b16 %v7686
          %v7739 = vunpack.c.l.b16 %v7687
          %v7740 = vunpack.c.l.b16 %v7688
          %v7741 = vrot.slane %v7726, 7
          %vm7742 = vcmask 1041409
          %v7743 = vsel %vm7742, %v7741, %v7725
          %v7744 = vrot.slane %v7727, 6
          %vm7745 = vcmask 1042434
          %v7746 = vsel %vm7745, %v7744, %v7743
          %v7747 = vrot.slane %v7728, 5
          %vm7748 = vcmask 1043459
          %v7749 = vsel %vm7748, %v7747, %v7746
          %v7750 = vrot.slane %v7729, 4
          %vm7751 = vcmask 1044484
          %v7752 = vsel %vm7751, %v7750, %v7749
          %v7753 = vrot.slane %v7730, 3
          %vm7754 = vcmask 1045509
          %v7755 = vsel %vm7754, %v7753, %v7752
          %v7756 = vrot.slane %v7731, 2
          %vm7757 = vcmask 1046534
          %v7758 = vsel %vm7757, %v7756, %v7755
          %v7759 = vrot.slane %v7732, 1
          %vm7760 = vcmask 1047559
          %v7761 = vsel %vm7760, %v7759, %v7758
          %v7762 = vrot.slane %v7734, 7
          %v7763 = vsel %vm7742, %v7762, %v7733
          %v7764 = vrot.slane %v7735, 6
          %v7765 = vsel %vm7745, %v7764, %v7763
          %v7766 = vrot.slane %v7736, 5
          %v7767 = vsel %vm7748, %v7766, %v7765
          %v7768 = vrot.slane %v7737, 4
          %v7769 = vsel %vm7751, %v7768, %v7767
          %v7770 = vrot.slane %v7738, 3
          %v7771 = vsel %vm7754, %v7770, %v7769
          %v7772 = vrot.slane %v7739, 2
          %v7773 = vsel %vm7757, %v7772, %v7771
          %v7774 = vrot.slane %v7740, 1
          %v7775 = vsel %vm7760, %v7774, %v7773
          %v7776 = vpack.c.b16 %v7775, %v7761
          %v7794 = vunpack.c.l.b16 %v7689
          %v7795 = vunpack.c.l.b16 %v7690
          %v7796 = vunpack.c.l.b16 %v7691
          %v7797 = vunpack.c.l.b16 %v7692
          %v7798 = vunpack.c.l.b16 %v7693
          %v7799 = vunpack.c.l.b16 %v7694
          %v7800 = vunpack.c.l.b16 %v7695
          %v7801 = vunpack.c.l.b16 %v7696
          %v7802 = vunpack.c.l.b16 %v7697
          %v7803 = vunpack.c.l.b16 %v7698
          %v7804 = vunpack.c.l.b16 %v7699
          %v7805 = vunpack.c.l.b16 %v7700
          %v7806 = vunpack.c.l.b16 %v7701
          %v7807 = vunpack.c.l.b16 %v7702
          %v7808 = vunpack.c.l.b16 %v7703
          %v7809 = vunpack.c.l.b16 %v7704
          %v7810 = vpack.c.b16 %v7795, %v7794
          %v7811 = vpack.c.b16 %v7797, %v7796
          %v7812 = vpack.c.b16 %v7799, %v7798
          %v7813 = vpack.c.b16 %v7801, %v7800
          %v7814 = vpack.c.b16 %v7803, %v7802
          %v7815 = vpack.c.b16 %v7805, %v7804
          %v7816 = vpack.c.b16 %v7807, %v7806
          %v7817 = vpack.c.b16 %v7809, %v7808
          %7826 = vmatpush.bf16.msra.mxu0 %v7817
          %7827 = vmatpush.bf16.msra.mxu0 %v7816
          %7828 = vmatpush.bf16.msra.mxu0 %v7815
          %7829 = vmatpush.bf16.msra.mxu0 %v7814
          %7830 = vmatpush.bf16.msra.mxu0 %v7813
          %7831 = vmatpush.bf16.msra.mxu0 %v7812
          %7832 = vmatpush.bf16.msra.mxu0 %v7811
          %7833 = vmatpush.bf16.msra.mxu0 %v7810
          %7834 = vmatmul.bf16.gmra.mxu0 %v7776
          %v7835 = vpop.f32.mrf.mxu0
          %v7836 = vadd.f32 %v7707, %v7835
          %v7837 = vpop.f32.mrf.mxu0
          %v7838 = vadd.f32 %v7707, %v7837
          %7839 = vdwg.mxu0
          %v7840 = vtanh.pop %v7836
          %v7841 = vtanh.pop %v7838
          %7842 = vst [vmem:[%s747] sm:$0xff] %v7840
          %7843 = vst [vmem:[%s747 + $0x8] sm:$0xff] %v7841
        $region100: #{bge_forward.1} parent=91 // pred_fallthru
          _
        %s7844 = sand.u32 %s500, 1
        %s7845 = scalar_lea.sflag [#allocation4], %s7844
        %s7846 = sand.u32 %s500, 1
        %s7847 = smul.addr %s7846, 16
        %s7848 = scalar_lea.vmem [#allocation3], %s7847
        // Predicated region
        $region101: #{bge_forward.1} parent=91 // pred_check
          %p7849 = pneg %p510
        $region102: #{bge_forward.1} parent=91 // pred_check_branch
          %7851 = sbr.rel (%p7849) target = $region104
        $region103: #{bge_forward.1} parent=91 // pred_region
          %s7852 = smul.u32 2, %s36
          %7854 = vsyncadd %s7845, 0
          %s7855 = smul.addr %s7852, 8
          %s7856 = scalar_lea.hbm %s18, %s7855
          %s7857 = sshll.u32 %s7848, 4
          %s7858 = int_to_ptr.vmem [resolvable:$true] %s7857
          %s7859 = sshll.u32 %s7856, 4
          %s7860 = int_to_ptr.hbm [resolvable:$true] %s7859
          %7865 = dma.vmem_to_hbm [thread:$0]  %s7858, 256, %s7860, %s7845, 128, 128, 8
        $region104: #{bge_forward.1} parent=91 // pred_fallthru
          _
      $region92: #{bge_forward.1} parent=5 // pred_fallthru
        _
      %p7866 = scmp.le.s32.totalorder 2, %s27
      // Predicated region
      $region105: #{bge_forward.1} parent=5 // pred_check
        %p7867 = pneg %p7866
      $region106: #{bge_forward.1} parent=5 // pred_check_branch
        %7869 = sbr.rel (%p7867) target = $region108
      $region107: #{bge_forward.1} parent=5 // pred_region
        %s7870 = ssub.s32 %s27, 2
        // Predicated region
        $region109: #{bge_forward.1} parent=107 // pred_check
          %p7871 = pneg %p516
        $region110: #{bge_forward.1} parent=107 // pred_check_branch
          %7873 = sbr.rel (%p7871) target = $region112
        $region111: #{bge_forward.1} parent=107 // pred_region
          %s7874 = sand.u32 %s501, 1
          %s7875 = scalar_lea.sflag [#allocation4], %s7874
          %s7876 = sand.u32 %s501, 1
          %s7877 = smul.addr %s7876, 16
          %s7878 = scalar_lea.vmem [#allocation3], %s7877
          %7880 = dma.done %s7875, 256
        $region112: #{bge_forward.1} parent=107 // pred_fallthru
          _
      $region108: #{bge_forward.1} parent=5 // pred_fallthru
        _
    $region6: #{bge_forward.1} parent=1 // loop_footer
      %s31 = sadd.s32 1, %s27
    $region7: #{bge_forward.1} parent=1 // loop_footer_branch
      %26 = sbr.rel target = $region3
    $region8: #{bge_forward.1} parent=1 // loop_exit
      _
    %7881 = vsyncpa [#allocation4], 1
    %s7882 = scalar_lea.sflag [#allocation4], 1
    %7883 = vsyncpa %s7882, 1

</llo_original>
